<compile_context>
chip_gen: v7x
topology: tpu7x:2x2x1
jax: 0.10.0
libtpu: 0.0.40
codegen_flags: <defaults>
</compile_context>

<pallas_src>
import math
from functools import partial

import jax
import jax.numpy as jnp
from jax.experimental import pallas as pl
from jax.experimental.pallas import tpu as pltpu

EPS_BN = 1e-5
EPS_LN = 1e-5
PRELU_ALPHA = 0.25   # nn.PReLU default init (all PReLU modules in the model)
NEG_INF = -1e30


# ------------------------------------------------------------------ in-kernel helpers
def _prelu(x, alpha=PRELU_ALPHA):
    return jnp.where(x > 0, x, alpha * x)


def _layernorm(x, gb):
    # gb rows: [gamma, beta]; x is (rows, C), normalize over the last dim.
    mu = jnp.mean(x, axis=-1, keepdims=True)
    var = jnp.mean((x - mu) ** 2, axis=-1, keepdims=True)
    return (x - mu) * jax.lax.rsqrt(var + EPS_LN) * gb[0:1, :] + gb[1:2, :]


def _bn_eval(x, p):
    # p rows: [gamma, beta, running_mean, running_var]; eval-mode BatchNorm1d.
    return (x - p[2:3, :]) * jax.lax.rsqrt(p[3:4, :] + EPS_BN) * p[0:1, :] + p[1:2, :]


# ------------------------------------------------------------------ the single fused kernel
def fused_kernel(xp_ref, xm_ref, mask_ref,
                 pw_ref, pb_ref, pbn_ref, pf1w_ref, pf1b_ref, pf2w_ref, pf2b_ref,
                 mw_ref, mb_ref, mbn_ref, mf1w_ref, mf1b_ref, mf2w_ref, mf2b_ref,
                 a1wq_ref, a1bq_ref, a1wkv_ref, a1bkv_ref, a1wo_ref, a1bo_ref,
                 a2wq_ref, a2bq_ref, a2wkv_ref, a2bkv_ref, a2wo_ref, a2bo_ref,
                 na_ref,
                 f1w1_ref, f1b1_ref, f1w2_ref, f1b2_ref, f1ln_ref,
                 f2w1_ref, f2b1_ref, f2w2_ref, f2b2_ref, f2ln_ref,
                 cw1_ref, cb1_ref, cbn1_ref, cw2_ref, cb2_ref, cbn2_ref, cw3_ref, cb3_ref,
                 out_ref, att1_ref, att2_ref,
                 hcat_ref, flat_ref, *, H):
    B, _, S = mask_ref.shape
    L = att1_ref.shape[1]
    C = pw_ref.shape[-1]
    D = C // H
    BL = B * L
    mask3 = mask_ref[...]                                   # (B, 1, S); 1.0 = padded key

    # ---- ConvBlock: im2col conv + BN(eval) + PReLU + SE, all on (B*L, C) token-flat rows
    def conv_se(xcol, w, b, bn, f1w, f1b, f2w, f2b):
        y = jnp.dot(xcol, w, preferred_element_type=jnp.float32) + b          # (BL, C)
        y = _prelu(_bn_eval(y, bn))
        y3 = y.reshape(B, L, C)
        s = jnp.mean(y3, axis=1)                                              # (B, C) global avg pool
        h = _prelu(jnp.dot(s, f1w, preferred_element_type=jnp.float32) + f1b)
        g = jax.nn.sigmoid(jnp.dot(h, f2w, preferred_element_type=jnp.float32) + f2b)
        return (y3 * g[:, None, :]).reshape(BL, C)                            # SE gate

    # ---- nn.MultiheadAttention (eval): fused KV projection, batch-batched score/PV einsums,
    #      per-head outputs staged into hcat_ref, one output projection, averaged weights.
    def mha(xq, xkv, wq, bq, wkv, bkv, wo, bo):
        q = jnp.dot(xq, wq, preferred_element_type=jnp.float32) + bq          # (BL, C)
        kv = jnp.dot(xkv, wkv, preferred_element_type=jnp.float32) + bkv      # (B*S, 2C)
        q3 = q.reshape(B, L, C)
        k3 = kv[:, :C].reshape(B, S, C)
        v3 = kv[:, C:].reshape(B, S, C)
        scale = 1.0 / math.sqrt(D)
        wsum = jnp.zeros((B, L, S), jnp.float32)
        for h in range(H):                                                    # static head loop
            qh = q3[:, :, h * D:(h + 1) * D] * scale
            kh = k3[:, :, h * D:(h + 1) * D]
            vh = v3[:, :, h * D:(h + 1) * D]
            sc = jnp.einsum("bld,bsd->bls", qh, kh,
                            preferred_element_type=jnp.float32)               # (B, L, S)
            sc = jnp.where(mask3 > 0.5, NEG_INF, sc)
            sc = sc - jnp.max(sc, axis=-1, keepdims=True)
            p = jnp.exp(sc)
            patt = p * pl.reciprocal(jnp.sum(p, axis=-1, keepdims=True), approx=True)
            wsum = wsum + patt
            oh = jnp.einsum("bls,bsd->bld", patt, vh,
                            preferred_element_type=jnp.float32)               # (B, L, D)
            hcat_ref[:, h * D:(h + 1) * D] = oh.reshape(BL, D)
        out = jnp.dot(hcat_ref[...], wo, preferred_element_type=jnp.float32) + bo   # (BL, C)
        return out, wsum * (1.0 / H)

    # ---- shared norm_att + PositionWiseFFN (residual around the normed input + FFN LayerNorm)
    def ln_ffn(x, w1, b1, w2, b2, ffn_ln):
        xn = _layernorm(x, na_ref[...])
        h = _prelu(jnp.dot(xn, w1, preferred_element_type=jnp.float32) + b1)
        o = jnp.dot(h, w2, preferred_element_type=jnp.float32) + b2
        return _layernorm(xn + o, ffn_ln)

    # === forward ===
    pirna_v = conv_se(xp_ref[...], pw_ref[...], pb_ref[...], pbn_ref[...],
                      pf1w_ref[...], pf1b_ref[...], pf2w_ref[...], pf2b_ref[...])
    mrna_v = conv_se(xm_ref[...], mw_ref[...], mb_ref[...], mbn_ref[...],
                     mf1w_ref[...], mf1b_ref[...], mf2w_ref[...], mf2b_ref[...])

    att, w1avg = mha(pirna_v, mrna_v, a1wq_ref[...], a1bq_ref[...], a1wkv_ref[...],
                     a1bkv_ref[...], a1wo_ref[...], a1bo_ref[...])
    att2, w2avg = mha(att, att, a2wq_ref[...], a2bq_ref[...], a2wkv_ref[...],
                      a2bkv_ref[...], a2wo_ref[...], a2bo_ref[...])
    att1_ref[...] = w1avg.astype(att1_ref.dtype)
    att2_ref[...] = w2avg.astype(att2_ref.dtype)

    y1 = ln_ffn(att, f1w1_ref[...], f1b1_ref[...], f1w2_ref[...], f1b2_ref[...], f1ln_ref[...])
    y2 = ln_ffn(att2, f2w1_ref[...], f2b1_ref[...], f2w2_ref[...], f2b2_ref[...], f2ln_ref[...])

    # add + norm_att + flatten to a lane-dense (B, L*C) slab + FELayer classifier head
    z3 = _layernorm(y1 + y2, na_ref[...]).reshape(B, L, C)
    for l in range(L):
        flat_ref[:, l * C:(l + 1) * C] = z3[:, l, :]
    zf = flat_ref[...]                                                        # (B, L*C)
    h1 = _prelu(_bn_eval(jnp.dot(zf, cw1_ref[...], preferred_element_type=jnp.float32)
                         + cb1_ref[...], cbn1_ref[...]))
    h2 = _prelu(_bn_eval(jnp.dot(h1, cw2_ref[...], preferred_element_type=jnp.float32)
                         + cb2_ref[...], cbn2_ref[...]))
    out = jnp.dot(h2, cw3_ref[...], preferred_element_type=jnp.float32) + cb3_ref[...]
    out_ref[...] = out.astype(out_ref.dtype)


# ------------------------------------------------------------------ wrapper (cheap XLA prep only)
def _im2col(x, K):
    # x: (B, L, E) -> (B*L, K*E); column index = k*E + e (matches w layout).
    B, L, E = x.shape
    pad = K // 2
    xp = jnp.pad(x, ((0, 0), (pad, pad), (0, 0)))
    cols = jnp.concatenate([xp[:, k:k + L, :] for k in range(K)], axis=-1)    # (B, L, K*E)
    return cols.reshape(B * L, K * E)


def conv_hier_attention3(x, params, *, pirna_len, mrna_len, nhead, kernel_size=5):
    B, _, E = x.shape
    L = pirna_len
    C = params["norm_att"].shape[-1]

    pirna_x = x[:, :pirna_len, :]                            # (B, L, E)
    mrna_x = x[:, mrna_len:, :]                              # (B, L, E)
    # key_padding_mask: True where the one-hot row sums to 0 (padding); from pirna (as in reference)
    mask3 = (jnp.sum(pirna_x, axis=2) == 0).astype(jnp.float32)[:, None, :]   # (B, 1, L)

    xcol_p = _im2col(pirna_x, kernel_size)                   # (B*L, K*E)
    xcol_m = _im2col(mrna_x, kernel_size)

    pc, mc = params["pirna_conv"], params["mrna_conv"]
    a1, a2 = params["mha1"], params["mha2"]
    f1, f2 = params["ffn1"], params["ffn2"]
    cls = params["cls"]

    out, att_score, att2_score = pl.pallas_call(
        partial(fused_kernel, H=nhead),
        out_shape=(jax.ShapeDtypeStruct((B, 2), jnp.float32),
                   jax.ShapeDtypeStruct((B, L, L), jnp.float32),
                   jax.ShapeDtypeStruct((B, L, L), jnp.float32)),
        scratch_shapes=[pltpu.VMEM((B * L, C), jnp.float32),      # per-head MHA output concat
                        pltpu.VMEM((B, L * C), jnp.float32)],     # lane-dense classifier input
    )(xcol_p, xcol_m, mask3,
      pc["w"], pc["b"], pc["bn"], pc["fc1w"], pc["fc1b"], pc["fc2w"], pc["fc2b"],
      mc["w"], mc["b"], mc["bn"], mc["fc1w"], mc["fc1b"], mc["fc2w"], mc["fc2b"],
      a1["wq"], a1["bq"], a1["wkv"], a1["bkv"], a1["wo"], a1["bo"],
      a2["wq"], a2["bq"], a2["wkv"], a2["bkv"], a2["wo"], a2["bo"],
      params["norm_att"],
      f1["w1"], f1["b1"], f1["w2"], f1["b2"], f1["ln"],
      f2["w1"], f2["b1"], f2["w2"], f2["b2"], f2["ln"],
      cls["w1"], cls["b1"], cls["bn1"], cls["w2"], cls["b2"], cls["bn2"], cls["w3"], cls["b3"])
    return out, att_score, att2_score


# ------------------------------------------------------------------ deterministic params
def init_params(key, *, E, C, L, K=5, r=4, nhead=4):
    keys = iter(jax.random.split(key, 64))

    def nrm(shape, scale):
        return scale * jax.random.normal(next(keys), shape, dtype=jnp.float32)

    def dense(din, dout):
        return nrm((din, dout), 1.0 / math.sqrt(din))

    def bn(c):  # rows: gamma, beta, running_mean, running_var
        return jnp.concatenate([
            1.0 + 0.1 * jax.random.normal(next(keys), (1, c), dtype=jnp.float32),
            0.1 * jax.random.normal(next(keys), (1, c), dtype=jnp.float32),
            0.1 * jax.random.normal(next(keys), (1, c), dtype=jnp.float32),
            jnp.ones((1, c), jnp.float32),
        ], axis=0)

    def ln(c):  # rows: gamma, beta
        return jnp.concatenate([jnp.ones((1, c), jnp.float32),
                                jnp.zeros((1, c), jnp.float32)], axis=0)

    def conv_block_params():
        return dict(
            w=nrm((K * E, C), 1.0 / math.sqrt(E * K)),        # im2col layout: row index k*E+e
            b=jnp.zeros((1, C), jnp.float32),
            bn=bn(C),
            fc1w=dense(C, C // r), fc1b=jnp.zeros((1, C // r), jnp.float32),
            fc2w=dense(C // r, C), fc2b=jnp.zeros((1, C), jnp.float32),
        )

    def mha_params():
        return dict(
            wq=dense(C, C),
            wkv=jnp.concatenate([dense(C, C), dense(C, C)], axis=-1),   # [Wk | Wv]
            wo=dense(C, C),
            bq=jnp.zeros((1, C), jnp.float32),
            bkv=jnp.zeros((1, 2 * C), jnp.float32),
            bo=jnp.zeros((1, C), jnp.float32),
        )

    def ffn_params():
        return dict(
            w1=dense(C, 4 * C), b1=jnp.zeros((1, 4 * C), jnp.float32),
            w2=dense(4 * C, C), b2=jnp.zeros((1, C), jnp.float32),
            ln=ln(C),
        )

    F = L * C
    cls = dict(
        w1=nrm((F, F // 4), 1.0 / math.sqrt(F)),              # Linear(F -> F//4), row index l*C+c
        b1=jnp.zeros((1, F // 4), jnp.float32), bn1=bn(F // 4),
        w2=dense(F // 4, F // 16), b2=jnp.zeros((1, F // 16), jnp.float32), bn2=bn(F // 16),
        w3=dense(F // 16, 2), b3=jnp.zeros((1, 2), jnp.float32),
    )
    return dict(
        pirna_conv=conv_block_params(),
        mrna_conv=conv_block_params(),
        mha1=mha_params(), mha2=mha_params(),
        norm_att=ln(C),
        ffn1=ffn_params(), ffn2=ffn_params(),
        cls=cls,
    )


if __name__ == "__main__":
    # small shapes consistent with the module: batch=2, emb_dim=4, seq(pirna=mrna)=8, cnn_dim=32
    B, L, E, C, H = 2, 8, 4, 32, 4
    key = jax.random.PRNGKey(0)
    kx, kp = jax.random.split(key)
    x = jax.random.normal(kx, (B, 2 * L, E), dtype=jnp.float32)   # (B, pirna_len + mrna_len, E)
    params = init_params(kp, E=E, C=C, L=L, K=5, r=4, nhead=H)

    fwd = jax.jit(partial(conv_hier_attention3, pirna_len=L, mrna_len=L, nhead=H, kernel_size=5))
    out, att_score, att2_score = fwd(x, params)
    jax.block_until_ready((out, att_score, att2_score))

    assert out.shape == (B, 2)
    assert att_score.shape == (B, L, L)
    assert att2_score.shape == (B, L, L)
    print("KERNEL_OK")
</pallas_src>

<mosaic_0001>
module attributes {stable_mosaic.version = 11 : i64} {
  func.func @fused_kernel(%arg0: memref<16x20xf32, #tpu.memory_space<vmem>>, %arg1: memref<16x20xf32, #tpu.memory_space<vmem>>, %arg2: memref<2x1x8xf32, #tpu.memory_space<vmem>>, %arg3: memref<20x32xf32, #tpu.memory_space<vmem>>, %arg4: memref<1x32xf32, #tpu.memory_space<vmem>>, %arg5: memref<4x32xf32, #tpu.memory_space<vmem>>, %arg6: memref<32x8xf32, #tpu.memory_space<vmem>>, %arg7: memref<1x8xf32, #tpu.memory_space<vmem>>, %arg8: memref<8x32xf32, #tpu.memory_space<vmem>>, %arg9: memref<1x32xf32, #tpu.memory_space<vmem>>, %arg10: memref<20x32xf32, #tpu.memory_space<vmem>>, %arg11: memref<1x32xf32, #tpu.memory_space<vmem>>, %arg12: memref<4x32xf32, #tpu.memory_space<vmem>>, %arg13: memref<32x8xf32, #tpu.memory_space<vmem>>, %arg14: memref<1x8xf32, #tpu.memory_space<vmem>>, %arg15: memref<8x32xf32, #tpu.memory_space<vmem>>, %arg16: memref<1x32xf32, #tpu.memory_space<vmem>>, %arg17: memref<32x32xf32, #tpu.memory_space<vmem>>, %arg18: memref<1x32xf32, #tpu.memory_space<vmem>>, %arg19: memref<32x64xf32, #tpu.memory_space<vmem>>, %arg20: memref<1x64xf32, #tpu.memory_space<vmem>>, %arg21: memref<32x32xf32, #tpu.memory_space<vmem>>, %arg22: memref<1x32xf32, #tpu.memory_space<vmem>>, %arg23: memref<32x32xf32, #tpu.memory_space<vmem>>, %arg24: memref<1x32xf32, #tpu.memory_space<vmem>>, %arg25: memref<32x64xf32, #tpu.memory_space<vmem>>, %arg26: memref<1x64xf32, #tpu.memory_space<vmem>>, %arg27: memref<32x32xf32, #tpu.memory_space<vmem>>, %arg28: memref<1x32xf32, #tpu.memory_space<vmem>>, %arg29: memref<2x32xf32, #tpu.memory_space<vmem>>, %arg30: memref<32x128xf32, #tpu.memory_space<vmem>>, %arg31: memref<1x128xf32, #tpu.memory_space<vmem>>, %arg32: memref<128x32xf32, #tpu.memory_space<vmem>>, %arg33: memref<1x32xf32, #tpu.memory_space<vmem>>, %arg34: memref<2x32xf32, #tpu.memory_space<vmem>>, %arg35: memref<32x128xf32, #tpu.memory_space<vmem>>, %arg36: memref<1x128xf32, #tpu.memory_space<vmem>>, %arg37: memref<128x32xf32, #tpu.memory_space<vmem>>, %arg38: memref<1x32xf32, #tpu.memory_space<vmem>>, %arg39: memref<2x32xf32, #tpu.memory_space<vmem>>, %arg40: memref<256x64xf32, #tpu.memory_space<vmem>>, %arg41: memref<1x64xf32, #tpu.memory_space<vmem>>, %arg42: memref<4x64xf32, #tpu.memory_space<vmem>>, %arg43: memref<64x16xf32, #tpu.memory_space<vmem>>, %arg44: memref<1x16xf32, #tpu.memory_space<vmem>>, %arg45: memref<4x16xf32, #tpu.memory_space<vmem>>, %arg46: memref<16x2xf32, #tpu.memory_space<vmem>>, %arg47: memref<1x2xf32, #tpu.memory_space<vmem>>, %arg48: memref<2x2xf32, #tpu.memory_space<vmem>>, %arg49: memref<2x8x8xf32, #tpu.memory_space<vmem>>, %arg50: memref<2x8x8xf32, #tpu.memory_space<vmem>>, %arg51: memref<16x32xf32, #tpu.memory_space<vmem>>, %arg52: memref<2x256xf32, #tpu.memory_space<vmem>>) attributes {dimension_semantics = [], scalar_prefetch = 0 : i64, scratch_operands = 2 : i64, tpu.core_type = #tpu.core_type<tc>} {
    %c0 = arith.constant 0 : index
    %c0_0 = arith.constant 0 : index
    %c0_1 = arith.constant 0 : index
    %0 = vector.load %arg2[%c0, %c0_0, %c0_1] : memref<2x1x8xf32, #tpu.memory_space<vmem>>, vector<2x1x8xf32>
    %c0_2 = arith.constant 0 : index
    %c0_3 = arith.constant 0 : index
    %1 = vector.load %arg0[%c0_2, %c0_3] : memref<16x20xf32, #tpu.memory_space<vmem>>, vector<16x20xf32>
    %c0_4 = arith.constant 0 : index
    %c0_5 = arith.constant 0 : index
    %2 = vector.load %arg3[%c0_4, %c0_5] : memref<20x32xf32, #tpu.memory_space<vmem>>, vector<20x32xf32>
    %c0_6 = arith.constant 0 : index
    %c0_7 = arith.constant 0 : index
    %3 = vector.load %arg4[%c0_6, %c0_7] : memref<1x32xf32, #tpu.memory_space<vmem>>, vector<1x32xf32>
    %c0_8 = arith.constant 0 : index
    %c0_9 = arith.constant 0 : index
    %4 = vector.load %arg5[%c0_8, %c0_9] : memref<4x32xf32, #tpu.memory_space<vmem>>, vector<4x32xf32>
    %c0_10 = arith.constant 0 : index
    %c0_11 = arith.constant 0 : index
    %5 = vector.load %arg6[%c0_10, %c0_11] : memref<32x8xf32, #tpu.memory_space<vmem>>, vector<32x8xf32>
    %c0_12 = arith.constant 0 : index
    %c0_13 = arith.constant 0 : index
    %6 = vector.load %arg7[%c0_12, %c0_13] : memref<1x8xf32, #tpu.memory_space<vmem>>, vector<1x8xf32>
    %c0_14 = arith.constant 0 : index
    %c0_15 = arith.constant 0 : index
    %7 = vector.load %arg8[%c0_14, %c0_15] : memref<8x32xf32, #tpu.memory_space<vmem>>, vector<8x32xf32>
    %c0_16 = arith.constant 0 : index
    %c0_17 = arith.constant 0 : index
    %8 = vector.load %arg9[%c0_16, %c0_17] : memref<1x32xf32, #tpu.memory_space<vmem>>, vector<1x32xf32>
    %cst = arith.constant dense<0.000000e+00> : vector<16x32xf32>
    %9 = tpu.matmul %1, %2, %cst {dimension_numbers = #tpu.dot_dimension_numbers<[1], [0], [0], [1], [0, 0, 1, 1], [], []>} : vector<16x20xf32>, vector<20x32xf32>, vector<16x32xf32> -> vector<16x32xf32>
    %10 = vector.broadcast %3 : vector<1x32xf32> to vector<16x32xf32>
    %11 = arith.addf %9, %10 : vector<16x32xf32>
    %12 = vector.extract_strided_slice %4 {offsets = [2, 0], sizes = [1, 32], strides = [1, 1]} : vector<4x32xf32> to vector<1x32xf32>
    %13 = vector.broadcast %12 : vector<1x32xf32> to vector<16x32xf32>
    %14 = arith.subf %11, %13 : vector<16x32xf32>
    %15 = vector.extract_strided_slice %4 {offsets = [3, 0], sizes = [1, 32], strides = [1, 1]} : vector<4x32xf32> to vector<1x32xf32>
    %cst_18 = arith.constant 9.99999974E-6 : f32
    %16 = vector.broadcast %cst_18 : f32 to vector<1x32xf32>
    %17 = arith.addf %15, %16 : vector<1x32xf32>
    %18 = math.rsqrt %17 : vector<1x32xf32>
    %19 = vector.broadcast %18 : vector<1x32xf32> to vector<16x32xf32>
    %20 = arith.mulf %14, %19 : vector<16x32xf32>
    %21 = vector.extract_strided_slice %4 {offsets = [0, 0], sizes = [1, 32], strides = [1, 1]} : vector<4x32xf32> to vector<1x32xf32>
    %22 = vector.broadcast %21 : vector<1x32xf32> to vector<16x32xf32>
    %23 = arith.mulf %20, %22 : vector<16x32xf32>
    %24 = vector.extract_strided_slice %4 {offsets = [1, 0], sizes = [1, 32], strides = [1, 1]} : vector<4x32xf32> to vector<1x32xf32>
    %25 = vector.broadcast %24 : vector<1x32xf32> to vector<16x32xf32>
    %26 = arith.addf %23, %25 : vector<16x32xf32>
    %cst_19 = arith.constant 0.000000e+00 : f32
    %27 = vector.broadcast %cst_19 : f32 to vector<16x32xf32>
    %28 = arith.cmpf ogt, %26, %27 : vector<16x32xf32>
    %cst_20 = arith.constant 2.500000e-01 : f32
    %29 = vector.broadcast %cst_20 : f32 to vector<16x32xf32>
    %30 = arith.mulf %29, %26 : vector<16x32xf32>
    %31 = arith.select %28, %26, %30 : vector<16x32xi1>, vector<16x32xf32>
    %32 = vector.shape_cast %31 : vector<16x32xf32> to vector<2x8x32xf32>
    %cst_21 = arith.constant dense<0.000000e+00> : vector<2x32xf32>
    %33 = vector.multi_reduction <add>, %32, %cst_21 [1] : vector<2x8x32xf32> to vector<2x32xf32>
    %cst_22 = arith.constant 8.000000e+00 : f32
    %34 = vector.broadcast %cst_22 : f32 to vector<2x32xf32>
    %35 = arith.divf %33, %34 : vector<2x32xf32>
    %cst_23 = arith.constant dense<0.000000e+00> : vector<2x8xf32>
    %36 = tpu.matmul %35, %5, %cst_23 {dimension_numbers = #tpu.dot_dimension_numbers<[1], [0], [0], [1], [0, 0, 1, 1], [], []>} : vector<2x32xf32>, vector<32x8xf32>, vector<2x8xf32> -> vector<2x8xf32>
    %37 = vector.broadcast %6 : vector<1x8xf32> to vector<2x8xf32>
    %38 = arith.addf %36, %37 : vector<2x8xf32>
    %cst_24 = arith.constant 0.000000e+00 : f32
    %39 = vector.broadcast %cst_24 : f32 to vector<2x8xf32>
    %40 = arith.cmpf ogt, %38, %39 : vector<2x8xf32>
    %cst_25 = arith.constant 2.500000e-01 : f32
    %41 = vector.broadcast %cst_25 : f32 to vector<2x8xf32>
    %42 = arith.mulf %41, %38 : vector<2x8xf32>
    %43 = arith.select %40, %38, %42 : vector<2x8xi1>, vector<2x8xf32>
    %cst_26 = arith.constant dense<0.000000e+00> : vector<2x32xf32>
    %44 = tpu.matmul %43, %7, %cst_26 {dimension_numbers = #tpu.dot_dimension_numbers<[1], [0], [0], [1], [0, 0, 1, 1], [], []>} : vector<2x8xf32>, vector<8x32xf32>, vector<2x32xf32> -> vector<2x32xf32>
    %45 = vector.broadcast %8 : vector<1x32xf32> to vector<2x32xf32>
    %46 = arith.addf %44, %45 : vector<2x32xf32>
    %47 = arith.negf %46 : vector<2x32xf32>
    %48 = math.exp %47 : vector<2x32xf32>
    %cst_27 = arith.constant 1.000000e+00 : f32
    %49 = vector.broadcast %cst_27 : f32 to vector<2x32xf32>
    %50 = arith.addf %49, %48 : vector<2x32xf32>
    %51 = arith.divf %49, %50 : vector<2x32xf32>
    %52 = vector.shape_cast %51 : vector<2x32xf32> to vector<2x1x32xf32>
    %53 = vector.broadcast %52 : vector<2x1x32xf32> to vector<2x8x32xf32>
    %54 = arith.mulf %32, %53 : vector<2x8x32xf32>
    %55 = vector.shape_cast %54 : vector<2x8x32xf32> to vector<16x32xf32>
    %c0_28 = arith.constant 0 : index
    %c0_29 = arith.constant 0 : index
    %56 = vector.load %arg1[%c0_28, %c0_29] : memref<16x20xf32, #tpu.memory_space<vmem>>, vector<16x20xf32>
    %c0_30 = arith.constant 0 : index
    %c0_31 = arith.constant 0 : index
    %57 = vector.load %arg10[%c0_30, %c0_31] : memref<20x32xf32, #tpu.memory_space<vmem>>, vector<20x32xf32>
    %c0_32 = arith.constant 0 : index
    %c0_33 = arith.constant 0 : index
    %58 = vector.load %arg11[%c0_32, %c0_33] : memref<1x32xf32, #tpu.memory_space<vmem>>, vector<1x32xf32>
    %c0_34 = arith.constant 0 : index
    %c0_35 = arith.constant 0 : index
    %59 = vector.load %arg12[%c0_34, %c0_35] : memref<4x32xf32, #tpu.memory_space<vmem>>, vector<4x32xf32>
    %c0_36 = arith.constant 0 : index
    %c0_37 = arith.constant 0 : index
    %60 = vector.load %arg13[%c0_36, %c0_37] : memref<32x8xf32, #tpu.memory_space<vmem>>, vector<32x8xf32>
    %c0_38 = arith.constant 0 : index
    %c0_39 = arith.constant 0 : index
    %61 = vector.load %arg14[%c0_38, %c0_39] : memref<1x8xf32, #tpu.memory_space<vmem>>, vector<1x8xf32>
    %c0_40 = arith.constant 0 : index
    %c0_41 = arith.constant 0 : index
    %62 = vector.load %arg15[%c0_40, %c0_41] : memref<8x32xf32, #tpu.memory_space<vmem>>, vector<8x32xf32>
    %c0_42 = arith.constant 0 : index
    %c0_43 = arith.constant 0 : index
    %63 = vector.load %arg16[%c0_42, %c0_43] : memref<1x32xf32, #tpu.memory_space<vmem>>, vector<1x32xf32>
    %cst_44 = arith.constant dense<0.000000e+00> : vector<16x32xf32>
    %64 = tpu.matmul %56, %57, %cst_44 {dimension_numbers = #tpu.dot_dimension_numbers<[1], [0], [0], [1], [0, 0, 1, 1], [], []>} : vector<16x20xf32>, vector<20x32xf32>, vector<16x32xf32> -> vector<16x32xf32>
    %65 = vector.broadcast %58 : vector<1x32xf32> to vector<16x32xf32>
    %66 = arith.addf %64, %65 : vector<16x32xf32>
    %67 = vector.extract_strided_slice %59 {offsets = [2, 0], sizes = [1, 32], strides = [1, 1]} : vector<4x32xf32> to vector<1x32xf32>
    %68 = vector.broadcast %67 : vector<1x32xf32> to vector<16x32xf32>
    %69 = arith.subf %66, %68 : vector<16x32xf32>
    %70 = vector.extract_strided_slice %59 {offsets = [3, 0], sizes = [1, 32], strides = [1, 1]} : vector<4x32xf32> to vector<1x32xf32>
    %cst_45 = arith.constant 9.99999974E-6 : f32
    %71 = vector.broadcast %cst_45 : f32 to vector<1x32xf32>
    %72 = arith.addf %70, %71 : vector<1x32xf32>
    %73 = math.rsqrt %72 : vector<1x32xf32>
    %74 = vector.broadcast %73 : vector<1x32xf32> to vector<16x32xf32>
    %75 = arith.mulf %69, %74 : vector<16x32xf32>
    %76 = vector.extract_strided_slice %59 {offsets = [0, 0], sizes = [1, 32], strides = [1, 1]} : vector<4x32xf32> to vector<1x32xf32>
    %77 = vector.broadcast %76 : vector<1x32xf32> to vector<16x32xf32>
    %78 = arith.mulf %75, %77 : vector<16x32xf32>
    %79 = vector.extract_strided_slice %59 {offsets = [1, 0], sizes = [1, 32], strides = [1, 1]} : vector<4x32xf32> to vector<1x32xf32>
    %80 = vector.broadcast %79 : vector<1x32xf32> to vector<16x32xf32>
    %81 = arith.addf %78, %80 : vector<16x32xf32>
    %cst_46 = arith.constant 0.000000e+00 : f32
    %82 = vector.broadcast %cst_46 : f32 to vector<16x32xf32>
    %83 = arith.cmpf ogt, %81, %82 : vector<16x32xf32>
    %cst_47 = arith.constant 2.500000e-01 : f32
    %84 = vector.broadcast %cst_47 : f32 to vector<16x32xf32>
    %85 = arith.mulf %84, %81 : vector<16x32xf32>
    %86 = arith.select %83, %81, %85 : vector<16x32xi1>, vector<16x32xf32>
    %87 = vector.shape_cast %86 : vector<16x32xf32> to vector<2x8x32xf32>
    %cst_48 = arith.constant dense<0.000000e+00> : vector<2x32xf32>
    %88 = vector.multi_reduction <add>, %87, %cst_48 [1] : vector<2x8x32xf32> to vector<2x32xf32>
    %cst_49 = arith.constant 8.000000e+00 : f32
    %89 = vector.broadcast %cst_49 : f32 to vector<2x32xf32>
    %90 = arith.divf %88, %89 : vector<2x32xf32>
    %cst_50 = arith.constant dense<0.000000e+00> : vector<2x8xf32>
    %91 = tpu.matmul %90, %60, %cst_50 {dimension_numbers = #tpu.dot_dimension_numbers<[1], [0], [0], [1], [0, 0, 1, 1], [], []>} : vector<2x32xf32>, vector<32x8xf32>, vector<2x8xf32> -> vector<2x8xf32>
    %92 = vector.broadcast %61 : vector<1x8xf32> to vector<2x8xf32>
    %93 = arith.addf %91, %92 : vector<2x8xf32>
    %cst_51 = arith.constant 0.000000e+00 : f32
    %94 = vector.broadcast %cst_51 : f32 to vector<2x8xf32>
    %95 = arith.cmpf ogt, %93, %94 : vector<2x8xf32>
    %cst_52 = arith.constant 2.500000e-01 : f32
    %96 = vector.broadcast %cst_52 : f32 to vector<2x8xf32>
    %97 = arith.mulf %96, %93 : vector<2x8xf32>
    %98 = arith.select %95, %93, %97 : vector<2x8xi1>, vector<2x8xf32>
    %cst_53 = arith.constant dense<0.000000e+00> : vector<2x32xf32>
    %99 = tpu.matmul %98, %62, %cst_53 {dimension_numbers = #tpu.dot_dimension_numbers<[1], [0], [0], [1], [0, 0, 1, 1], [], []>} : vector<2x8xf32>, vector<8x32xf32>, vector<2x32xf32> -> vector<2x32xf32>
    %100 = vector.broadcast %63 : vector<1x32xf32> to vector<2x32xf32>
    %101 = arith.addf %99, %100 : vector<2x32xf32>
    %102 = arith.negf %101 : vector<2x32xf32>
    %103 = math.exp %102 : vector<2x32xf32>
    %cst_54 = arith.constant 1.000000e+00 : f32
    %104 = vector.broadcast %cst_54 : f32 to vector<2x32xf32>
    %105 = arith.addf %104, %103 : vector<2x32xf32>
    %106 = arith.divf %104, %105 : vector<2x32xf32>
    %107 = vector.shape_cast %106 : vector<2x32xf32> to vector<2x1x32xf32>
    %108 = vector.broadcast %107 : vector<2x1x32xf32> to vector<2x8x32xf32>
    %109 = arith.mulf %87, %108 : vector<2x8x32xf32>
    %110 = vector.shape_cast %109 : vector<2x8x32xf32> to vector<16x32xf32>
    %c0_55 = arith.constant 0 : index
    %c0_56 = arith.constant 0 : index
    %111 = vector.load %arg17[%c0_55, %c0_56] : memref<32x32xf32, #tpu.memory_space<vmem>>, vector<32x32xf32>
    %c0_57 = arith.constant 0 : index
    %c0_58 = arith.constant 0 : index
    %112 = vector.load %arg18[%c0_57, %c0_58] : memref<1x32xf32, #tpu.memory_space<vmem>>, vector<1x32xf32>
    %c0_59 = arith.constant 0 : index
    %c0_60 = arith.constant 0 : index
    %113 = vector.load %arg19[%c0_59, %c0_60] : memref<32x64xf32, #tpu.memory_space<vmem>>, vector<32x64xf32>
    %c0_61 = arith.constant 0 : index
    %c0_62 = arith.constant 0 : index
    %114 = vector.load %arg20[%c0_61, %c0_62] : memref<1x64xf32, #tpu.memory_space<vmem>>, vector<1x64xf32>
    %c0_63 = arith.constant 0 : index
    %c0_64 = arith.constant 0 : index
    %115 = vector.load %arg21[%c0_63, %c0_64] : memref<32x32xf32, #tpu.memory_space<vmem>>, vector<32x32xf32>
    %c0_65 = arith.constant 0 : index
    %c0_66 = arith.constant 0 : index
    %116 = vector.load %arg22[%c0_65, %c0_66] : memref<1x32xf32, #tpu.memory_space<vmem>>, vector<1x32xf32>
    %cst_67 = arith.constant dense<0.000000e+00> : vector<16x32xf32>
    %117 = tpu.matmul %55, %111, %cst_67 {dimension_numbers = #tpu.dot_dimension_numbers<[1], [0], [0], [1], [0, 0, 1, 1], [], []>} : vector<16x32xf32>, vector<32x32xf32>, vector<16x32xf32> -> vector<16x32xf32>
    %118 = vector.broadcast %112 : vector<1x32xf32> to vector<16x32xf32>
    %119 = arith.addf %117, %118 : vector<16x32xf32>
    %cst_68 = arith.constant dense<0.000000e+00> : vector<16x64xf32>
    %120 = tpu.matmul %110, %113, %cst_68 {dimension_numbers = #tpu.dot_dimension_numbers<[1], [0], [0], [1], [0, 0, 1, 1], [], []>} : vector<16x32xf32>, vector<32x64xf32>, vector<16x64xf32> -> vector<16x64xf32>
    %121 = vector.broadcast %114 : vector<1x64xf32> to vector<16x64xf32>
    %122 = arith.addf %120, %121 : vector<16x64xf32>
    %123 = vector.shape_cast %119 : vector<16x32xf32> to vector<2x8x32xf32>
    %124 = vector.extract_strided_slice %122 {offsets = [0, 0], sizes = [16, 32], strides = [1, 1]} : vector<16x64xf32> to vector<16x32xf32>
    %125 = vector.shape_cast %124 : vector<16x32xf32> to vector<2x8x32xf32>
    %126 = vector.extract_strided_slice %122 {offsets = [0, 32], sizes = [16, 32], strides = [1, 1]} : vector<16x64xf32> to vector<16x32xf32>
    %127 = vector.shape_cast %126 : vector<16x32xf32> to vector<2x8x32xf32>
    %cst_69 = arith.constant 0.000000e+00 : f32
    %128 = vector.broadcast %cst_69 : f32 to vector<2x8x8xf32>
    %129 = vector.extract_strided_slice %123 {offsets = [0, 0, 0], sizes = [2, 8, 8], strides = [1, 1, 1]} : vector<2x8x32xf32> to vector<2x8x8xf32>
    %cst_70 = arith.constant 0.353553385 : f32
    %130 = vector.broadcast %cst_70 : f32 to vector<2x8x8xf32>
    %131 = arith.mulf %129, %130 : vector<2x8x8xf32>
    %132 = vector.extract_strided_slice %125 {offsets = [0, 0, 0], sizes = [2, 8, 8], strides = [1, 1, 1]} : vector<2x8x32xf32> to vector<2x8x8xf32>
    %133 = vector.extract_strided_slice %127 {offsets = [0, 0, 0], sizes = [2, 8, 8], strides = [1, 1, 1]} : vector<2x8x32xf32> to vector<2x8x8xf32>
    "tpu.trace_start"() <{level = 10 : i32, message = "bld,bsd->bls"}> : () -> ()
    %cst_71 = arith.constant dense<0.000000e+00> : vector<2x8x8xf32>
    %134 = tpu.matmul %131, %132, %cst_71 {dimension_numbers = #tpu.dot_dimension_numbers<[2], [2], [1], [1], [0, 0, 0, 1, 1, 1], [0], [0]>} : vector<2x8x8xf32>, vector<2x8x8xf32>, vector<2x8x8xf32> -> vector<2x8x8xf32>
    %cst_72 = arith.constant 5.000000e-01 : f32
    "tpu.trace_stop"() : () -> ()
    %135 = vector.broadcast %cst_72 : f32 to vector<2x1x8xf32>
    %136 = arith.cmpf ogt, %0, %135 : vector<2x1x8xf32>
    %cst_73 = arith.constant -1.000000e+30 : f32
    %137 = vector.shape_cast %136 : vector<2x1x8xi1> to vector<2x1x8xi1>
    %138 = vector.broadcast %137 : vector<2x1x8xi1> to vector<2x8x8xi1>
    %139 = vector.broadcast %cst_73 : f32 to vector<2x8x8xf32>
    %140 = arith.select %138, %139, %134 : vector<2x8x8xi1>, vector<2x8x8xf32>
    %cst_74 = arith.constant dense<0xFF800000> : vector<2x8xf32>
    %141 = vector.multi_reduction <maximumf>, %140, %cst_74 [2] : vector<2x8x8xf32> to vector<2x8xf32>
    %142 = vector.shape_cast %141 : vector<2x8xf32> to vector<2x8x1xf32>
    %143 = vector.broadcast %142 : vector<2x8x1xf32> to vector<2x8x8xf32>
    %144 = arith.subf %140, %143 : vector<2x8x8xf32>
    %145 = math.exp %144 : vector<2x8x8xf32>
    %cst_75 = arith.constant dense<0.000000e+00> : vector<2x8xf32>
    %146 = vector.multi_reduction <add>, %145, %cst_75 [2] : vector<2x8x8xf32> to vector<2x8xf32>
    %147 = vector.shape_cast %146 : vector<2x8xf32> to vector<2x8x1xf32>
    %148 = tpu.reciprocal %147 {approx = true} : vector<2x8x1xf32> -> vector<2x8x1xf32>
    %149 = vector.broadcast %148 : vector<2x8x1xf32> to vector<2x8x8xf32>
    %150 = arith.mulf %145, %149 : vector<2x8x8xf32>
    %151 = arith.addf %128, %150 : vector<2x8x8xf32>
    "tpu.trace_start"() <{level = 10 : i32, message = "bls,bsd->bld"}> : () -> ()
    %cst_76 = arith.constant dense<0.000000e+00> : vector<2x8x8xf32>
    %152 = tpu.matmul %150, %133, %cst_76 {dimension_numbers = #tpu.dot_dimension_numbers<[2], [1], [1], [2], [0, 0, 0, 1, 1, 2], [0], [0]>} : vector<2x8x8xf32>, vector<2x8x8xf32>, vector<2x8x8xf32> -> vector<2x8x8xf32>
    "tpu.trace_stop"() : () -> ()
    %153 = vector.shape_cast %152 : vector<2x8x8xf32> to vector<16x8xf32>
    %c0_77 = arith.constant 0 : index
    %c0_78 = arith.constant 0 : index
    %154 = vector.load %arg51[%c0_77, %c0_78] : memref<16x32xf32, #tpu.memory_space<vmem>>, vector<16x8xf32>
    tpu.vector_store %arg51[%c0_77, %c0_78], %153 {strides = array<i32>} : memref<16x32xf32, #tpu.memory_space<vmem>>, vector<16x8xf32>,
    %155 = vector.extract_strided_slice %123 {offsets = [0, 0, 8], sizes = [2, 8, 8], strides = [1, 1, 1]} : vector<2x8x32xf32> to vector<2x8x8xf32>
    %cst_79 = arith.constant 0.353553385 : f32
    %156 = vector.broadcast %cst_79 : f32 to vector<2x8x8xf32>
    %157 = arith.mulf %155, %156 : vector<2x8x8xf32>
    %158 = vector.extract_strided_slice %125 {offsets = [0, 0, 8], sizes = [2, 8, 8], strides = [1, 1, 1]} : vector<2x8x32xf32> to vector<2x8x8xf32>
    %159 = vector.extract_strided_slice %127 {offsets = [0, 0, 8], sizes = [2, 8, 8], strides = [1, 1, 1]} : vector<2x8x32xf32> to vector<2x8x8xf32>
    "tpu.trace_start"() <{level = 10 : i32, message = "bld,bsd->bls"}> : () -> ()
    %cst_80 = arith.constant dense<0.000000e+00> : vector<2x8x8xf32>
    %160 = tpu.matmul %157, %158, %cst_80 {dimension_numbers = #tpu.dot_dimension_numbers<[2], [2], [1], [1], [0, 0, 0, 1, 1, 1], [0], [0]>} : vector<2x8x8xf32>, vector<2x8x8xf32>, vector<2x8x8xf32> -> vector<2x8x8xf32>
    %cst_81 = arith.constant 5.000000e-01 : f32
    "tpu.trace_stop"() : () -> ()
    %161 = vector.broadcast %cst_81 : f32 to vector<2x1x8xf32>
    %162 = arith.cmpf ogt, %0, %161 : vector<2x1x8xf32>
    %cst_82 = arith.constant -1.000000e+30 : f32
    %163 = vector.shape_cast %162 : vector<2x1x8xi1> to vector<2x1x8xi1>
    %164 = vector.broadcast %163 : vector<2x1x8xi1> to vector<2x8x8xi1>
    %165 = vector.broadcast %cst_82 : f32 to vector<2x8x8xf32>
    %166 = arith.select %164, %165, %160 : vector<2x8x8xi1>, vector<2x8x8xf32>
    %cst_83 = arith.constant dense<0xFF800000> : vector<2x8xf32>
    %167 = vector.multi_reduction <maximumf>, %166, %cst_83 [2] : vector<2x8x8xf32> to vector<2x8xf32>
    %168 = vector.shape_cast %167 : vector<2x8xf32> to vector<2x8x1xf32>
    %169 = vector.broadcast %168 : vector<2x8x1xf32> to vector<2x8x8xf32>
    %170 = arith.subf %166, %169 : vector<2x8x8xf32>
    %171 = math.exp %170 : vector<2x8x8xf32>
    %cst_84 = arith.constant dense<0.000000e+00> : vector<2x8xf32>
    %172 = vector.multi_reduction <add>, %171, %cst_84 [2] : vector<2x8x8xf32> to vector<2x8xf32>
    %173 = vector.shape_cast %172 : vector<2x8xf32> to vector<2x8x1xf32>
    %174 = tpu.reciprocal %173 {approx = true} : vector<2x8x1xf32> -> vector<2x8x1xf32>
    %175 = vector.broadcast %174 : vector<2x8x1xf32> to vector<2x8x8xf32>
    %176 = arith.mulf %171, %175 : vector<2x8x8xf32>
    %177 = arith.addf %151, %176 : vector<2x8x8xf32>
    "tpu.trace_start"() <{level = 10 : i32, message = "bls,bsd->bld"}> : () -> ()
    %cst_85 = arith.constant dense<0.000000e+00> : vector<2x8x8xf32>
    %178 = tpu.matmul %176, %159, %cst_85 {dimension_numbers = #tpu.dot_dimension_numbers<[2], [1], [1], [2], [0, 0, 0, 1, 1, 2], [0], [0]>} : vector<2x8x8xf32>, vector<2x8x8xf32>, vector<2x8x8xf32> -> vector<2x8x8xf32>
    "tpu.trace_stop"() : () -> ()
    %179 = vector.shape_cast %178 : vector<2x8x8xf32> to vector<16x8xf32>
    %c0_86 = arith.constant 0 : index
    %c8 = arith.constant 8 : index
    %180 = vector.load %arg51[%c0_86, %c8] : memref<16x32xf32, #tpu.memory_space<vmem>>, vector<16x8xf32>
    tpu.vector_store %arg51[%c0_86, %c8], %179 {strides = array<i32>} : memref<16x32xf32, #tpu.memory_space<vmem>>, vector<16x8xf32>,
    %181 = vector.extract_strided_slice %123 {offsets = [0, 0, 16], sizes = [2, 8, 8], strides = [1, 1, 1]} : vector<2x8x32xf32> to vector<2x8x8xf32>
    %cst_87 = arith.constant 0.353553385 : f32
    %182 = vector.broadcast %cst_87 : f32 to vector<2x8x8xf32>
    %183 = arith.mulf %181, %182 : vector<2x8x8xf32>
    %184 = vector.extract_strided_slice %125 {offsets = [0, 0, 16], sizes = [2, 8, 8], strides = [1, 1, 1]} : vector<2x8x32xf32> to vector<2x8x8xf32>
    %185 = vector.extract_strided_slice %127 {offsets = [0, 0, 16], sizes = [2, 8, 8], strides = [1, 1, 1]} : vector<2x8x32xf32> to vector<2x8x8xf32>
    "tpu.trace_start"() <{level = 10 : i32, message = "bld,bsd->bls"}> : () -> ()
    %cst_88 = arith.constant dense<0.000000e+00> : vector<2x8x8xf32>
    %186 = tpu.matmul %183, %184, %cst_88 {dimension_numbers = #tpu.dot_dimension_numbers<[2], [2], [1], [1], [0, 0, 0, 1, 1, 1], [0], [0]>} : vector<2x8x8xf32>, vector<2x8x8xf32>, vector<2x8x8xf32> -> vector<2x8x8xf32>
    %cst_89 = arith.constant 5.000000e-01 : f32
    "tpu.trace_stop"() : () -> ()
    %187 = vector.broadcast %cst_89 : f32 to vector<2x1x8xf32>
    %188 = arith.cmpf ogt, %0, %187 : vector<2x1x8xf32>
    %cst_90 = arith.constant -1.000000e+30 : f32
    %189 = vector.shape_cast %188 : vector<2x1x8xi1> to vector<2x1x8xi1>
    %190 = vector.broadcast %189 : vector<2x1x8xi1> to vector<2x8x8xi1>
    %191 = vector.broadcast %cst_90 : f32 to vector<2x8x8xf32>
    %192 = arith.select %190, %191, %186 : vector<2x8x8xi1>, vector<2x8x8xf32>
    %cst_91 = arith.constant dense<0xFF800000> : vector<2x8xf32>
    %193 = vector.multi_reduction <maximumf>, %192, %cst_91 [2] : vector<2x8x8xf32> to vector<2x8xf32>
    %194 = vector.shape_cast %193 : vector<2x8xf32> to vector<2x8x1xf32>
    %195 = vector.broadcast %194 : vector<2x8x1xf32> to vector<2x8x8xf32>
    %196 = arith.subf %192, %195 : vector<2x8x8xf32>
    %197 = math.exp %196 : vector<2x8x8xf32>
    %cst_92 = arith.constant dense<0.000000e+00> : vector<2x8xf32>
    %198 = vector.multi_reduction <add>, %197, %cst_92 [2] : vector<2x8x8xf32> to vector<2x8xf32>
    %199 = vector.shape_cast %198 : vector<2x8xf32> to vector<2x8x1xf32>
    %200 = tpu.reciprocal %199 {approx = true} : vector<2x8x1xf32> -> vector<2x8x1xf32>
    %201 = vector.broadcast %200 : vector<2x8x1xf32> to vector<2x8x8xf32>
    %202 = arith.mulf %197, %201 : vector<2x8x8xf32>
    %203 = arith.addf %177, %202 : vector<2x8x8xf32>
    "tpu.trace_start"() <{level = 10 : i32, message = "bls,bsd->bld"}> : () -> ()
    %cst_93 = arith.constant dense<0.000000e+00> : vector<2x8x8xf32>
    %204 = tpu.matmul %202, %185, %cst_93 {dimension_numbers = #tpu.dot_dimension_numbers<[2], [1], [1], [2], [0, 0, 0, 1, 1, 2], [0], [0]>} : vector<2x8x8xf32>, vector<2x8x8xf32>, vector<2x8x8xf32> -> vector<2x8x8xf32>
    "tpu.trace_stop"() : () -> ()
    %205 = vector.shape_cast %204 : vector<2x8x8xf32> to vector<16x8xf32>
    %c0_94 = arith.constant 0 : index
    %c16 = arith.constant 16 : index
    %206 = vector.load %arg51[%c0_94, %c16] : memref<16x32xf32, #tpu.memory_space<vmem>>, vector<16x8xf32>
    tpu.vector_store %arg51[%c0_94, %c16], %205 {strides = array<i32>} : memref<16x32xf32, #tpu.memory_space<vmem>>, vector<16x8xf32>,
    %207 = vector.extract_strided_slice %123 {offsets = [0, 0, 24], sizes = [2, 8, 8], strides = [1, 1, 1]} : vector<2x8x32xf32> to vector<2x8x8xf32>
    %cst_95 = arith.constant 0.353553385 : f32
    %208 = vector.broadcast %cst_95 : f32 to vector<2x8x8xf32>
    %209 = arith.mulf %207, %208 : vector<2x8x8xf32>
    %210 = vector.extract_strided_slice %125 {offsets = [0, 0, 24], sizes = [2, 8, 8], strides = [1, 1, 1]} : vector<2x8x32xf32> to vector<2x8x8xf32>
    %211 = vector.extract_strided_slice %127 {offsets = [0, 0, 24], sizes = [2, 8, 8], strides = [1, 1, 1]} : vector<2x8x32xf32> to vector<2x8x8xf32>
    "tpu.trace_start"() <{level = 10 : i32, message = "bld,bsd->bls"}> : () -> ()
    %cst_96 = arith.constant dense<0.000000e+00> : vector<2x8x8xf32>
    %212 = tpu.matmul %209, %210, %cst_96 {dimension_numbers = #tpu.dot_dimension_numbers<[2], [2], [1], [1], [0, 0, 0, 1, 1, 1], [0], [0]>} : vector<2x8x8xf32>, vector<2x8x8xf32>, vector<2x8x8xf32> -> vector<2x8x8xf32>
    %cst_97 = arith.constant 5.000000e-01 : f32
    "tpu.trace_stop"() : () -> ()
    %213 = vector.broadcast %cst_97 : f32 to vector<2x1x8xf32>
    %214 = arith.cmpf ogt, %0, %213 : vector<2x1x8xf32>
    %cst_98 = arith.constant -1.000000e+30 : f32
    %215 = vector.shape_cast %214 : vector<2x1x8xi1> to vector<2x1x8xi1>
    %216 = vector.broadcast %215 : vector<2x1x8xi1> to vector<2x8x8xi1>
    %217 = vector.broadcast %cst_98 : f32 to vector<2x8x8xf32>
    %218 = arith.select %216, %217, %212 : vector<2x8x8xi1>, vector<2x8x8xf32>
    %cst_99 = arith.constant dense<0xFF800000> : vector<2x8xf32>
    %219 = vector.multi_reduction <maximumf>, %218, %cst_99 [2] : vector<2x8x8xf32> to vector<2x8xf32>
    %220 = vector.shape_cast %219 : vector<2x8xf32> to vector<2x8x1xf32>
    %221 = vector.broadcast %220 : vector<2x8x1xf32> to vector<2x8x8xf32>
    %222 = arith.subf %218, %221 : vector<2x8x8xf32>
    %223 = math.exp %222 : vector<2x8x8xf32>
    %cst_100 = arith.constant dense<0.000000e+00> : vector<2x8xf32>
    %224 = vector.multi_reduction <add>, %223, %cst_100 [2] : vector<2x8x8xf32> to vector<2x8xf32>
    %225 = vector.shape_cast %224 : vector<2x8xf32> to vector<2x8x1xf32>
    %226 = tpu.reciprocal %225 {approx = true} : vector<2x8x1xf32> -> vector<2x8x1xf32>
    %227 = vector.broadcast %226 : vector<2x8x1xf32> to vector<2x8x8xf32>
    %228 = arith.mulf %223, %227 : vector<2x8x8xf32>
    %229 = arith.addf %203, %228 : vector<2x8x8xf32>
    "tpu.trace_start"() <{level = 10 : i32, message = "bls,bsd->bld"}> : () -> ()
    %cst_101 = arith.constant dense<0.000000e+00> : vector<2x8x8xf32>
    %230 = tpu.matmul %228, %211, %cst_101 {dimension_numbers = #tpu.dot_dimension_numbers<[2], [1], [1], [2], [0, 0, 0, 1, 1, 2], [0], [0]>} : vector<2x8x8xf32>, vector<2x8x8xf32>, vector<2x8x8xf32> -> vector<2x8x8xf32>
    "tpu.trace_stop"() : () -> ()
    %231 = vector.shape_cast %230 : vector<2x8x8xf32> to vector<16x8xf32>
    %c0_102 = arith.constant 0 : index
    %c24 = arith.constant 24 : index
    %232 = vector.load %arg51[%c0_102, %c24] : memref<16x32xf32, #tpu.memory_space<vmem>>, vector<16x8xf32>
    tpu.vector_store %arg51[%c0_102, %c24], %231 {strides = array<i32>} : memref<16x32xf32, #tpu.memory_space<vmem>>, vector<16x8xf32>,
    %c0_103 = arith.constant 0 : index
    %c0_104 = arith.constant 0 : index
    %233 = vector.load %arg51[%c0_103, %c0_104] : memref<16x32xf32, #tpu.memory_space<vmem>>, vector<16x32xf32>
    %cst_105 = arith.constant dense<0.000000e+00> : vector<16x32xf32>
    %234 = tpu.matmul %233, %115, %cst_105 {dimension_numbers = #tpu.dot_dimension_numbers<[1], [0], [0], [1], [0, 0, 1, 1], [], []>} : vector<16x32xf32>, vector<32x32xf32>, vector<16x32xf32> -> vector<16x32xf32>
    %235 = vector.broadcast %116 : vector<1x32xf32> to vector<16x32xf32>
    %236 = arith.addf %234, %235 : vector<16x32xf32>
    %cst_106 = arith.constant 2.500000e-01 : f32
    %237 = vector.broadcast %cst_106 : f32 to vector<2x8x8xf32>
    %238 = arith.mulf %229, %237 : vector<2x8x8xf32>
    %c0_107 = arith.constant 0 : index
    %c0_108 = arith.constant 0 : index
    %239 = vector.load %arg23[%c0_107, %c0_108] : memref<32x32xf32, #tpu.memory_space<vmem>>, vector<32x32xf32>
    %c0_109 = arith.constant 0 : index
    %c0_110 = arith.constant 0 : index
    %240 = vector.load %arg24[%c0_109, %c0_110] : memref<1x32xf32, #tpu.memory_space<vmem>>, vector<1x32xf32>
    %c0_111 = arith.constant 0 : index
    %c0_112 = arith.constant 0 : index
    %241 = vector.load %arg25[%c0_111, %c0_112] : memref<32x64xf32, #tpu.memory_space<vmem>>, vector<32x64xf32>
    %c0_113 = arith.constant 0 : index
    %c0_114 = arith.constant 0 : index
    %242 = vector.load %arg26[%c0_113, %c0_114] : memref<1x64xf32, #tpu.memory_space<vmem>>, vector<1x64xf32>
    %c0_115 = arith.constant 0 : index
    %c0_116 = arith.constant 0 : index
    %243 = vector.load %arg27[%c0_115, %c0_116] : memref<32x32xf32, #tpu.memory_space<vmem>>, vector<32x32xf32>
    %c0_117 = arith.constant 0 : index
    %c0_118 = arith.constant 0 : index
    %244 = vector.load %arg28[%c0_117, %c0_118] : memref<1x32xf32, #tpu.memory_space<vmem>>, vector<1x32xf32>
    %cst_119 = arith.constant dense<0.000000e+00> : vector<16x32xf32>
    %245 = tpu.matmul %236, %239, %cst_119 {dimension_numbers = #tpu.dot_dimension_numbers<[1], [0], [0], [1], [0, 0, 1, 1], [], []>} : vector<16x32xf32>, vector<32x32xf32>, vector<16x32xf32> -> vector<16x32xf32>
    %246 = vector.broadcast %240 : vector<1x32xf32> to vector<16x32xf32>
    %247 = arith.addf %245, %246 : vector<16x32xf32>
    %cst_120 = arith.constant dense<0.000000e+00> : vector<16x64xf32>
    %248 = tpu.matmul %236, %241, %cst_120 {dimension_numbers = #tpu.dot_dimension_numbers<[1], [0], [0], [1], [0, 0, 1, 1], [], []>} : vector<16x32xf32>, vector<32x64xf32>, vector<16x64xf32> -> vector<16x64xf32>
    %249 = vector.broadcast %242 : vector<1x64xf32> to vector<16x64xf32>
    %250 = arith.addf %248, %249 : vector<16x64xf32>
    %251 = vector.shape_cast %247 : vector<16x32xf32> to vector<2x8x32xf32>
    %252 = vector.extract_strided_slice %250 {offsets = [0, 0], sizes = [16, 32], strides = [1, 1]} : vector<16x64xf32> to vector<16x32xf32>
    %253 = vector.shape_cast %252 : vector<16x32xf32> to vector<2x8x32xf32>
    %254 = vector.extract_strided_slice %250 {offsets = [0, 32], sizes = [16, 32], strides = [1, 1]} : vector<16x64xf32> to vector<16x32xf32>
    %255 = vector.shape_cast %254 : vector<16x32xf32> to vector<2x8x32xf32>
    %cst_121 = arith.constant 0.000000e+00 : f32
    %256 = vector.broadcast %cst_121 : f32 to vector<2x8x8xf32>
    %257 = vector.extract_strided_slice %251 {offsets = [0, 0, 0], sizes = [2, 8, 8], strides = [1, 1, 1]} : vector<2x8x32xf32> to vector<2x8x8xf32>
    %cst_122 = arith.constant 0.353553385 : f32
    %258 = vector.broadcast %cst_122 : f32 to vector<2x8x8xf32>
    %259 = arith.mulf %257, %258 : vector<2x8x8xf32>
    %260 = vector.extract_strided_slice %253 {offsets = [0, 0, 0], sizes = [2, 8, 8], strides = [1, 1, 1]} : vector<2x8x32xf32> to vector<2x8x8xf32>
    %261 = vector.extract_strided_slice %255 {offsets = [0, 0, 0], sizes = [2, 8, 8], strides = [1, 1, 1]} : vector<2x8x32xf32> to vector<2x8x8xf32>
    "tpu.trace_start"() <{level = 10 : i32, message = "bld,bsd->bls"}> : () -> ()
    %cst_123 = arith.constant dense<0.000000e+00> : vector<2x8x8xf32>
    %262 = tpu.matmul %259, %260, %cst_123 {dimension_numbers = #tpu.dot_dimension_numbers<[2], [2], [1], [1], [0, 0, 0, 1, 1, 1], [0], [0]>} : vector<2x8x8xf32>, vector<2x8x8xf32>, vector<2x8x8xf32> -> vector<2x8x8xf32>
    %cst_124 = arith.constant 5.000000e-01 : f32
    "tpu.trace_stop"() : () -> ()
    %263 = vector.broadcast %cst_124 : f32 to vector<2x1x8xf32>
    %264 = arith.cmpf ogt, %0, %263 : vector<2x1x8xf32>
    %cst_125 = arith.constant -1.000000e+30 : f32
    %265 = vector.shape_cast %264 : vector<2x1x8xi1> to vector<2x1x8xi1>
    %266 = vector.broadcast %265 : vector<2x1x8xi1> to vector<2x8x8xi1>
    %267 = vector.broadcast %cst_125 : f32 to vector<2x8x8xf32>
    %268 = arith.select %266, %267, %262 : vector<2x8x8xi1>, vector<2x8x8xf32>
    %cst_126 = arith.constant dense<0xFF800000> : vector<2x8xf32>
    %269 = vector.multi_reduction <maximumf>, %268, %cst_126 [2] : vector<2x8x8xf32> to vector<2x8xf32>
    %270 = vector.shape_cast %269 : vector<2x8xf32> to vector<2x8x1xf32>
    %271 = vector.broadcast %270 : vector<2x8x1xf32> to vector<2x8x8xf32>
    %272 = arith.subf %268, %271 : vector<2x8x8xf32>
    %273 = math.exp %272 : vector<2x8x8xf32>
    %cst_127 = arith.constant dense<0.000000e+00> : vector<2x8xf32>
    %274 = vector.multi_reduction <add>, %273, %cst_127 [2] : vector<2x8x8xf32> to vector<2x8xf32>
    %275 = vector.shape_cast %274 : vector<2x8xf32> to vector<2x8x1xf32>
    %276 = tpu.reciprocal %275 {approx = true} : vector<2x8x1xf32> -> vector<2x8x1xf32>
    %277 = vector.broadcast %276 : vector<2x8x1xf32> to vector<2x8x8xf32>
    %278 = arith.mulf %273, %277 : vector<2x8x8xf32>
    %279 = arith.addf %256, %278 : vector<2x8x8xf32>
    "tpu.trace_start"() <{level = 10 : i32, message = "bls,bsd->bld"}> : () -> ()
    %cst_128 = arith.constant dense<0.000000e+00> : vector<2x8x8xf32>
    %280 = tpu.matmul %278, %261, %cst_128 {dimension_numbers = #tpu.dot_dimension_numbers<[2], [1], [1], [2], [0, 0, 0, 1, 1, 2], [0], [0]>} : vector<2x8x8xf32>, vector<2x8x8xf32>, vector<2x8x8xf32> -> vector<2x8x8xf32>
    "tpu.trace_stop"() : () -> ()
    %281 = vector.shape_cast %280 : vector<2x8x8xf32> to vector<16x8xf32>
    %c0_129 = arith.constant 0 : index
    %c0_130 = arith.constant 0 : index
    %282 = vector.load %arg51[%c0_129, %c0_130] : memref<16x32xf32, #tpu.memory_space<vmem>>, vector<16x8xf32>
    tpu.vector_store %arg51[%c0_129, %c0_130], %281 {strides = array<i32>} : memref<16x32xf32, #tpu.memory_space<vmem>>, vector<16x8xf32>,
    %283 = vector.extract_strided_slice %251 {offsets = [0, 0, 8], sizes = [2, 8, 8], strides = [1, 1, 1]} : vector<2x8x32xf32> to vector<2x8x8xf32>
    %cst_131 = arith.constant 0.353553385 : f32
    %284 = vector.broadcast %cst_131 : f32 to vector<2x8x8xf32>
    %285 = arith.mulf %283, %284 : vector<2x8x8xf32>
    %286 = vector.extract_strided_slice %253 {offsets = [0, 0, 8], sizes = [2, 8, 8], strides = [1, 1, 1]} : vector<2x8x32xf32> to vector<2x8x8xf32>
    %287 = vector.extract_strided_slice %255 {offsets = [0, 0, 8], sizes = [2, 8, 8], strides = [1, 1, 1]} : vector<2x8x32xf32> to vector<2x8x8xf32>
    "tpu.trace_start"() <{level = 10 : i32, message = "bld,bsd->bls"}> : () -> ()
    %cst_132 = arith.constant dense<0.000000e+00> : vector<2x8x8xf32>
    %288 = tpu.matmul %285, %286, %cst_132 {dimension_numbers = #tpu.dot_dimension_numbers<[2], [2], [1], [1], [0, 0, 0, 1, 1, 1], [0], [0]>} : vector<2x8x8xf32>, vector<2x8x8xf32>, vector<2x8x8xf32> -> vector<2x8x8xf32>
    %cst_133 = arith.constant 5.000000e-01 : f32
    "tpu.trace_stop"() : () -> ()
    %289 = vector.broadcast %cst_133 : f32 to vector<2x1x8xf32>
    %290 = arith.cmpf ogt, %0, %289 : vector<2x1x8xf32>
    %cst_134 = arith.constant -1.000000e+30 : f32
    %291 = vector.shape_cast %290 : vector<2x1x8xi1> to vector<2x1x8xi1>
    %292 = vector.broadcast %291 : vector<2x1x8xi1> to vector<2x8x8xi1>
    %293 = vector.broadcast %cst_134 : f32 to vector<2x8x8xf32>
    %294 = arith.select %292, %293, %288 : vector<2x8x8xi1>, vector<2x8x8xf32>
    %cst_135 = arith.constant dense<0xFF800000> : vector<2x8xf32>
    %295 = vector.multi_reduction <maximumf>, %294, %cst_135 [2] : vector<2x8x8xf32> to vector<2x8xf32>
    %296 = vector.shape_cast %295 : vector<2x8xf32> to vector<2x8x1xf32>
    %297 = vector.broadcast %296 : vector<2x8x1xf32> to vector<2x8x8xf32>
    %298 = arith.subf %294, %297 : vector<2x8x8xf32>
    %299 = math.exp %298 : vector<2x8x8xf32>
    %cst_136 = arith.constant dense<0.000000e+00> : vector<2x8xf32>
    %300 = vector.multi_reduction <add>, %299, %cst_136 [2] : vector<2x8x8xf32> to vector<2x8xf32>
    %301 = vector.shape_cast %300 : vector<2x8xf32> to vector<2x8x1xf32>
    %302 = tpu.reciprocal %301 {approx = true} : vector<2x8x1xf32> -> vector<2x8x1xf32>
    %303 = vector.broadcast %302 : vector<2x8x1xf32> to vector<2x8x8xf32>
    %304 = arith.mulf %299, %303 : vector<2x8x8xf32>
    %305 = arith.addf %279, %304 : vector<2x8x8xf32>
    "tpu.trace_start"() <{level = 10 : i32, message = "bls,bsd->bld"}> : () -> ()
    %cst_137 = arith.constant dense<0.000000e+00> : vector<2x8x8xf32>
    %306 = tpu.matmul %304, %287, %cst_137 {dimension_numbers = #tpu.dot_dimension_numbers<[2], [1], [1], [2], [0, 0, 0, 1, 1, 2], [0], [0]>} : vector<2x8x8xf32>, vector<2x8x8xf32>, vector<2x8x8xf32> -> vector<2x8x8xf32>
    "tpu.trace_stop"() : () -> ()
    %307 = vector.shape_cast %306 : vector<2x8x8xf32> to vector<16x8xf32>
    %c0_138 = arith.constant 0 : index
    %c8_139 = arith.constant 8 : index
    %308 = vector.load %arg51[%c0_138, %c8_139] : memref<16x32xf32, #tpu.memory_space<vmem>>, vector<16x8xf32>
    tpu.vector_store %arg51[%c0_138, %c8_139], %307 {strides = array<i32>} : memref<16x32xf32, #tpu.memory_space<vmem>>, vector<16x8xf32>,
    %309 = vector.extract_strided_slice %251 {offsets = [0, 0, 16], sizes = [2, 8, 8], strides = [1, 1, 1]} : vector<2x8x32xf32> to vector<2x8x8xf32>
    %cst_140 = arith.constant 0.353553385 : f32
    %310 = vector.broadcast %cst_140 : f32 to vector<2x8x8xf32>
    %311 = arith.mulf %309, %310 : vector<2x8x8xf32>
    %312 = vector.extract_strided_slice %253 {offsets = [0, 0, 16], sizes = [2, 8, 8], strides = [1, 1, 1]} : vector<2x8x32xf32> to vector<2x8x8xf32>
    %313 = vector.extract_strided_slice %255 {offsets = [0, 0, 16], sizes = [2, 8, 8], strides = [1, 1, 1]} : vector<2x8x32xf32> to vector<2x8x8xf32>
    "tpu.trace_start"() <{level = 10 : i32, message = "bld,bsd->bls"}> : () -> ()
    %cst_141 = arith.constant dense<0.000000e+00> : vector<2x8x8xf32>
    %314 = tpu.matmul %311, %312, %cst_141 {dimension_numbers = #tpu.dot_dimension_numbers<[2], [2], [1], [1], [0, 0, 0, 1, 1, 1], [0], [0]>} : vector<2x8x8xf32>, vector<2x8x8xf32>, vector<2x8x8xf32> -> vector<2x8x8xf32>
    %cst_142 = arith.constant 5.000000e-01 : f32
    "tpu.trace_stop"() : () -> ()
    %315 = vector.broadcast %cst_142 : f32 to vector<2x1x8xf32>
    %316 = arith.cmpf ogt, %0, %315 : vector<2x1x8xf32>
    %cst_143 = arith.constant -1.000000e+30 : f32
    %317 = vector.shape_cast %316 : vector<2x1x8xi1> to vector<2x1x8xi1>
    %318 = vector.broadcast %317 : vector<2x1x8xi1> to vector<2x8x8xi1>
    %319 = vector.broadcast %cst_143 : f32 to vector<2x8x8xf32>
    %320 = arith.select %318, %319, %314 : vector<2x8x8xi1>, vector<2x8x8xf32>
    %cst_144 = arith.constant dense<0xFF800000> : vector<2x8xf32>
    %321 = vector.multi_reduction <maximumf>, %320, %cst_144 [2] : vector<2x8x8xf32> to vector<2x8xf32>
    %322 = vector.shape_cast %321 : vector<2x8xf32> to vector<2x8x1xf32>
    %323 = vector.broadcast %322 : vector<2x8x1xf32> to vector<2x8x8xf32>
    %324 = arith.subf %320, %323 : vector<2x8x8xf32>
    %325 = math.exp %324 : vector<2x8x8xf32>
    %cst_145 = arith.constant dense<0.000000e+00> : vector<2x8xf32>
    %326 = vector.multi_reduction <add>, %325, %cst_145 [2] : vector<2x8x8xf32> to vector<2x8xf32>
    %327 = vector.shape_cast %326 : vector<2x8xf32> to vector<2x8x1xf32>
    %328 = tpu.reciprocal %327 {approx = true} : vector<2x8x1xf32> -> vector<2x8x1xf32>
    %329 = vector.broadcast %328 : vector<2x8x1xf32> to vector<2x8x8xf32>
    %330 = arith.mulf %325, %329 : vector<2x8x8xf32>
    %331 = arith.addf %305, %330 : vector<2x8x8xf32>
    "tpu.trace_start"() <{level = 10 : i32, message = "bls,bsd->bld"}> : () -> ()
    %cst_146 = arith.constant dense<0.000000e+00> : vector<2x8x8xf32>
    %332 = tpu.matmul %330, %313, %cst_146 {dimension_numbers = #tpu.dot_dimension_numbers<[2], [1], [1], [2], [0, 0, 0, 1, 1, 2], [0], [0]>} : vector<2x8x8xf32>, vector<2x8x8xf32>, vector<2x8x8xf32> -> vector<2x8x8xf32>
    "tpu.trace_stop"() : () -> ()
    %333 = vector.shape_cast %332 : vector<2x8x8xf32> to vector<16x8xf32>
    %c0_147 = arith.constant 0 : index
    %c16_148 = arith.constant 16 : index
    %334 = vector.load %arg51[%c0_147, %c16_148] : memref<16x32xf32, #tpu.memory_space<vmem>>, vector<16x8xf32>
    tpu.vector_store %arg51[%c0_147, %c16_148], %333 {strides = array<i32>} : memref<16x32xf32, #tpu.memory_space<vmem>>, vector<16x8xf32>,
    %335 = vector.extract_strided_slice %251 {offsets = [0, 0, 24], sizes = [2, 8, 8], strides = [1, 1, 1]} : vector<2x8x32xf32> to vector<2x8x8xf32>
    %cst_149 = arith.constant 0.353553385 : f32
    %336 = vector.broadcast %cst_149 : f32 to vector<2x8x8xf32>
    %337 = arith.mulf %335, %336 : vector<2x8x8xf32>
    %338 = vector.extract_strided_slice %253 {offsets = [0, 0, 24], sizes = [2, 8, 8], strides = [1, 1, 1]} : vector<2x8x32xf32> to vector<2x8x8xf32>
    %339 = vector.extract_strided_slice %255 {offsets = [0, 0, 24], sizes = [2, 8, 8], strides = [1, 1, 1]} : vector<2x8x32xf32> to vector<2x8x8xf32>
    "tpu.trace_start"() <{level = 10 : i32, message = "bld,bsd->bls"}> : () -> ()
    %cst_150 = arith.constant dense<0.000000e+00> : vector<2x8x8xf32>
    %340 = tpu.matmul %337, %338, %cst_150 {dimension_numbers = #tpu.dot_dimension_numbers<[2], [2], [1], [1], [0, 0, 0, 1, 1, 1], [0], [0]>} : vector<2x8x8xf32>, vector<2x8x8xf32>, vector<2x8x8xf32> -> vector<2x8x8xf32>
    %cst_151 = arith.constant 5.000000e-01 : f32
    "tpu.trace_stop"() : () -> ()
    %341 = vector.broadcast %cst_151 : f32 to vector<2x1x8xf32>
    %342 = arith.cmpf ogt, %0, %341 : vector<2x1x8xf32>
    %cst_152 = arith.constant -1.000000e+30 : f32
    %343 = vector.shape_cast %342 : vector<2x1x8xi1> to vector<2x1x8xi1>
    %344 = vector.broadcast %343 : vector<2x1x8xi1> to vector<2x8x8xi1>
    %345 = vector.broadcast %cst_152 : f32 to vector<2x8x8xf32>
    %346 = arith.select %344, %345, %340 : vector<2x8x8xi1>, vector<2x8x8xf32>
    %cst_153 = arith.constant dense<0xFF800000> : vector<2x8xf32>
    %347 = vector.multi_reduction <maximumf>, %346, %cst_153 [2] : vector<2x8x8xf32> to vector<2x8xf32>
    %348 = vector.shape_cast %347 : vector<2x8xf32> to vector<2x8x1xf32>
    %349 = vector.broadcast %348 : vector<2x8x1xf32> to vector<2x8x8xf32>
    %350 = arith.subf %346, %349 : vector<2x8x8xf32>
    %351 = math.exp %350 : vector<2x8x8xf32>
    %cst_154 = arith.constant dense<0.000000e+00> : vector<2x8xf32>
    %352 = vector.multi_reduction <add>, %351, %cst_154 [2] : vector<2x8x8xf32> to vector<2x8xf32>
    %353 = vector.shape_cast %352 : vector<2x8xf32> to vector<2x8x1xf32>
    %354 = tpu.reciprocal %353 {approx = true} : vector<2x8x1xf32> -> vector<2x8x1xf32>
    %355 = vector.broadcast %354 : vector<2x8x1xf32> to vector<2x8x8xf32>
    %356 = arith.mulf %351, %355 : vector<2x8x8xf32>
    %357 = arith.addf %331, %356 : vector<2x8x8xf32>
    "tpu.trace_start"() <{level = 10 : i32, message = "bls,bsd->bld"}> : () -> ()
    %cst_155 = arith.constant dense<0.000000e+00> : vector<2x8x8xf32>
    %358 = tpu.matmul %356, %339, %cst_155 {dimension_numbers = #tpu.dot_dimension_numbers<[2], [1], [1], [2], [0, 0, 0, 1, 1, 2], [0], [0]>} : vector<2x8x8xf32>, vector<2x8x8xf32>, vector<2x8x8xf32> -> vector<2x8x8xf32>
    "tpu.trace_stop"() : () -> ()
    %359 = vector.shape_cast %358 : vector<2x8x8xf32> to vector<16x8xf32>
    %c0_156 = arith.constant 0 : index
    %c24_157 = arith.constant 24 : index
    %360 = vector.load %arg51[%c0_156, %c24_157] : memref<16x32xf32, #tpu.memory_space<vmem>>, vector<16x8xf32>
    tpu.vector_store %arg51[%c0_156, %c24_157], %359 {strides = array<i32>} : memref<16x32xf32, #tpu.memory_space<vmem>>, vector<16x8xf32>,
    %c0_158 = arith.constant 0 : index
    %c0_159 = arith.constant 0 : index
    %361 = vector.load %arg51[%c0_158, %c0_159] : memref<16x32xf32, #tpu.memory_space<vmem>>, vector<16x32xf32>
    %cst_160 = arith.constant dense<0.000000e+00> : vector<16x32xf32>
    %362 = tpu.matmul %361, %243, %cst_160 {dimension_numbers = #tpu.dot_dimension_numbers<[1], [0], [0], [1], [0, 0, 1, 1], [], []>} : vector<16x32xf32>, vector<32x32xf32>, vector<16x32xf32> -> vector<16x32xf32>
    %363 = vector.broadcast %244 : vector<1x32xf32> to vector<16x32xf32>
    %364 = arith.addf %362, %363 : vector<16x32xf32>
    %cst_161 = arith.constant 2.500000e-01 : f32
    %365 = vector.broadcast %cst_161 : f32 to vector<2x8x8xf32>
    %366 = arith.mulf %357, %365 : vector<2x8x8xf32>
    %c0_162 = arith.constant 0 : index
    %c0_163 = arith.constant 0 : index
    %c0_164 = arith.constant 0 : index
    %367 = vector.load %arg49[%c0_162, %c0_163, %c0_164] : memref<2x8x8xf32, #tpu.memory_space<vmem>>, vector<2x8x8xf32>
    tpu.vector_store %arg49[%c0_162, %c0_163, %c0_164], %238 {strides = array<i32>} : memref<2x8x8xf32, #tpu.memory_space<vmem>>, vector<2x8x8xf32>,
    %c0_165 = arith.constant 0 : index
    %c0_166 = arith.constant 0 : index
    %c0_167 = arith.constant 0 : index
    %368 = vector.load %arg50[%c0_165, %c0_166, %c0_167] : memref<2x8x8xf32, #tpu.memory_space<vmem>>, vector<2x8x8xf32>
    tpu.vector_store %arg50[%c0_165, %c0_166, %c0_167], %366 {strides = array<i32>} : memref<2x8x8xf32, #tpu.memory_space<vmem>>, vector<2x8x8xf32>,
    %c0_168 = arith.constant 0 : index
    %c0_169 = arith.constant 0 : index
    %369 = vector.load %arg30[%c0_168, %c0_169] : memref<32x128xf32, #tpu.memory_space<vmem>>, vector<32x128xf32>
    %c0_170 = arith.constant 0 : index
    %c0_171 = arith.constant 0 : index
    %370 = vector.load %arg31[%c0_170, %c0_171] : memref<1x128xf32, #tpu.memory_space<vmem>>, vector<1x128xf32>
    %c0_172 = arith.constant 0 : index
    %c0_173 = arith.constant 0 : index
    %371 = vector.load %arg32[%c0_172, %c0_173] : memref<128x32xf32, #tpu.memory_space<vmem>>, vector<128x32xf32>
    %c0_174 = arith.constant 0 : index
    %c0_175 = arith.constant 0 : index
    %372 = vector.load %arg33[%c0_174, %c0_175] : memref<1x32xf32, #tpu.memory_space<vmem>>, vector<1x32xf32>
    %c0_176 = arith.constant 0 : index
    %c0_177 = arith.constant 0 : index
    %373 = vector.load %arg34[%c0_176, %c0_177] : memref<2x32xf32, #tpu.memory_space<vmem>>, vector<2x32xf32>
    %c0_178 = arith.constant 0 : index
    %c0_179 = arith.constant 0 : index
    %374 = vector.load %arg29[%c0_178, %c0_179] : memref<2x32xf32, #tpu.memory_space<vmem>>, vector<2x32xf32>
    %cst_180 = arith.constant dense<0.000000e+00> : vector<16xf32>
    %375 = vector.multi_reduction <add>, %236, %cst_180 [1] : vector<16x32xf32> to vector<16xf32>
    %376 = vector.shape_cast %375 : vector<16xf32> to vector<16x1xf32>
    %cst_181 = arith.constant 3.200000e+01 : f32
    %377 = vector.broadcast %cst_181 : f32 to vector<16x1xf32>
    %378 = arith.divf %376, %377 : vector<16x1xf32>
    %379 = vector.broadcast %378 : vector<16x1xf32> to vector<16x32xf32>
    %380 = arith.subf %236, %379 : vector<16x32xf32>
    %381 = arith.mulf %380, %380 : vector<16x32xf32>
    %cst_182 = arith.constant dense<0.000000e+00> : vector<16xf32>
    %382 = vector.multi_reduction <add>, %381, %cst_182 [1] : vector<16x32xf32> to vector<16xf32>
    %383 = vector.shape_cast %382 : vector<16xf32> to vector<16x1xf32>
    %cst_183 = arith.constant 3.200000e+01 : f32
    %384 = vector.broadcast %cst_183 : f32 to vector<16x1xf32>
    %385 = arith.divf %383, %384 : vector<16x1xf32>
    %386 = vector.broadcast %378 : vector<16x1xf32> to vector<16x32xf32>
    %387 = arith.subf %236, %386 : vector<16x32xf32>
    %cst_184 = arith.constant 9.99999974E-6 : f32
    %388 = vector.broadcast %cst_184 : f32 to vector<16x1xf32>
    %389 = arith.addf %385, %388 : vector<16x1xf32>
    %390 = math.rsqrt %389 : vector<16x1xf32>
    %391 = vector.broadcast %390 : vector<16x1xf32> to vector<16x32xf32>
    %392 = arith.mulf %387, %391 : vector<16x32xf32>
    %393 = vector.extract_strided_slice %374 {offsets = [0, 0], sizes = [1, 32], strides = [1, 1]} : vector<2x32xf32> to vector<1x32xf32>
    %394 = vector.broadcast %393 : vector<1x32xf32> to vector<16x32xf32>
    %395 = arith.mulf %392, %394 : vector<16x32xf32>
    %396 = vector.extract_strided_slice %374 {offsets = [1, 0], sizes = [1, 32], strides = [1, 1]} : vector<2x32xf32> to vector<1x32xf32>
    %397 = vector.broadcast %396 : vector<1x32xf32> to vector<16x32xf32>
    %398 = arith.addf %395, %397 : vector<16x32xf32>
    %cst_185 = arith.constant dense<0.000000e+00> : vector<16x128xf32>
    %399 = tpu.matmul %398, %369, %cst_185 {dimension_numbers = #tpu.dot_dimension_numbers<[1], [0], [0], [1], [0, 0, 1, 1], [], []>} : vector<16x32xf32>, vector<32x128xf32>, vector<16x128xf32> -> vector<16x128xf32>
    %400 = vector.broadcast %370 : vector<1x128xf32> to vector<16x128xf32>
    %401 = arith.addf %399, %400 : vector<16x128xf32>
    %cst_186 = arith.constant 0.000000e+00 : f32
    %402 = vector.broadcast %cst_186 : f32 to vector<16x128xf32>
    %403 = arith.cmpf ogt, %401, %402 : vector<16x128xf32>
    %cst_187 = arith.constant 2.500000e-01 : f32
    %404 = vector.broadcast %cst_187 : f32 to vector<16x128xf32>
    %405 = arith.mulf %404, %401 : vector<16x128xf32>
    %406 = arith.select %403, %401, %405 : vector<16x128xi1>, vector<16x128xf32>
    %cst_188 = arith.constant dense<0.000000e+00> : vector<16x32xf32>
    %407 = tpu.matmul %406, %371, %cst_188 {dimension_numbers = #tpu.dot_dimension_numbers<[1], [0], [0], [1], [0, 0, 1, 1], [], []>} : vector<16x128xf32>, vector<128x32xf32>, vector<16x32xf32> -> vector<16x32xf32>
    %408 = vector.broadcast %372 : vector<1x32xf32> to vector<16x32xf32>
    %409 = arith.addf %407, %408 : vector<16x32xf32>
    %410 = arith.addf %398, %409 : vector<16x32xf32>
    %cst_189 = arith.constant dense<0.000000e+00> : vector<16xf32>
    %411 = vector.multi_reduction <add>, %410, %cst_189 [1] : vector<16x32xf32> to vector<16xf32>
    %412 = vector.shape_cast %411 : vector<16xf32> to vector<16x1xf32>
    %cst_190 = arith.constant 3.200000e+01 : f32
    %413 = vector.broadcast %cst_190 : f32 to vector<16x1xf32>
    %414 = arith.divf %412, %413 : vector<16x1xf32>
    %415 = vector.broadcast %414 : vector<16x1xf32> to vector<16x32xf32>
    %416 = arith.subf %410, %415 : vector<16x32xf32>
    %417 = arith.mulf %416, %416 : vector<16x32xf32>
    %cst_191 = arith.constant dense<0.000000e+00> : vector<16xf32>
    %418 = vector.multi_reduction <add>, %417, %cst_191 [1] : vector<16x32xf32> to vector<16xf32>
    %419 = vector.shape_cast %418 : vector<16xf32> to vector<16x1xf32>
    %cst_192 = arith.constant 3.200000e+01 : f32
    %420 = vector.broadcast %cst_192 : f32 to vector<16x1xf32>
    %421 = arith.divf %419, %420 : vector<16x1xf32>
    %422 = vector.broadcast %414 : vector<16x1xf32> to vector<16x32xf32>
    %423 = arith.subf %410, %422 : vector<16x32xf32>
    %cst_193 = arith.constant 9.99999974E-6 : f32
    %424 = vector.broadcast %cst_193 : f32 to vector<16x1xf32>
    %425 = arith.addf %421, %424 : vector<16x1xf32>
    %426 = math.rsqrt %425 : vector<16x1xf32>
    %427 = vector.broadcast %426 : vector<16x1xf32> to vector<16x32xf32>
    %428 = arith.mulf %423, %427 : vector<16x32xf32>
    %429 = vector.extract_strided_slice %373 {offsets = [0, 0], sizes = [1, 32], strides = [1, 1]} : vector<2x32xf32> to vector<1x32xf32>
    %430 = vector.broadcast %429 : vector<1x32xf32> to vector<16x32xf32>
    %431 = arith.mulf %428, %430 : vector<16x32xf32>
    %432 = vector.extract_strided_slice %373 {offsets = [1, 0], sizes = [1, 32], strides = [1, 1]} : vector<2x32xf32> to vector<1x32xf32>
    %433 = vector.broadcast %432 : vector<1x32xf32> to vector<16x32xf32>
    %434 = arith.addf %431, %433 : vector<16x32xf32>
    %c0_194 = arith.constant 0 : index
    %c0_195 = arith.constant 0 : index
    %435 = vector.load %arg35[%c0_194, %c0_195] : memref<32x128xf32, #tpu.memory_space<vmem>>, vector<32x128xf32>
    %c0_196 = arith.constant 0 : index
    %c0_197 = arith.constant 0 : index
    %436 = vector.load %arg36[%c0_196, %c0_197] : memref<1x128xf32, #tpu.memory_space<vmem>>, vector<1x128xf32>
    %c0_198 = arith.constant 0 : index
    %c0_199 = arith.constant 0 : index
    %437 = vector.load %arg37[%c0_198, %c0_199] : memref<128x32xf32, #tpu.memory_space<vmem>>, vector<128x32xf32>
    %c0_200 = arith.constant 0 : index
    %c0_201 = arith.constant 0 : index
    %438 = vector.load %arg38[%c0_200, %c0_201] : memref<1x32xf32, #tpu.memory_space<vmem>>, vector<1x32xf32>
    %c0_202 = arith.constant 0 : index
    %c0_203 = arith.constant 0 : index
    %439 = vector.load %arg39[%c0_202, %c0_203] : memref<2x32xf32, #tpu.memory_space<vmem>>, vector<2x32xf32>
    %c0_204 = arith.constant 0 : index
    %c0_205 = arith.constant 0 : index
    %440 = vector.load %arg29[%c0_204, %c0_205] : memref<2x32xf32, #tpu.memory_space<vmem>>, vector<2x32xf32>
    %cst_206 = arith.constant dense<0.000000e+00> : vector<16xf32>
    %441 = vector.multi_reduction <add>, %364, %cst_206 [1] : vector<16x32xf32> to vector<16xf32>
    %442 = vector.shape_cast %441 : vector<16xf32> to vector<16x1xf32>
    %cst_207 = arith.constant 3.200000e+01 : f32
    %443 = vector.broadcast %cst_207 : f32 to vector<16x1xf32>
    %444 = arith.divf %442, %443 : vector<16x1xf32>
    %445 = vector.broadcast %444 : vector<16x1xf32> to vector<16x32xf32>
    %446 = arith.subf %364, %445 : vector<16x32xf32>
    %447 = arith.mulf %446, %446 : vector<16x32xf32>
    %cst_208 = arith.constant dense<0.000000e+00> : vector<16xf32>
    %448 = vector.multi_reduction <add>, %447, %cst_208 [1] : vector<16x32xf32> to vector<16xf32>
    %449 = vector.shape_cast %448 : vector<16xf32> to vector<16x1xf32>
    %cst_209 = arith.constant 3.200000e+01 : f32
    %450 = vector.broadcast %cst_209 : f32 to vector<16x1xf32>
    %451 = arith.divf %449, %450 : vector<16x1xf32>
    %452 = vector.broadcast %444 : vector<16x1xf32> to vector<16x32xf32>
    %453 = arith.subf %364, %452 : vector<16x32xf32>
    %cst_210 = arith.constant 9.99999974E-6 : f32
    %454 = vector.broadcast %cst_210 : f32 to vector<16x1xf32>
    %455 = arith.addf %451, %454 : vector<16x1xf32>
    %456 = math.rsqrt %455 : vector<16x1xf32>
    %457 = vector.broadcast %456 : vector<16x1xf32> to vector<16x32xf32>
    %458 = arith.mulf %453, %457 : vector<16x32xf32>
    %459 = vector.extract_strided_slice %440 {offsets = [0, 0], sizes = [1, 32], strides = [1, 1]} : vector<2x32xf32> to vector<1x32xf32>
    %460 = vector.broadcast %459 : vector<1x32xf32> to vector<16x32xf32>
    %461 = arith.mulf %458, %460 : vector<16x32xf32>
    %462 = vector.extract_strided_slice %440 {offsets = [1, 0], sizes = [1, 32], strides = [1, 1]} : vector<2x32xf32> to vector<1x32xf32>
    %463 = vector.broadcast %462 : vector<1x32xf32> to vector<16x32xf32>
    %464 = arith.addf %461, %463 : vector<16x32xf32>
    %cst_211 = arith.constant dense<0.000000e+00> : vector<16x128xf32>
    %465 = tpu.matmul %464, %435, %cst_211 {dimension_numbers = #tpu.dot_dimension_numbers<[1], [0], [0], [1], [0, 0, 1, 1], [], []>} : vector<16x32xf32>, vector<32x128xf32>, vector<16x128xf32> -> vector<16x128xf32>
    %466 = vector.broadcast %436 : vector<1x128xf32> to vector<16x128xf32>
    %467 = arith.addf %465, %466 : vector<16x128xf32>
    %cst_212 = arith.constant 0.000000e+00 : f32
    %468 = vector.broadcast %cst_212 : f32 to vector<16x128xf32>
    %469 = arith.cmpf ogt, %467, %468 : vector<16x128xf32>
    %cst_213 = arith.constant 2.500000e-01 : f32
    %470 = vector.broadcast %cst_213 : f32 to vector<16x128xf32>
    %471 = arith.mulf %470, %467 : vector<16x128xf32>
    %472 = arith.select %469, %467, %471 : vector<16x128xi1>, vector<16x128xf32>
    %cst_214 = arith.constant dense<0.000000e+00> : vector<16x32xf32>
    %473 = tpu.matmul %472, %437, %cst_214 {dimension_numbers = #tpu.dot_dimension_numbers<[1], [0], [0], [1], [0, 0, 1, 1], [], []>} : vector<16x128xf32>, vector<128x32xf32>, vector<16x32xf32> -> vector<16x32xf32>
    %474 = vector.broadcast %438 : vector<1x32xf32> to vector<16x32xf32>
    %475 = arith.addf %473, %474 : vector<16x32xf32>
    %476 = arith.addf %464, %475 : vector<16x32xf32>
    %cst_215 = arith.constant dense<0.000000e+00> : vector<16xf32>
    %477 = vector.multi_reduction <add>, %476, %cst_215 [1] : vector<16x32xf32> to vector<16xf32>
    %478 = vector.shape_cast %477 : vector<16xf32> to vector<16x1xf32>
    %cst_216 = arith.constant 3.200000e+01 : f32
    %479 = vector.broadcast %cst_216 : f32 to vector<16x1xf32>
    %480 = arith.divf %478, %479 : vector<16x1xf32>
    %481 = vector.broadcast %480 : vector<16x1xf32> to vector<16x32xf32>
    %482 = arith.subf %476, %481 : vector<16x32xf32>
    %483 = arith.mulf %482, %482 : vector<16x32xf32>
    %cst_217 = arith.constant dense<0.000000e+00> : vector<16xf32>
    %484 = vector.multi_reduction <add>, %483, %cst_217 [1] : vector<16x32xf32> to vector<16xf32>
    %485 = vector.shape_cast %484 : vector<16xf32> to vector<16x1xf32>
    %cst_218 = arith.constant 3.200000e+01 : f32
    %486 = vector.broadcast %cst_218 : f32 to vector<16x1xf32>
    %487 = arith.divf %485, %486 : vector<16x1xf32>
    %488 = vector.broadcast %480 : vector<16x1xf32> to vector<16x32xf32>
    %489 = arith.subf %476, %488 : vector<16x32xf32>
    %cst_219 = arith.constant 9.99999974E-6 : f32
    %490 = vector.broadcast %cst_219 : f32 to vector<16x1xf32>
    %491 = arith.addf %487, %490 : vector<16x1xf32>
    %492 = math.rsqrt %491 : vector<16x1xf32>
    %493 = vector.broadcast %492 : vector<16x1xf32> to vector<16x32xf32>
    %494 = arith.mulf %489, %493 : vector<16x32xf32>
    %495 = vector.extract_strided_slice %439 {offsets = [0, 0], sizes = [1, 32], strides = [1, 1]} : vector<2x32xf32> to vector<1x32xf32>
    %496 = vector.broadcast %495 : vector<1x32xf32> to vector<16x32xf32>
    %497 = arith.mulf %494, %496 : vector<16x32xf32>
    %498 = vector.extract_strided_slice %439 {offsets = [1, 0], sizes = [1, 32], strides = [1, 1]} : vector<2x32xf32> to vector<1x32xf32>
    %499 = vector.broadcast %498 : vector<1x32xf32> to vector<16x32xf32>
    %500 = arith.addf %497, %499 : vector<16x32xf32>
    %501 = arith.addf %434, %500 : vector<16x32xf32>
    %c0_220 = arith.constant 0 : index
    %c0_221 = arith.constant 0 : index
    %502 = vector.load %arg29[%c0_220, %c0_221] : memref<2x32xf32, #tpu.memory_space<vmem>>, vector<2x32xf32>
    %cst_222 = arith.constant dense<0.000000e+00> : vector<16xf32>
    %503 = vector.multi_reduction <add>, %501, %cst_222 [1] : vector<16x32xf32> to vector<16xf32>
    %504 = vector.shape_cast %503 : vector<16xf32> to vector<16x1xf32>
    %cst_223 = arith.constant 3.200000e+01 : f32
    %505 = vector.broadcast %cst_223 : f32 to vector<16x1xf32>
    %506 = arith.divf %504, %505 : vector<16x1xf32>
    %507 = vector.broadcast %506 : vector<16x1xf32> to vector<16x32xf32>
    %508 = arith.subf %501, %507 : vector<16x32xf32>
    %509 = arith.mulf %508, %508 : vector<16x32xf32>
    %cst_224 = arith.constant dense<0.000000e+00> : vector<16xf32>
    %510 = vector.multi_reduction <add>, %509, %cst_224 [1] : vector<16x32xf32> to vector<16xf32>
    %511 = vector.shape_cast %510 : vector<16xf32> to vector<16x1xf32>
    %cst_225 = arith.constant 3.200000e+01 : f32
    %512 = vector.broadcast %cst_225 : f32 to vector<16x1xf32>
    %513 = arith.divf %511, %512 : vector<16x1xf32>
    %514 = vector.broadcast %506 : vector<16x1xf32> to vector<16x32xf32>
    %515 = arith.subf %501, %514 : vector<16x32xf32>
    %cst_226 = arith.constant 9.99999974E-6 : f32
    %516 = vector.broadcast %cst_226 : f32 to vector<16x1xf32>
    %517 = arith.addf %513, %516 : vector<16x1xf32>
    %518 = math.rsqrt %517 : vector<16x1xf32>
    %519 = vector.broadcast %518 : vector<16x1xf32> to vector<16x32xf32>
    %520 = arith.mulf %515, %519 : vector<16x32xf32>
    %521 = vector.extract_strided_slice %502 {offsets = [0, 0], sizes = [1, 32], strides = [1, 1]} : vector<2x32xf32> to vector<1x32xf32>
    %522 = vector.broadcast %521 : vector<1x32xf32> to vector<16x32xf32>
    %523 = arith.mulf %520, %522 : vector<16x32xf32>
    %524 = vector.extract_strided_slice %502 {offsets = [1, 0], sizes = [1, 32], strides = [1, 1]} : vector<2x32xf32> to vector<1x32xf32>
    %525 = vector.broadcast %524 : vector<1x32xf32> to vector<16x32xf32>
    %526 = arith.addf %523, %525 : vector<16x32xf32>
    %527 = vector.shape_cast %526 : vector<16x32xf32> to vector<2x8x32xf32>
    %528 = vector.extract_strided_slice %527 {offsets = [0, 0, 0], sizes = [2, 1, 32], strides = [1, 1, 1]} : vector<2x8x32xf32> to vector<2x1x32xf32>
    %529 = vector.shape_cast %528 : vector<2x1x32xf32> to vector<2x32xf32>
    %c0_227 = arith.constant 0 : index
    %c0_228 = arith.constant 0 : index
    %530 = vector.load %arg52[%c0_227, %c0_228] : memref<2x256xf32, #tpu.memory_space<vmem>>, vector<2x32xf32>
    tpu.vector_store %arg52[%c0_227, %c0_228], %529 {strides = array<i32>} : memref<2x256xf32, #tpu.memory_space<vmem>>, vector<2x32xf32>,
    %531 = vector.extract_strided_slice %527 {offsets = [0, 1, 0], sizes = [2, 1, 32], strides = [1, 1, 1]} : vector<2x8x32xf32> to vector<2x1x32xf32>
    %532 = vector.shape_cast %531 : vector<2x1x32xf32> to vector<2x32xf32>
    %c0_229 = arith.constant 0 : index
    %c32 = arith.constant 32 : index
    %533 = vector.load %arg52[%c0_229, %c32] : memref<2x256xf32, #tpu.memory_space<vmem>>, vector<2x32xf32>
    tpu.vector_store %arg52[%c0_229, %c32], %532 {strides = array<i32>} : memref<2x256xf32, #tpu.memory_space<vmem>>, vector<2x32xf32>,
    %534 = vector.extract_strided_slice %527 {offsets = [0, 2, 0], sizes = [2, 1, 32], strides = [1, 1, 1]} : vector<2x8x32xf32> to vector<2x1x32xf32>
    %535 = vector.shape_cast %534 : vector<2x1x32xf32> to vector<2x32xf32>
    %c0_230 = arith.constant 0 : index
    %c64 = arith.constant 64 : index
    %536 = vector.load %arg52[%c0_230, %c64] : memref<2x256xf32, #tpu.memory_space<vmem>>, vector<2x32xf32>
    tpu.vector_store %arg52[%c0_230, %c64], %535 {strides = array<i32>} : memref<2x256xf32, #tpu.memory_space<vmem>>, vector<2x32xf32>,
    %537 = vector.extract_strided_slice %527 {offsets = [0, 3, 0], sizes = [2, 1, 32], strides = [1, 1, 1]} : vector<2x8x32xf32> to vector<2x1x32xf32>
    %538 = vector.shape_cast %537 : vector<2x1x32xf32> to vector<2x32xf32>
    %c0_231 = arith.constant 0 : index
    %c96 = arith.constant 96 : index
    %539 = vector.load %arg52[%c0_231, %c96] : memref<2x256xf32, #tpu.memory_space<vmem>>, vector<2x32xf32>
    tpu.vector_store %arg52[%c0_231, %c96], %538 {strides = array<i32>} : memref<2x256xf32, #tpu.memory_space<vmem>>, vector<2x32xf32>,
    %540 = vector.extract_strided_slice %527 {offsets = [0, 4, 0], sizes = [2, 1, 32], strides = [1, 1, 1]} : vector<2x8x32xf32> to vector<2x1x32xf32>
    %541 = vector.shape_cast %540 : vector<2x1x32xf32> to vector<2x32xf32>
    %c0_232 = arith.constant 0 : index
    %c128 = arith.constant 128 : index
    %542 = vector.load %arg52[%c0_232, %c128] : memref<2x256xf32, #tpu.memory_space<vmem>>, vector<2x32xf32>
    tpu.vector_store %arg52[%c0_232, %c128], %541 {strides = array<i32>} : memref<2x256xf32, #tpu.memory_space<vmem>>, vector<2x32xf32>,
    %543 = vector.extract_strided_slice %527 {offsets = [0, 5, 0], sizes = [2, 1, 32], strides = [1, 1, 1]} : vector<2x8x32xf32> to vector<2x1x32xf32>
    %544 = vector.shape_cast %543 : vector<2x1x32xf32> to vector<2x32xf32>
    %c0_233 = arith.constant 0 : index
    %c160 = arith.constant 160 : index
    %545 = vector.load %arg52[%c0_233, %c160] : memref<2x256xf32, #tpu.memory_space<vmem>>, vector<2x32xf32>
    tpu.vector_store %arg52[%c0_233, %c160], %544 {strides = array<i32>} : memref<2x256xf32, #tpu.memory_space<vmem>>, vector<2x32xf32>,
    %546 = vector.extract_strided_slice %527 {offsets = [0, 6, 0], sizes = [2, 1, 32], strides = [1, 1, 1]} : vector<2x8x32xf32> to vector<2x1x32xf32>
    %547 = vector.shape_cast %546 : vector<2x1x32xf32> to vector<2x32xf32>
    %c0_234 = arith.constant 0 : index
    %c192 = arith.constant 192 : index
    %548 = vector.load %arg52[%c0_234, %c192] : memref<2x256xf32, #tpu.memory_space<vmem>>, vector<2x32xf32>
    tpu.vector_store %arg52[%c0_234, %c192], %547 {strides = array<i32>} : memref<2x256xf32, #tpu.memory_space<vmem>>, vector<2x32xf32>,
    %549 = vector.extract_strided_slice %527 {offsets = [0, 7, 0], sizes = [2, 1, 32], strides = [1, 1, 1]} : vector<2x8x32xf32> to vector<2x1x32xf32>
    %550 = vector.shape_cast %549 : vector<2x1x32xf32> to vector<2x32xf32>
    %c0_235 = arith.constant 0 : index
    %c224 = arith.constant 224 : index
    %551 = vector.load %arg52[%c0_235, %c224] : memref<2x256xf32, #tpu.memory_space<vmem>>, vector<2x32xf32>
    tpu.vector_store %arg52[%c0_235, %c224], %550 {strides = array<i32>} : memref<2x256xf32, #tpu.memory_space<vmem>>, vector<2x32xf32>,
    %c0_236 = arith.constant 0 : index
    %c0_237 = arith.constant 0 : index
    %552 = vector.load %arg52[%c0_236, %c0_237] : memref<2x256xf32, #tpu.memory_space<vmem>>, vector<2x256xf32>
    %c0_238 = arith.constant 0 : index
    %c0_239 = arith.constant 0 : index
    %553 = vector.load %arg40[%c0_238, %c0_239] : memref<256x64xf32, #tpu.memory_space<vmem>>, vector<256x64xf32>
    %cst_240 = arith.constant dense<0.000000e+00> : vector<2x64xf32>
    %554 = tpu.matmul %552, %553, %cst_240 {dimension_numbers = #tpu.dot_dimension_numbers<[1], [0], [0], [1], [0, 0, 1, 1], [], []>} : vector<2x256xf32>, vector<256x64xf32>, vector<2x64xf32> -> vector<2x64xf32>
    %c0_241 = arith.constant 0 : index
    %c0_242 = arith.constant 0 : index
    %555 = vector.load %arg41[%c0_241, %c0_242] : memref<1x64xf32, #tpu.memory_space<vmem>>, vector<1x64xf32>
    %556 = vector.broadcast %555 : vector<1x64xf32> to vector<2x64xf32>
    %557 = arith.addf %554, %556 : vector<2x64xf32>
    %c0_243 = arith.constant 0 : index
    %c0_244 = arith.constant 0 : index
    %558 = vector.load %arg42[%c0_243, %c0_244] : memref<4x64xf32, #tpu.memory_space<vmem>>, vector<4x64xf32>
    %559 = vector.extract_strided_slice %558 {offsets = [2, 0], sizes = [1, 64], strides = [1, 1]} : vector<4x64xf32> to vector<1x64xf32>
    %560 = vector.broadcast %559 : vector<1x64xf32> to vector<2x64xf32>
    %561 = arith.subf %557, %560 : vector<2x64xf32>
    %562 = vector.extract_strided_slice %558 {offsets = [3, 0], sizes = [1, 64], strides = [1, 1]} : vector<4x64xf32> to vector<1x64xf32>
    %cst_245 = arith.constant 9.99999974E-6 : f32
    %563 = vector.broadcast %cst_245 : f32 to vector<1x64xf32>
    %564 = arith.addf %562, %563 : vector<1x64xf32>
    %565 = math.rsqrt %564 : vector<1x64xf32>
    %566 = vector.broadcast %565 : vector<1x64xf32> to vector<2x64xf32>
    %567 = arith.mulf %561, %566 : vector<2x64xf32>
    %568 = vector.extract_strided_slice %558 {offsets = [0, 0], sizes = [1, 64], strides = [1, 1]} : vector<4x64xf32> to vector<1x64xf32>
    %569 = vector.broadcast %568 : vector<1x64xf32> to vector<2x64xf32>
    %570 = arith.mulf %567, %569 : vector<2x64xf32>
    %571 = vector.extract_strided_slice %558 {offsets = [1, 0], sizes = [1, 64], strides = [1, 1]} : vector<4x64xf32> to vector<1x64xf32>
    %572 = vector.broadcast %571 : vector<1x64xf32> to vector<2x64xf32>
    %573 = arith.addf %570, %572 : vector<2x64xf32>
    %cst_246 = arith.constant 0.000000e+00 : f32
    %574 = vector.broadcast %cst_246 : f32 to vector<2x64xf32>
    %575 = arith.cmpf ogt, %573, %574 : vector<2x64xf32>
    %cst_247 = arith.constant 2.500000e-01 : f32
    %576 = vector.broadcast %cst_247 : f32 to vector<2x64xf32>
    %577 = arith.mulf %576, %573 : vector<2x64xf32>
    %578 = arith.select %575, %573, %577 : vector<2x64xi1>, vector<2x64xf32>
    %c0_248 = arith.constant 0 : index
    %c0_249 = arith.constant 0 : index
    %579 = vector.load %arg43[%c0_248, %c0_249] : memref<64x16xf32, #tpu.memory_space<vmem>>, vector<64x16xf32>
    %cst_250 = arith.constant dense<0.000000e+00> : vector<2x16xf32>
    %580 = tpu.matmul %578, %579, %cst_250 {dimension_numbers = #tpu.dot_dimension_numbers<[1], [0], [0], [1], [0, 0, 1, 1], [], []>} : vector<2x64xf32>, vector<64x16xf32>, vector<2x16xf32> -> vector<2x16xf32>
    %c0_251 = arith.constant 0 : index
    %c0_252 = arith.constant 0 : index
    %581 = vector.load %arg44[%c0_251, %c0_252] : memref<1x16xf32, #tpu.memory_space<vmem>>, vector<1x16xf32>
    %582 = vector.broadcast %581 : vector<1x16xf32> to vector<2x16xf32>
    %583 = arith.addf %580, %582 : vector<2x16xf32>
    %c0_253 = arith.constant 0 : index
    %c0_254 = arith.constant 0 : index
    %584 = vector.load %arg45[%c0_253, %c0_254] : memref<4x16xf32, #tpu.memory_space<vmem>>, vector<4x16xf32>
    %585 = vector.extract_strided_slice %584 {offsets = [2, 0], sizes = [1, 16], strides = [1, 1]} : vector<4x16xf32> to vector<1x16xf32>
    %586 = vector.broadcast %585 : vector<1x16xf32> to vector<2x16xf32>
    %587 = arith.subf %583, %586 : vector<2x16xf32>
    %588 = vector.extract_strided_slice %584 {offsets = [3, 0], sizes = [1, 16], strides = [1, 1]} : vector<4x16xf32> to vector<1x16xf32>
    %cst_255 = arith.constant 9.99999974E-6 : f32
    %589 = vector.broadcast %cst_255 : f32 to vector<1x16xf32>
    %590 = arith.addf %588, %589 : vector<1x16xf32>
    %591 = math.rsqrt %590 : vector<1x16xf32>
    %592 = vector.broadcast %591 : vector<1x16xf32> to vector<2x16xf32>
    %593 = arith.mulf %587, %592 : vector<2x16xf32>
    %594 = vector.extract_strided_slice %584 {offsets = [0, 0], sizes = [1, 16], strides = [1, 1]} : vector<4x16xf32> to vector<1x16xf32>
    %595 = vector.broadcast %594 : vector<1x16xf32> to vector<2x16xf32>
    %596 = arith.mulf %593, %595 : vector<2x16xf32>
    %597 = vector.extract_strided_slice %584 {offsets = [1, 0], sizes = [1, 16], strides = [1, 1]} : vector<4x16xf32> to vector<1x16xf32>
    %598 = vector.broadcast %597 : vector<1x16xf32> to vector<2x16xf32>
    %599 = arith.addf %596, %598 : vector<2x16xf32>
    %cst_256 = arith.constant 0.000000e+00 : f32
    %600 = vector.broadcast %cst_256 : f32 to vector<2x16xf32>
    %601 = arith.cmpf ogt, %599, %600 : vector<2x16xf32>
    %cst_257 = arith.constant 2.500000e-01 : f32
    %602 = vector.broadcast %cst_257 : f32 to vector<2x16xf32>
    %603 = arith.mulf %602, %599 : vector<2x16xf32>
    %604 = arith.select %601, %599, %603 : vector<2x16xi1>, vector<2x16xf32>
    %c0_258 = arith.constant 0 : index
    %c0_259 = arith.constant 0 : index
    %605 = vector.load %arg46[%c0_258, %c0_259] : memref<16x2xf32, #tpu.memory_space<vmem>>, vector<16x2xf32>
    %cst_260 = arith.constant dense<0.000000e+00> : vector<2x2xf32>
    %606 = tpu.matmul %604, %605, %cst_260 {dimension_numbers = #tpu.dot_dimension_numbers<[1], [0], [0], [1], [0, 0, 1, 1], [], []>} : vector<2x16xf32>, vector<16x2xf32>, vector<2x2xf32> -> vector<2x2xf32>
    %c0_261 = arith.constant 0 : index
    %c0_262 = arith.constant 0 : index
    %607 = vector.load %arg47[%c0_261, %c0_262] : memref<1x2xf32, #tpu.memory_space<vmem>>, vector<1x2xf32>
    %608 = vector.broadcast %607 : vector<1x2xf32> to vector<2x2xf32>
    %609 = arith.addf %606, %608 : vector<2x2xf32>
    %c0_263 = arith.constant 0 : index
    %c0_264 = arith.constant 0 : index
    %610 = vector.load %arg48[%c0_263, %c0_264] : memref<2x2xf32, #tpu.memory_space<vmem>>, vector<2x2xf32>
    tpu.vector_store %arg48[%c0_263, %c0_264], %609 {strides = array<i32>} : memref<2x2xf32, #tpu.memory_space<vmem>>, vector<2x2xf32>,
    return
  }
}

</mosaic_0001>

<llo_original>
// kernel: conv_hier_attention3.1
$region0: #{conv_hier_attention3.1}
  #allocation0 [shape = 'u32[]', space=smem, size = 0x4, offset = 0x4, fixed_abs, tag = 'smem constant byte address 0x4 - core index']
  #allocation1 [shape = 'u32[144,128]{1,0:T(1,128)}', space=vmem, size = 0x12000, scoped, tag = 'internal scratch']
  #allocation2 [shape = 'f32[16,32]{1,0:T(8,128)}', space=vmem, size = 0x2000, scoped, tag = 'scratch operand']
  #allocation3 [shape = 'f32[2,256]{1,0:T(2,128)}', space=vmem, size = 0x800, scoped, tag = 'scratch operand']
  %s0 = inlined_call_operand.smem [shape: u32[51], index: -1, kind: input, shape index: {}]
  %s1 = sld [smem:[%s0]]
  %s2 = scalar_lea.smem %s0, 1
  %s3 = sld [smem:[%s2]]
  %s4 = scalar_lea.smem %s0, 2
  %s5 = sld [smem:[%s4]]
  %s6 = scalar_lea.smem %s0, 3
  %s7 = sld [smem:[%s6]]
  %s8 = scalar_lea.smem %s0, 4
  %s9 = sld [smem:[%s8]]
  %s10 = scalar_lea.smem %s0, 5
  %s11 = sld [smem:[%s10]]
  %s12 = scalar_lea.smem %s0, 6
  %s13 = sld [smem:[%s12]]
  %s14 = scalar_lea.smem %s0, 7
  %s15 = sld [smem:[%s14]]
  %s16 = scalar_lea.smem %s0, 8
  %s17 = sld [smem:[%s16]]
  %s18 = scalar_lea.smem %s0, 9
  %s19 = sld [smem:[%s18]]
  %s20 = scalar_lea.smem %s0, 10
  %s21 = sld [smem:[%s20]]
  %s22 = scalar_lea.smem %s0, 11
  %s23 = sld [smem:[%s22]]
  %s24 = scalar_lea.smem %s0, 12
  %s25 = sld [smem:[%s24]]
  %s26 = scalar_lea.smem %s0, 13
  %s27 = sld [smem:[%s26]]
  %s28 = scalar_lea.smem %s0, 14
  %s29 = sld [smem:[%s28]]
  %s30 = scalar_lea.smem %s0, 15
  %s31 = sld [smem:[%s30]]
  %s32 = scalar_lea.smem %s0, 16
  %s33 = sld [smem:[%s32]]
  %s34 = scalar_lea.smem %s0, 17
  %s35 = sld [smem:[%s34]]
  %s36 = scalar_lea.smem %s0, 18
  %s37 = sld [smem:[%s36]]
  %s38 = scalar_lea.smem %s0, 19
  %s39 = sld [smem:[%s38]]
  %s40 = scalar_lea.smem %s0, 20
  %s41 = sld [smem:[%s40]]
  %s42 = scalar_lea.smem %s0, 21
  %s43 = sld [smem:[%s42]]
  %s44 = scalar_lea.smem %s0, 22
  %s45 = sld [smem:[%s44]]
  %s46 = scalar_lea.smem %s0, 23
  %s47 = sld [smem:[%s46]]
  %s48 = scalar_lea.smem %s0, 24
  %s49 = sld [smem:[%s48]]
  %s50 = scalar_lea.smem %s0, 25
  %s51 = sld [smem:[%s50]]
  %s52 = scalar_lea.smem %s0, 26
  %s53 = sld [smem:[%s52]]
  %s54 = scalar_lea.smem %s0, 27
  %s55 = sld [smem:[%s54]]
  %s56 = scalar_lea.smem %s0, 28
  %s57 = sld [smem:[%s56]]
  %s58 = scalar_lea.smem %s0, 29
  %s59 = sld [smem:[%s58]]
  %s60 = scalar_lea.smem %s0, 30
  %s61 = sld [smem:[%s60]]
  %s62 = scalar_lea.smem %s0, 31
  %s63 = sld [smem:[%s62]]
  %s64 = scalar_lea.smem %s0, 32
  %s65 = sld [smem:[%s64]]
  %s66 = scalar_lea.smem %s0, 33
  %s67 = sld [smem:[%s66]]
  %s68 = scalar_lea.smem %s0, 34
  %s69 = sld [smem:[%s68]]
  %s70 = scalar_lea.smem %s0, 35
  %s71 = sld [smem:[%s70]]
  %s72 = scalar_lea.smem %s0, 36
  %s73 = sld [smem:[%s72]]
  %s74 = scalar_lea.smem %s0, 37
  %s75 = sld [smem:[%s74]]
  %s76 = scalar_lea.smem %s0, 38
  %s77 = sld [smem:[%s76]]
  %s78 = scalar_lea.smem %s0, 39
  %s79 = sld [smem:[%s78]]
  %s80 = scalar_lea.smem %s0, 40
  %s81 = sld [smem:[%s80]]
  %s82 = scalar_lea.smem %s0, 41
  %s83 = sld [smem:[%s82]]
  %s84 = scalar_lea.smem %s0, 42
  %s85 = sld [smem:[%s84]]
  %s86 = scalar_lea.smem %s0, 43
  %s87 = sld [smem:[%s86]]
  %s88 = scalar_lea.smem %s0, 44
  %s89 = sld [smem:[%s88]]
  %s90 = scalar_lea.smem %s0, 45
  %s91 = sld [smem:[%s90]]
  %s92 = scalar_lea.smem %s0, 46
  %s93 = sld [smem:[%s92]]
  %s94 = scalar_lea.smem %s0, 47
  %s95 = sld [smem:[%s94]]
  %s96 = scalar_lea.smem %s0, 48
  %s97 = sld [smem:[%s96]]
  %s98 = scalar_lea.smem %s0, 49
  %s99 = sld [smem:[%s98]]
  %s100 = scalar_lea.smem %s0, 50
  %s101 = sld [smem:[%s100]]
  %102 = xla_tuple %s97, %s99, %s101
  %s103 = sld [smem:[#allocation0]]
  $region218: #{conv_hier_attention3.1} parent=0
    _
  %s105 = ssub.s32 1, %s103
  %s106 = scalar_select 0, %s105, %s103
  $region1: #{conv_hier_attention3.1} parent=0
    #allocation4 [shape = 'u8[1024]{0}', space=vmem, size = 0x400, scoped, tag = 'output window, operand 0, single buffered']
    #allocation5 [shape = 's32[1]{0}', space=sflag, size = 0x4, scoped, tag = 'scoped memory for conv_hier_attention3.1']
    #allocation6 [shape = 'u8[8192]{0}', space=vmem, size = 0x2000, scoped, tag = 'output window, operand 1, single buffered']
    #allocation7 [shape = 's32[1]{0}', space=sflag, size = 0x4, scoped, tag = 'scoped memory for conv_hier_attention3.1']
    #allocation8 [shape = 'u8[8192]{0}', space=vmem, size = 0x2000, scoped, tag = 'output window, operand 2, single buffered']
    %107 = vsyncpa [#allocation5], 0
    %108 = vsyncpa [#allocation7], 0
    // Predicated region
    $region2: #{conv_hier_attention3.1} parent=1 // pred_check
      _
    $region3: #{conv_hier_attention3.1} parent=1 // pred_check_branch
      %110 = sbr.rel (0) target = $region5
    $region4: #{conv_hier_attention3.1} parent=1 // pred_region
      _
    $region5: #{conv_hier_attention3.1} parent=1 // pred_fallthru
      _
    // Predicated region
    $region6: #{conv_hier_attention3.1} parent=1 // pred_check
      _
    $region7: #{conv_hier_attention3.1} parent=1 // pred_check_branch
      %112 = sbr.rel (0) target = $region9
    $region8: #{conv_hier_attention3.1} parent=1 // pred_region
      _
    $region9: #{conv_hier_attention3.1} parent=1 // pred_fallthru
      _
    // Predicated region
    $region10: #{conv_hier_attention3.1} parent=1 // pred_check
      _
    $region11: #{conv_hier_attention3.1} parent=1 // pred_check_branch
      %114 = sbr.rel (0) target = $region13
    $region12: #{conv_hier_attention3.1} parent=1 // pred_region
      _
    $region13: #{conv_hier_attention3.1} parent=1 // pred_fallthru
      _
    // Predicated region
    $region14: #{conv_hier_attention3.1} parent=1 // pred_check
      _
    $region15: #{conv_hier_attention3.1} parent=1 // pred_check_branch
      %116 = sbr.rel (0) target = $region17
    $region16: #{conv_hier_attention3.1} parent=1 // pred_region
      _
    $region17: #{conv_hier_attention3.1} parent=1 // pred_fallthru
      _
    // Predicated region
    $region18: #{conv_hier_attention3.1} parent=1 // pred_check
      _
    $region19: #{conv_hier_attention3.1} parent=1 // pred_check_branch
      %118 = sbr.rel (0) target = $region21
    $region20: #{conv_hier_attention3.1} parent=1 // pred_region
      _
    $region21: #{conv_hier_attention3.1} parent=1 // pred_fallthru
      _
    // Predicated region
    $region22: #{conv_hier_attention3.1} parent=1 // pred_check
      _
    $region23: #{conv_hier_attention3.1} parent=1 // pred_check_branch
      %120 = sbr.rel (0) target = $region25
    $region24: #{conv_hier_attention3.1} parent=1 // pred_region
      _
    $region25: #{conv_hier_attention3.1} parent=1 // pred_fallthru
      _
    // Predicated region
    $region26: #{conv_hier_attention3.1} parent=1 // pred_check
      _
    $region27: #{conv_hier_attention3.1} parent=1 // pred_check_branch
      %122 = sbr.rel (0) target = $region29
    $region28: #{conv_hier_attention3.1} parent=1 // pred_region
      _
    $region29: #{conv_hier_attention3.1} parent=1 // pred_fallthru
      _
    // Predicated region
    $region30: #{conv_hier_attention3.1} parent=1 // pred_check
      _
    $region31: #{conv_hier_attention3.1} parent=1 // pred_check_branch
      %124 = sbr.rel (0) target = $region33
    $region32: #{conv_hier_attention3.1} parent=1 // pred_region
      _
    $region33: #{conv_hier_attention3.1} parent=1 // pred_fallthru
      _
    // Predicated region
    $region34: #{conv_hier_attention3.1} parent=1 // pred_check
      _
    $region35: #{conv_hier_attention3.1} parent=1 // pred_check_branch
      %126 = sbr.rel (0) target = $region37
    $region36: #{conv_hier_attention3.1} parent=1 // pred_region
      _
    $region37: #{conv_hier_attention3.1} parent=1 // pred_fallthru
      _
    // Predicated region
    $region38: #{conv_hier_attention3.1} parent=1 // pred_check
      _
    $region39: #{conv_hier_attention3.1} parent=1 // pred_check_branch
      %128 = sbr.rel (0) target = $region41
    $region40: #{conv_hier_attention3.1} parent=1 // pred_region
      _
    $region41: #{conv_hier_attention3.1} parent=1 // pred_fallthru
      _
    // Predicated region
    $region42: #{conv_hier_attention3.1} parent=1 // pred_check
      _
    $region43: #{conv_hier_attention3.1} parent=1 // pred_check_branch
      %130 = sbr.rel (0) target = $region45
    $region44: #{conv_hier_attention3.1} parent=1 // pred_region
      _
    $region45: #{conv_hier_attention3.1} parent=1 // pred_fallthru
      _
    // Predicated region
    $region46: #{conv_hier_attention3.1} parent=1 // pred_check
      _
    $region47: #{conv_hier_attention3.1} parent=1 // pred_check_branch
      %132 = sbr.rel (0) target = $region49
    $region48: #{conv_hier_attention3.1} parent=1 // pred_region
      _
    $region49: #{conv_hier_attention3.1} parent=1 // pred_fallthru
      _
    // Predicated region
    $region50: #{conv_hier_attention3.1} parent=1 // pred_check
      _
    $region51: #{conv_hier_attention3.1} parent=1 // pred_check_branch
      %134 = sbr.rel (0) target = $region53
    $region52: #{conv_hier_attention3.1} parent=1 // pred_region
      _
    $region53: #{conv_hier_attention3.1} parent=1 // pred_fallthru
      _
    // Predicated region
    $region54: #{conv_hier_attention3.1} parent=1 // pred_check
      _
    $region55: #{conv_hier_attention3.1} parent=1 // pred_check_branch
      %136 = sbr.rel (0) target = $region57
    $region56: #{conv_hier_attention3.1} parent=1 // pred_region
      _
    $region57: #{conv_hier_attention3.1} parent=1 // pred_fallthru
      _
    // Predicated region
    $region58: #{conv_hier_attention3.1} parent=1 // pred_check
      _
    $region59: #{conv_hier_attention3.1} parent=1 // pred_check_branch
      %138 = sbr.rel (0) target = $region61
    $region60: #{conv_hier_attention3.1} parent=1 // pred_region
      _
    $region61: #{conv_hier_attention3.1} parent=1 // pred_fallthru
      _
    // Predicated region
    $region62: #{conv_hier_attention3.1} parent=1 // pred_check
      _
    $region63: #{conv_hier_attention3.1} parent=1 // pred_check_branch
      %140 = sbr.rel (0) target = $region65
    $region64: #{conv_hier_attention3.1} parent=1 // pred_region
      _
    $region65: #{conv_hier_attention3.1} parent=1 // pred_fallthru
      _
    // Predicated region
    $region66: #{conv_hier_attention3.1} parent=1 // pred_check
      _
    $region67: #{conv_hier_attention3.1} parent=1 // pred_check_branch
      %142 = sbr.rel (0) target = $region69
    $region68: #{conv_hier_attention3.1} parent=1 // pred_region
      _
    $region69: #{conv_hier_attention3.1} parent=1 // pred_fallthru
      _
    // Predicated region
    $region70: #{conv_hier_attention3.1} parent=1 // pred_check
      _
    $region71: #{conv_hier_attention3.1} parent=1 // pred_check_branch
      %144 = sbr.rel (0) target = $region73
    $region72: #{conv_hier_attention3.1} parent=1 // pred_region
      _
    $region73: #{conv_hier_attention3.1} parent=1 // pred_fallthru
      _
    // Predicated region
    $region74: #{conv_hier_attention3.1} parent=1 // pred_check
      _
    $region75: #{conv_hier_attention3.1} parent=1 // pred_check_branch
      %146 = sbr.rel (0) target = $region77
    $region76: #{conv_hier_attention3.1} parent=1 // pred_region
      _
    $region77: #{conv_hier_attention3.1} parent=1 // pred_fallthru
      _
    // Predicated region
    $region78: #{conv_hier_attention3.1} parent=1 // pred_check
      _
    $region79: #{conv_hier_attention3.1} parent=1 // pred_check_branch
      %148 = sbr.rel (0) target = $region81
    $region80: #{conv_hier_attention3.1} parent=1 // pred_region
      _
    $region81: #{conv_hier_attention3.1} parent=1 // pred_fallthru
      _
    // Predicated region
    $region82: #{conv_hier_attention3.1} parent=1 // pred_check
      _
    $region83: #{conv_hier_attention3.1} parent=1 // pred_check_branch
      %150 = sbr.rel (0) target = $region85
    $region84: #{conv_hier_attention3.1} parent=1 // pred_region
      _
    $region85: #{conv_hier_attention3.1} parent=1 // pred_fallthru
      _
    // Predicated region
    $region86: #{conv_hier_attention3.1} parent=1 // pred_check
      _
    $region87: #{conv_hier_attention3.1} parent=1 // pred_check_branch
      %152 = sbr.rel (0) target = $region89
    $region88: #{conv_hier_attention3.1} parent=1 // pred_region
      _
    $region89: #{conv_hier_attention3.1} parent=1 // pred_fallthru
      _
    // Predicated region
    $region90: #{conv_hier_attention3.1} parent=1 // pred_check
      _
    $region91: #{conv_hier_attention3.1} parent=1 // pred_check_branch
      %154 = sbr.rel (0) target = $region93
    $region92: #{conv_hier_attention3.1} parent=1 // pred_region
      _
    $region93: #{conv_hier_attention3.1} parent=1 // pred_fallthru
      _
    // Predicated region
    $region94: #{conv_hier_attention3.1} parent=1 // pred_check
      _
    $region95: #{conv_hier_attention3.1} parent=1 // pred_check_branch
      %156 = sbr.rel (0) target = $region97
    $region96: #{conv_hier_attention3.1} parent=1 // pred_region
      _
    $region97: #{conv_hier_attention3.1} parent=1 // pred_fallthru
      _
    // Predicated region
    $region98: #{conv_hier_attention3.1} parent=1 // pred_check
      _
    $region99: #{conv_hier_attention3.1} parent=1 // pred_check_branch
      %158 = sbr.rel (0) target = $region101
    $region100: #{conv_hier_attention3.1} parent=1 // pred_region
      _
    $region101: #{conv_hier_attention3.1} parent=1 // pred_fallthru
      _
    // Predicated region
    $region102: #{conv_hier_attention3.1} parent=1 // pred_check
      _
    $region103: #{conv_hier_attention3.1} parent=1 // pred_check_branch
      %160 = sbr.rel (0) target = $region105
    $region104: #{conv_hier_attention3.1} parent=1 // pred_region
      _
    $region105: #{conv_hier_attention3.1} parent=1 // pred_fallthru
      _
    // Predicated region
    $region106: #{conv_hier_attention3.1} parent=1 // pred_check
      _
    $region107: #{conv_hier_attention3.1} parent=1 // pred_check_branch
      %162 = sbr.rel (0) target = $region109
    $region108: #{conv_hier_attention3.1} parent=1 // pred_region
      _
    $region109: #{conv_hier_attention3.1} parent=1 // pred_fallthru
      _
    // Predicated region
    $region110: #{conv_hier_attention3.1} parent=1 // pred_check
      _
    $region111: #{conv_hier_attention3.1} parent=1 // pred_check_branch
      %164 = sbr.rel (0) target = $region113
    $region112: #{conv_hier_attention3.1} parent=1 // pred_region
      _
    $region113: #{conv_hier_attention3.1} parent=1 // pred_fallthru
      _
    // Predicated region
    $region114: #{conv_hier_attention3.1} parent=1 // pred_check
      _
    $region115: #{conv_hier_attention3.1} parent=1 // pred_check_branch
      %166 = sbr.rel (0) target = $region117
    $region116: #{conv_hier_attention3.1} parent=1 // pred_region
      _
    $region117: #{conv_hier_attention3.1} parent=1 // pred_fallthru
      _
    // Predicated region
    $region118: #{conv_hier_attention3.1} parent=1 // pred_check
      _
    $region119: #{conv_hier_attention3.1} parent=1 // pred_check_branch
      %168 = sbr.rel (0) target = $region121
    $region120: #{conv_hier_attention3.1} parent=1 // pred_region
      _
    $region121: #{conv_hier_attention3.1} parent=1 // pred_fallthru
      _
    // Predicated region
    $region122: #{conv_hier_attention3.1} parent=1 // pred_check
      _
    $region123: #{conv_hier_attention3.1} parent=1 // pred_check_branch
      %170 = sbr.rel (0) target = $region125
    $region124: #{conv_hier_attention3.1} parent=1 // pred_region
      _
    $region125: #{conv_hier_attention3.1} parent=1 // pred_fallthru
      _
    // Predicated region
    $region126: #{conv_hier_attention3.1} parent=1 // pred_check
      _
    $region127: #{conv_hier_attention3.1} parent=1 // pred_check_branch
      %172 = sbr.rel (0) target = $region129
    $region128: #{conv_hier_attention3.1} parent=1 // pred_region
      _
    $region129: #{conv_hier_attention3.1} parent=1 // pred_fallthru
      _
    // Predicated region
    $region130: #{conv_hier_attention3.1} parent=1 // pred_check
      _
    $region131: #{conv_hier_attention3.1} parent=1 // pred_check_branch
      %174 = sbr.rel (0) target = $region133
    $region132: #{conv_hier_attention3.1} parent=1 // pred_region
      _
    $region133: #{conv_hier_attention3.1} parent=1 // pred_fallthru
      _
    // Predicated region
    $region134: #{conv_hier_attention3.1} parent=1 // pred_check
      _
    $region135: #{conv_hier_attention3.1} parent=1 // pred_check_branch
      %176 = sbr.rel (0) target = $region137
    $region136: #{conv_hier_attention3.1} parent=1 // pred_region
      _
    $region137: #{conv_hier_attention3.1} parent=1 // pred_fallthru
      _
    // Predicated region
    $region138: #{conv_hier_attention3.1} parent=1 // pred_check
      _
    $region139: #{conv_hier_attention3.1} parent=1 // pred_check_branch
      %178 = sbr.rel (0) target = $region141
    $region140: #{conv_hier_attention3.1} parent=1 // pred_region
      _
    $region141: #{conv_hier_attention3.1} parent=1 // pred_fallthru
      _
    // Predicated region
    $region142: #{conv_hier_attention3.1} parent=1 // pred_check
      _
    $region143: #{conv_hier_attention3.1} parent=1 // pred_check_branch
      %180 = sbr.rel (0) target = $region145
    $region144: #{conv_hier_attention3.1} parent=1 // pred_region
      _
    $region145: #{conv_hier_attention3.1} parent=1 // pred_fallthru
      _
    // Predicated region
    $region146: #{conv_hier_attention3.1} parent=1 // pred_check
      _
    $region147: #{conv_hier_attention3.1} parent=1 // pred_check_branch
      %182 = sbr.rel (0) target = $region149
    $region148: #{conv_hier_attention3.1} parent=1 // pred_region
      _
    $region149: #{conv_hier_attention3.1} parent=1 // pred_fallthru
      _
    // Predicated region
    $region150: #{conv_hier_attention3.1} parent=1 // pred_check
      _
    $region151: #{conv_hier_attention3.1} parent=1 // pred_check_branch
      %184 = sbr.rel (0) target = $region153
    $region152: #{conv_hier_attention3.1} parent=1 // pred_region
      _
    $region153: #{conv_hier_attention3.1} parent=1 // pred_fallthru
      _
    // Predicated region
    $region154: #{conv_hier_attention3.1} parent=1 // pred_check
      _
    $region155: #{conv_hier_attention3.1} parent=1 // pred_check_branch
      %186 = sbr.rel (0) target = $region157
    $region156: #{conv_hier_attention3.1} parent=1 // pred_region
      _
    $region157: #{conv_hier_attention3.1} parent=1 // pred_fallthru
      _
    // Predicated region
    $region158: #{conv_hier_attention3.1} parent=1 // pred_check
      _
    $region159: #{conv_hier_attention3.1} parent=1 // pred_check_branch
      %188 = sbr.rel (0) target = $region161
    $region160: #{conv_hier_attention3.1} parent=1 // pred_region
      _
    $region161: #{conv_hier_attention3.1} parent=1 // pred_fallthru
      _
    // Predicated region
    $region162: #{conv_hier_attention3.1} parent=1 // pred_check
      _
    $region163: #{conv_hier_attention3.1} parent=1 // pred_check_branch
      %190 = sbr.rel (0) target = $region165
    $region164: #{conv_hier_attention3.1} parent=1 // pred_region
      _
    $region165: #{conv_hier_attention3.1} parent=1 // pred_fallthru
      _
    // Predicated region
    $region166: #{conv_hier_attention3.1} parent=1 // pred_check
      _
    $region167: #{conv_hier_attention3.1} parent=1 // pred_check_branch
      %192 = sbr.rel (0) target = $region169
    $region168: #{conv_hier_attention3.1} parent=1 // pred_region
      _
    $region169: #{conv_hier_attention3.1} parent=1 // pred_fallthru
      _
    // Predicated region
    $region170: #{conv_hier_attention3.1} parent=1 // pred_check
      _
    $region171: #{conv_hier_attention3.1} parent=1 // pred_check_branch
      %194 = sbr.rel (0) target = $region173
    $region172: #{conv_hier_attention3.1} parent=1 // pred_region
      _
    $region173: #{conv_hier_attention3.1} parent=1 // pred_fallthru
      _
    // Predicated region
    $region174: #{conv_hier_attention3.1} parent=1 // pred_check
      _
    $region175: #{conv_hier_attention3.1} parent=1 // pred_check_branch
      %196 = sbr.rel (0) target = $region177
    $region176: #{conv_hier_attention3.1} parent=1 // pred_region
      _
    $region177: #{conv_hier_attention3.1} parent=1 // pred_fallthru
      _
    // Predicated region
    $region178: #{conv_hier_attention3.1} parent=1 // pred_check
      _
    $region179: #{conv_hier_attention3.1} parent=1 // pred_check_branch
      %198 = sbr.rel (0) target = $region181
    $region180: #{conv_hier_attention3.1} parent=1 // pred_region
      _
    $region181: #{conv_hier_attention3.1} parent=1 // pred_fallthru
      _
    // Predicated region
    $region182: #{conv_hier_attention3.1} parent=1 // pred_check
      _
    $region183: #{conv_hier_attention3.1} parent=1 // pred_check_branch
      %200 = sbr.rel (0) target = $region185
    $region184: #{conv_hier_attention3.1} parent=1 // pred_region
      _
    $region185: #{conv_hier_attention3.1} parent=1 // pred_fallthru
      _
    // Predicated region
    $region186: #{conv_hier_attention3.1} parent=1 // pred_check
      _
    $region187: #{conv_hier_attention3.1} parent=1 // pred_check_branch
      %202 = sbr.rel (0) target = $region189
    $region188: #{conv_hier_attention3.1} parent=1 // pred_region
      _
    $region189: #{conv_hier_attention3.1} parent=1 // pred_fallthru
      _
    // Predicated region
    $region190: #{conv_hier_attention3.1} parent=1 // pred_check
      _
    $region191: #{conv_hier_attention3.1} parent=1 // pred_check_branch
      %204 = sbr.rel (0) target = $region193
    $region192: #{conv_hier_attention3.1} parent=1 // pred_region
      _
    $region193: #{conv_hier_attention3.1} parent=1 // pred_fallthru
      _
    %v205 = vld [vmem:[%s5] sm:$0x1]
    %v206 = vld [vmem:[%s5 + $0x1] sm:$0x1]
    %v207 = vld [vmem:[%s1] sm:$0xff]
    %v208 = vld [vmem:[%s1 + $0x8] sm:$0xff]
    %v209 = vld [vmem:[%s7] sm:$0xff]
    %v210 = vld [vmem:[%s7 + $0x8] sm:$0xff]
    %v211 = vld [vmem:[%s7 + $0x10] sm:$0xf]
    %v212 = vld [vmem:[%s9] sm:$0x1]
    %v213 = vld [vmem:[%s11] sm:$0xf]
    %v214 = vld [vmem:[%s13] sm:$0xff]
    %v215 = vld [vmem:[%s13 + $0x8] sm:$0xff]
    %v216 = vld [vmem:[%s13 + $0x10] sm:$0xff]
    %v217 = vld [vmem:[%s13 + $0x18] sm:$0xff]
    %v218 = vld [vmem:[%s15] sm:$0x1]
    %v219 = vld [vmem:[%s17] sm:$0xff]
    %v220 = vld [vmem:[%s19] sm:$0x1]
    %v222 = vlaneseq
    %v223 = vshrl.u32 %v222, 7
    %v224 = vsub.s32 0, %v223
    %v225 = vrot.slane %v212, %v224
    %vm227 = vcmask 162816
    %v229 = vsel %vm227, %v207, 0
    %v232 = vsel %vm227, %v208, 0
    %vm234 = vcmask 1043456
    %v236 = vsel %vm234, %v211, 0
    %238 = vmatprep.subr.mxu0 0.0
    %239 = vmatpush1.msra.mxu0 %v209
    %240 = vmatprep.subr.mxu0 0.0
    %241 = vmatpush1.msra.mxu0 %v210
    %242 = vmatprep.subr.mxu0 0.0
    %243 = vmatpush1.msra.mxu0 %v236
    %244 = vmatprep.subr.mxu0 0.0
    %245 = vmatpush1.msra.mxu0 0.0
    %246 = vmatprep.subr.mxu0 0.0
    %247 = vmatpush1.msra.mxu0 0.0
    %248 = vmatprep.subr.mxu0 0.0
    %249 = vmatpush1.msra.mxu0 0.0
    %250 = vmatprep.subr.mxu0 0.0
    %251 = vmatpush1.msra.mxu0 0.0
    %252 = vmatprep.subr.mxu0 0.0
    %253 = vmatpush1.msra.mxu0 0.0
    %254 = vmatprep.subr.mxu0 0.0
    %255 = vmatpush1.msra.mxu0 0.0
    %256 = vmatprep.subr.mxu0 0.0
    %257 = vmatpush1.msra.mxu0 0.0
    %258 = vmatprep.subr.mxu0 0.0
    %259 = vmatpush1.msra.mxu0 0.0
    %260 = vmatprep.subr.mxu0 0.0
    %261 = vmatpush1.msra.mxu0 0.0
    %262 = vmatprep.subr.mxu0 0.0
    %263 = vmatpush1.msra.mxu0 0.0
    %264 = vmatprep.subr.mxu0 0.0
    %265 = vmatpush1.msra.mxu0 0.0
    %266 = vmatprep.subr.mxu0 0.0
    %267 = vmatpush1.msra.mxu0 0.0
    %268 = vmatprep.subr.mxu0 0.0
    %269 = vmatpush1.msra.mxu0 0.0
    %270 = vmatprep.subr.mxu0 0.0
    %271 = vmatpush1.msra.mxu0 0.0
    %272 = vmatprep.subr.mxu0 0.0
    %273 = vmatpush1.msra.mxu0 0.0
    %274 = vmatprep.subr.mxu0 0.0
    %275 = vmatpush1.msra.mxu0 0.0
    %276 = vmatprep.subr.mxu0 0.0
    %277 = vmatpush1.msra.mxu0 0.0
    %278 = vmatprep.subr.mxu0 0.0
    %279 = vmatpush1.msra.mxu0 0.0
    %280 = vmatprep.subr.mxu0 0.0
    %281 = vmatpush1.msra.mxu0 0.0
    %282 = vmatprep.subr.mxu0 0.0
    %283 = vmatpush1.msra.mxu0 0.0
    %284 = vmatprep.subr.mxu0 0.0
    %285 = vmatpush1.msra.mxu0 0.0
    %286 = vmatprep.subr.mxu0 0.0
    %287 = vmatpush1.msra.mxu0 0.0
    %288 = vmatprep.subr.mxu0 0.0
    %289 = vmatpush1.msra.mxu0 0.0
    %290 = vmatprep.subr.mxu0 0.0
    %291 = vmatpush1.msra.mxu0 0.0
    %292 = vmatprep.subr.mxu0 0.0
    %293 = vmatpush1.msra.mxu0 0.0
    %294 = vmatprep.subr.mxu0 0.0
    %295 = vmatpush1.msra.mxu0 0.0
    %296 = vmatprep.subr.mxu0 0.0
    %297 = vmatpush1.msra.mxu0 0.0
    %298 = vmatprep.subr.mxu0 0.0
    %299 = vmatpush1.msra.mxu0 0.0
    %300 = vmatprep.subr.mxu0 0.0
    %301 = vmatpush1.msra.mxu0 0.0
    %302 = vmatprep.mubr.f32.mxu0 0.0
    %303 = vmatmul.mubr.f32.gmra.mrb[0].mxu0 %v229
    %v304 = vpop.f32.mrb[0].mxu0
    %v305 = vadd.f32 %v225, %v304
    %v306 = vpop.f32.mrb[0].mxu0
    %307 = vmatprep.mubr.f32.mxu0 0.0
    %308 = vmatmul.mubr.f32.gmra.mrb[0].mxu0 %v232
    %v309 = vpop.f32.mrb[0].mxu0
    %v310 = vadd.f32 %v225, %v309
    %v311 = vpop.f32.mrb[0].mxu0
    %312 = vdwg.mxu0
    %v313 = vlaneseq
    %v314 = vshrl.u32 %v313, 7
    %v315 = vsub.s32 2, %v314
    %v316 = vrot.slane %v213, %v315
    %v317 = vsub.f32 %v305, %v316
    %v318 = vsub.f32 %v310, %v316
    %v319 = vadd.f32 %v213, 1e-05
    %v320 = vrsqrt.pop %v319
    %v321 = vlaneseq
    %v322 = vshrl.u32 %v321, 7
    %v323 = vsub.s32 3, %v322
    %v324 = vrot.slane %v320, %v323
    %v325 = vmul.f32 %v317, %v324
    %v326 = vmul.f32 %v318, %v324
    %v327 = vlaneseq
    %v328 = vshrl.u32 %v327, 7
    %v329 = vsub.s32 0, %v328
    %v330 = vrot.slane %v213, %v329
    %v331 = vmul.f32 %v325, %v330
    %v332 = vmul.f32 %v326, %v330
    %v333 = vlaneseq
    %v334 = vshrl.u32 %v333, 7
    %v335 = vsub.s32 1, %v334
    %v336 = vrot.slane %v213, %v335
    %v337 = vadd.f32 %v331, %v336
    %v338 = vadd.f32 %v332, %v336
    %vm339 = vcmp.gt.f32.partialorder %v337, 0.0
    %vm340 = vcmp.gt.f32.partialorder %v338, 0.0
    %v341 = vmul.f32 %v337, 0.25
    %v342 = vmul.f32 %v338, 0.25
    %v343 = vsel %vm339, %v337, %v341
    %v344 = vsel %vm340, %v338, %v342
    %vm345 = vcmask 261120
    %v346 = vsel %vm345, %v343, 0.0
    %v347 = vrot.slane %v346, 4
    %v348 = vadd.f32 %v346, %v347
    %v349 = vrot.slane %v348, 2
    %v350 = vadd.f32 %v348, %v349
    %v351 = vrot.slane %v350, 1
    %v352 = vadd.f32 %v350, %v351
    %v353 = vsel %vm345, %v344, 0.0
    %v354 = vrot.slane %v353, 4
    %v355 = vadd.f32 %v353, %v354
    %v356 = vrot.slane %v355, 2
    %v357 = vadd.f32 %v355, %v356
    %v358 = vrot.slane %v357, 1
    %v359 = vadd.f32 %v357, %v358
    %v360 = vrcp.pop 8.0
    %v361 = vmul.f32 %v352, %v360
    %v362 = vmul.f32 %v359, %v360
    %v364 = vlaneseq
    %v365 = vshrl.u32 %v364, 7
    %v366 = vsub.s32 0, %v365
    %v367 = vrot.slane %v218, %v366
    %vm371 = vcmask 1041409
    %v372 = vsel %vm371, %v362, %v361
    %v373 = vsel %vm345, %v372, 0
    %375 = vmatprep.subr.mxu0 0.0
    %376 = vmatpush1.msra.mxu0 %v214
    %377 = vmatprep.subr.mxu0 0.0
    %378 = vmatpush1.msra.mxu0 %v215
    %379 = vmatprep.subr.mxu0 0.0
    %380 = vmatpush1.msra.mxu0 %v216
    %381 = vmatprep.subr.mxu0 0.0
    %382 = vmatpush1.msra.mxu0 %v217
    %383 = vmatprep.subr.mxu0 0.0
    %384 = vmatpush1.msra.mxu0 0.0
    %385 = vmatprep.subr.mxu0 0.0
    %386 = vmatpush1.msra.mxu0 0.0
    %387 = vmatprep.subr.mxu0 0.0
    %388 = vmatpush1.msra.mxu0 0.0
    %389 = vmatprep.subr.mxu0 0.0
    %390 = vmatpush1.msra.mxu0 0.0
    %391 = vmatprep.subr.mxu0 0.0
    %392 = vmatpush1.msra.mxu0 0.0
    %393 = vmatprep.subr.mxu0 0.0
    %394 = vmatpush1.msra.mxu0 0.0
    %395 = vmatprep.subr.mxu0 0.0
    %396 = vmatpush1.msra.mxu0 0.0
    %397 = vmatprep.subr.mxu0 0.0
    %398 = vmatpush1.msra.mxu0 0.0
    %399 = vmatprep.subr.mxu0 0.0
    %400 = vmatpush1.msra.mxu0 0.0
    %401 = vmatprep.subr.mxu0 0.0
    %402 = vmatpush1.msra.mxu0 0.0
    %403 = vmatprep.subr.mxu0 0.0
    %404 = vmatpush1.msra.mxu0 0.0
    %405 = vmatprep.subr.mxu0 0.0
    %406 = vmatpush1.msra.mxu0 0.0
    %407 = vmatprep.subr.mxu0 0.0
    %408 = vmatpush1.msra.mxu0 0.0
    %409 = vmatprep.subr.mxu0 0.0
    %410 = vmatpush1.msra.mxu0 0.0
    %411 = vmatprep.subr.mxu0 0.0
    %412 = vmatpush1.msra.mxu0 0.0
    %413 = vmatprep.subr.mxu0 0.0
    %414 = vmatpush1.msra.mxu0 0.0
    %415 = vmatprep.subr.mxu0 0.0
    %416 = vmatpush1.msra.mxu0 0.0
    %417 = vmatprep.subr.mxu0 0.0
    %418 = vmatpush1.msra.mxu0 0.0
    %419 = vmatprep.subr.mxu0 0.0
    %420 = vmatpush1.msra.mxu0 0.0
    %421 = vmatprep.subr.mxu0 0.0
    %422 = vmatpush1.msra.mxu0 0.0
    %423 = vmatprep.subr.mxu0 0.0
    %424 = vmatpush1.msra.mxu0 0.0
    %425 = vmatprep.subr.mxu0 0.0
    %426 = vmatpush1.msra.mxu0 0.0
    %427 = vmatprep.subr.mxu0 0.0
    %428 = vmatpush1.msra.mxu0 0.0
    %429 = vmatprep.subr.mxu0 0.0
    %430 = vmatpush1.msra.mxu0 0.0
    %431 = vmatprep.subr.mxu0 0.0
    %432 = vmatpush1.msra.mxu0 0.0
    %433 = vmatprep.subr.mxu0 0.0
    %434 = vmatpush1.msra.mxu0 0.0
    %435 = vmatprep.subr.mxu0 0.0
    %436 = vmatpush1.msra.mxu0 0.0
    %437 = vmatprep.subr.mxu0 0.0
    %438 = vmatpush1.msra.mxu0 0.0
    %439 = vmatprep.mubr.f32.mxu0 0.0
    %440 = vmatmul.mubr.f32.gmra.mrb[0].mxu0 %v373
    %v441 = vpop.f32.mrb[0].mxu0
    %v442 = vadd.f32 %v367, %v441
    %v443 = vpop.f32.mrb[0].mxu0
    %444 = vdwg.mxu0
    %vm445 = vcmp.gt.f32.partialorder %v442, 0.0
    %v446 = vmul.f32 %v442, 0.25
    %v447 = vsel %vm445, %v442, %v446
    %v449 = vlaneseq
    %v450 = vshrl.u32 %v449, 7
    %v451 = vsub.s32 0, %v450
    %v452 = vrot.slane %v220, %v451
    %vm454 = vcmask 64512
    %v456 = vsel %vm454, %v447, 0
    %458 = vmatprep.subr.mxu0 0.0
    %459 = vmatpush1.msra.mxu0 %v219
    %460 = vmatprep.subr.mxu0 0.0
    %461 = vmatpush1.msra.mxu0 0.0
    %462 = vmatprep.subr.mxu0 0.0
    %463 = vmatpush1.msra.mxu0 0.0
    %464 = vmatprep.subr.mxu0 0.0
    %465 = vmatpush1.msra.mxu0 0.0
    %466 = vmatprep.subr.mxu0 0.0
    %467 = vmatpush1.msra.mxu0 0.0
    %468 = vmatprep.subr.mxu0 0.0
    %469 = vmatpush1.msra.mxu0 0.0
    %470 = vmatprep.subr.mxu0 0.0
    %471 = vmatpush1.msra.mxu0 0.0
    %472 = vmatprep.subr.mxu0 0.0
    %473 = vmatpush1.msra.mxu0 0.0
    %474 = vmatprep.subr.mxu0 0.0
    %475 = vmatpush1.msra.mxu0 0.0
    %476 = vmatprep.subr.mxu0 0.0
    %477 = vmatpush1.msra.mxu0 0.0
    %478 = vmatprep.subr.mxu0 0.0
    %479 = vmatpush1.msra.mxu0 0.0
    %480 = vmatprep.subr.mxu0 0.0
    %481 = vmatpush1.msra.mxu0 0.0
    %482 = vmatprep.subr.mxu0 0.0
    %483 = vmatpush1.msra.mxu0 0.0
    %484 = vmatprep.subr.mxu0 0.0
    %485 = vmatpush1.msra.mxu0 0.0
    %486 = vmatprep.subr.mxu0 0.0
    %487 = vmatpush1.msra.mxu0 0.0
    %488 = vmatprep.subr.mxu0 0.0
    %489 = vmatpush1.msra.mxu0 0.0
    %490 = vmatprep.subr.mxu0 0.0
    %491 = vmatpush1.msra.mxu0 0.0
    %492 = vmatprep.subr.mxu0 0.0
    %493 = vmatpush1.msra.mxu0 0.0
    %494 = vmatprep.subr.mxu0 0.0
    %495 = vmatpush1.msra.mxu0 0.0
    %496 = vmatprep.subr.mxu0 0.0
    %497 = vmatpush1.msra.mxu0 0.0
    %498 = vmatprep.subr.mxu0 0.0
    %499 = vmatpush1.msra.mxu0 0.0
    %500 = vmatprep.subr.mxu0 0.0
    %501 = vmatpush1.msra.mxu0 0.0
    %502 = vmatprep.subr.mxu0 0.0
    %503 = vmatpush1.msra.mxu0 0.0
    %504 = vmatprep.subr.mxu0 0.0
    %505 = vmatpush1.msra.mxu0 0.0
    %506 = vmatprep.subr.mxu0 0.0
    %507 = vmatpush1.msra.mxu0 0.0
    %508 = vmatprep.subr.mxu0 0.0
    %509 = vmatpush1.msra.mxu0 0.0
    %510 = vmatprep.subr.mxu0 0.0
    %511 = vmatpush1.msra.mxu0 0.0
    %512 = vmatprep.subr.mxu0 0.0
    %513 = vmatpush1.msra.mxu0 0.0
    %514 = vmatprep.subr.mxu0 0.0
    %515 = vmatpush1.msra.mxu0 0.0
    %516 = vmatprep.subr.mxu0 0.0
    %517 = vmatpush1.msra.mxu0 0.0
    %518 = vmatprep.subr.mxu0 0.0
    %519 = vmatpush1.msra.mxu0 0.0
    %520 = vmatprep.subr.mxu0 0.0
    %521 = vmatpush1.msra.mxu0 0.0
    %522 = vmatprep.mubr.f32.mxu0 0.0
    %523 = vmatmul.mubr.f32.gmra.mrb[0].mxu0 %v456
    %v524 = vpop.f32.mrb[0].mxu0
    %v525 = vadd.f32 %v452, %v524
    %v526 = vpop.f32.mrb[0].mxu0
    %527 = vdwg.mxu0
    %v528 = vxor.u32 %v525, 2147483648
    %v529 = vmul.f32 %v528, 1.442695
    %v530 = vpow.pop %v529
    %v531 = vadd.f32 %v530, 1.0
    %v532 = vrcp.pop %v531
    %v533 = vmul.f32 1.0, %v532
    %v536 = vunpack.c.l.s4 1966171168
    %v537 = vunpack.c.0.s8 %v536
    %v538 = vlaneseq
    %v539 = vshrl.u32 %v538, 7
    %v540 = vsub.s32 %v537, %v539
    %v541 = vrot.slane %v533, %v540
    %v542 = vcombine.high %v541, %v541
    %v544 = vunpack.c.l.s4 1966171168
    %v545 = vunpack.c.0.s8 %v544
    %v546 = vlaneseq
    %v547 = vshrl.u32 %v546, 7
    %v548 = vsub.s32 %v545, %v547
    %v549 = vrot.slane %v541, %v548
    %v551 = vunpack.c.l.s4 1966171168
    %v552 = vunpack.c.0.s8 %v551
    %v553 = vlaneseq
    %v554 = vshrl.u32 %v553, 7
    %v555 = vsub.s32 %v552, %v554
    %v556 = vrot.slane %v542, %v555
    %v557 = vlaneseq
    %v558 = vshrl.u32 %v557, 7
    %v559 = vsub.s32 0, %v558
    %v560 = vrot.slane %v549, %v559
    %v561 = vlaneseq
    %v562 = vshrl.u32 %v561, 7
    %v563 = vsub.s32 0, %v562
    %v564 = vrot.slane %v556, %v563
    %v567 = vmul.f32 %v343, %v560
    %v568 = vmul.f32 %v344, %v564
    %v569 = vld [vmem:[%s3] sm:$0xff]
    %v570 = vld [vmem:[%s3 + $0x8] sm:$0xff]
    %v571 = vld [vmem:[%s21] sm:$0xff]
    %v572 = vld [vmem:[%s21 + $0x8] sm:$0xff]
    %v573 = vld [vmem:[%s21 + $0x10] sm:$0xf]
    %v574 = vld [vmem:[%s23] sm:$0x1]
    %v575 = vld [vmem:[%s25] sm:$0xf]
    %v576 = vld [vmem:[%s27] sm:$0xff]
    %v577 = vld [vmem:[%s27 + $0x8] sm:$0xff]
    %v578 = vld [vmem:[%s27 + $0x10] sm:$0xff]
    %v579 = vld [vmem:[%s27 + $0x18] sm:$0xff]
    %v580 = vld [vmem:[%s29] sm:$0x1]
    %v581 = vld [vmem:[%s31] sm:$0xff]
    %v582 = vld [vmem:[%s33] sm:$0x1]
    %v584 = vlaneseq
    %v585 = vshrl.u32 %v584, 7
    %v586 = vsub.s32 0, %v585
    %v587 = vrot.slane %v574, %v586
    %v590 = vsel %vm227, %v569, 0
    %v593 = vsel %vm227, %v570, 0
    %v596 = vsel %vm234, %v573, 0
    %598 = vmatprep.subr.mxu0 0.0
    %599 = vmatpush1.msra.mxu0 %v571
    %600 = vmatprep.subr.mxu0 0.0
    %601 = vmatpush1.msra.mxu0 %v572
    %602 = vmatprep.subr.mxu0 0.0
    %603 = vmatpush1.msra.mxu0 %v596
    %604 = vmatprep.subr.mxu0 0.0
    %605 = vmatpush1.msra.mxu0 0.0
    %606 = vmatprep.subr.mxu0 0.0
    %607 = vmatpush1.msra.mxu0 0.0
    %608 = vmatprep.subr.mxu0 0.0
    %609 = vmatpush1.msra.mxu0 0.0
    %610 = vmatprep.subr.mxu0 0.0
    %611 = vmatpush1.msra.mxu0 0.0
    %612 = vmatprep.subr.mxu0 0.0
    %613 = vmatpush1.msra.mxu0 0.0
    %614 = vmatprep.subr.mxu0 0.0
    %615 = vmatpush1.msra.mxu0 0.0
    %616 = vmatprep.subr.mxu0 0.0
    %617 = vmatpush1.msra.mxu0 0.0
    %618 = vmatprep.subr.mxu0 0.0
    %619 = vmatpush1.msra.mxu0 0.0
    %620 = vmatprep.subr.mxu0 0.0
    %621 = vmatpush1.msra.mxu0 0.0
    %622 = vmatprep.subr.mxu0 0.0
    %623 = vmatpush1.msra.mxu0 0.0
    %624 = vmatprep.subr.mxu0 0.0
    %625 = vmatpush1.msra.mxu0 0.0
    %626 = vmatprep.subr.mxu0 0.0
    %627 = vmatpush1.msra.mxu0 0.0
    %628 = vmatprep.subr.mxu0 0.0
    %629 = vmatpush1.msra.mxu0 0.0
    %630 = vmatprep.subr.mxu0 0.0
    %631 = vmatpush1.msra.mxu0 0.0
    %632 = vmatprep.subr.mxu0 0.0
    %633 = vmatpush1.msra.mxu0 0.0
    %634 = vmatprep.subr.mxu0 0.0
    %635 = vmatpush1.msra.mxu0 0.0
    %636 = vmatprep.subr.mxu0 0.0
    %637 = vmatpush1.msra.mxu0 0.0
    %638 = vmatprep.subr.mxu0 0.0
    %639 = vmatpush1.msra.mxu0 0.0
    %640 = vmatprep.subr.mxu0 0.0
    %641 = vmatpush1.msra.mxu0 0.0
    %642 = vmatprep.subr.mxu0 0.0
    %643 = vmatpush1.msra.mxu0 0.0
    %644 = vmatprep.subr.mxu0 0.0
    %645 = vmatpush1.msra.mxu0 0.0
    %646 = vmatprep.subr.mxu0 0.0
    %647 = vmatpush1.msra.mxu0 0.0
    %648 = vmatprep.subr.mxu0 0.0
    %649 = vmatpush1.msra.mxu0 0.0
    %650 = vmatprep.subr.mxu0 0.0
    %651 = vmatpush1.msra.mxu0 0.0
    %652 = vmatprep.subr.mxu0 0.0
    %653 = vmatpush1.msra.mxu0 0.0
    %654 = vmatprep.subr.mxu0 0.0
    %655 = vmatpush1.msra.mxu0 0.0
    %656 = vmatprep.subr.mxu0 0.0
    %657 = vmatpush1.msra.mxu0 0.0
    %658 = vmatprep.subr.mxu0 0.0
    %659 = vmatpush1.msra.mxu0 0.0
    %660 = vmatprep.subr.mxu0 0.0
    %661 = vmatpush1.msra.mxu0 0.0
    %662 = vmatprep.mubr.f32.mxu0 0.0
    %663 = vmatmul.mubr.f32.gmra.mrb[0].mxu0 %v590
    %v664 = vpop.f32.mrb[0].mxu0
    %v665 = vadd.f32 %v587, %v664
    %v666 = vpop.f32.mrb[0].mxu0
    %667 = vmatprep.mubr.f32.mxu0 0.0
    %668 = vmatmul.mubr.f32.gmra.mrb[0].mxu0 %v593
    %v669 = vpop.f32.mrb[0].mxu0
    %v670 = vadd.f32 %v587, %v669
    %v671 = vpop.f32.mrb[0].mxu0
    %672 = vdwg.mxu0
    %v673 = vlaneseq
    %v674 = vshrl.u32 %v673, 7
    %v675 = vsub.s32 2, %v674
    %v676 = vrot.slane %v575, %v675
    %v677 = vsub.f32 %v665, %v676
    %v678 = vsub.f32 %v670, %v676
    %v679 = vadd.f32 %v575, 1e-05
    %v680 = vrsqrt.pop %v679
    %v681 = vlaneseq
    %v682 = vshrl.u32 %v681, 7
    %v683 = vsub.s32 3, %v682
    %v684 = vrot.slane %v680, %v683
    %v685 = vmul.f32 %v677, %v684
    %v686 = vmul.f32 %v678, %v684
    %v687 = vlaneseq
    %v688 = vshrl.u32 %v687, 7
    %v689 = vsub.s32 0, %v688
    %v690 = vrot.slane %v575, %v689
    %v691 = vmul.f32 %v685, %v690
    %v692 = vmul.f32 %v686, %v690
    %v693 = vlaneseq
    %v694 = vshrl.u32 %v693, 7
    %v695 = vsub.s32 1, %v694
    %v696 = vrot.slane %v575, %v695
    %v697 = vadd.f32 %v691, %v696
    %v698 = vadd.f32 %v692, %v696
    %vm699 = vcmp.gt.f32.partialorder %v697, 0.0
    %vm700 = vcmp.gt.f32.partialorder %v698, 0.0
    %v701 = vmul.f32 %v697, 0.25
    %v702 = vmul.f32 %v698, 0.25
    %v703 = vsel %vm699, %v697, %v701
    %v704 = vsel %vm700, %v698, %v702
    %v705 = vsel %vm345, %v703, 0.0
    %v706 = vrot.slane %v705, 4
    %v707 = vadd.f32 %v705, %v706
    %v708 = vrot.slane %v707, 2
    %v709 = vadd.f32 %v707, %v708
    %v710 = vrot.slane %v709, 1
    %v711 = vadd.f32 %v709, %v710
    %v712 = vsel %vm345, %v704, 0.0
    %v713 = vrot.slane %v712, 4
    %v714 = vadd.f32 %v712, %v713
    %v715 = vrot.slane %v714, 2
    %v716 = vadd.f32 %v714, %v715
    %v717 = vrot.slane %v716, 1
    %v718 = vadd.f32 %v716, %v717
    %v719 = vmul.f32 %v711, %v360
    %v720 = vmul.f32 %v718, %v360
    %v722 = vlaneseq
    %v723 = vshrl.u32 %v722, 7
    %v724 = vsub.s32 0, %v723
    %v725 = vrot.slane %v580, %v724
    %v729 = vsel %vm371, %v720, %v719
    %v730 = vsel %vm345, %v729, 0
    %732 = vmatprep.subr.mxu0 0.0
    %733 = vmatpush1.msra.mxu0 %v576
    %734 = vmatprep.subr.mxu0 0.0
    %735 = vmatpush1.msra.mxu0 %v577
    %736 = vmatprep.subr.mxu0 0.0
    %737 = vmatpush1.msra.mxu0 %v578
    %738 = vmatprep.subr.mxu0 0.0
    %739 = vmatpush1.msra.mxu0 %v579
    %740 = vmatprep.subr.mxu0 0.0
    %741 = vmatpush1.msra.mxu0 0.0
    %742 = vmatprep.subr.mxu0 0.0
    %743 = vmatpush1.msra.mxu0 0.0
    %744 = vmatprep.subr.mxu0 0.0
    %745 = vmatpush1.msra.mxu0 0.0
    %746 = vmatprep.subr.mxu0 0.0
    %747 = vmatpush1.msra.mxu0 0.0
    %748 = vmatprep.subr.mxu0 0.0
    %749 = vmatpush1.msra.mxu0 0.0
    %750 = vmatprep.subr.mxu0 0.0
    %751 = vmatpush1.msra.mxu0 0.0
    %752 = vmatprep.subr.mxu0 0.0
    %753 = vmatpush1.msra.mxu0 0.0
    %754 = vmatprep.subr.mxu0 0.0
    %755 = vmatpush1.msra.mxu0 0.0
    %756 = vmatprep.subr.mxu0 0.0
    %757 = vmatpush1.msra.mxu0 0.0
    %758 = vmatprep.subr.mxu0 0.0
    %759 = vmatpush1.msra.mxu0 0.0
    %760 = vmatprep.subr.mxu0 0.0
    %761 = vmatpush1.msra.mxu0 0.0
    %762 = vmatprep.subr.mxu0 0.0
    %763 = vmatpush1.msra.mxu0 0.0
    %764 = vmatprep.subr.mxu0 0.0
    %765 = vmatpush1.msra.mxu0 0.0
    %766 = vmatprep.subr.mxu0 0.0
    %767 = vmatpush1.msra.mxu0 0.0
    %768 = vmatprep.subr.mxu0 0.0
    %769 = vmatpush1.msra.mxu0 0.0
    %770 = vmatprep.subr.mxu0 0.0
    %771 = vmatpush1.msra.mxu0 0.0
    %772 = vmatprep.subr.mxu0 0.0
    %773 = vmatpush1.msra.mxu0 0.0
    %774 = vmatprep.subr.mxu0 0.0
    %775 = vmatpush1.msra.mxu0 0.0
    %776 = vmatprep.subr.mxu0 0.0
    %777 = vmatpush1.msra.mxu0 0.0
    %778 = vmatprep.subr.mxu0 0.0
    %779 = vmatpush1.msra.mxu0 0.0
    %780 = vmatprep.subr.mxu0 0.0
    %781 = vmatpush1.msra.mxu0 0.0
    %782 = vmatprep.subr.mxu0 0.0
    %783 = vmatpush1.msra.mxu0 0.0
    %784 = vmatprep.subr.mxu0 0.0
    %785 = vmatpush1.msra.mxu0 0.0
    %786 = vmatprep.subr.mxu0 0.0
    %787 = vmatpush1.msra.mxu0 0.0
    %788 = vmatprep.subr.mxu0 0.0
    %789 = vmatpush1.msra.mxu0 0.0
    %790 = vmatprep.subr.mxu0 0.0
    %791 = vmatpush1.msra.mxu0 0.0
    %792 = vmatprep.subr.mxu0 0.0
    %793 = vmatpush1.msra.mxu0 0.0
    %794 = vmatprep.subr.mxu0 0.0
    %795 = vmatpush1.msra.mxu0 0.0
    %796 = vmatprep.mubr.f32.mxu0 0.0
    %797 = vmatmul.mubr.f32.gmra.mrb[0].mxu0 %v730
    %v798 = vpop.f32.mrb[0].mxu0
    %v799 = vadd.f32 %v725, %v798
    %v800 = vpop.f32.mrb[0].mxu0
    %801 = vdwg.mxu0
    %vm802 = vcmp.gt.f32.partialorder %v799, 0.0
    %v803 = vmul.f32 %v799, 0.25
    %v804 = vsel %vm802, %v799, %v803
    %v806 = vlaneseq
    %v807 = vshrl.u32 %v806, 7
    %v808 = vsub.s32 0, %v807
    %v809 = vrot.slane %v582, %v808
    %v812 = vsel %vm454, %v804, 0
    %814 = vmatprep.subr.mxu0 0.0
    %815 = vmatpush1.msra.mxu0 %v581
    %816 = vmatprep.subr.mxu0 0.0
    %817 = vmatpush1.msra.mxu0 0.0
    %818 = vmatprep.subr.mxu0 0.0
    %819 = vmatpush1.msra.mxu0 0.0
    %820 = vmatprep.subr.mxu0 0.0
    %821 = vmatpush1.msra.mxu0 0.0
    %822 = vmatprep.subr.mxu0 0.0
    %823 = vmatpush1.msra.mxu0 0.0
    %824 = vmatprep.subr.mxu0 0.0
    %825 = vmatpush1.msra.mxu0 0.0
    %826 = vmatprep.subr.mxu0 0.0
    %827 = vmatpush1.msra.mxu0 0.0
    %828 = vmatprep.subr.mxu0 0.0
    %829 = vmatpush1.msra.mxu0 0.0
    %830 = vmatprep.subr.mxu0 0.0
    %831 = vmatpush1.msra.mxu0 0.0
    %832 = vmatprep.subr.mxu0 0.0
    %833 = vmatpush1.msra.mxu0 0.0
    %834 = vmatprep.subr.mxu0 0.0
    %835 = vmatpush1.msra.mxu0 0.0
    %836 = vmatprep.subr.mxu0 0.0
    %837 = vmatpush1.msra.mxu0 0.0
    %838 = vmatprep.subr.mxu0 0.0
    %839 = vmatpush1.msra.mxu0 0.0
    %840 = vmatprep.subr.mxu0 0.0
    %841 = vmatpush1.msra.mxu0 0.0
    %842 = vmatprep.subr.mxu0 0.0
    %843 = vmatpush1.msra.mxu0 0.0
    %844 = vmatprep.subr.mxu0 0.0
    %845 = vmatpush1.msra.mxu0 0.0
    %846 = vmatprep.subr.mxu0 0.0
    %847 = vmatpush1.msra.mxu0 0.0
    %848 = vmatprep.subr.mxu0 0.0
    %849 = vmatpush1.msra.mxu0 0.0
    %850 = vmatprep.subr.mxu0 0.0
    %851 = vmatpush1.msra.mxu0 0.0
    %852 = vmatprep.subr.mxu0 0.0
    %853 = vmatpush1.msra.mxu0 0.0
    %854 = vmatprep.subr.mxu0 0.0
    %855 = vmatpush1.msra.mxu0 0.0
    %856 = vmatprep.subr.mxu0 0.0
    %857 = vmatpush1.msra.mxu0 0.0
    %858 = vmatprep.subr.mxu0 0.0
    %859 = vmatpush1.msra.mxu0 0.0
    %860 = vmatprep.subr.mxu0 0.0
    %861 = vmatpush1.msra.mxu0 0.0
    %862 = vmatprep.subr.mxu0 0.0
    %863 = vmatpush1.msra.mxu0 0.0
    %864 = vmatprep.subr.mxu0 0.0
    %865 = vmatpush1.msra.mxu0 0.0
    %866 = vmatprep.subr.mxu0 0.0
    %867 = vmatpush1.msra.mxu0 0.0
    %868 = vmatprep.subr.mxu0 0.0
    %869 = vmatpush1.msra.mxu0 0.0
    %870 = vmatprep.subr.mxu0 0.0
    %871 = vmatpush1.msra.mxu0 0.0
    %872 = vmatprep.subr.mxu0 0.0
    %873 = vmatpush1.msra.mxu0 0.0
    %874 = vmatprep.subr.mxu0 0.0
    %875 = vmatpush1.msra.mxu0 0.0
    %876 = vmatprep.subr.mxu0 0.0
    %877 = vmatpush1.msra.mxu0 0.0
    %878 = vmatprep.mubr.f32.mxu0 0.0
    %879 = vmatmul.mubr.f32.gmra.mrb[0].mxu0 %v812
    %v880 = vpop.f32.mrb[0].mxu0
    %v881 = vadd.f32 %v809, %v880
    %v882 = vpop.f32.mrb[0].mxu0
    %883 = vdwg.mxu0
    %v884 = vxor.u32 %v881, 2147483648
    %v885 = vmul.f32 %v884, 1.442695
    %v886 = vpow.pop %v885
    %v887 = vadd.f32 %v886, 1.0
    %v888 = vrcp.pop %v887
    %v889 = vmul.f32 1.0, %v888
    %v892 = vunpack.c.l.s4 1966171168
    %v893 = vunpack.c.0.s8 %v892
    %v894 = vlaneseq
    %v895 = vshrl.u32 %v894, 7
    %v896 = vsub.s32 %v893, %v895
    %v897 = vrot.slane %v889, %v896
    %v898 = vcombine.high %v897, %v897
    %v900 = vunpack.c.l.s4 1966171168
    %v901 = vunpack.c.0.s8 %v900
    %v902 = vlaneseq
    %v903 = vshrl.u32 %v902, 7
    %v904 = vsub.s32 %v901, %v903
    %v905 = vrot.slane %v897, %v904
    %v907 = vunpack.c.l.s4 1966171168
    %v908 = vunpack.c.0.s8 %v907
    %v909 = vlaneseq
    %v910 = vshrl.u32 %v909, 7
    %v911 = vsub.s32 %v908, %v910
    %v912 = vrot.slane %v898, %v911
    %v913 = vlaneseq
    %v914 = vshrl.u32 %v913, 7
    %v915 = vsub.s32 0, %v914
    %v916 = vrot.slane %v905, %v915
    %v917 = vlaneseq
    %v918 = vshrl.u32 %v917, 7
    %v919 = vsub.s32 0, %v918
    %v920 = vrot.slane %v912, %v919
    %v923 = vmul.f32 %v703, %v916
    %v924 = vmul.f32 %v704, %v920
    %v925 = vld [vmem:[%s35] sm:$0xff]
    %v926 = vld [vmem:[%s35 + $0x8] sm:$0xff]
    %v927 = vld [vmem:[%s35 + $0x10] sm:$0xff]
    %v928 = vld [vmem:[%s35 + $0x18] sm:$0xff]
    %v929 = vld [vmem:[%s37] sm:$0x1]
    %v930 = vld [vmem:[%s39] sm:$0xff]
    %v931 = vld [vmem:[%s39 + $0x8] sm:$0xff]
    %v932 = vld [vmem:[%s39 + $0x10] sm:$0xff]
    %v933 = vld [vmem:[%s39 + $0x18] sm:$0xff]
    %v934 = vld [vmem:[%s41] sm:$0x1]
    %v935 = vld [vmem:[%s43] sm:$0xff]
    %v936 = vld [vmem:[%s43 + $0x8] sm:$0xff]
    %v937 = vld [vmem:[%s43 + $0x10] sm:$0xff]
    %v938 = vld [vmem:[%s43 + $0x18] sm:$0xff]
    %v939 = vld [vmem:[%s45] sm:$0x1]
    %v941 = vlaneseq
    %v942 = vshrl.u32 %v941, 7
    %v943 = vsub.s32 0, %v942
    %v944 = vrot.slane %v929, %v943
    %v947 = vsel %vm345, %v567, 0
    %v950 = vsel %vm345, %v568, 0
    %952 = vmatprep.subr.mxu0 0.0
    %953 = vmatpush1.msra.mxu0 %v925
    %954 = vmatprep.subr.mxu0 0.0
    %955 = vmatpush1.msra.mxu0 %v926
    %956 = vmatprep.subr.mxu0 0.0
    %957 = vmatpush1.msra.mxu0 %v927
    %958 = vmatprep.subr.mxu0 0.0
    %959 = vmatpush1.msra.mxu0 %v928
    %960 = vmatprep.subr.mxu0 0.0
    %961 = vmatpush1.msra.mxu0 0.0
    %962 = vmatprep.subr.mxu0 0.0
    %963 = vmatpush1.msra.mxu0 0.0
    %964 = vmatprep.subr.mxu0 0.0
    %965 = vmatpush1.msra.mxu0 0.0
    %966 = vmatprep.subr.mxu0 0.0
    %967 = vmatpush1.msra.mxu0 0.0
    %968 = vmatprep.subr.mxu0 0.0
    %969 = vmatpush1.msra.mxu0 0.0
    %970 = vmatprep.subr.mxu0 0.0
    %971 = vmatpush1.msra.mxu0 0.0
    %972 = vmatprep.subr.mxu0 0.0
    %973 = vmatpush1.msra.mxu0 0.0
    %974 = vmatprep.subr.mxu0 0.0
    %975 = vmatpush1.msra.mxu0 0.0
    %976 = vmatprep.subr.mxu0 0.0
    %977 = vmatpush1.msra.mxu0 0.0
    %978 = vmatprep.subr.mxu0 0.0
    %979 = vmatpush1.msra.mxu0 0.0
    %980 = vmatprep.subr.mxu0 0.0
    %981 = vmatpush1.msra.mxu0 0.0
    %982 = vmatprep.subr.mxu0 0.0
    %983 = vmatpush1.msra.mxu0 0.0
    %984 = vmatprep.subr.mxu0 0.0
    %985 = vmatpush1.msra.mxu0 0.0
    %986 = vmatprep.subr.mxu0 0.0
    %987 = vmatpush1.msra.mxu0 0.0
    %988 = vmatprep.subr.mxu0 0.0
    %989 = vmatpush1.msra.mxu0 0.0
    %990 = vmatprep.subr.mxu0 0.0
    %991 = vmatpush1.msra.mxu0 0.0
    %992 = vmatprep.subr.mxu0 0.0
    %993 = vmatpush1.msra.mxu0 0.0
    %994 = vmatprep.subr.mxu0 0.0
    %995 = vmatpush1.msra.mxu0 0.0
    %996 = vmatprep.subr.mxu0 0.0
    %997 = vmatpush1.msra.mxu0 0.0
    %998 = vmatprep.subr.mxu0 0.0
    %999 = vmatpush1.msra.mxu0 0.0
    %1000 = vmatprep.subr.mxu0 0.0
    %1001 = vmatpush1.msra.mxu0 0.0
    %1002 = vmatprep.subr.mxu0 0.0
    %1003 = vmatpush1.msra.mxu0 0.0
    %1004 = vmatprep.subr.mxu0 0.0
    %1005 = vmatpush1.msra.mxu0 0.0
    %1006 = vmatprep.subr.mxu0 0.0
    %1007 = vmatpush1.msra.mxu0 0.0
    %1008 = vmatprep.subr.mxu0 0.0
    %1009 = vmatpush1.msra.mxu0 0.0
    %1010 = vmatprep.subr.mxu0 0.0
    %1011 = vmatpush1.msra.mxu0 0.0
    %1012 = vmatprep.subr.mxu0 0.0
    %1013 = vmatpush1.msra.mxu0 0.0
    %1014 = vmatprep.subr.mxu0 0.0
    %1015 = vmatpush1.msra.mxu0 0.0
    %1016 = vmatprep.mubr.f32.mxu0 0.0
    %1017 = vmatmul.mubr.f32.gmra.mrb[0].mxu0 %v947
    %v1018 = vpop.f32.mrb[0].mxu0
    %v1019 = vadd.f32 %v944, %v1018
    %v1020 = vpop.f32.mrb[0].mxu0
    %1021 = vmatprep.mubr.f32.mxu0 0.0
    %1022 = vmatmul.mubr.f32.gmra.mrb[0].mxu0 %v950
    %v1023 = vpop.f32.mrb[0].mxu0
    %v1024 = vadd.f32 %v944, %v1023
    %v1025 = vpop.f32.mrb[0].mxu0
    %1026 = vdwg.mxu0
    %v1028 = vlaneseq
    %v1029 = vshrl.u32 %v1028, 7
    %v1030 = vsub.s32 0, %v1029
    %v1031 = vrot.slane %v934, %v1030
    %v1034 = vsel %vm345, %v923, 0
    %v1037 = vsel %vm345, %v924, 0
    %1039 = vmatprep.subr.mxu0 0.0
    %1040 = vmatpush1.msra.mxu0 %v930
    %1041 = vmatprep.subr.mxu0 0.0
    %1042 = vmatpush1.msra.mxu0 %v931
    %1043 = vmatprep.subr.mxu0 0.0
    %1044 = vmatpush1.msra.mxu0 %v932
    %1045 = vmatprep.subr.mxu0 0.0
    %1046 = vmatpush1.msra.mxu0 %v933
    %1047 = vmatprep.subr.mxu0 0.0
    %1048 = vmatpush1.msra.mxu0 0.0
    %1049 = vmatprep.subr.mxu0 0.0
    %1050 = vmatpush1.msra.mxu0 0.0
    %1051 = vmatprep.subr.mxu0 0.0
    %1052 = vmatpush1.msra.mxu0 0.0
    %1053 = vmatprep.subr.mxu0 0.0
    %1054 = vmatpush1.msra.mxu0 0.0
    %1055 = vmatprep.subr.mxu0 0.0
    %1056 = vmatpush1.msra.mxu0 0.0
    %1057 = vmatprep.subr.mxu0 0.0
    %1058 = vmatpush1.msra.mxu0 0.0
    %1059 = vmatprep.subr.mxu0 0.0
    %1060 = vmatpush1.msra.mxu0 0.0
    %1061 = vmatprep.subr.mxu0 0.0
    %1062 = vmatpush1.msra.mxu0 0.0
    %1063 = vmatprep.subr.mxu0 0.0
    %1064 = vmatpush1.msra.mxu0 0.0
    %1065 = vmatprep.subr.mxu0 0.0
    %1066 = vmatpush1.msra.mxu0 0.0
    %1067 = vmatprep.subr.mxu0 0.0
    %1068 = vmatpush1.msra.mxu0 0.0
    %1069 = vmatprep.subr.mxu0 0.0
    %1070 = vmatpush1.msra.mxu0 0.0
    %1071 = vmatprep.subr.mxu0 0.0
    %1072 = vmatpush1.msra.mxu0 0.0
    %1073 = vmatprep.subr.mxu0 0.0
    %1074 = vmatpush1.msra.mxu0 0.0
    %1075 = vmatprep.subr.mxu0 0.0
    %1076 = vmatpush1.msra.mxu0 0.0
    %1077 = vmatprep.subr.mxu0 0.0
    %1078 = vmatpush1.msra.mxu0 0.0
    %1079 = vmatprep.subr.mxu0 0.0
    %1080 = vmatpush1.msra.mxu0 0.0
    %1081 = vmatprep.subr.mxu0 0.0
    %1082 = vmatpush1.msra.mxu0 0.0
    %1083 = vmatprep.subr.mxu0 0.0
    %1084 = vmatpush1.msra.mxu0 0.0
    %1085 = vmatprep.subr.mxu0 0.0
    %1086 = vmatpush1.msra.mxu0 0.0
    %1087 = vmatprep.subr.mxu0 0.0
    %1088 = vmatpush1.msra.mxu0 0.0
    %1089 = vmatprep.subr.mxu0 0.0
    %1090 = vmatpush1.msra.mxu0 0.0
    %1091 = vmatprep.subr.mxu0 0.0
    %1092 = vmatpush1.msra.mxu0 0.0
    %1093 = vmatprep.subr.mxu0 0.0
    %1094 = vmatpush1.msra.mxu0 0.0
    %1095 = vmatprep.subr.mxu0 0.0
    %1096 = vmatpush1.msra.mxu0 0.0
    %1097 = vmatprep.subr.mxu0 0.0
    %1098 = vmatpush1.msra.mxu0 0.0
    %1099 = vmatprep.subr.mxu0 0.0
    %1100 = vmatpush1.msra.mxu0 0.0
    %1101 = vmatprep.subr.mxu0 0.0
    %1102 = vmatpush1.msra.mxu0 0.0
    %1103 = vmatprep.mubr.f32.mxu0 0.0
    %1104 = vmatmul.mubr.f32.gmra.mrb[0].mxu0 %v1034
    %v1105 = vpop.f32.mrb[0].mxu0
    %v1106 = vadd.f32 %v1031, %v1105
    %v1107 = vpop.f32.mrb[0].mxu0
    %1108 = vmatprep.mubr.f32.mxu0 0.0
    %1109 = vmatmul.mubr.f32.gmra.mrb[0].mxu0 %v1037
    %v1110 = vpop.f32.mrb[0].mxu0
    %v1111 = vadd.f32 %v1031, %v1110
    %v1112 = vpop.f32.mrb[0].mxu0
    %1113 = vdwg.mxu0
    %v1114 = vmul.f32 %v1019, 0.35355338
    %v1115 = vmul.f32 %v1024, 0.35355338
    %v1117 = vsel %vm454, %v1114, 0
    %v1120 = vsel %vm454, %v1106, 0
    %1122 = vmatprep.subr.mxu0 0.0
    %1123 = vmatpush1.xpose.msra.mxu0 %v1120
    %1124 = vmatprep.subr.mxu0 0.0
    %1125 = vmatpush1.xpose.msra.mxu0 0.0
    %1126 = vmatprep.subr.mxu0 0.0
    %1127 = vmatpush1.xpose.msra.mxu0 0.0
    %1128 = vmatprep.subr.mxu0 0.0
    %1129 = vmatpush1.xpose.msra.mxu0 0.0
    %1130 = vmatprep.subr.mxu0 0.0
    %1131 = vmatpush1.xpose.msra.mxu0 0.0
    %1132 = vmatprep.subr.mxu0 0.0
    %1133 = vmatpush1.xpose.msra.mxu0 0.0
    %1134 = vmatprep.subr.mxu0 0.0
    %1135 = vmatpush1.xpose.msra.mxu0 0.0
    %1136 = vmatprep.subr.mxu0 0.0
    %1137 = vmatpush1.xpose.msra.mxu0 0.0
    %1138 = vmatprep.subr.mxu0 0.0
    %1139 = vmatpush1.xpose.msra.mxu0 0.0
    %1140 = vmatprep.subr.mxu0 0.0
    %1141 = vmatpush1.xpose.msra.mxu0 0.0
    %1142 = vmatprep.subr.mxu0 0.0
    %1143 = vmatpush1.xpose.msra.mxu0 0.0
    %1144 = vmatprep.subr.mxu0 0.0
    %1145 = vmatpush1.xpose.msra.mxu0 0.0
    %1146 = vmatprep.subr.mxu0 0.0
    %1147 = vmatpush1.xpose.msra.mxu0 0.0
    %1148 = vmatprep.subr.mxu0 0.0
    %1149 = vmatpush1.xpose.msra.mxu0 0.0
    %1150 = vmatprep.subr.mxu0 0.0
    %1151 = vmatpush1.xpose.msra.mxu0 0.0
    %1152 = vmatprep.subr.mxu0 0.0
    %1153 = vmatpush1.xpose.msra.mxu0 0.0
    %1154 = vmatprep.subr.mxu0 0.0
    %1155 = vmatpush1.xpose.msra.mxu0 0.0
    %1156 = vmatprep.subr.mxu0 0.0
    %1157 = vmatpush1.xpose.msra.mxu0 0.0
    %1158 = vmatprep.subr.mxu0 0.0
    %1159 = vmatpush1.xpose.msra.mxu0 0.0
    %1160 = vmatprep.subr.mxu0 0.0
    %1161 = vmatpush1.xpose.msra.mxu0 0.0
    %1162 = vmatprep.subr.mxu0 0.0
    %1163 = vmatpush1.xpose.msra.mxu0 0.0
    %1164 = vmatprep.subr.mxu0 0.0
    %1165 = vmatpush1.xpose.msra.mxu0 0.0
    %1166 = vmatprep.subr.mxu0 0.0
    %1167 = vmatpush1.xpose.msra.mxu0 0.0
    %1168 = vmatprep.subr.mxu0 0.0
    %1169 = vmatpush1.xpose.msra.mxu0 0.0
    %1170 = vmatprep.subr.mxu0 0.0
    %1171 = vmatpush1.xpose.msra.mxu0 0.0
    %1172 = vmatprep.subr.mxu0 0.0
    %1173 = vmatpush1.xpose.msra.mxu0 0.0
    %1174 = vmatprep.subr.mxu0 0.0
    %1175 = vmatpush1.xpose.msra.mxu0 0.0
    %1176 = vmatprep.subr.mxu0 0.0
    %1177 = vmatpush1.xpose.msra.mxu0 0.0
    %1178 = vmatprep.subr.mxu0 0.0
    %1179 = vmatpush1.xpose.msra.mxu0 0.0
    %1180 = vmatprep.subr.mxu0 0.0
    %1181 = vmatpush1.xpose.msra.mxu0 0.0
    %1182 = vmatprep.subr.mxu0 0.0
    %1183 = vmatpush1.xpose.msra.mxu0 0.0
    %1184 = vmatprep.subr.mxu0 0.0
    %1185 = vmatpush1.xpose.msra.mxu0 0.0
    %1186 = vmatprep.mubr.f32.mxu0 0.0
    %1187 = vmatmul.mubr.f32.gmra.mrb[0].mxu0 %v1117
    %v1188 = vpop.f32.mrb[0].mxu0
    %v1189 = vadd.f32 0.0, %v1188
    %v1190 = vpop.f32.mrb[0].mxu0
    %1191 = vdwg.mxu0
    %v1193 = vsel %vm454, %v1115, 0
    %v1196 = vsel %vm454, %v1111, 0
    %1198 = vmatprep.subr.mxu0 0.0
    %1199 = vmatpush1.xpose.msra.mxu0 %v1196
    %1200 = vmatprep.subr.mxu0 0.0
    %1201 = vmatpush1.xpose.msra.mxu0 0.0
    %1202 = vmatprep.subr.mxu0 0.0
    %1203 = vmatpush1.xpose.msra.mxu0 0.0
    %1204 = vmatprep.subr.mxu0 0.0
    %1205 = vmatpush1.xpose.msra.mxu0 0.0
    %1206 = vmatprep.subr.mxu0 0.0
    %1207 = vmatpush1.xpose.msra.mxu0 0.0
    %1208 = vmatprep.subr.mxu0 0.0
    %1209 = vmatpush1.xpose.msra.mxu0 0.0
    %1210 = vmatprep.subr.mxu0 0.0
    %1211 = vmatpush1.xpose.msra.mxu0 0.0
    %1212 = vmatprep.subr.mxu0 0.0
    %1213 = vmatpush1.xpose.msra.mxu0 0.0
    %1214 = vmatprep.subr.mxu0 0.0
    %1215 = vmatpush1.xpose.msra.mxu0 0.0
    %1216 = vmatprep.subr.mxu0 0.0
    %1217 = vmatpush1.xpose.msra.mxu0 0.0
    %1218 = vmatprep.subr.mxu0 0.0
    %1219 = vmatpush1.xpose.msra.mxu0 0.0
    %1220 = vmatprep.subr.mxu0 0.0
    %1221 = vmatpush1.xpose.msra.mxu0 0.0
    %1222 = vmatprep.subr.mxu0 0.0
    %1223 = vmatpush1.xpose.msra.mxu0 0.0
    %1224 = vmatprep.subr.mxu0 0.0
    %1225 = vmatpush1.xpose.msra.mxu0 0.0
    %1226 = vmatprep.subr.mxu0 0.0
    %1227 = vmatpush1.xpose.msra.mxu0 0.0
    %1228 = vmatprep.subr.mxu0 0.0
    %1229 = vmatpush1.xpose.msra.mxu0 0.0
    %1230 = vmatprep.subr.mxu0 0.0
    %1231 = vmatpush1.xpose.msra.mxu0 0.0
    %1232 = vmatprep.subr.mxu0 0.0
    %1233 = vmatpush1.xpose.msra.mxu0 0.0
    %1234 = vmatprep.subr.mxu0 0.0
    %1235 = vmatpush1.xpose.msra.mxu0 0.0
    %1236 = vmatprep.subr.mxu0 0.0
    %1237 = vmatpush1.xpose.msra.mxu0 0.0
    %1238 = vmatprep.subr.mxu0 0.0
    %1239 = vmatpush1.xpose.msra.mxu0 0.0
    %1240 = vmatprep.subr.mxu0 0.0
    %1241 = vmatpush1.xpose.msra.mxu0 0.0
    %1242 = vmatprep.subr.mxu0 0.0
    %1243 = vmatpush1.xpose.msra.mxu0 0.0
    %1244 = vmatprep.subr.mxu0 0.0
    %1245 = vmatpush1.xpose.msra.mxu0 0.0
    %1246 = vmatprep.subr.mxu0 0.0
    %1247 = vmatpush1.xpose.msra.mxu0 0.0
    %1248 = vmatprep.subr.mxu0 0.0
    %1249 = vmatpush1.xpose.msra.mxu0 0.0
    %1250 = vmatprep.subr.mxu0 0.0
    %1251 = vmatpush1.xpose.msra.mxu0 0.0
    %1252 = vmatprep.subr.mxu0 0.0
    %1253 = vmatpush1.xpose.msra.mxu0 0.0
    %1254 = vmatprep.subr.mxu0 0.0
    %1255 = vmatpush1.xpose.msra.mxu0 0.0
    %1256 = vmatprep.subr.mxu0 0.0
    %1257 = vmatpush1.xpose.msra.mxu0 0.0
    %1258 = vmatprep.subr.mxu0 0.0
    %1259 = vmatpush1.xpose.msra.mxu0 0.0
    %1260 = vmatprep.subr.mxu0 0.0
    %1261 = vmatpush1.xpose.msra.mxu0 0.0
    %1262 = vmatprep.mubr.f32.mxu0 0.0
    %1263 = vmatmul.mubr.f32.gmra.mrb[0].mxu0 %v1193
    %v1264 = vpop.f32.mrb[0].mxu0
    %v1265 = vadd.f32 0.0, %v1264
    %v1266 = vpop.f32.mrb[0].mxu0
    %1267 = vdwg.mxu0
    %vm1268 = vcmp.gt.f32.partialorder %v205, 0.5
    %vm1269 = vcmp.gt.f32.partialorder %v206, 0.5
    %v1270 = vsel %vm1268, 1, 0
    %v1271 = vsel %vm1269, 1, 0
    %v1272 = vlaneseq
    %v1273 = vshrl.u32 %v1272, 7
    %v1274 = vsub.s32 0, %v1273
    %v1275 = vrot.slane %v1270, %v1274
    %v1276 = vlaneseq
    %v1277 = vshrl.u32 %v1276, 7
    %v1278 = vsub.s32 0, %v1277
    %v1279 = vrot.slane %v1271, %v1278
    %vm1280 = vcmp.eq.s32.totalorder %v1275, 1
    %vm1281 = vcmp.eq.s32.totalorder %v1279, 1
    %v1282 = vsel %vm1280, -1e+30, %v1189
    %v1283 = vsel %vm1281, -1e+30, %v1265
    %v1284 = vsel %vm454, %v1282, -inf
    %1285 = vmax.xlane.f32.xlu0 %v1284
    %v1286 = vpop.xlane.xlu0 %1285
    %v1287 = vsel %vm454, %v1283, -inf
    %1288 = vmax.xlane.f32.xlu0 %v1287
    %v1289 = vpop.xlane.xlu0 %1288
    %v1290 = vsub.f32 %v1282, %v1286
    %v1291 = vsub.f32 %v1283, %v1289
    %v1292 = vmul.f32 %v1290, 1.442695
    %v1293 = vpow.pop %v1292
    %v1294 = vmul.f32 %v1291, 1.442695
    %v1295 = vpow.pop %v1294
    %v1296 = vsel %vm454, %v1293, 0.0
    %1297 = vadd.xlane.f32.xlu0 %v1296
    %v1298 = vpop.xlane.xlu0 %1297
    %v1299 = vsel %vm454, %v1295, 0.0
    %1300 = vadd.xlane.f32.xlu0 %v1299
    %v1301 = vpop.xlane.xlu0 %1300
    %v1302 = vrcp.pop %v1298
    %v1303 = vrcp.pop %v1301
    %v1304 = vmul.f32 %v1293, %v1302
    %v1305 = vmul.f32 %v1295, %v1303
    %v1306 = vadd.f32 %v1304, 0.0
    %v1307 = vadd.f32 %v1305, 0.0
    %1308 = vrot.lane.b32.xlu0 %v1106, 96
    %v1309 = vpop.permute.xlu0 %1308
    %v1312 = vsel %vm454, %v1304, 0
    %1314 = vmatprep.subr.mxu0 0.0
    %1315 = vmatpush1.msra.mxu0 %v1309
    %1316 = vmatprep.subr.mxu0 0.0
    %1317 = vmatpush1.msra.mxu0 0.0
    %1318 = vmatprep.subr.mxu0 0.0
    %1319 = vmatpush1.msra.mxu0 0.0
    %1320 = vmatprep.subr.mxu0 0.0
    %1321 = vmatpush1.msra.mxu0 0.0
    %1322 = vmatprep.subr.mxu0 0.0
    %1323 = vmatpush1.msra.mxu0 0.0
    %1324 = vmatprep.subr.mxu0 0.0
    %1325 = vmatpush1.msra.mxu0 0.0
    %1326 = vmatprep.subr.mxu0 0.0
    %1327 = vmatpush1.msra.mxu0 0.0
    %1328 = vmatprep.subr.mxu0 0.0
    %1329 = vmatpush1.msra.mxu0 0.0
    %1330 = vmatprep.subr.mxu0 0.0
    %1331 = vmatpush1.msra.mxu0 0.0
    %1332 = vmatprep.subr.mxu0 0.0
    %1333 = vmatpush1.msra.mxu0 0.0
    %1334 = vmatprep.subr.mxu0 0.0
    %1335 = vmatpush1.msra.mxu0 0.0
    %1336 = vmatprep.subr.mxu0 0.0
    %1337 = vmatpush1.msra.mxu0 0.0
    %1338 = vmatprep.subr.mxu0 0.0
    %1339 = vmatpush1.msra.mxu0 0.0
    %1340 = vmatprep.subr.mxu0 0.0
    %1341 = vmatpush1.msra.mxu0 0.0
    %1342 = vmatprep.subr.mxu0 0.0
    %1343 = vmatpush1.msra.mxu0 0.0
    %1344 = vmatprep.subr.mxu0 0.0
    %1345 = vmatpush1.msra.mxu0 0.0
    %1346 = vmatprep.subr.mxu0 0.0
    %1347 = vmatpush1.msra.mxu0 0.0
    %1348 = vmatprep.subr.mxu0 0.0
    %1349 = vmatpush1.msra.mxu0 0.0
    %1350 = vmatprep.subr.mxu0 0.0
    %1351 = vmatpush1.msra.mxu0 0.0
    %1352 = vmatprep.subr.mxu0 0.0
    %1353 = vmatpush1.msra.mxu0 0.0
    %1354 = vmatprep.subr.mxu0 0.0
    %1355 = vmatpush1.msra.mxu0 0.0
    %1356 = vmatprep.subr.mxu0 0.0
    %1357 = vmatpush1.msra.mxu0 0.0
    %1358 = vmatprep.subr.mxu0 0.0
    %1359 = vmatpush1.msra.mxu0 0.0
    %1360 = vmatprep.subr.mxu0 0.0
    %1361 = vmatpush1.msra.mxu0 0.0
    %1362 = vmatprep.subr.mxu0 0.0
    %1363 = vmatpush1.msra.mxu0 0.0
    %1364 = vmatprep.subr.mxu0 0.0
    %1365 = vmatpush1.msra.mxu0 0.0
    %1366 = vmatprep.subr.mxu0 0.0
    %1367 = vmatpush1.msra.mxu0 0.0
    %1368 = vmatprep.subr.mxu0 0.0
    %1369 = vmatpush1.msra.mxu0 0.0
    %1370 = vmatprep.subr.mxu0 0.0
    %1371 = vmatpush1.msra.mxu0 0.0
    %1372 = vmatprep.subr.mxu0 0.0
    %1373 = vmatpush1.msra.mxu0 0.0
    %1374 = vmatprep.subr.mxu0 0.0
    %1375 = vmatpush1.msra.mxu0 0.0
    %1376 = vmatprep.subr.mxu0 0.0
    %1377 = vmatpush1.msra.mxu0 0.0
    %1378 = vmatprep.mubr.f32.mxu0 0.0
    %1379 = vmatmul.mubr.f32.gmra.mrb[0].mxu0 %v1312
    %v1380 = vpop.f32.mrb[0].mxu0
    %v1381 = vadd.f32 0.0, %v1380
    %v1382 = vpop.f32.mrb[0].mxu0
    %1383 = vdwg.mxu0
    %1384 = vrot.lane.b32.xlu0 %v1111, 96
    %v1385 = vpop.permute.xlu0 %1384
    %v1388 = vsel %vm454, %v1305, 0
    %1390 = vmatprep.subr.mxu0 0.0
    %1391 = vmatpush1.msra.mxu0 %v1385
    %1392 = vmatprep.subr.mxu0 0.0
    %1393 = vmatpush1.msra.mxu0 0.0
    %1394 = vmatprep.subr.mxu0 0.0
    %1395 = vmatpush1.msra.mxu0 0.0
    %1396 = vmatprep.subr.mxu0 0.0
    %1397 = vmatpush1.msra.mxu0 0.0
    %1398 = vmatprep.subr.mxu0 0.0
    %1399 = vmatpush1.msra.mxu0 0.0
    %1400 = vmatprep.subr.mxu0 0.0
    %1401 = vmatpush1.msra.mxu0 0.0
    %1402 = vmatprep.subr.mxu0 0.0
    %1403 = vmatpush1.msra.mxu0 0.0
    %1404 = vmatprep.subr.mxu0 0.0
    %1405 = vmatpush1.msra.mxu0 0.0
    %1406 = vmatprep.subr.mxu0 0.0
    %1407 = vmatpush1.msra.mxu0 0.0
    %1408 = vmatprep.subr.mxu0 0.0
    %1409 = vmatpush1.msra.mxu0 0.0
    %1410 = vmatprep.subr.mxu0 0.0
    %1411 = vmatpush1.msra.mxu0 0.0
    %1412 = vmatprep.subr.mxu0 0.0
    %1413 = vmatpush1.msra.mxu0 0.0
    %1414 = vmatprep.subr.mxu0 0.0
    %1415 = vmatpush1.msra.mxu0 0.0
    %1416 = vmatprep.subr.mxu0 0.0
    %1417 = vmatpush1.msra.mxu0 0.0
    %1418 = vmatprep.subr.mxu0 0.0
    %1419 = vmatpush1.msra.mxu0 0.0
    %1420 = vmatprep.subr.mxu0 0.0
    %1421 = vmatpush1.msra.mxu0 0.0
    %1422 = vmatprep.subr.mxu0 0.0
    %1423 = vmatpush1.msra.mxu0 0.0
    %1424 = vmatprep.subr.mxu0 0.0
    %1425 = vmatpush1.msra.mxu0 0.0
    %1426 = vmatprep.subr.mxu0 0.0
    %1427 = vmatpush1.msra.mxu0 0.0
    %1428 = vmatprep.subr.mxu0 0.0
    %1429 = vmatpush1.msra.mxu0 0.0
    %1430 = vmatprep.subr.mxu0 0.0
    %1431 = vmatpush1.msra.mxu0 0.0
    %1432 = vmatprep.subr.mxu0 0.0
    %1433 = vmatpush1.msra.mxu0 0.0
    %1434 = vmatprep.subr.mxu0 0.0
    %1435 = vmatpush1.msra.mxu0 0.0
    %1436 = vmatprep.subr.mxu0 0.0
    %1437 = vmatpush1.msra.mxu0 0.0
    %1438 = vmatprep.subr.mxu0 0.0
    %1439 = vmatpush1.msra.mxu0 0.0
    %1440 = vmatprep.subr.mxu0 0.0
    %1441 = vmatpush1.msra.mxu0 0.0
    %1442 = vmatprep.subr.mxu0 0.0
    %1443 = vmatpush1.msra.mxu0 0.0
    %1444 = vmatprep.subr.mxu0 0.0
    %1445 = vmatpush1.msra.mxu0 0.0
    %1446 = vmatprep.subr.mxu0 0.0
    %1447 = vmatpush1.msra.mxu0 0.0
    %1448 = vmatprep.subr.mxu0 0.0
    %1449 = vmatpush1.msra.mxu0 0.0
    %1450 = vmatprep.subr.mxu0 0.0
    %1451 = vmatpush1.msra.mxu0 0.0
    %1452 = vmatprep.subr.mxu0 0.0
    %1453 = vmatpush1.msra.mxu0 0.0
    %1454 = vmatprep.mubr.f32.mxu0 0.0
    %1455 = vmatmul.mubr.f32.gmra.mrb[0].mxu0 %v1388
    %v1456 = vpop.f32.mrb[0].mxu0
    %v1457 = vadd.f32 0.0, %v1456
    %v1458 = vpop.f32.mrb[0].mxu0
    %1459 = vdwg.mxu0
    %1460 = vst.msk [vmem:[#allocation2] sm:$0xff] %vm454, %v1381
    %1461 = vst.msk [vmem:[#allocation2 + $0x8] sm:$0xff] %vm454, %v1457
    %1462 = vrot.lane.b32.xlu0 %v1114, 120
    %v1463 = vpop.permute.xlu0 %1462
    %1464 = vrot.lane.b32.xlu0 %v1106, 120
    %v1465 = vpop.permute.xlu0 %1464
    %v1466 = vsel %vm454, %v1463, 0
    %v1468 = vsel %vm454, %v1465, 0
    %1470 = vmatprep.subr.mxu0 0.0
    %1471 = vmatpush1.xpose.msra.mxu0 %v1468
    %1472 = vmatprep.subr.mxu0 0.0
    %1473 = vmatpush1.xpose.msra.mxu0 0.0
    %1474 = vmatprep.subr.mxu0 0.0
    %1475 = vmatpush1.xpose.msra.mxu0 0.0
    %1476 = vmatprep.subr.mxu0 0.0
    %1477 = vmatpush1.xpose.msra.mxu0 0.0
    %1478 = vmatprep.subr.mxu0 0.0
    %1479 = vmatpush1.xpose.msra.mxu0 0.0
    %1480 = vmatprep.subr.mxu0 0.0
    %1481 = vmatpush1.xpose.msra.mxu0 0.0
    %1482 = vmatprep.subr.mxu0 0.0
    %1483 = vmatpush1.xpose.msra.mxu0 0.0
    %1484 = vmatprep.subr.mxu0 0.0
    %1485 = vmatpush1.xpose.msra.mxu0 0.0
    %1486 = vmatprep.subr.mxu0 0.0
    %1487 = vmatpush1.xpose.msra.mxu0 0.0
    %1488 = vmatprep.subr.mxu0 0.0
    %1489 = vmatpush1.xpose.msra.mxu0 0.0
    %1490 = vmatprep.subr.mxu0 0.0
    %1491 = vmatpush1.xpose.msra.mxu0 0.0
    %1492 = vmatprep.subr.mxu0 0.0
    %1493 = vmatpush1.xpose.msra.mxu0 0.0
    %1494 = vmatprep.subr.mxu0 0.0
    %1495 = vmatpush1.xpose.msra.mxu0 0.0
    %1496 = vmatprep.subr.mxu0 0.0
    %1497 = vmatpush1.xpose.msra.mxu0 0.0
    %1498 = vmatprep.subr.mxu0 0.0
    %1499 = vmatpush1.xpose.msra.mxu0 0.0
    %1500 = vmatprep.subr.mxu0 0.0
    %1501 = vmatpush1.xpose.msra.mxu0 0.0
    %1502 = vmatprep.subr.mxu0 0.0
    %1503 = vmatpush1.xpose.msra.mxu0 0.0
    %1504 = vmatprep.subr.mxu0 0.0
    %1505 = vmatpush1.xpose.msra.mxu0 0.0
    %1506 = vmatprep.subr.mxu0 0.0
    %1507 = vmatpush1.xpose.msra.mxu0 0.0
    %1508 = vmatprep.subr.mxu0 0.0
    %1509 = vmatpush1.xpose.msra.mxu0 0.0
    %1510 = vmatprep.subr.mxu0 0.0
    %1511 = vmatpush1.xpose.msra.mxu0 0.0
    %1512 = vmatprep.subr.mxu0 0.0
    %1513 = vmatpush1.xpose.msra.mxu0 0.0
    %1514 = vmatprep.subr.mxu0 0.0
    %1515 = vmatpush1.xpose.msra.mxu0 0.0
    %1516 = vmatprep.subr.mxu0 0.0
    %1517 = vmatpush1.xpose.msra.mxu0 0.0
    %1518 = vmatprep.subr.mxu0 0.0
    %1519 = vmatpush1.xpose.msra.mxu0 0.0
    %1520 = vmatprep.subr.mxu0 0.0
    %1521 = vmatpush1.xpose.msra.mxu0 0.0
    %1522 = vmatprep.subr.mxu0 0.0
    %1523 = vmatpush1.xpose.msra.mxu0 0.0
    %1524 = vmatprep.subr.mxu0 0.0
    %1525 = vmatpush1.xpose.msra.mxu0 0.0
    %1526 = vmatprep.subr.mxu0 0.0
    %1527 = vmatpush1.xpose.msra.mxu0 0.0
    %1528 = vmatprep.subr.mxu0 0.0
    %1529 = vmatpush1.xpose.msra.mxu0 0.0
    %1530 = vmatprep.subr.mxu0 0.0
    %1531 = vmatpush1.xpose.msra.mxu0 0.0
    %1532 = vmatprep.subr.mxu0 0.0
    %1533 = vmatpush1.xpose.msra.mxu0 0.0
    %1534 = vmatprep.mubr.f32.mxu0 0.0
    %1535 = vmatmul.mubr.f32.gmra.mrb[0].mxu0 %v1466
    %v1536 = vpop.f32.mrb[0].mxu0
    %v1537 = vadd.f32 0.0, %v1536
    %v1538 = vpop.f32.mrb[0].mxu0
    %1539 = vdwg.mxu0
    %1540 = vrot.lane.b32.xlu0 %v1115, 120
    %v1541 = vpop.permute.xlu0 %1540
    %1542 = vrot.lane.b32.xlu0 %v1111, 120
    %v1543 = vpop.permute.xlu0 %1542
    %v1544 = vsel %vm454, %v1541, 0
    %v1546 = vsel %vm454, %v1543, 0
    %1548 = vmatprep.subr.mxu0 0.0
    %1549 = vmatpush1.xpose.msra.mxu0 %v1546
    %1550 = vmatprep.subr.mxu0 0.0
    %1551 = vmatpush1.xpose.msra.mxu0 0.0
    %1552 = vmatprep.subr.mxu0 0.0
    %1553 = vmatpush1.xpose.msra.mxu0 0.0
    %1554 = vmatprep.subr.mxu0 0.0
    %1555 = vmatpush1.xpose.msra.mxu0 0.0
    %1556 = vmatprep.subr.mxu0 0.0
    %1557 = vmatpush1.xpose.msra.mxu0 0.0
    %1558 = vmatprep.subr.mxu0 0.0
    %1559 = vmatpush1.xpose.msra.mxu0 0.0
    %1560 = vmatprep.subr.mxu0 0.0
    %1561 = vmatpush1.xpose.msra.mxu0 0.0
    %1562 = vmatprep.subr.mxu0 0.0
    %1563 = vmatpush1.xpose.msra.mxu0 0.0
    %1564 = vmatprep.subr.mxu0 0.0
    %1565 = vmatpush1.xpose.msra.mxu0 0.0
    %1566 = vmatprep.subr.mxu0 0.0
    %1567 = vmatpush1.xpose.msra.mxu0 0.0
    %1568 = vmatprep.subr.mxu0 0.0
    %1569 = vmatpush1.xpose.msra.mxu0 0.0
    %1570 = vmatprep.subr.mxu0 0.0
    %1571 = vmatpush1.xpose.msra.mxu0 0.0
    %1572 = vmatprep.subr.mxu0 0.0
    %1573 = vmatpush1.xpose.msra.mxu0 0.0
    %1574 = vmatprep.subr.mxu0 0.0
    %1575 = vmatpush1.xpose.msra.mxu0 0.0
    %1576 = vmatprep.subr.mxu0 0.0
    %1577 = vmatpush1.xpose.msra.mxu0 0.0
    %1578 = vmatprep.subr.mxu0 0.0
    %1579 = vmatpush1.xpose.msra.mxu0 0.0
    %1580 = vmatprep.subr.mxu0 0.0
    %1581 = vmatpush1.xpose.msra.mxu0 0.0
    %1582 = vmatprep.subr.mxu0 0.0
    %1583 = vmatpush1.xpose.msra.mxu0 0.0
    %1584 = vmatprep.subr.mxu0 0.0
    %1585 = vmatpush1.xpose.msra.mxu0 0.0
    %1586 = vmatprep.subr.mxu0 0.0
    %1587 = vmatpush1.xpose.msra.mxu0 0.0
    %1588 = vmatprep.subr.mxu0 0.0
    %1589 = vmatpush1.xpose.msra.mxu0 0.0
    %1590 = vmatprep.subr.mxu0 0.0
    %1591 = vmatpush1.xpose.msra.mxu0 0.0
    %1592 = vmatprep.subr.mxu0 0.0
    %1593 = vmatpush1.xpose.msra.mxu0 0.0
    %1594 = vmatprep.subr.mxu0 0.0
    %1595 = vmatpush1.xpose.msra.mxu0 0.0
    %1596 = vmatprep.subr.mxu0 0.0
    %1597 = vmatpush1.xpose.msra.mxu0 0.0
    %1598 = vmatprep.subr.mxu0 0.0
    %1599 = vmatpush1.xpose.msra.mxu0 0.0
    %1600 = vmatprep.subr.mxu0 0.0
    %1601 = vmatpush1.xpose.msra.mxu0 0.0
    %1602 = vmatprep.subr.mxu0 0.0
    %1603 = vmatpush1.xpose.msra.mxu0 0.0
    %1604 = vmatprep.subr.mxu0 0.0
    %1605 = vmatpush1.xpose.msra.mxu0 0.0
    %1606 = vmatprep.subr.mxu0 0.0
    %1607 = vmatpush1.xpose.msra.mxu0 0.0
    %1608 = vmatprep.subr.mxu0 0.0
    %1609 = vmatpush1.xpose.msra.mxu0 0.0
    %1610 = vmatprep.subr.mxu0 0.0
    %1611 = vmatpush1.xpose.msra.mxu0 0.0
    %1612 = vmatprep.mubr.f32.mxu0 0.0
    %1613 = vmatmul.mubr.f32.gmra.mrb[0].mxu0 %v1544
    %v1614 = vpop.f32.mrb[0].mxu0
    %v1615 = vadd.f32 0.0, %v1614
    %v1616 = vpop.f32.mrb[0].mxu0
    %1617 = vdwg.mxu0
    %v1618 = vsel %vm1280, -1e+30, %v1537
    %v1619 = vsel %vm1281, -1e+30, %v1615
    %v1620 = vsel %vm454, %v1618, -inf
    %1621 = vmax.xlane.f32.xlu0 %v1620
    %v1622 = vpop.xlane.xlu0 %1621
    %v1623 = vsel %vm454, %v1619, -inf
    %1624 = vmax.xlane.f32.xlu0 %v1623
    %v1625 = vpop.xlane.xlu0 %1624
    %v1626 = vsub.f32 %v1618, %v1622
    %v1627 = vsub.f32 %v1619, %v1625
    %v1628 = vmul.f32 %v1626, 1.442695
    %v1629 = vpow.pop %v1628
    %v1630 = vmul.f32 %v1627, 1.442695
    %v1631 = vpow.pop %v1630
    %v1632 = vsel %vm454, %v1629, 0.0
    %1633 = vadd.xlane.f32.xlu0 %v1632
    %v1634 = vpop.xlane.xlu0 %1633
    %v1635 = vsel %vm454, %v1631, 0.0
    %1636 = vadd.xlane.f32.xlu0 %v1635
    %v1637 = vpop.xlane.xlu0 %1636
    %v1638 = vrcp.pop %v1634
    %v1639 = vrcp.pop %v1637
    %v1640 = vmul.f32 %v1629, %v1638
    %v1641 = vmul.f32 %v1631, %v1639
    %v1642 = vadd.f32 %v1306, %v1640
    %v1643 = vadd.f32 %v1307, %v1641
    %1644 = vrot.lane.b32.xlu0 %v1106, 88
    %v1645 = vpop.permute.xlu0 %1644
    %v1648 = vsel %vm454, %v1640, 0
    %1650 = vmatprep.subr.mxu0 0.0
    %1651 = vmatpush1.msra.mxu0 %v1645
    %1652 = vmatprep.subr.mxu0 0.0
    %1653 = vmatpush1.msra.mxu0 0.0
    %1654 = vmatprep.subr.mxu0 0.0
    %1655 = vmatpush1.msra.mxu0 0.0
    %1656 = vmatprep.subr.mxu0 0.0
    %1657 = vmatpush1.msra.mxu0 0.0
    %1658 = vmatprep.subr.mxu0 0.0
    %1659 = vmatpush1.msra.mxu0 0.0
    %1660 = vmatprep.subr.mxu0 0.0
    %1661 = vmatpush1.msra.mxu0 0.0
    %1662 = vmatprep.subr.mxu0 0.0
    %1663 = vmatpush1.msra.mxu0 0.0
    %1664 = vmatprep.subr.mxu0 0.0
    %1665 = vmatpush1.msra.mxu0 0.0
    %1666 = vmatprep.subr.mxu0 0.0
    %1667 = vmatpush1.msra.mxu0 0.0
    %1668 = vmatprep.subr.mxu0 0.0
    %1669 = vmatpush1.msra.mxu0 0.0
    %1670 = vmatprep.subr.mxu0 0.0
    %1671 = vmatpush1.msra.mxu0 0.0
    %1672 = vmatprep.subr.mxu0 0.0
    %1673 = vmatpush1.msra.mxu0 0.0
    %1674 = vmatprep.subr.mxu0 0.0
    %1675 = vmatpush1.msra.mxu0 0.0
    %1676 = vmatprep.subr.mxu0 0.0
    %1677 = vmatpush1.msra.mxu0 0.0
    %1678 = vmatprep.subr.mxu0 0.0
    %1679 = vmatpush1.msra.mxu0 0.0
    %1680 = vmatprep.subr.mxu0 0.0
    %1681 = vmatpush1.msra.mxu0 0.0
    %1682 = vmatprep.subr.mxu0 0.0
    %1683 = vmatpush1.msra.mxu0 0.0
    %1684 = vmatprep.subr.mxu0 0.0
    %1685 = vmatpush1.msra.mxu0 0.0
    %1686 = vmatprep.subr.mxu0 0.0
    %1687 = vmatpush1.msra.mxu0 0.0
    %1688 = vmatprep.subr.mxu0 0.0
    %1689 = vmatpush1.msra.mxu0 0.0
    %1690 = vmatprep.subr.mxu0 0.0
    %1691 = vmatpush1.msra.mxu0 0.0
    %1692 = vmatprep.subr.mxu0 0.0
    %1693 = vmatpush1.msra.mxu0 0.0
    %1694 = vmatprep.subr.mxu0 0.0
    %1695 = vmatpush1.msra.mxu0 0.0
    %1696 = vmatprep.subr.mxu0 0.0
    %1697 = vmatpush1.msra.mxu0 0.0
    %1698 = vmatprep.subr.mxu0 0.0
    %1699 = vmatpush1.msra.mxu0 0.0
    %1700 = vmatprep.subr.mxu0 0.0
    %1701 = vmatpush1.msra.mxu0 0.0
    %1702 = vmatprep.subr.mxu0 0.0
    %1703 = vmatpush1.msra.mxu0 0.0
    %1704 = vmatprep.subr.mxu0 0.0
    %1705 = vmatpush1.msra.mxu0 0.0
    %1706 = vmatprep.subr.mxu0 0.0
    %1707 = vmatpush1.msra.mxu0 0.0
    %1708 = vmatprep.subr.mxu0 0.0
    %1709 = vmatpush1.msra.mxu0 0.0
    %1710 = vmatprep.subr.mxu0 0.0
    %1711 = vmatpush1.msra.mxu0 0.0
    %1712 = vmatprep.subr.mxu0 0.0
    %1713 = vmatpush1.msra.mxu0 0.0
    %1714 = vmatprep.mubr.f32.mxu0 0.0
    %1715 = vmatmul.mubr.f32.gmra.mrb[0].mxu0 %v1648
    %v1716 = vpop.f32.mrb[0].mxu0
    %v1717 = vadd.f32 0.0, %v1716
    %v1718 = vpop.f32.mrb[0].mxu0
    %1719 = vdwg.mxu0
    %1720 = vrot.lane.b32.xlu0 %v1111, 88
    %v1721 = vpop.permute.xlu0 %1720
    %v1724 = vsel %vm454, %v1641, 0
    %1726 = vmatprep.subr.mxu0 0.0
    %1727 = vmatpush1.msra.mxu0 %v1721
    %1728 = vmatprep.subr.mxu0 0.0
    %1729 = vmatpush1.msra.mxu0 0.0
    %1730 = vmatprep.subr.mxu0 0.0
    %1731 = vmatpush1.msra.mxu0 0.0
    %1732 = vmatprep.subr.mxu0 0.0
    %1733 = vmatpush1.msra.mxu0 0.0
    %1734 = vmatprep.subr.mxu0 0.0
    %1735 = vmatpush1.msra.mxu0 0.0
    %1736 = vmatprep.subr.mxu0 0.0
    %1737 = vmatpush1.msra.mxu0 0.0
    %1738 = vmatprep.subr.mxu0 0.0
    %1739 = vmatpush1.msra.mxu0 0.0
    %1740 = vmatprep.subr.mxu0 0.0
    %1741 = vmatpush1.msra.mxu0 0.0
    %1742 = vmatprep.subr.mxu0 0.0
    %1743 = vmatpush1.msra.mxu0 0.0
    %1744 = vmatprep.subr.mxu0 0.0
    %1745 = vmatpush1.msra.mxu0 0.0
    %1746 = vmatprep.subr.mxu0 0.0
    %1747 = vmatpush1.msra.mxu0 0.0
    %1748 = vmatprep.subr.mxu0 0.0
    %1749 = vmatpush1.msra.mxu0 0.0
    %1750 = vmatprep.subr.mxu0 0.0
    %1751 = vmatpush1.msra.mxu0 0.0
    %1752 = vmatprep.subr.mxu0 0.0
    %1753 = vmatpush1.msra.mxu0 0.0
    %1754 = vmatprep.subr.mxu0 0.0
    %1755 = vmatpush1.msra.mxu0 0.0
    %1756 = vmatprep.subr.mxu0 0.0
    %1757 = vmatpush1.msra.mxu0 0.0
    %1758 = vmatprep.subr.mxu0 0.0
    %1759 = vmatpush1.msra.mxu0 0.0
    %1760 = vmatprep.subr.mxu0 0.0
    %1761 = vmatpush1.msra.mxu0 0.0
    %1762 = vmatprep.subr.mxu0 0.0
    %1763 = vmatpush1.msra.mxu0 0.0
    %1764 = vmatprep.subr.mxu0 0.0
    %1765 = vmatpush1.msra.mxu0 0.0
    %1766 = vmatprep.subr.mxu0 0.0
    %1767 = vmatpush1.msra.mxu0 0.0
    %1768 = vmatprep.subr.mxu0 0.0
    %1769 = vmatpush1.msra.mxu0 0.0
    %1770 = vmatprep.subr.mxu0 0.0
    %1771 = vmatpush1.msra.mxu0 0.0
    %1772 = vmatprep.subr.mxu0 0.0
    %1773 = vmatpush1.msra.mxu0 0.0
    %1774 = vmatprep.subr.mxu0 0.0
    %1775 = vmatpush1.msra.mxu0 0.0
    %1776 = vmatprep.subr.mxu0 0.0
    %1777 = vmatpush1.msra.mxu0 0.0
    %1778 = vmatprep.subr.mxu0 0.0
    %1779 = vmatpush1.msra.mxu0 0.0
    %1780 = vmatprep.subr.mxu0 0.0
    %1781 = vmatpush1.msra.mxu0 0.0
    %1782 = vmatprep.subr.mxu0 0.0
    %1783 = vmatpush1.msra.mxu0 0.0
    %1784 = vmatprep.subr.mxu0 0.0
    %1785 = vmatpush1.msra.mxu0 0.0
    %1786 = vmatprep.subr.mxu0 0.0
    %1787 = vmatpush1.msra.mxu0 0.0
    %1788 = vmatprep.subr.mxu0 0.0
    %1789 = vmatpush1.msra.mxu0 0.0
    %1790 = vmatprep.mubr.f32.mxu0 0.0
    %1791 = vmatmul.mubr.f32.gmra.mrb[0].mxu0 %v1724
    %v1792 = vpop.f32.mrb[0].mxu0
    %v1793 = vadd.f32 0.0, %v1792
    %v1794 = vpop.f32.mrb[0].mxu0
    %1795 = vdwg.mxu0
    %1798 = vrot.lane.b32.xlu0 %v1717, 8
    %v1799 = vpop.permute.xlu0 %1798
    %1800 = vrot.lane.b32.xlu0 %v1793, 8
    %v1801 = vpop.permute.xlu0 %1800
    %vm1804 = vcmask 130112
    %1805 = vst.msk [vmem:[#allocation2] sm:$0xff] %vm1804, %v1799
    %1806 = vst.msk [vmem:[#allocation2 + $0x8] sm:$0xff] %vm1804, %v1801
    %1807 = vrot.lane.b32.xlu0 %v1114, 112
    %v1808 = vpop.permute.xlu0 %1807
    %1809 = vrot.lane.b32.xlu0 %v1106, 112
    %v1810 = vpop.permute.xlu0 %1809
    %v1811 = vsel %vm454, %v1808, 0
    %v1813 = vsel %vm454, %v1810, 0
    %1815 = vmatprep.subr.mxu0 0.0
    %1816 = vmatpush1.xpose.msra.mxu0 %v1813
    %1817 = vmatprep.subr.mxu0 0.0
    %1818 = vmatpush1.xpose.msra.mxu0 0.0
    %1819 = vmatprep.subr.mxu0 0.0
    %1820 = vmatpush1.xpose.msra.mxu0 0.0
    %1821 = vmatprep.subr.mxu0 0.0
    %1822 = vmatpush1.xpose.msra.mxu0 0.0
    %1823 = vmatprep.subr.mxu0 0.0
    %1824 = vmatpush1.xpose.msra.mxu0 0.0
    %1825 = vmatprep.subr.mxu0 0.0
    %1826 = vmatpush1.xpose.msra.mxu0 0.0
    %1827 = vmatprep.subr.mxu0 0.0
    %1828 = vmatpush1.xpose.msra.mxu0 0.0
    %1829 = vmatprep.subr.mxu0 0.0
    %1830 = vmatpush1.xpose.msra.mxu0 0.0
    %1831 = vmatprep.subr.mxu0 0.0
    %1832 = vmatpush1.xpose.msra.mxu0 0.0
    %1833 = vmatprep.subr.mxu0 0.0
    %1834 = vmatpush1.xpose.msra.mxu0 0.0
    %1835 = vmatprep.subr.mxu0 0.0
    %1836 = vmatpush1.xpose.msra.mxu0 0.0
    %1837 = vmatprep.subr.mxu0 0.0
    %1838 = vmatpush1.xpose.msra.mxu0 0.0
    %1839 = vmatprep.subr.mxu0 0.0
    %1840 = vmatpush1.xpose.msra.mxu0 0.0
    %1841 = vmatprep.subr.mxu0 0.0
    %1842 = vmatpush1.xpose.msra.mxu0 0.0
    %1843 = vmatprep.subr.mxu0 0.0
    %1844 = vmatpush1.xpose.msra.mxu0 0.0
    %1845 = vmatprep.subr.mxu0 0.0
    %1846 = vmatpush1.xpose.msra.mxu0 0.0
    %1847 = vmatprep.subr.mxu0 0.0
    %1848 = vmatpush1.xpose.msra.mxu0 0.0
    %1849 = vmatprep.subr.mxu0 0.0
    %1850 = vmatpush1.xpose.msra.mxu0 0.0
    %1851 = vmatprep.subr.mxu0 0.0
    %1852 = vmatpush1.xpose.msra.mxu0 0.0
    %1853 = vmatprep.subr.mxu0 0.0
    %1854 = vmatpush1.xpose.msra.mxu0 0.0
    %1855 = vmatprep.subr.mxu0 0.0
    %1856 = vmatpush1.xpose.msra.mxu0 0.0
    %1857 = vmatprep.subr.mxu0 0.0
    %1858 = vmatpush1.xpose.msra.mxu0 0.0
    %1859 = vmatprep.subr.mxu0 0.0
    %1860 = vmatpush1.xpose.msra.mxu0 0.0
    %1861 = vmatprep.subr.mxu0 0.0
    %1862 = vmatpush1.xpose.msra.mxu0 0.0
    %1863 = vmatprep.subr.mxu0 0.0
    %1864 = vmatpush1.xpose.msra.mxu0 0.0
    %1865 = vmatprep.subr.mxu0 0.0
    %1866 = vmatpush1.xpose.msra.mxu0 0.0
    %1867 = vmatprep.subr.mxu0 0.0
    %1868 = vmatpush1.xpose.msra.mxu0 0.0
    %1869 = vmatprep.subr.mxu0 0.0
    %1870 = vmatpush1.xpose.msra.mxu0 0.0
    %1871 = vmatprep.subr.mxu0 0.0
    %1872 = vmatpush1.xpose.msra.mxu0 0.0
    %1873 = vmatprep.subr.mxu0 0.0
    %1874 = vmatpush1.xpose.msra.mxu0 0.0
    %1875 = vmatprep.subr.mxu0 0.0
    %1876 = vmatpush1.xpose.msra.mxu0 0.0
    %1877 = vmatprep.subr.mxu0 0.0
    %1878 = vmatpush1.xpose.msra.mxu0 0.0
    %1879 = vmatprep.mubr.f32.mxu0 0.0
    %1880 = vmatmul.mubr.f32.gmra.mrb[0].mxu0 %v1811
    %v1881 = vpop.f32.mrb[0].mxu0
    %v1882 = vadd.f32 0.0, %v1881
    %v1883 = vpop.f32.mrb[0].mxu0
    %1884 = vdwg.mxu0
    %1885 = vrot.lane.b32.xlu0 %v1115, 112
    %v1886 = vpop.permute.xlu0 %1885
    %1887 = vrot.lane.b32.xlu0 %v1111, 112
    %v1888 = vpop.permute.xlu0 %1887
    %v1889 = vsel %vm454, %v1886, 0
    %v1891 = vsel %vm454, %v1888, 0
    %1893 = vmatprep.subr.mxu0 0.0
    %1894 = vmatpush1.xpose.msra.mxu0 %v1891
    %1895 = vmatprep.subr.mxu0 0.0
    %1896 = vmatpush1.xpose.msra.mxu0 0.0
    %1897 = vmatprep.subr.mxu0 0.0
    %1898 = vmatpush1.xpose.msra.mxu0 0.0
    %1899 = vmatprep.subr.mxu0 0.0
    %1900 = vmatpush1.xpose.msra.mxu0 0.0
    %1901 = vmatprep.subr.mxu0 0.0
    %1902 = vmatpush1.xpose.msra.mxu0 0.0
    %1903 = vmatprep.subr.mxu0 0.0
    %1904 = vmatpush1.xpose.msra.mxu0 0.0
    %1905 = vmatprep.subr.mxu0 0.0
    %1906 = vmatpush1.xpose.msra.mxu0 0.0
    %1907 = vmatprep.subr.mxu0 0.0
    %1908 = vmatpush1.xpose.msra.mxu0 0.0
    %1909 = vmatprep.subr.mxu0 0.0
    %1910 = vmatpush1.xpose.msra.mxu0 0.0
    %1911 = vmatprep.subr.mxu0 0.0
    %1912 = vmatpush1.xpose.msra.mxu0 0.0
    %1913 = vmatprep.subr.mxu0 0.0
    %1914 = vmatpush1.xpose.msra.mxu0 0.0
    %1915 = vmatprep.subr.mxu0 0.0
    %1916 = vmatpush1.xpose.msra.mxu0 0.0
    %1917 = vmatprep.subr.mxu0 0.0
    %1918 = vmatpush1.xpose.msra.mxu0 0.0
    %1919 = vmatprep.subr.mxu0 0.0
    %1920 = vmatpush1.xpose.msra.mxu0 0.0
    %1921 = vmatprep.subr.mxu0 0.0
    %1922 = vmatpush1.xpose.msra.mxu0 0.0
    %1923 = vmatprep.subr.mxu0 0.0
    %1924 = vmatpush1.xpose.msra.mxu0 0.0
    %1925 = vmatprep.subr.mxu0 0.0
    %1926 = vmatpush1.xpose.msra.mxu0 0.0
    %1927 = vmatprep.subr.mxu0 0.0
    %1928 = vmatpush1.xpose.msra.mxu0 0.0
    %1929 = vmatprep.subr.mxu0 0.0
    %1930 = vmatpush1.xpose.msra.mxu0 0.0
    %1931 = vmatprep.subr.mxu0 0.0
    %1932 = vmatpush1.xpose.msra.mxu0 0.0
    %1933 = vmatprep.subr.mxu0 0.0
    %1934 = vmatpush1.xpose.msra.mxu0 0.0
    %1935 = vmatprep.subr.mxu0 0.0
    %1936 = vmatpush1.xpose.msra.mxu0 0.0
    %1937 = vmatprep.subr.mxu0 0.0
    %1938 = vmatpush1.xpose.msra.mxu0 0.0
    %1939 = vmatprep.subr.mxu0 0.0
    %1940 = vmatpush1.xpose.msra.mxu0 0.0
    %1941 = vmatprep.subr.mxu0 0.0
    %1942 = vmatpush1.xpose.msra.mxu0 0.0
    %1943 = vmatprep.subr.mxu0 0.0
    %1944 = vmatpush1.xpose.msra.mxu0 0.0
    %1945 = vmatprep.subr.mxu0 0.0
    %1946 = vmatpush1.xpose.msra.mxu0 0.0
    %1947 = vmatprep.subr.mxu0 0.0
    %1948 = vmatpush1.xpose.msra.mxu0 0.0
    %1949 = vmatprep.subr.mxu0 0.0
    %1950 = vmatpush1.xpose.msra.mxu0 0.0
    %1951 = vmatprep.subr.mxu0 0.0
    %1952 = vmatpush1.xpose.msra.mxu0 0.0
    %1953 = vmatprep.subr.mxu0 0.0
    %1954 = vmatpush1.xpose.msra.mxu0 0.0
    %1955 = vmatprep.subr.mxu0 0.0
    %1956 = vmatpush1.xpose.msra.mxu0 0.0
    %1957 = vmatprep.mubr.f32.mxu0 0.0
    %1958 = vmatmul.mubr.f32.gmra.mrb[0].mxu0 %v1889
    %v1959 = vpop.f32.mrb[0].mxu0
    %v1960 = vadd.f32 0.0, %v1959
    %v1961 = vpop.f32.mrb[0].mxu0
    %1962 = vdwg.mxu0
    %v1963 = vsel %vm1280, -1e+30, %v1882
    %v1964 = vsel %vm1281, -1e+30, %v1960
    %v1965 = vsel %vm454, %v1963, -inf
    %1966 = vmax.xlane.f32.xlu0 %v1965
    %v1967 = vpop.xlane.xlu0 %1966
    %v1968 = vsel %vm454, %v1964, -inf
    %1969 = vmax.xlane.f32.xlu0 %v1968
    %v1970 = vpop.xlane.xlu0 %1969
    %v1971 = vsub.f32 %v1963, %v1967
    %v1972 = vsub.f32 %v1964, %v1970
    %v1973 = vmul.f32 %v1971, 1.442695
    %v1974 = vpow.pop %v1973
    %v1975 = vmul.f32 %v1972, 1.442695
    %v1976 = vpow.pop %v1975
    %v1977 = vsel %vm454, %v1974, 0.0
    %1978 = vadd.xlane.f32.xlu0 %v1977
    %v1979 = vpop.xlane.xlu0 %1978
    %v1980 = vsel %vm454, %v1976, 0.0
    %1981 = vadd.xlane.f32.xlu0 %v1980
    %v1982 = vpop.xlane.xlu0 %1981
    %v1983 = vrcp.pop %v1979
    %v1984 = vrcp.pop %v1982
    %v1985 = vmul.f32 %v1974, %v1983
    %v1986 = vmul.f32 %v1976, %v1984
    %v1987 = vadd.f32 %v1642, %v1985
    %v1988 = vadd.f32 %v1643, %v1986
    %1989 = vrot.lane.b32.xlu0 %v1106, 80
    %v1990 = vpop.permute.xlu0 %1989
    %v1993 = vsel %vm454, %v1985, 0
    %1995 = vmatprep.subr.mxu0 0.0
    %1996 = vmatpush1.msra.mxu0 %v1990
    %1997 = vmatprep.subr.mxu0 0.0
    %1998 = vmatpush1.msra.mxu0 0.0
    %1999 = vmatprep.subr.mxu0 0.0
    %2000 = vmatpush1.msra.mxu0 0.0
    %2001 = vmatprep.subr.mxu0 0.0
    %2002 = vmatpush1.msra.mxu0 0.0
    %2003 = vmatprep.subr.mxu0 0.0
    %2004 = vmatpush1.msra.mxu0 0.0
    %2005 = vmatprep.subr.mxu0 0.0
    %2006 = vmatpush1.msra.mxu0 0.0
    %2007 = vmatprep.subr.mxu0 0.0
    %2008 = vmatpush1.msra.mxu0 0.0
    %2009 = vmatprep.subr.mxu0 0.0
    %2010 = vmatpush1.msra.mxu0 0.0
    %2011 = vmatprep.subr.mxu0 0.0
    %2012 = vmatpush1.msra.mxu0 0.0
    %2013 = vmatprep.subr.mxu0 0.0
    %2014 = vmatpush1.msra.mxu0 0.0
    %2015 = vmatprep.subr.mxu0 0.0
    %2016 = vmatpush1.msra.mxu0 0.0
    %2017 = vmatprep.subr.mxu0 0.0
    %2018 = vmatpush1.msra.mxu0 0.0
    %2019 = vmatprep.subr.mxu0 0.0
    %2020 = vmatpush1.msra.mxu0 0.0
    %2021 = vmatprep.subr.mxu0 0.0
    %2022 = vmatpush1.msra.mxu0 0.0
    %2023 = vmatprep.subr.mxu0 0.0
    %2024 = vmatpush1.msra.mxu0 0.0
    %2025 = vmatprep.subr.mxu0 0.0
    %2026 = vmatpush1.msra.mxu0 0.0
    %2027 = vmatprep.subr.mxu0 0.0
    %2028 = vmatpush1.msra.mxu0 0.0
    %2029 = vmatprep.subr.mxu0 0.0
    %2030 = vmatpush1.msra.mxu0 0.0
    %2031 = vmatprep.subr.mxu0 0.0
    %2032 = vmatpush1.msra.mxu0 0.0
    %2033 = vmatprep.subr.mxu0 0.0
    %2034 = vmatpush1.msra.mxu0 0.0
    %2035 = vmatprep.subr.mxu0 0.0
    %2036 = vmatpush1.msra.mxu0 0.0
    %2037 = vmatprep.subr.mxu0 0.0
    %2038 = vmatpush1.msra.mxu0 0.0
    %2039 = vmatprep.subr.mxu0 0.0
    %2040 = vmatpush1.msra.mxu0 0.0
    %2041 = vmatprep.subr.mxu0 0.0
    %2042 = vmatpush1.msra.mxu0 0.0
    %2043 = vmatprep.subr.mxu0 0.0
    %2044 = vmatpush1.msra.mxu0 0.0
    %2045 = vmatprep.subr.mxu0 0.0
    %2046 = vmatpush1.msra.mxu0 0.0
    %2047 = vmatprep.subr.mxu0 0.0
    %2048 = vmatpush1.msra.mxu0 0.0
    %2049 = vmatprep.subr.mxu0 0.0
    %2050 = vmatpush1.msra.mxu0 0.0
    %2051 = vmatprep.subr.mxu0 0.0
    %2052 = vmatpush1.msra.mxu0 0.0
    %2053 = vmatprep.subr.mxu0 0.0
    %2054 = vmatpush1.msra.mxu0 0.0
    %2055 = vmatprep.subr.mxu0 0.0
    %2056 = vmatpush1.msra.mxu0 0.0
    %2057 = vmatprep.subr.mxu0 0.0
    %2058 = vmatpush1.msra.mxu0 0.0
    %2059 = vmatprep.mubr.f32.mxu0 0.0
    %2060 = vmatmul.mubr.f32.gmra.mrb[0].mxu0 %v1993
    %v2061 = vpop.f32.mrb[0].mxu0
    %v2062 = vadd.f32 0.0, %v2061
    %v2063 = vpop.f32.mrb[0].mxu0
    %2064 = vdwg.mxu0
    %2065 = vrot.lane.b32.xlu0 %v1111, 80
    %v2066 = vpop.permute.xlu0 %2065
    %v2069 = vsel %vm454, %v1986, 0
    %2071 = vmatprep.subr.mxu0 0.0
    %2072 = vmatpush1.msra.mxu0 %v2066
    %2073 = vmatprep.subr.mxu0 0.0
    %2074 = vmatpush1.msra.mxu0 0.0
    %2075 = vmatprep.subr.mxu0 0.0
    %2076 = vmatpush1.msra.mxu0 0.0
    %2077 = vmatprep.subr.mxu0 0.0
    %2078 = vmatpush1.msra.mxu0 0.0
    %2079 = vmatprep.subr.mxu0 0.0
    %2080 = vmatpush1.msra.mxu0 0.0
    %2081 = vmatprep.subr.mxu0 0.0
    %2082 = vmatpush1.msra.mxu0 0.0
    %2083 = vmatprep.subr.mxu0 0.0
    %2084 = vmatpush1.msra.mxu0 0.0
    %2085 = vmatprep.subr.mxu0 0.0
    %2086 = vmatpush1.msra.mxu0 0.0
    %2087 = vmatprep.subr.mxu0 0.0
    %2088 = vmatpush1.msra.mxu0 0.0
    %2089 = vmatprep.subr.mxu0 0.0
    %2090 = vmatpush1.msra.mxu0 0.0
    %2091 = vmatprep.subr.mxu0 0.0
    %2092 = vmatpush1.msra.mxu0 0.0
    %2093 = vmatprep.subr.mxu0 0.0
    %2094 = vmatpush1.msra.mxu0 0.0
    %2095 = vmatprep.subr.mxu0 0.0
    %2096 = vmatpush1.msra.mxu0 0.0
    %2097 = vmatprep.subr.mxu0 0.0
    %2098 = vmatpush1.msra.mxu0 0.0
    %2099 = vmatprep.subr.mxu0 0.0
    %2100 = vmatpush1.msra.mxu0 0.0
    %2101 = vmatprep.subr.mxu0 0.0
    %2102 = vmatpush1.msra.mxu0 0.0
    %2103 = vmatprep.subr.mxu0 0.0
    %2104 = vmatpush1.msra.mxu0 0.0
    %2105 = vmatprep.subr.mxu0 0.0
    %2106 = vmatpush1.msra.mxu0 0.0
    %2107 = vmatprep.subr.mxu0 0.0
    %2108 = vmatpush1.msra.mxu0 0.0
    %2109 = vmatprep.subr.mxu0 0.0
    %2110 = vmatpush1.msra.mxu0 0.0
    %2111 = vmatprep.subr.mxu0 0.0
    %2112 = vmatpush1.msra.mxu0 0.0
    %2113 = vmatprep.subr.mxu0 0.0
    %2114 = vmatpush1.msra.mxu0 0.0
    %2115 = vmatprep.subr.mxu0 0.0
    %2116 = vmatpush1.msra.mxu0 0.0
    %2117 = vmatprep.subr.mxu0 0.0
    %2118 = vmatpush1.msra.mxu0 0.0
    %2119 = vmatprep.subr.mxu0 0.0
    %2120 = vmatpush1.msra.mxu0 0.0
    %2121 = vmatprep.subr.mxu0 0.0
    %2122 = vmatpush1.msra.mxu0 0.0
    %2123 = vmatprep.subr.mxu0 0.0
    %2124 = vmatpush1.msra.mxu0 0.0
    %2125 = vmatprep.subr.mxu0 0.0
    %2126 = vmatpush1.msra.mxu0 0.0
    %2127 = vmatprep.subr.mxu0 0.0
    %2128 = vmatpush1.msra.mxu0 0.0
    %2129 = vmatprep.subr.mxu0 0.0
    %2130 = vmatpush1.msra.mxu0 0.0
    %2131 = vmatprep.subr.mxu0 0.0
    %2132 = vmatpush1.msra.mxu0 0.0
    %2133 = vmatprep.subr.mxu0 0.0
    %2134 = vmatpush1.msra.mxu0 0.0
    %2135 = vmatprep.mubr.f32.mxu0 0.0
    %2136 = vmatmul.mubr.f32.gmra.mrb[0].mxu0 %v2069
    %v2137 = vpop.f32.mrb[0].mxu0
    %v2138 = vadd.f32 0.0, %v2137
    %v2139 = vpop.f32.mrb[0].mxu0
    %2140 = vdwg.mxu0
    %2143 = vrot.lane.b32.xlu0 %v2062, 16
    %v2144 = vpop.permute.xlu0 %2143
    %2145 = vrot.lane.b32.xlu0 %v2138, 16
    %v2146 = vpop.permute.xlu0 %2145
    %vm2149 = vcmask 195712
    %2150 = vst.msk [vmem:[#allocation2] sm:$0xff] %vm2149, %v2144
    %2151 = vst.msk [vmem:[#allocation2 + $0x8] sm:$0xff] %vm2149, %v2146
    %2152 = vrot.lane.b32.xlu0 %v1114, 104
    %v2153 = vpop.permute.xlu0 %2152
    %2154 = vrot.lane.b32.xlu0 %v1106, 104
    %v2155 = vpop.permute.xlu0 %2154
    %v2156 = vsel %vm454, %v2153, 0
    %v2158 = vsel %vm454, %v2155, 0
    %2160 = vmatprep.subr.mxu0 0.0
    %2161 = vmatpush1.xpose.msra.mxu0 %v2158
    %2162 = vmatprep.subr.mxu0 0.0
    %2163 = vmatpush1.xpose.msra.mxu0 0.0
    %2164 = vmatprep.subr.mxu0 0.0
    %2165 = vmatpush1.xpose.msra.mxu0 0.0
    %2166 = vmatprep.subr.mxu0 0.0
    %2167 = vmatpush1.xpose.msra.mxu0 0.0
    %2168 = vmatprep.subr.mxu0 0.0
    %2169 = vmatpush1.xpose.msra.mxu0 0.0
    %2170 = vmatprep.subr.mxu0 0.0
    %2171 = vmatpush1.xpose.msra.mxu0 0.0
    %2172 = vmatprep.subr.mxu0 0.0
    %2173 = vmatpush1.xpose.msra.mxu0 0.0
    %2174 = vmatprep.subr.mxu0 0.0
    %2175 = vmatpush1.xpose.msra.mxu0 0.0
    %2176 = vmatprep.subr.mxu0 0.0
    %2177 = vmatpush1.xpose.msra.mxu0 0.0
    %2178 = vmatprep.subr.mxu0 0.0
    %2179 = vmatpush1.xpose.msra.mxu0 0.0
    %2180 = vmatprep.subr.mxu0 0.0
    %2181 = vmatpush1.xpose.msra.mxu0 0.0
    %2182 = vmatprep.subr.mxu0 0.0
    %2183 = vmatpush1.xpose.msra.mxu0 0.0
    %2184 = vmatprep.subr.mxu0 0.0
    %2185 = vmatpush1.xpose.msra.mxu0 0.0
    %2186 = vmatprep.subr.mxu0 0.0
    %2187 = vmatpush1.xpose.msra.mxu0 0.0
    %2188 = vmatprep.subr.mxu0 0.0
    %2189 = vmatpush1.xpose.msra.mxu0 0.0
    %2190 = vmatprep.subr.mxu0 0.0
    %2191 = vmatpush1.xpose.msra.mxu0 0.0
    %2192 = vmatprep.subr.mxu0 0.0
    %2193 = vmatpush1.xpose.msra.mxu0 0.0
    %2194 = vmatprep.subr.mxu0 0.0
    %2195 = vmatpush1.xpose.msra.mxu0 0.0
    %2196 = vmatprep.subr.mxu0 0.0
    %2197 = vmatpush1.xpose.msra.mxu0 0.0
    %2198 = vmatprep.subr.mxu0 0.0
    %2199 = vmatpush1.xpose.msra.mxu0 0.0
    %2200 = vmatprep.subr.mxu0 0.0
    %2201 = vmatpush1.xpose.msra.mxu0 0.0
    %2202 = vmatprep.subr.mxu0 0.0
    %2203 = vmatpush1.xpose.msra.mxu0 0.0
    %2204 = vmatprep.subr.mxu0 0.0
    %2205 = vmatpush1.xpose.msra.mxu0 0.0
    %2206 = vmatprep.subr.mxu0 0.0
    %2207 = vmatpush1.xpose.msra.mxu0 0.0
    %2208 = vmatprep.subr.mxu0 0.0
    %2209 = vmatpush1.xpose.msra.mxu0 0.0
    %2210 = vmatprep.subr.mxu0 0.0
    %2211 = vmatpush1.xpose.msra.mxu0 0.0
    %2212 = vmatprep.subr.mxu0 0.0
    %2213 = vmatpush1.xpose.msra.mxu0 0.0
    %2214 = vmatprep.subr.mxu0 0.0
    %2215 = vmatpush1.xpose.msra.mxu0 0.0
    %2216 = vmatprep.subr.mxu0 0.0
    %2217 = vmatpush1.xpose.msra.mxu0 0.0
    %2218 = vmatprep.subr.mxu0 0.0
    %2219 = vmatpush1.xpose.msra.mxu0 0.0
    %2220 = vmatprep.subr.mxu0 0.0
    %2221 = vmatpush1.xpose.msra.mxu0 0.0
    %2222 = vmatprep.subr.mxu0 0.0
    %2223 = vmatpush1.xpose.msra.mxu0 0.0
    %2224 = vmatprep.mubr.f32.mxu0 0.0
    %2225 = vmatmul.mubr.f32.gmra.mrb[0].mxu0 %v2156
    %v2226 = vpop.f32.mrb[0].mxu0
    %v2227 = vadd.f32 0.0, %v2226
    %v2228 = vpop.f32.mrb[0].mxu0
    %2229 = vdwg.mxu0
    %2230 = vrot.lane.b32.xlu0 %v1115, 104
    %v2231 = vpop.permute.xlu0 %2230
    %2232 = vrot.lane.b32.xlu0 %v1111, 104
    %v2233 = vpop.permute.xlu0 %2232
    %v2234 = vsel %vm454, %v2231, 0
    %v2236 = vsel %vm454, %v2233, 0
    %2238 = vmatprep.subr.mxu0 0.0
    %2239 = vmatpush1.xpose.msra.mxu0 %v2236
    %2240 = vmatprep.subr.mxu0 0.0
    %2241 = vmatpush1.xpose.msra.mxu0 0.0
    %2242 = vmatprep.subr.mxu0 0.0
    %2243 = vmatpush1.xpose.msra.mxu0 0.0
    %2244 = vmatprep.subr.mxu0 0.0
    %2245 = vmatpush1.xpose.msra.mxu0 0.0
    %2246 = vmatprep.subr.mxu0 0.0
    %2247 = vmatpush1.xpose.msra.mxu0 0.0
    %2248 = vmatprep.subr.mxu0 0.0
    %2249 = vmatpush1.xpose.msra.mxu0 0.0
    %2250 = vmatprep.subr.mxu0 0.0
    %2251 = vmatpush1.xpose.msra.mxu0 0.0
    %2252 = vmatprep.subr.mxu0 0.0
    %2253 = vmatpush1.xpose.msra.mxu0 0.0
    %2254 = vmatprep.subr.mxu0 0.0
    %2255 = vmatpush1.xpose.msra.mxu0 0.0
    %2256 = vmatprep.subr.mxu0 0.0
    %2257 = vmatpush1.xpose.msra.mxu0 0.0
    %2258 = vmatprep.subr.mxu0 0.0
    %2259 = vmatpush1.xpose.msra.mxu0 0.0
    %2260 = vmatprep.subr.mxu0 0.0
    %2261 = vmatpush1.xpose.msra.mxu0 0.0
    %2262 = vmatprep.subr.mxu0 0.0
    %2263 = vmatpush1.xpose.msra.mxu0 0.0
    %2264 = vmatprep.subr.mxu0 0.0
    %2265 = vmatpush1.xpose.msra.mxu0 0.0
    %2266 = vmatprep.subr.mxu0 0.0
    %2267 = vmatpush1.xpose.msra.mxu0 0.0
    %2268 = vmatprep.subr.mxu0 0.0
    %2269 = vmatpush1.xpose.msra.mxu0 0.0
    %2270 = vmatprep.subr.mxu0 0.0
    %2271 = vmatpush1.xpose.msra.mxu0 0.0
    %2272 = vmatprep.subr.mxu0 0.0
    %2273 = vmatpush1.xpose.msra.mxu0 0.0
    %2274 = vmatprep.subr.mxu0 0.0
    %2275 = vmatpush1.xpose.msra.mxu0 0.0
    %2276 = vmatprep.subr.mxu0 0.0
    %2277 = vmatpush1.xpose.msra.mxu0 0.0
    %2278 = vmatprep.subr.mxu0 0.0
    %2279 = vmatpush1.xpose.msra.mxu0 0.0
    %2280 = vmatprep.subr.mxu0 0.0
    %2281 = vmatpush1.xpose.msra.mxu0 0.0
    %2282 = vmatprep.subr.mxu0 0.0
    %2283 = vmatpush1.xpose.msra.mxu0 0.0
    %2284 = vmatprep.subr.mxu0 0.0
    %2285 = vmatpush1.xpose.msra.mxu0 0.0
    %2286 = vmatprep.subr.mxu0 0.0
    %2287 = vmatpush1.xpose.msra.mxu0 0.0
    %2288 = vmatprep.subr.mxu0 0.0
    %2289 = vmatpush1.xpose.msra.mxu0 0.0
    %2290 = vmatprep.subr.mxu0 0.0
    %2291 = vmatpush1.xpose.msra.mxu0 0.0
    %2292 = vmatprep.subr.mxu0 0.0
    %2293 = vmatpush1.xpose.msra.mxu0 0.0
    %2294 = vmatprep.subr.mxu0 0.0
    %2295 = vmatpush1.xpose.msra.mxu0 0.0
    %2296 = vmatprep.subr.mxu0 0.0
    %2297 = vmatpush1.xpose.msra.mxu0 0.0
    %2298 = vmatprep.subr.mxu0 0.0
    %2299 = vmatpush1.xpose.msra.mxu0 0.0
    %2300 = vmatprep.subr.mxu0 0.0
    %2301 = vmatpush1.xpose.msra.mxu0 0.0
    %2302 = vmatprep.mubr.f32.mxu0 0.0
    %2303 = vmatmul.mubr.f32.gmra.mrb[0].mxu0 %v2234
    %v2304 = vpop.f32.mrb[0].mxu0
    %v2305 = vadd.f32 0.0, %v2304
    %v2306 = vpop.f32.mrb[0].mxu0
    %2307 = vdwg.mxu0
    %v2308 = vsel %vm1280, -1e+30, %v2227
    %v2309 = vsel %vm1281, -1e+30, %v2305
    %v2310 = vsel %vm454, %v2308, -inf
    %2311 = vmax.xlane.f32.xlu0 %v2310
    %v2312 = vpop.xlane.xlu0 %2311
    %v2313 = vsel %vm454, %v2309, -inf
    %2314 = vmax.xlane.f32.xlu0 %v2313
    %v2315 = vpop.xlane.xlu0 %2314
    %v2316 = vsub.f32 %v2308, %v2312
    %v2317 = vsub.f32 %v2309, %v2315
    %v2318 = vmul.f32 %v2316, 1.442695
    %v2319 = vpow.pop %v2318
    %v2320 = vmul.f32 %v2317, 1.442695
    %v2321 = vpow.pop %v2320
    %v2322 = vsel %vm454, %v2319, 0.0
    %2323 = vadd.xlane.f32.xlu0 %v2322
    %v2324 = vpop.xlane.xlu0 %2323
    %v2325 = vsel %vm454, %v2321, 0.0
    %2326 = vadd.xlane.f32.xlu0 %v2325
    %v2327 = vpop.xlane.xlu0 %2326
    %v2328 = vrcp.pop %v2324
    %v2329 = vrcp.pop %v2327
    %v2330 = vmul.f32 %v2319, %v2328
    %v2331 = vmul.f32 %v2321, %v2329
    %v2332 = vadd.f32 %v1987, %v2330
    %v2333 = vadd.f32 %v1988, %v2331
    %2334 = vrot.lane.b32.xlu0 %v1106, 72
    %v2335 = vpop.permute.xlu0 %2334
    %v2338 = vsel %vm454, %v2330, 0
    %2340 = vmatprep.subr.mxu0 0.0
    %2341 = vmatpush1.msra.mxu0 %v2335
    %2342 = vmatprep.subr.mxu0 0.0
    %2343 = vmatpush1.msra.mxu0 0.0
    %2344 = vmatprep.subr.mxu0 0.0
    %2345 = vmatpush1.msra.mxu0 0.0
    %2346 = vmatprep.subr.mxu0 0.0
    %2347 = vmatpush1.msra.mxu0 0.0
    %2348 = vmatprep.subr.mxu0 0.0
    %2349 = vmatpush1.msra.mxu0 0.0
    %2350 = vmatprep.subr.mxu0 0.0
    %2351 = vmatpush1.msra.mxu0 0.0
    %2352 = vmatprep.subr.mxu0 0.0
    %2353 = vmatpush1.msra.mxu0 0.0
    %2354 = vmatprep.subr.mxu0 0.0
    %2355 = vmatpush1.msra.mxu0 0.0
    %2356 = vmatprep.subr.mxu0 0.0
    %2357 = vmatpush1.msra.mxu0 0.0
    %2358 = vmatprep.subr.mxu0 0.0
    %2359 = vmatpush1.msra.mxu0 0.0
    %2360 = vmatprep.subr.mxu0 0.0
    %2361 = vmatpush1.msra.mxu0 0.0
    %2362 = vmatprep.subr.mxu0 0.0
    %2363 = vmatpush1.msra.mxu0 0.0
    %2364 = vmatprep.subr.mxu0 0.0
    %2365 = vmatpush1.msra.mxu0 0.0
    %2366 = vmatprep.subr.mxu0 0.0
    %2367 = vmatpush1.msra.mxu0 0.0
    %2368 = vmatprep.subr.mxu0 0.0
    %2369 = vmatpush1.msra.mxu0 0.0
    %2370 = vmatprep.subr.mxu0 0.0
    %2371 = vmatpush1.msra.mxu0 0.0
    %2372 = vmatprep.subr.mxu0 0.0
    %2373 = vmatpush1.msra.mxu0 0.0
    %2374 = vmatprep.subr.mxu0 0.0
    %2375 = vmatpush1.msra.mxu0 0.0
    %2376 = vmatprep.subr.mxu0 0.0
    %2377 = vmatpush1.msra.mxu0 0.0
    %2378 = vmatprep.subr.mxu0 0.0
    %2379 = vmatpush1.msra.mxu0 0.0
    %2380 = vmatprep.subr.mxu0 0.0
    %2381 = vmatpush1.msra.mxu0 0.0
    %2382 = vmatprep.subr.mxu0 0.0
    %2383 = vmatpush1.msra.mxu0 0.0
    %2384 = vmatprep.subr.mxu0 0.0
    %2385 = vmatpush1.msra.mxu0 0.0
    %2386 = vmatprep.subr.mxu0 0.0
    %2387 = vmatpush1.msra.mxu0 0.0
    %2388 = vmatprep.subr.mxu0 0.0
    %2389 = vmatpush1.msra.mxu0 0.0
    %2390 = vmatprep.subr.mxu0 0.0
    %2391 = vmatpush1.msra.mxu0 0.0
    %2392 = vmatprep.subr.mxu0 0.0
    %2393 = vmatpush1.msra.mxu0 0.0
    %2394 = vmatprep.subr.mxu0 0.0
    %2395 = vmatpush1.msra.mxu0 0.0
    %2396 = vmatprep.subr.mxu0 0.0
    %2397 = vmatpush1.msra.mxu0 0.0
    %2398 = vmatprep.subr.mxu0 0.0
    %2399 = vmatpush1.msra.mxu0 0.0
    %2400 = vmatprep.subr.mxu0 0.0
    %2401 = vmatpush1.msra.mxu0 0.0
    %2402 = vmatprep.subr.mxu0 0.0
    %2403 = vmatpush1.msra.mxu0 0.0
    %2404 = vmatprep.mubr.f32.mxu0 0.0
    %2405 = vmatmul.mubr.f32.gmra.mrb[0].mxu0 %v2338
    %v2406 = vpop.f32.mrb[0].mxu0
    %v2407 = vadd.f32 0.0, %v2406
    %v2408 = vpop.f32.mrb[0].mxu0
    %2409 = vdwg.mxu0
    %2410 = vrot.lane.b32.xlu0 %v1111, 72
    %v2411 = vpop.permute.xlu0 %2410
    %v2414 = vsel %vm454, %v2331, 0
    %2416 = vmatprep.subr.mxu0 0.0
    %2417 = vmatpush1.msra.mxu0 %v2411
    %2418 = vmatprep.subr.mxu0 0.0
    %2419 = vmatpush1.msra.mxu0 0.0
    %2420 = vmatprep.subr.mxu0 0.0
    %2421 = vmatpush1.msra.mxu0 0.0
    %2422 = vmatprep.subr.mxu0 0.0
    %2423 = vmatpush1.msra.mxu0 0.0
    %2424 = vmatprep.subr.mxu0 0.0
    %2425 = vmatpush1.msra.mxu0 0.0
    %2426 = vmatprep.subr.mxu0 0.0
    %2427 = vmatpush1.msra.mxu0 0.0
    %2428 = vmatprep.subr.mxu0 0.0
    %2429 = vmatpush1.msra.mxu0 0.0
    %2430 = vmatprep.subr.mxu0 0.0
    %2431 = vmatpush1.msra.mxu0 0.0
    %2432 = vmatprep.subr.mxu0 0.0
    %2433 = vmatpush1.msra.mxu0 0.0
    %2434 = vmatprep.subr.mxu0 0.0
    %2435 = vmatpush1.msra.mxu0 0.0
    %2436 = vmatprep.subr.mxu0 0.0
    %2437 = vmatpush1.msra.mxu0 0.0
    %2438 = vmatprep.subr.mxu0 0.0
    %2439 = vmatpush1.msra.mxu0 0.0
    %2440 = vmatprep.subr.mxu0 0.0
    %2441 = vmatpush1.msra.mxu0 0.0
    %2442 = vmatprep.subr.mxu0 0.0
    %2443 = vmatpush1.msra.mxu0 0.0
    %2444 = vmatprep.subr.mxu0 0.0
    %2445 = vmatpush1.msra.mxu0 0.0
    %2446 = vmatprep.subr.mxu0 0.0
    %2447 = vmatpush1.msra.mxu0 0.0
    %2448 = vmatprep.subr.mxu0 0.0
    %2449 = vmatpush1.msra.mxu0 0.0
    %2450 = vmatprep.subr.mxu0 0.0
    %2451 = vmatpush1.msra.mxu0 0.0
    %2452 = vmatprep.subr.mxu0 0.0
    %2453 = vmatpush1.msra.mxu0 0.0
    %2454 = vmatprep.subr.mxu0 0.0
    %2455 = vmatpush1.msra.mxu0 0.0
    %2456 = vmatprep.subr.mxu0 0.0
    %2457 = vmatpush1.msra.mxu0 0.0
    %2458 = vmatprep.subr.mxu0 0.0
    %2459 = vmatpush1.msra.mxu0 0.0
    %2460 = vmatprep.subr.mxu0 0.0
    %2461 = vmatpush1.msra.mxu0 0.0
    %2462 = vmatprep.subr.mxu0 0.0
    %2463 = vmatpush1.msra.mxu0 0.0
    %2464 = vmatprep.subr.mxu0 0.0
    %2465 = vmatpush1.msra.mxu0 0.0
    %2466 = vmatprep.subr.mxu0 0.0
    %2467 = vmatpush1.msra.mxu0 0.0
    %2468 = vmatprep.subr.mxu0 0.0
    %2469 = vmatpush1.msra.mxu0 0.0
    %2470 = vmatprep.subr.mxu0 0.0
    %2471 = vmatpush1.msra.mxu0 0.0
    %2472 = vmatprep.subr.mxu0 0.0
    %2473 = vmatpush1.msra.mxu0 0.0
    %2474 = vmatprep.subr.mxu0 0.0
    %2475 = vmatpush1.msra.mxu0 0.0
    %2476 = vmatprep.subr.mxu0 0.0
    %2477 = vmatpush1.msra.mxu0 0.0
    %2478 = vmatprep.subr.mxu0 0.0
    %2479 = vmatpush1.msra.mxu0 0.0
    %2480 = vmatprep.mubr.f32.mxu0 0.0
    %2481 = vmatmul.mubr.f32.gmra.mrb[0].mxu0 %v2414
    %v2482 = vpop.f32.mrb[0].mxu0
    %v2483 = vadd.f32 0.0, %v2482
    %v2484 = vpop.f32.mrb[0].mxu0
    %2485 = vdwg.mxu0
    %2488 = vrot.lane.b32.xlu0 %v2407, 24
    %v2489 = vpop.permute.xlu0 %2488
    %2490 = vrot.lane.b32.xlu0 %v2483, 24
    %v2491 = vpop.permute.xlu0 %2490
    %vm2494 = vcmask 261312
    %2495 = vst.msk [vmem:[#allocation2] sm:$0xff] %vm2494, %v2489
    %2496 = vst.msk [vmem:[#allocation2 + $0x8] sm:$0xff] %vm2494, %v2491
    %v2497 = vld [vmem:[#allocation2] sm:$0xff]
    %v2498 = vld [vmem:[#allocation2 + $0x8] sm:$0xff]
    %v2500 = vlaneseq
    %v2501 = vshrl.u32 %v2500, 7
    %v2502 = vsub.s32 0, %v2501
    %v2503 = vrot.slane %v939, %v2502
    %v2506 = vsel %vm345, %v2497, 0
    %v2509 = vsel %vm345, %v2498, 0
    %2511 = vmatprep.subr.mxu0 0.0
    %2512 = vmatpush1.msra.mxu0 %v935
    %2513 = vmatprep.subr.mxu0 0.0
    %2514 = vmatpush1.msra.mxu0 %v936
    %2515 = vmatprep.subr.mxu0 0.0
    %2516 = vmatpush1.msra.mxu0 %v937
    %2517 = vmatprep.subr.mxu0 0.0
    %2518 = vmatpush1.msra.mxu0 %v938
    %2519 = vmatprep.subr.mxu0 0.0
    %2520 = vmatpush1.msra.mxu0 0.0
    %2521 = vmatprep.subr.mxu0 0.0
    %2522 = vmatpush1.msra.mxu0 0.0
    %2523 = vmatprep.subr.mxu0 0.0
    %2524 = vmatpush1.msra.mxu0 0.0
    %2525 = vmatprep.subr.mxu0 0.0
    %2526 = vmatpush1.msra.mxu0 0.0
    %2527 = vmatprep.subr.mxu0 0.0
    %2528 = vmatpush1.msra.mxu0 0.0
    %2529 = vmatprep.subr.mxu0 0.0
    %2530 = vmatpush1.msra.mxu0 0.0
    %2531 = vmatprep.subr.mxu0 0.0
    %2532 = vmatpush1.msra.mxu0 0.0
    %2533 = vmatprep.subr.mxu0 0.0
    %2534 = vmatpush1.msra.mxu0 0.0
    %2535 = vmatprep.subr.mxu0 0.0
    %2536 = vmatpush1.msra.mxu0 0.0
    %2537 = vmatprep.subr.mxu0 0.0
    %2538 = vmatpush1.msra.mxu0 0.0
    %2539 = vmatprep.subr.mxu0 0.0
    %2540 = vmatpush1.msra.mxu0 0.0
    %2541 = vmatprep.subr.mxu0 0.0
    %2542 = vmatpush1.msra.mxu0 0.0
    %2543 = vmatprep.subr.mxu0 0.0
    %2544 = vmatpush1.msra.mxu0 0.0
    %2545 = vmatprep.subr.mxu0 0.0
    %2546 = vmatpush1.msra.mxu0 0.0
    %2547 = vmatprep.subr.mxu0 0.0
    %2548 = vmatpush1.msra.mxu0 0.0
    %2549 = vmatprep.subr.mxu0 0.0
    %2550 = vmatpush1.msra.mxu0 0.0
    %2551 = vmatprep.subr.mxu0 0.0
    %2552 = vmatpush1.msra.mxu0 0.0
    %2553 = vmatprep.subr.mxu0 0.0
    %2554 = vmatpush1.msra.mxu0 0.0
    %2555 = vmatprep.subr.mxu0 0.0
    %2556 = vmatpush1.msra.mxu0 0.0
    %2557 = vmatprep.subr.mxu0 0.0
    %2558 = vmatpush1.msra.mxu0 0.0
    %2559 = vmatprep.subr.mxu0 0.0
    %2560 = vmatpush1.msra.mxu0 0.0
    %2561 = vmatprep.subr.mxu0 0.0
    %2562 = vmatpush1.msra.mxu0 0.0
    %2563 = vmatprep.subr.mxu0 0.0
    %2564 = vmatpush1.msra.mxu0 0.0
    %2565 = vmatprep.subr.mxu0 0.0
    %2566 = vmatpush1.msra.mxu0 0.0
    %2567 = vmatprep.subr.mxu0 0.0
    %2568 = vmatpush1.msra.mxu0 0.0
    %2569 = vmatprep.subr.mxu0 0.0
    %2570 = vmatpush1.msra.mxu0 0.0
    %2571 = vmatprep.subr.mxu0 0.0
    %2572 = vmatpush1.msra.mxu0 0.0
    %2573 = vmatprep.subr.mxu0 0.0
    %2574 = vmatpush1.msra.mxu0 0.0
    %2575 = vmatprep.mubr.f32.mxu0 0.0
    %2576 = vmatmul.mubr.f32.gmra.mrb[0].mxu0 %v2506
    %v2577 = vpop.f32.mrb[0].mxu0
    %v2578 = vadd.f32 %v2503, %v2577
    %v2579 = vpop.f32.mrb[0].mxu0
    %2580 = vmatprep.mubr.f32.mxu0 0.0
    %2581 = vmatmul.mubr.f32.gmra.mrb[0].mxu0 %v2509
    %v2582 = vpop.f32.mrb[0].mxu0
    %v2583 = vadd.f32 %v2503, %v2582
    %v2584 = vpop.f32.mrb[0].mxu0
    %2585 = vdwg.mxu0
    %v2586 = vmul.f32 %v2332, 0.25
    %v2587 = vmul.f32 %v2333, 0.25
    %v2588 = vld [vmem:[%s47] sm:$0xff]
    %v2589 = vld [vmem:[%s47 + $0x8] sm:$0xff]
    %v2590 = vld [vmem:[%s47 + $0x10] sm:$0xff]
    %v2591 = vld [vmem:[%s47 + $0x18] sm:$0xff]
    %v2592 = vld [vmem:[%s49] sm:$0x1]
    %v2593 = vld [vmem:[%s51] sm:$0xff]
    %v2594 = vld [vmem:[%s51 + $0x8] sm:$0xff]
    %v2595 = vld [vmem:[%s51 + $0x10] sm:$0xff]
    %v2596 = vld [vmem:[%s51 + $0x18] sm:$0xff]
    %v2597 = vld [vmem:[%s53] sm:$0x1]
    %v2598 = vld [vmem:[%s55] sm:$0xff]
    %v2599 = vld [vmem:[%s55 + $0x8] sm:$0xff]
    %v2600 = vld [vmem:[%s55 + $0x10] sm:$0xff]
    %v2601 = vld [vmem:[%s55 + $0x18] sm:$0xff]
    %v2602 = vld [vmem:[%s57] sm:$0x1]
    %v2604 = vlaneseq
    %v2605 = vshrl.u32 %v2604, 7
    %v2606 = vsub.s32 0, %v2605
    %v2607 = vrot.slane %v2592, %v2606
    %v2610 = vsel %vm345, %v2578, 0
    %v2613 = vsel %vm345, %v2583, 0
    %2615 = vmatprep.subr.mxu0 0.0
    %2616 = vmatpush1.msra.mxu0 %v2588
    %2617 = vmatprep.subr.mxu0 0.0
    %2618 = vmatpush1.msra.mxu0 %v2589
    %2619 = vmatprep.subr.mxu0 0.0
    %2620 = vmatpush1.msra.mxu0 %v2590
    %2621 = vmatprep.subr.mxu0 0.0
    %2622 = vmatpush1.msra.mxu0 %v2591
    %2623 = vmatprep.subr.mxu0 0.0
    %2624 = vmatpush1.msra.mxu0 0.0
    %2625 = vmatprep.subr.mxu0 0.0
    %2626 = vmatpush1.msra.mxu0 0.0
    %2627 = vmatprep.subr.mxu0 0.0
    %2628 = vmatpush1.msra.mxu0 0.0
    %2629 = vmatprep.subr.mxu0 0.0
    %2630 = vmatpush1.msra.mxu0 0.0
    %2631 = vmatprep.subr.mxu0 0.0
    %2632 = vmatpush1.msra.mxu0 0.0
    %2633 = vmatprep.subr.mxu0 0.0
    %2634 = vmatpush1.msra.mxu0 0.0
    %2635 = vmatprep.subr.mxu0 0.0
    %2636 = vmatpush1.msra.mxu0 0.0
    %2637 = vmatprep.subr.mxu0 0.0
    %2638 = vmatpush1.msra.mxu0 0.0
    %2639 = vmatprep.subr.mxu0 0.0
    %2640 = vmatpush1.msra.mxu0 0.0
    %2641 = vmatprep.subr.mxu0 0.0
    %2642 = vmatpush1.msra.mxu0 0.0
    %2643 = vmatprep.subr.mxu0 0.0
    %2644 = vmatpush1.msra.mxu0 0.0
    %2645 = vmatprep.subr.mxu0 0.0
    %2646 = vmatpush1.msra.mxu0 0.0
    %2647 = vmatprep.subr.mxu0 0.0
    %2648 = vmatpush1.msra.mxu0 0.0
    %2649 = vmatprep.subr.mxu0 0.0
    %2650 = vmatpush1.msra.mxu0 0.0
    %2651 = vmatprep.subr.mxu0 0.0
    %2652 = vmatpush1.msra.mxu0 0.0
    %2653 = vmatprep.subr.mxu0 0.0
    %2654 = vmatpush1.msra.mxu0 0.0
    %2655 = vmatprep.subr.mxu0 0.0
    %2656 = vmatpush1.msra.mxu0 0.0
    %2657 = vmatprep.subr.mxu0 0.0
    %2658 = vmatpush1.msra.mxu0 0.0
    %2659 = vmatprep.subr.mxu0 0.0
    %2660 = vmatpush1.msra.mxu0 0.0
    %2661 = vmatprep.subr.mxu0 0.0
    %2662 = vmatpush1.msra.mxu0 0.0
    %2663 = vmatprep.subr.mxu0 0.0
    %2664 = vmatpush1.msra.mxu0 0.0
    %2665 = vmatprep.subr.mxu0 0.0
    %2666 = vmatpush1.msra.mxu0 0.0
    %2667 = vmatprep.subr.mxu0 0.0
    %2668 = vmatpush1.msra.mxu0 0.0
    %2669 = vmatprep.subr.mxu0 0.0
    %2670 = vmatpush1.msra.mxu0 0.0
    %2671 = vmatprep.subr.mxu0 0.0
    %2672 = vmatpush1.msra.mxu0 0.0
    %2673 = vmatprep.subr.mxu0 0.0
    %2674 = vmatpush1.msra.mxu0 0.0
    %2675 = vmatprep.subr.mxu0 0.0
    %2676 = vmatpush1.msra.mxu0 0.0
    %2677 = vmatprep.subr.mxu0 0.0
    %2678 = vmatpush1.msra.mxu0 0.0
    %2679 = vmatprep.mubr.f32.mxu0 0.0
    %2680 = vmatmul.mubr.f32.gmra.mrb[0].mxu0 %v2610
    %v2681 = vpop.f32.mrb[0].mxu0
    %v2682 = vadd.f32 %v2607, %v2681
    %v2683 = vpop.f32.mrb[0].mxu0
    %2684 = vmatprep.mubr.f32.mxu0 0.0
    %2685 = vmatmul.mubr.f32.gmra.mrb[0].mxu0 %v2613
    %v2686 = vpop.f32.mrb[0].mxu0
    %v2687 = vadd.f32 %v2607, %v2686
    %v2688 = vpop.f32.mrb[0].mxu0
    %2689 = vdwg.mxu0
    %v2691 = vlaneseq
    %v2692 = vshrl.u32 %v2691, 7
    %v2693 = vsub.s32 0, %v2692
    %v2694 = vrot.slane %v2597, %v2693
    %2696 = vmatprep.subr.mxu0 0.0
    %2697 = vmatpush1.msra.mxu0 %v2593
    %2698 = vmatprep.subr.mxu0 0.0
    %2699 = vmatpush1.msra.mxu0 %v2594
    %2700 = vmatprep.subr.mxu0 0.0
    %2701 = vmatpush1.msra.mxu0 %v2595
    %2702 = vmatprep.subr.mxu0 0.0
    %2703 = vmatpush1.msra.mxu0 %v2596
    %2704 = vmatprep.subr.mxu0 0.0
    %2705 = vmatpush1.msra.mxu0 0.0
    %2706 = vmatprep.subr.mxu0 0.0
    %2707 = vmatpush1.msra.mxu0 0.0
    %2708 = vmatprep.subr.mxu0 0.0
    %2709 = vmatpush1.msra.mxu0 0.0
    %2710 = vmatprep.subr.mxu0 0.0
    %2711 = vmatpush1.msra.mxu0 0.0
    %2712 = vmatprep.subr.mxu0 0.0
    %2713 = vmatpush1.msra.mxu0 0.0
    %2714 = vmatprep.subr.mxu0 0.0
    %2715 = vmatpush1.msra.mxu0 0.0
    %2716 = vmatprep.subr.mxu0 0.0
    %2717 = vmatpush1.msra.mxu0 0.0
    %2718 = vmatprep.subr.mxu0 0.0
    %2719 = vmatpush1.msra.mxu0 0.0
    %2720 = vmatprep.subr.mxu0 0.0
    %2721 = vmatpush1.msra.mxu0 0.0
    %2722 = vmatprep.subr.mxu0 0.0
    %2723 = vmatpush1.msra.mxu0 0.0
    %2724 = vmatprep.subr.mxu0 0.0
    %2725 = vmatpush1.msra.mxu0 0.0
    %2726 = vmatprep.subr.mxu0 0.0
    %2727 = vmatpush1.msra.mxu0 0.0
    %2728 = vmatprep.subr.mxu0 0.0
    %2729 = vmatpush1.msra.mxu0 0.0
    %2730 = vmatprep.subr.mxu0 0.0
    %2731 = vmatpush1.msra.mxu0 0.0
    %2732 = vmatprep.subr.mxu0 0.0
    %2733 = vmatpush1.msra.mxu0 0.0
    %2734 = vmatprep.subr.mxu0 0.0
    %2735 = vmatpush1.msra.mxu0 0.0
    %2736 = vmatprep.subr.mxu0 0.0
    %2737 = vmatpush1.msra.mxu0 0.0
    %2738 = vmatprep.subr.mxu0 0.0
    %2739 = vmatpush1.msra.mxu0 0.0
    %2740 = vmatprep.subr.mxu0 0.0
    %2741 = vmatpush1.msra.mxu0 0.0
    %2742 = vmatprep.subr.mxu0 0.0
    %2743 = vmatpush1.msra.mxu0 0.0
    %2744 = vmatprep.subr.mxu0 0.0
    %2745 = vmatpush1.msra.mxu0 0.0
    %2746 = vmatprep.subr.mxu0 0.0
    %2747 = vmatpush1.msra.mxu0 0.0
    %2748 = vmatprep.subr.mxu0 0.0
    %2749 = vmatpush1.msra.mxu0 0.0
    %2750 = vmatprep.subr.mxu0 0.0
    %2751 = vmatpush1.msra.mxu0 0.0
    %2752 = vmatprep.subr.mxu0 0.0
    %2753 = vmatpush1.msra.mxu0 0.0
    %2754 = vmatprep.subr.mxu0 0.0
    %2755 = vmatpush1.msra.mxu0 0.0
    %2756 = vmatprep.subr.mxu0 0.0
    %2757 = vmatpush1.msra.mxu0 0.0
    %2758 = vmatprep.subr.mxu0 0.0
    %2759 = vmatpush1.msra.mxu0 0.0
    %2760 = vmatprep.mubr.f32.mxu0 0.0
    %2761 = vmatmul.mubr.f32.gmra.mrb[0].mxu0 %v2610
    %v2762 = vpop.f32.mrb[0].mxu0
    %v2763 = vadd.f32 %v2694, %v2762
    %v2764 = vpop.f32.mrb[0].mxu0
    %2765 = vmatprep.mubr.f32.mxu0 0.0
    %2766 = vmatmul.mubr.f32.gmra.mrb[0].mxu0 %v2613
    %v2767 = vpop.f32.mrb[0].mxu0
    %v2768 = vadd.f32 %v2694, %v2767
    %v2769 = vpop.f32.mrb[0].mxu0
    %2770 = vdwg.mxu0
    %v2771 = vmul.f32 %v2682, 0.35355338
    %v2772 = vmul.f32 %v2687, 0.35355338
    %v2774 = vsel %vm454, %v2771, 0
    %v2777 = vsel %vm454, %v2763, 0
    %2779 = vmatprep.subr.mxu0 0.0
    %2780 = vmatpush1.xpose.msra.mxu0 %v2777
    %2781 = vmatprep.subr.mxu0 0.0
    %2782 = vmatpush1.xpose.msra.mxu0 0.0
    %2783 = vmatprep.subr.mxu0 0.0
    %2784 = vmatpush1.xpose.msra.mxu0 0.0
    %2785 = vmatprep.subr.mxu0 0.0
    %2786 = vmatpush1.xpose.msra.mxu0 0.0
    %2787 = vmatprep.subr.mxu0 0.0
    %2788 = vmatpush1.xpose.msra.mxu0 0.0
    %2789 = vmatprep.subr.mxu0 0.0
    %2790 = vmatpush1.xpose.msra.mxu0 0.0
    %2791 = vmatprep.subr.mxu0 0.0
    %2792 = vmatpush1.xpose.msra.mxu0 0.0
    %2793 = vmatprep.subr.mxu0 0.0
    %2794 = vmatpush1.xpose.msra.mxu0 0.0
    %2795 = vmatprep.subr.mxu0 0.0
    %2796 = vmatpush1.xpose.msra.mxu0 0.0
    %2797 = vmatprep.subr.mxu0 0.0
    %2798 = vmatpush1.xpose.msra.mxu0 0.0
    %2799 = vmatprep.subr.mxu0 0.0
    %2800 = vmatpush1.xpose.msra.mxu0 0.0
    %2801 = vmatprep.subr.mxu0 0.0
    %2802 = vmatpush1.xpose.msra.mxu0 0.0
    %2803 = vmatprep.subr.mxu0 0.0
    %2804 = vmatpush1.xpose.msra.mxu0 0.0
    %2805 = vmatprep.subr.mxu0 0.0
    %2806 = vmatpush1.xpose.msra.mxu0 0.0
    %2807 = vmatprep.subr.mxu0 0.0
    %2808 = vmatpush1.xpose.msra.mxu0 0.0
    %2809 = vmatprep.subr.mxu0 0.0
    %2810 = vmatpush1.xpose.msra.mxu0 0.0
    %2811 = vmatprep.subr.mxu0 0.0
    %2812 = vmatpush1.xpose.msra.mxu0 0.0
    %2813 = vmatprep.subr.mxu0 0.0
    %2814 = vmatpush1.xpose.msra.mxu0 0.0
    %2815 = vmatprep.subr.mxu0 0.0
    %2816 = vmatpush1.xpose.msra.mxu0 0.0
    %2817 = vmatprep.subr.mxu0 0.0
    %2818 = vmatpush1.xpose.msra.mxu0 0.0
    %2819 = vmatprep.subr.mxu0 0.0
    %2820 = vmatpush1.xpose.msra.mxu0 0.0
    %2821 = vmatprep.subr.mxu0 0.0
    %2822 = vmatpush1.xpose.msra.mxu0 0.0
    %2823 = vmatprep.subr.mxu0 0.0
    %2824 = vmatpush1.xpose.msra.mxu0 0.0
    %2825 = vmatprep.subr.mxu0 0.0
    %2826 = vmatpush1.xpose.msra.mxu0 0.0
    %2827 = vmatprep.subr.mxu0 0.0
    %2828 = vmatpush1.xpose.msra.mxu0 0.0
    %2829 = vmatprep.subr.mxu0 0.0
    %2830 = vmatpush1.xpose.msra.mxu0 0.0
    %2831 = vmatprep.subr.mxu0 0.0
    %2832 = vmatpush1.xpose.msra.mxu0 0.0
    %2833 = vmatprep.subr.mxu0 0.0
    %2834 = vmatpush1.xpose.msra.mxu0 0.0
    %2835 = vmatprep.subr.mxu0 0.0
    %2836 = vmatpush1.xpose.msra.mxu0 0.0
    %2837 = vmatprep.subr.mxu0 0.0
    %2838 = vmatpush1.xpose.msra.mxu0 0.0
    %2839 = vmatprep.subr.mxu0 0.0
    %2840 = vmatpush1.xpose.msra.mxu0 0.0
    %2841 = vmatprep.subr.mxu0 0.0
    %2842 = vmatpush1.xpose.msra.mxu0 0.0
    %2843 = vmatprep.mubr.f32.mxu0 0.0
    %2844 = vmatmul.mubr.f32.gmra.mrb[0].mxu0 %v2774
    %v2845 = vpop.f32.mrb[0].mxu0
    %v2846 = vadd.f32 0.0, %v2845
    %v2847 = vpop.f32.mrb[0].mxu0
    %2848 = vdwg.mxu0
    %v2850 = vsel %vm454, %v2772, 0
    %v2853 = vsel %vm454, %v2768, 0
    %2855 = vmatprep.subr.mxu0 0.0
    %2856 = vmatpush1.xpose.msra.mxu0 %v2853
    %2857 = vmatprep.subr.mxu0 0.0
    %2858 = vmatpush1.xpose.msra.mxu0 0.0
    %2859 = vmatprep.subr.mxu0 0.0
    %2860 = vmatpush1.xpose.msra.mxu0 0.0
    %2861 = vmatprep.subr.mxu0 0.0
    %2862 = vmatpush1.xpose.msra.mxu0 0.0
    %2863 = vmatprep.subr.mxu0 0.0
    %2864 = vmatpush1.xpose.msra.mxu0 0.0
    %2865 = vmatprep.subr.mxu0 0.0
    %2866 = vmatpush1.xpose.msra.mxu0 0.0
    %2867 = vmatprep.subr.mxu0 0.0
    %2868 = vmatpush1.xpose.msra.mxu0 0.0
    %2869 = vmatprep.subr.mxu0 0.0
    %2870 = vmatpush1.xpose.msra.mxu0 0.0
    %2871 = vmatprep.subr.mxu0 0.0
    %2872 = vmatpush1.xpose.msra.mxu0 0.0
    %2873 = vmatprep.subr.mxu0 0.0
    %2874 = vmatpush1.xpose.msra.mxu0 0.0
    %2875 = vmatprep.subr.mxu0 0.0
    %2876 = vmatpush1.xpose.msra.mxu0 0.0
    %2877 = vmatprep.subr.mxu0 0.0
    %2878 = vmatpush1.xpose.msra.mxu0 0.0
    %2879 = vmatprep.subr.mxu0 0.0
    %2880 = vmatpush1.xpose.msra.mxu0 0.0
    %2881 = vmatprep.subr.mxu0 0.0
    %2882 = vmatpush1.xpose.msra.mxu0 0.0
    %2883 = vmatprep.subr.mxu0 0.0
    %2884 = vmatpush1.xpose.msra.mxu0 0.0
    %2885 = vmatprep.subr.mxu0 0.0
    %2886 = vmatpush1.xpose.msra.mxu0 0.0
    %2887 = vmatprep.subr.mxu0 0.0
    %2888 = vmatpush1.xpose.msra.mxu0 0.0
    %2889 = vmatprep.subr.mxu0 0.0
    %2890 = vmatpush1.xpose.msra.mxu0 0.0
    %2891 = vmatprep.subr.mxu0 0.0
    %2892 = vmatpush1.xpose.msra.mxu0 0.0
    %2893 = vmatprep.subr.mxu0 0.0
    %2894 = vmatpush1.xpose.msra.mxu0 0.0
    %2895 = vmatprep.subr.mxu0 0.0
    %2896 = vmatpush1.xpose.msra.mxu0 0.0
    %2897 = vmatprep.subr.mxu0 0.0
    %2898 = vmatpush1.xpose.msra.mxu0 0.0
    %2899 = vmatprep.subr.mxu0 0.0
    %2900 = vmatpush1.xpose.msra.mxu0 0.0
    %2901 = vmatprep.subr.mxu0 0.0
    %2902 = vmatpush1.xpose.msra.mxu0 0.0
    %2903 = vmatprep.subr.mxu0 0.0
    %2904 = vmatpush1.xpose.msra.mxu0 0.0
    %2905 = vmatprep.subr.mxu0 0.0
    %2906 = vmatpush1.xpose.msra.mxu0 0.0
    %2907 = vmatprep.subr.mxu0 0.0
    %2908 = vmatpush1.xpose.msra.mxu0 0.0
    %2909 = vmatprep.subr.mxu0 0.0
    %2910 = vmatpush1.xpose.msra.mxu0 0.0
    %2911 = vmatprep.subr.mxu0 0.0
    %2912 = vmatpush1.xpose.msra.mxu0 0.0
    %2913 = vmatprep.subr.mxu0 0.0
    %2914 = vmatpush1.xpose.msra.mxu0 0.0
    %2915 = vmatprep.subr.mxu0 0.0
    %2916 = vmatpush1.xpose.msra.mxu0 0.0
    %2917 = vmatprep.subr.mxu0 0.0
    %2918 = vmatpush1.xpose.msra.mxu0 0.0
    %2919 = vmatprep.mubr.f32.mxu0 0.0
    %2920 = vmatmul.mubr.f32.gmra.mrb[0].mxu0 %v2850
    %v2921 = vpop.f32.mrb[0].mxu0
    %v2922 = vadd.f32 0.0, %v2921
    %v2923 = vpop.f32.mrb[0].mxu0
    %2924 = vdwg.mxu0
    %v2925 = vsel %vm1280, -1e+30, %v2846
    %v2926 = vsel %vm1281, -1e+30, %v2922
    %v2927 = vsel %vm454, %v2925, -inf
    %2928 = vmax.xlane.f32.xlu0 %v2927
    %v2929 = vpop.xlane.xlu0 %2928
    %v2930 = vsel %vm454, %v2926, -inf
    %2931 = vmax.xlane.f32.xlu0 %v2930
    %v2932 = vpop.xlane.xlu0 %2931
    %v2933 = vsub.f32 %v2925, %v2929
    %v2934 = vsub.f32 %v2926, %v2932
    %v2935 = vmul.f32 %v2933, 1.442695
    %v2936 = vpow.pop %v2935
    %v2937 = vmul.f32 %v2934, 1.442695
    %v2938 = vpow.pop %v2937
    %v2939 = vsel %vm454, %v2936, 0.0
    %2940 = vadd.xlane.f32.xlu0 %v2939
    %v2941 = vpop.xlane.xlu0 %2940
    %v2942 = vsel %vm454, %v2938, 0.0
    %2943 = vadd.xlane.f32.xlu0 %v2942
    %v2944 = vpop.xlane.xlu0 %2943
    %v2945 = vrcp.pop %v2941
    %v2946 = vrcp.pop %v2944
    %v2947 = vmul.f32 %v2936, %v2945
    %v2948 = vmul.f32 %v2938, %v2946
    %v2949 = vadd.f32 %v2947, 0.0
    %v2950 = vadd.f32 %v2948, 0.0
    %2951 = vrot.lane.b32.xlu0 %v2763, 96
    %v2952 = vpop.permute.xlu0 %2951
    %v2955 = vsel %vm454, %v2947, 0
    %2957 = vmatprep.subr.mxu0 0.0
    %2958 = vmatpush1.msra.mxu0 %v2952
    %2959 = vmatprep.subr.mxu0 0.0
    %2960 = vmatpush1.msra.mxu0 0.0
    %2961 = vmatprep.subr.mxu0 0.0
    %2962 = vmatpush1.msra.mxu0 0.0
    %2963 = vmatprep.subr.mxu0 0.0
    %2964 = vmatpush1.msra.mxu0 0.0
    %2965 = vmatprep.subr.mxu0 0.0
    %2966 = vmatpush1.msra.mxu0 0.0
    %2967 = vmatprep.subr.mxu0 0.0
    %2968 = vmatpush1.msra.mxu0 0.0
    %2969 = vmatprep.subr.mxu0 0.0
    %2970 = vmatpush1.msra.mxu0 0.0
    %2971 = vmatprep.subr.mxu0 0.0
    %2972 = vmatpush1.msra.mxu0 0.0
    %2973 = vmatprep.subr.mxu0 0.0
    %2974 = vmatpush1.msra.mxu0 0.0
    %2975 = vmatprep.subr.mxu0 0.0
    %2976 = vmatpush1.msra.mxu0 0.0
    %2977 = vmatprep.subr.mxu0 0.0
    %2978 = vmatpush1.msra.mxu0 0.0
    %2979 = vmatprep.subr.mxu0 0.0
    %2980 = vmatpush1.msra.mxu0 0.0
    %2981 = vmatprep.subr.mxu0 0.0
    %2982 = vmatpush1.msra.mxu0 0.0
    %2983 = vmatprep.subr.mxu0 0.0
    %2984 = vmatpush1.msra.mxu0 0.0
    %2985 = vmatprep.subr.mxu0 0.0
    %2986 = vmatpush1.msra.mxu0 0.0
    %2987 = vmatprep.subr.mxu0 0.0
    %2988 = vmatpush1.msra.mxu0 0.0
    %2989 = vmatprep.subr.mxu0 0.0
    %2990 = vmatpush1.msra.mxu0 0.0
    %2991 = vmatprep.subr.mxu0 0.0
    %2992 = vmatpush1.msra.mxu0 0.0
    %2993 = vmatprep.subr.mxu0 0.0
    %2994 = vmatpush1.msra.mxu0 0.0
    %2995 = vmatprep.subr.mxu0 0.0
    %2996 = vmatpush1.msra.mxu0 0.0
    %2997 = vmatprep.subr.mxu0 0.0
    %2998 = vmatpush1.msra.mxu0 0.0
    %2999 = vmatprep.subr.mxu0 0.0
    %3000 = vmatpush1.msra.mxu0 0.0
    %3001 = vmatprep.subr.mxu0 0.0
    %3002 = vmatpush1.msra.mxu0 0.0
    %3003 = vmatprep.subr.mxu0 0.0
    %3004 = vmatpush1.msra.mxu0 0.0
    %3005 = vmatprep.subr.mxu0 0.0
    %3006 = vmatpush1.msra.mxu0 0.0
    %3007 = vmatprep.subr.mxu0 0.0
    %3008 = vmatpush1.msra.mxu0 0.0
    %3009 = vmatprep.subr.mxu0 0.0
    %3010 = vmatpush1.msra.mxu0 0.0
    %3011 = vmatprep.subr.mxu0 0.0
    %3012 = vmatpush1.msra.mxu0 0.0
    %3013 = vmatprep.subr.mxu0 0.0
    %3014 = vmatpush1.msra.mxu0 0.0
    %3015 = vmatprep.subr.mxu0 0.0
    %3016 = vmatpush1.msra.mxu0 0.0
    %3017 = vmatprep.subr.mxu0 0.0
    %3018 = vmatpush1.msra.mxu0 0.0
    %3019 = vmatprep.subr.mxu0 0.0
    %3020 = vmatpush1.msra.mxu0 0.0
    %3021 = vmatprep.mubr.f32.mxu0 0.0
    %3022 = vmatmul.mubr.f32.gmra.mrb[0].mxu0 %v2955
    %v3023 = vpop.f32.mrb[0].mxu0
    %v3024 = vadd.f32 0.0, %v3023
    %v3025 = vpop.f32.mrb[0].mxu0
    %3026 = vdwg.mxu0
    %3027 = vrot.lane.b32.xlu0 %v2768, 96
    %v3028 = vpop.permute.xlu0 %3027
    %v3031 = vsel %vm454, %v2948, 0
    %3033 = vmatprep.subr.mxu0 0.0
    %3034 = vmatpush1.msra.mxu0 %v3028
    %3035 = vmatprep.subr.mxu0 0.0
    %3036 = vmatpush1.msra.mxu0 0.0
    %3037 = vmatprep.subr.mxu0 0.0
    %3038 = vmatpush1.msra.mxu0 0.0
    %3039 = vmatprep.subr.mxu0 0.0
    %3040 = vmatpush1.msra.mxu0 0.0
    %3041 = vmatprep.subr.mxu0 0.0
    %3042 = vmatpush1.msra.mxu0 0.0
    %3043 = vmatprep.subr.mxu0 0.0
    %3044 = vmatpush1.msra.mxu0 0.0
    %3045 = vmatprep.subr.mxu0 0.0
    %3046 = vmatpush1.msra.mxu0 0.0
    %3047 = vmatprep.subr.mxu0 0.0
    %3048 = vmatpush1.msra.mxu0 0.0
    %3049 = vmatprep.subr.mxu0 0.0
    %3050 = vmatpush1.msra.mxu0 0.0
    %3051 = vmatprep.subr.mxu0 0.0
    %3052 = vmatpush1.msra.mxu0 0.0
    %3053 = vmatprep.subr.mxu0 0.0
    %3054 = vmatpush1.msra.mxu0 0.0
    %3055 = vmatprep.subr.mxu0 0.0
    %3056 = vmatpush1.msra.mxu0 0.0
    %3057 = vmatprep.subr.mxu0 0.0
    %3058 = vmatpush1.msra.mxu0 0.0
    %3059 = vmatprep.subr.mxu0 0.0
    %3060 = vmatpush1.msra.mxu0 0.0
    %3061 = vmatprep.subr.mxu0 0.0
    %3062 = vmatpush1.msra.mxu0 0.0
    %3063 = vmatprep.subr.mxu0 0.0
    %3064 = vmatpush1.msra.mxu0 0.0
    %3065 = vmatprep.subr.mxu0 0.0
    %3066 = vmatpush1.msra.mxu0 0.0
    %3067 = vmatprep.subr.mxu0 0.0
    %3068 = vmatpush1.msra.mxu0 0.0
    %3069 = vmatprep.subr.mxu0 0.0
    %3070 = vmatpush1.msra.mxu0 0.0
    %3071 = vmatprep.subr.mxu0 0.0
    %3072 = vmatpush1.msra.mxu0 0.0
    %3073 = vmatprep.subr.mxu0 0.0
    %3074 = vmatpush1.msra.mxu0 0.0
    %3075 = vmatprep.subr.mxu0 0.0
    %3076 = vmatpush1.msra.mxu0 0.0
    %3077 = vmatprep.subr.mxu0 0.0
    %3078 = vmatpush1.msra.mxu0 0.0
    %3079 = vmatprep.subr.mxu0 0.0
    %3080 = vmatpush1.msra.mxu0 0.0
    %3081 = vmatprep.subr.mxu0 0.0
    %3082 = vmatpush1.msra.mxu0 0.0
    %3083 = vmatprep.subr.mxu0 0.0
    %3084 = vmatpush1.msra.mxu0 0.0
    %3085 = vmatprep.subr.mxu0 0.0
    %3086 = vmatpush1.msra.mxu0 0.0
    %3087 = vmatprep.subr.mxu0 0.0
    %3088 = vmatpush1.msra.mxu0 0.0
    %3089 = vmatprep.subr.mxu0 0.0
    %3090 = vmatpush1.msra.mxu0 0.0
    %3091 = vmatprep.subr.mxu0 0.0
    %3092 = vmatpush1.msra.mxu0 0.0
    %3093 = vmatprep.subr.mxu0 0.0
    %3094 = vmatpush1.msra.mxu0 0.0
    %3095 = vmatprep.subr.mxu0 0.0
    %3096 = vmatpush1.msra.mxu0 0.0
    %3097 = vmatprep.mubr.f32.mxu0 0.0
    %3098 = vmatmul.mubr.f32.gmra.mrb[0].mxu0 %v3031
    %v3099 = vpop.f32.mrb[0].mxu0
    %v3100 = vadd.f32 0.0, %v3099
    %v3101 = vpop.f32.mrb[0].mxu0
    %3102 = vdwg.mxu0
    %3103 = vst.msk [vmem:[#allocation2] sm:$0xff] %vm454, %v3024
    %3104 = vst.msk [vmem:[#allocation2 + $0x8] sm:$0xff] %vm454, %v3100
    %3105 = vrot.lane.b32.xlu0 %v2771, 120
    %v3106 = vpop.permute.xlu0 %3105
    %3107 = vrot.lane.b32.xlu0 %v2763, 120
    %v3108 = vpop.permute.xlu0 %3107
    %v3109 = vsel %vm454, %v3106, 0
    %v3111 = vsel %vm454, %v3108, 0
    %3113 = vmatprep.subr.mxu0 0.0
    %3114 = vmatpush1.xpose.msra.mxu0 %v3111
    %3115 = vmatprep.subr.mxu0 0.0
    %3116 = vmatpush1.xpose.msra.mxu0 0.0
    %3117 = vmatprep.subr.mxu0 0.0
    %3118 = vmatpush1.xpose.msra.mxu0 0.0
    %3119 = vmatprep.subr.mxu0 0.0
    %3120 = vmatpush1.xpose.msra.mxu0 0.0
    %3121 = vmatprep.subr.mxu0 0.0
    %3122 = vmatpush1.xpose.msra.mxu0 0.0
    %3123 = vmatprep.subr.mxu0 0.0
    %3124 = vmatpush1.xpose.msra.mxu0 0.0
    %3125 = vmatprep.subr.mxu0 0.0
    %3126 = vmatpush1.xpose.msra.mxu0 0.0
    %3127 = vmatprep.subr.mxu0 0.0
    %3128 = vmatpush1.xpose.msra.mxu0 0.0
    %3129 = vmatprep.subr.mxu0 0.0
    %3130 = vmatpush1.xpose.msra.mxu0 0.0
    %3131 = vmatprep.subr.mxu0 0.0
    %3132 = vmatpush1.xpose.msra.mxu0 0.0
    %3133 = vmatprep.subr.mxu0 0.0
    %3134 = vmatpush1.xpose.msra.mxu0 0.0
    %3135 = vmatprep.subr.mxu0 0.0
    %3136 = vmatpush1.xpose.msra.mxu0 0.0
    %3137 = vmatprep.subr.mxu0 0.0
    %3138 = vmatpush1.xpose.msra.mxu0 0.0
    %3139 = vmatprep.subr.mxu0 0.0
    %3140 = vmatpush1.xpose.msra.mxu0 0.0
    %3141 = vmatprep.subr.mxu0 0.0
    %3142 = vmatpush1.xpose.msra.mxu0 0.0
    %3143 = vmatprep.subr.mxu0 0.0
    %3144 = vmatpush1.xpose.msra.mxu0 0.0
    %3145 = vmatprep.subr.mxu0 0.0
    %3146 = vmatpush1.xpose.msra.mxu0 0.0
    %3147 = vmatprep.subr.mxu0 0.0
    %3148 = vmatpush1.xpose.msra.mxu0 0.0
    %3149 = vmatprep.subr.mxu0 0.0
    %3150 = vmatpush1.xpose.msra.mxu0 0.0
    %3151 = vmatprep.subr.mxu0 0.0
    %3152 = vmatpush1.xpose.msra.mxu0 0.0
    %3153 = vmatprep.subr.mxu0 0.0
    %3154 = vmatpush1.xpose.msra.mxu0 0.0
    %3155 = vmatprep.subr.mxu0 0.0
    %3156 = vmatpush1.xpose.msra.mxu0 0.0
    %3157 = vmatprep.subr.mxu0 0.0
    %3158 = vmatpush1.xpose.msra.mxu0 0.0
    %3159 = vmatprep.subr.mxu0 0.0
    %3160 = vmatpush1.xpose.msra.mxu0 0.0
    %3161 = vmatprep.subr.mxu0 0.0
    %3162 = vmatpush1.xpose.msra.mxu0 0.0
    %3163 = vmatprep.subr.mxu0 0.0
    %3164 = vmatpush1.xpose.msra.mxu0 0.0
    %3165 = vmatprep.subr.mxu0 0.0
    %3166 = vmatpush1.xpose.msra.mxu0 0.0
    %3167 = vmatprep.subr.mxu0 0.0
    %3168 = vmatpush1.xpose.msra.mxu0 0.0
    %3169 = vmatprep.subr.mxu0 0.0
    %3170 = vmatpush1.xpose.msra.mxu0 0.0
    %3171 = vmatprep.subr.mxu0 0.0
    %3172 = vmatpush1.xpose.msra.mxu0 0.0
    %3173 = vmatprep.subr.mxu0 0.0
    %3174 = vmatpush1.xpose.msra.mxu0 0.0
    %3175 = vmatprep.subr.mxu0 0.0
    %3176 = vmatpush1.xpose.msra.mxu0 0.0
    %3177 = vmatprep.mubr.f32.mxu0 0.0
    %3178 = vmatmul.mubr.f32.gmra.mrb[0].mxu0 %v3109
    %v3179 = vpop.f32.mrb[0].mxu0
    %v3180 = vadd.f32 0.0, %v3179
    %v3181 = vpop.f32.mrb[0].mxu0
    %3182 = vdwg.mxu0
    %3183 = vrot.lane.b32.xlu0 %v2772, 120
    %v3184 = vpop.permute.xlu0 %3183
    %3185 = vrot.lane.b32.xlu0 %v2768, 120
    %v3186 = vpop.permute.xlu0 %3185
    %v3187 = vsel %vm454, %v3184, 0
    %v3189 = vsel %vm454, %v3186, 0
    %3191 = vmatprep.subr.mxu0 0.0
    %3192 = vmatpush1.xpose.msra.mxu0 %v3189
    %3193 = vmatprep.subr.mxu0 0.0
    %3194 = vmatpush1.xpose.msra.mxu0 0.0
    %3195 = vmatprep.subr.mxu0 0.0
    %3196 = vmatpush1.xpose.msra.mxu0 0.0
    %3197 = vmatprep.subr.mxu0 0.0
    %3198 = vmatpush1.xpose.msra.mxu0 0.0
    %3199 = vmatprep.subr.mxu0 0.0
    %3200 = vmatpush1.xpose.msra.mxu0 0.0
    %3201 = vmatprep.subr.mxu0 0.0
    %3202 = vmatpush1.xpose.msra.mxu0 0.0
    %3203 = vmatprep.subr.mxu0 0.0
    %3204 = vmatpush1.xpose.msra.mxu0 0.0
    %3205 = vmatprep.subr.mxu0 0.0
    %3206 = vmatpush1.xpose.msra.mxu0 0.0
    %3207 = vmatprep.subr.mxu0 0.0
    %3208 = vmatpush1.xpose.msra.mxu0 0.0
    %3209 = vmatprep.subr.mxu0 0.0
    %3210 = vmatpush1.xpose.msra.mxu0 0.0
    %3211 = vmatprep.subr.mxu0 0.0
    %3212 = vmatpush1.xpose.msra.mxu0 0.0
    %3213 = vmatprep.subr.mxu0 0.0
    %3214 = vmatpush1.xpose.msra.mxu0 0.0
    %3215 = vmatprep.subr.mxu0 0.0
    %3216 = vmatpush1.xpose.msra.mxu0 0.0
    %3217 = vmatprep.subr.mxu0 0.0
    %3218 = vmatpush1.xpose.msra.mxu0 0.0
    %3219 = vmatprep.subr.mxu0 0.0
    %3220 = vmatpush1.xpose.msra.mxu0 0.0
    %3221 = vmatprep.subr.mxu0 0.0
    %3222 = vmatpush1.xpose.msra.mxu0 0.0
    %3223 = vmatprep.subr.mxu0 0.0
    %3224 = vmatpush1.xpose.msra.mxu0 0.0
    %3225 = vmatprep.subr.mxu0 0.0
    %3226 = vmatpush1.xpose.msra.mxu0 0.0
    %3227 = vmatprep.subr.mxu0 0.0
    %3228 = vmatpush1.xpose.msra.mxu0 0.0
    %3229 = vmatprep.subr.mxu0 0.0
    %3230 = vmatpush1.xpose.msra.mxu0 0.0
    %3231 = vmatprep.subr.mxu0 0.0
    %3232 = vmatpush1.xpose.msra.mxu0 0.0
    %3233 = vmatprep.subr.mxu0 0.0
    %3234 = vmatpush1.xpose.msra.mxu0 0.0
    %3235 = vmatprep.subr.mxu0 0.0
    %3236 = vmatpush1.xpose.msra.mxu0 0.0
    %3237 = vmatprep.subr.mxu0 0.0
    %3238 = vmatpush1.xpose.msra.mxu0 0.0
    %3239 = vmatprep.subr.mxu0 0.0
    %3240 = vmatpush1.xpose.msra.mxu0 0.0
    %3241 = vmatprep.subr.mxu0 0.0
    %3242 = vmatpush1.xpose.msra.mxu0 0.0
    %3243 = vmatprep.subr.mxu0 0.0
    %3244 = vmatpush1.xpose.msra.mxu0 0.0
    %3245 = vmatprep.subr.mxu0 0.0
    %3246 = vmatpush1.xpose.msra.mxu0 0.0
    %3247 = vmatprep.subr.mxu0 0.0
    %3248 = vmatpush1.xpose.msra.mxu0 0.0
    %3249 = vmatprep.subr.mxu0 0.0
    %3250 = vmatpush1.xpose.msra.mxu0 0.0
    %3251 = vmatprep.subr.mxu0 0.0
    %3252 = vmatpush1.xpose.msra.mxu0 0.0
    %3253 = vmatprep.subr.mxu0 0.0
    %3254 = vmatpush1.xpose.msra.mxu0 0.0
    %3255 = vmatprep.mubr.f32.mxu0 0.0
    %3256 = vmatmul.mubr.f32.gmra.mrb[0].mxu0 %v3187
    %v3257 = vpop.f32.mrb[0].mxu0
    %v3258 = vadd.f32 0.0, %v3257
    %v3259 = vpop.f32.mrb[0].mxu0
    %3260 = vdwg.mxu0
    %v3261 = vsel %vm1280, -1e+30, %v3180
    %v3262 = vsel %vm1281, -1e+30, %v3258
    %v3263 = vsel %vm454, %v3261, -inf
    %3264 = vmax.xlane.f32.xlu0 %v3263
    %v3265 = vpop.xlane.xlu0 %3264
    %v3266 = vsel %vm454, %v3262, -inf
    %3267 = vmax.xlane.f32.xlu0 %v3266
    %v3268 = vpop.xlane.xlu0 %3267
    %v3269 = vsub.f32 %v3261, %v3265
    %v3270 = vsub.f32 %v3262, %v3268
    %v3271 = vmul.f32 %v3269, 1.442695
    %v3272 = vpow.pop %v3271
    %v3273 = vmul.f32 %v3270, 1.442695
    %v3274 = vpow.pop %v3273
    %v3275 = vsel %vm454, %v3272, 0.0
    %3276 = vadd.xlane.f32.xlu0 %v3275
    %v3277 = vpop.xlane.xlu0 %3276
    %v3278 = vsel %vm454, %v3274, 0.0
    %3279 = vadd.xlane.f32.xlu0 %v3278
    %v3280 = vpop.xlane.xlu0 %3279
    %v3281 = vrcp.pop %v3277
    %v3282 = vrcp.pop %v3280
    %v3283 = vmul.f32 %v3272, %v3281
    %v3284 = vmul.f32 %v3274, %v3282
    %v3285 = vadd.f32 %v2949, %v3283
    %v3286 = vadd.f32 %v2950, %v3284
    %3287 = vrot.lane.b32.xlu0 %v2763, 88
    %v3288 = vpop.permute.xlu0 %3287
    %v3291 = vsel %vm454, %v3283, 0
    %3293 = vmatprep.subr.mxu0 0.0
    %3294 = vmatpush1.msra.mxu0 %v3288
    %3295 = vmatprep.subr.mxu0 0.0
    %3296 = vmatpush1.msra.mxu0 0.0
    %3297 = vmatprep.subr.mxu0 0.0
    %3298 = vmatpush1.msra.mxu0 0.0
    %3299 = vmatprep.subr.mxu0 0.0
    %3300 = vmatpush1.msra.mxu0 0.0
    %3301 = vmatprep.subr.mxu0 0.0
    %3302 = vmatpush1.msra.mxu0 0.0
    %3303 = vmatprep.subr.mxu0 0.0
    %3304 = vmatpush1.msra.mxu0 0.0
    %3305 = vmatprep.subr.mxu0 0.0
    %3306 = vmatpush1.msra.mxu0 0.0
    %3307 = vmatprep.subr.mxu0 0.0
    %3308 = vmatpush1.msra.mxu0 0.0
    %3309 = vmatprep.subr.mxu0 0.0
    %3310 = vmatpush1.msra.mxu0 0.0
    %3311 = vmatprep.subr.mxu0 0.0
    %3312 = vmatpush1.msra.mxu0 0.0
    %3313 = vmatprep.subr.mxu0 0.0
    %3314 = vmatpush1.msra.mxu0 0.0
    %3315 = vmatprep.subr.mxu0 0.0
    %3316 = vmatpush1.msra.mxu0 0.0
    %3317 = vmatprep.subr.mxu0 0.0
    %3318 = vmatpush1.msra.mxu0 0.0
    %3319 = vmatprep.subr.mxu0 0.0
    %3320 = vmatpush1.msra.mxu0 0.0
    %3321 = vmatprep.subr.mxu0 0.0
    %3322 = vmatpush1.msra.mxu0 0.0
    %3323 = vmatprep.subr.mxu0 0.0
    %3324 = vmatpush1.msra.mxu0 0.0
    %3325 = vmatprep.subr.mxu0 0.0
    %3326 = vmatpush1.msra.mxu0 0.0
    %3327 = vmatprep.subr.mxu0 0.0
    %3328 = vmatpush1.msra.mxu0 0.0
    %3329 = vmatprep.subr.mxu0 0.0
    %3330 = vmatpush1.msra.mxu0 0.0
    %3331 = vmatprep.subr.mxu0 0.0
    %3332 = vmatpush1.msra.mxu0 0.0
    %3333 = vmatprep.subr.mxu0 0.0
    %3334 = vmatpush1.msra.mxu0 0.0
    %3335 = vmatprep.subr.mxu0 0.0
    %3336 = vmatpush1.msra.mxu0 0.0
    %3337 = vmatprep.subr.mxu0 0.0
    %3338 = vmatpush1.msra.mxu0 0.0
    %3339 = vmatprep.subr.mxu0 0.0
    %3340 = vmatpush1.msra.mxu0 0.0
    %3341 = vmatprep.subr.mxu0 0.0
    %3342 = vmatpush1.msra.mxu0 0.0
    %3343 = vmatprep.subr.mxu0 0.0
    %3344 = vmatpush1.msra.mxu0 0.0
    %3345 = vmatprep.subr.mxu0 0.0
    %3346 = vmatpush1.msra.mxu0 0.0
    %3347 = vmatprep.subr.mxu0 0.0
    %3348 = vmatpush1.msra.mxu0 0.0
    %3349 = vmatprep.subr.mxu0 0.0
    %3350 = vmatpush1.msra.mxu0 0.0
    %3351 = vmatprep.subr.mxu0 0.0
    %3352 = vmatpush1.msra.mxu0 0.0
    %3353 = vmatprep.subr.mxu0 0.0
    %3354 = vmatpush1.msra.mxu0 0.0
    %3355 = vmatprep.subr.mxu0 0.0
    %3356 = vmatpush1.msra.mxu0 0.0
    %3357 = vmatprep.mubr.f32.mxu0 0.0
    %3358 = vmatmul.mubr.f32.gmra.mrb[0].mxu0 %v3291
    %v3359 = vpop.f32.mrb[0].mxu0
    %v3360 = vadd.f32 0.0, %v3359
    %v3361 = vpop.f32.mrb[0].mxu0
    %3362 = vdwg.mxu0
    %3363 = vrot.lane.b32.xlu0 %v2768, 88
    %v3364 = vpop.permute.xlu0 %3363
    %v3367 = vsel %vm454, %v3284, 0
    %3369 = vmatprep.subr.mxu0 0.0
    %3370 = vmatpush1.msra.mxu0 %v3364
    %3371 = vmatprep.subr.mxu0 0.0
    %3372 = vmatpush1.msra.mxu0 0.0
    %3373 = vmatprep.subr.mxu0 0.0
    %3374 = vmatpush1.msra.mxu0 0.0
    %3375 = vmatprep.subr.mxu0 0.0
    %3376 = vmatpush1.msra.mxu0 0.0
    %3377 = vmatprep.subr.mxu0 0.0
    %3378 = vmatpush1.msra.mxu0 0.0
    %3379 = vmatprep.subr.mxu0 0.0
    %3380 = vmatpush1.msra.mxu0 0.0
    %3381 = vmatprep.subr.mxu0 0.0
    %3382 = vmatpush1.msra.mxu0 0.0
    %3383 = vmatprep.subr.mxu0 0.0
    %3384 = vmatpush1.msra.mxu0 0.0
    %3385 = vmatprep.subr.mxu0 0.0
    %3386 = vmatpush1.msra.mxu0 0.0
    %3387 = vmatprep.subr.mxu0 0.0
    %3388 = vmatpush1.msra.mxu0 0.0
    %3389 = vmatprep.subr.mxu0 0.0
    %3390 = vmatpush1.msra.mxu0 0.0
    %3391 = vmatprep.subr.mxu0 0.0
    %3392 = vmatpush1.msra.mxu0 0.0
    %3393 = vmatprep.subr.mxu0 0.0
    %3394 = vmatpush1.msra.mxu0 0.0
    %3395 = vmatprep.subr.mxu0 0.0
    %3396 = vmatpush1.msra.mxu0 0.0
    %3397 = vmatprep.subr.mxu0 0.0
    %3398 = vmatpush1.msra.mxu0 0.0
    %3399 = vmatprep.subr.mxu0 0.0
    %3400 = vmatpush1.msra.mxu0 0.0
    %3401 = vmatprep.subr.mxu0 0.0
    %3402 = vmatpush1.msra.mxu0 0.0
    %3403 = vmatprep.subr.mxu0 0.0
    %3404 = vmatpush1.msra.mxu0 0.0
    %3405 = vmatprep.subr.mxu0 0.0
    %3406 = vmatpush1.msra.mxu0 0.0
    %3407 = vmatprep.subr.mxu0 0.0
    %3408 = vmatpush1.msra.mxu0 0.0
    %3409 = vmatprep.subr.mxu0 0.0
    %3410 = vmatpush1.msra.mxu0 0.0
    %3411 = vmatprep.subr.mxu0 0.0
    %3412 = vmatpush1.msra.mxu0 0.0
    %3413 = vmatprep.subr.mxu0 0.0
    %3414 = vmatpush1.msra.mxu0 0.0
    %3415 = vmatprep.subr.mxu0 0.0
    %3416 = vmatpush1.msra.mxu0 0.0
    %3417 = vmatprep.subr.mxu0 0.0
    %3418 = vmatpush1.msra.mxu0 0.0
    %3419 = vmatprep.subr.mxu0 0.0
    %3420 = vmatpush1.msra.mxu0 0.0
    %3421 = vmatprep.subr.mxu0 0.0
    %3422 = vmatpush1.msra.mxu0 0.0
    %3423 = vmatprep.subr.mxu0 0.0
    %3424 = vmatpush1.msra.mxu0 0.0
    %3425 = vmatprep.subr.mxu0 0.0
    %3426 = vmatpush1.msra.mxu0 0.0
    %3427 = vmatprep.subr.mxu0 0.0
    %3428 = vmatpush1.msra.mxu0 0.0
    %3429 = vmatprep.subr.mxu0 0.0
    %3430 = vmatpush1.msra.mxu0 0.0
    %3431 = vmatprep.subr.mxu0 0.0
    %3432 = vmatpush1.msra.mxu0 0.0
    %3433 = vmatprep.mubr.f32.mxu0 0.0
    %3434 = vmatmul.mubr.f32.gmra.mrb[0].mxu0 %v3367
    %v3435 = vpop.f32.mrb[0].mxu0
    %v3436 = vadd.f32 0.0, %v3435
    %v3437 = vpop.f32.mrb[0].mxu0
    %3438 = vdwg.mxu0
    %3441 = vrot.lane.b32.xlu0 %v3360, 8
    %v3442 = vpop.permute.xlu0 %3441
    %3443 = vrot.lane.b32.xlu0 %v3436, 8
    %v3444 = vpop.permute.xlu0 %3443
    %3447 = vst.msk [vmem:[#allocation2] sm:$0xff] %vm1804, %v3442
    %3448 = vst.msk [vmem:[#allocation2 + $0x8] sm:$0xff] %vm1804, %v3444
    %3449 = vrot.lane.b32.xlu0 %v2771, 112
    %v3450 = vpop.permute.xlu0 %3449
    %3451 = vrot.lane.b32.xlu0 %v2763, 112
    %v3452 = vpop.permute.xlu0 %3451
    %v3453 = vsel %vm454, %v3450, 0
    %v3455 = vsel %vm454, %v3452, 0
    %3457 = vmatprep.subr.mxu0 0.0
    %3458 = vmatpush1.xpose.msra.mxu0 %v3455
    %3459 = vmatprep.subr.mxu0 0.0
    %3460 = vmatpush1.xpose.msra.mxu0 0.0
    %3461 = vmatprep.subr.mxu0 0.0
    %3462 = vmatpush1.xpose.msra.mxu0 0.0
    %3463 = vmatprep.subr.mxu0 0.0
    %3464 = vmatpush1.xpose.msra.mxu0 0.0
    %3465 = vmatprep.subr.mxu0 0.0
    %3466 = vmatpush1.xpose.msra.mxu0 0.0
    %3467 = vmatprep.subr.mxu0 0.0
    %3468 = vmatpush1.xpose.msra.mxu0 0.0
    %3469 = vmatprep.subr.mxu0 0.0
    %3470 = vmatpush1.xpose.msra.mxu0 0.0
    %3471 = vmatprep.subr.mxu0 0.0
    %3472 = vmatpush1.xpose.msra.mxu0 0.0
    %3473 = vmatprep.subr.mxu0 0.0
    %3474 = vmatpush1.xpose.msra.mxu0 0.0
    %3475 = vmatprep.subr.mxu0 0.0
    %3476 = vmatpush1.xpose.msra.mxu0 0.0
    %3477 = vmatprep.subr.mxu0 0.0
    %3478 = vmatpush1.xpose.msra.mxu0 0.0
    %3479 = vmatprep.subr.mxu0 0.0
    %3480 = vmatpush1.xpose.msra.mxu0 0.0
    %3481 = vmatprep.subr.mxu0 0.0
    %3482 = vmatpush1.xpose.msra.mxu0 0.0
    %3483 = vmatprep.subr.mxu0 0.0
    %3484 = vmatpush1.xpose.msra.mxu0 0.0
    %3485 = vmatprep.subr.mxu0 0.0
    %3486 = vmatpush1.xpose.msra.mxu0 0.0
    %3487 = vmatprep.subr.mxu0 0.0
    %3488 = vmatpush1.xpose.msra.mxu0 0.0
    %3489 = vmatprep.subr.mxu0 0.0
    %3490 = vmatpush1.xpose.msra.mxu0 0.0
    %3491 = vmatprep.subr.mxu0 0.0
    %3492 = vmatpush1.xpose.msra.mxu0 0.0
    %3493 = vmatprep.subr.mxu0 0.0
    %3494 = vmatpush1.xpose.msra.mxu0 0.0
    %3495 = vmatprep.subr.mxu0 0.0
    %3496 = vmatpush1.xpose.msra.mxu0 0.0
    %3497 = vmatprep.subr.mxu0 0.0
    %3498 = vmatpush1.xpose.msra.mxu0 0.0
    %3499 = vmatprep.subr.mxu0 0.0
    %3500 = vmatpush1.xpose.msra.mxu0 0.0
    %3501 = vmatprep.subr.mxu0 0.0
    %3502 = vmatpush1.xpose.msra.mxu0 0.0
    %3503 = vmatprep.subr.mxu0 0.0
    %3504 = vmatpush1.xpose.msra.mxu0 0.0
    %3505 = vmatprep.subr.mxu0 0.0
    %3506 = vmatpush1.xpose.msra.mxu0 0.0
    %3507 = vmatprep.subr.mxu0 0.0
    %3508 = vmatpush1.xpose.msra.mxu0 0.0
    %3509 = vmatprep.subr.mxu0 0.0
    %3510 = vmatpush1.xpose.msra.mxu0 0.0
    %3511 = vmatprep.subr.mxu0 0.0
    %3512 = vmatpush1.xpose.msra.mxu0 0.0
    %3513 = vmatprep.subr.mxu0 0.0
    %3514 = vmatpush1.xpose.msra.mxu0 0.0
    %3515 = vmatprep.subr.mxu0 0.0
    %3516 = vmatpush1.xpose.msra.mxu0 0.0
    %3517 = vmatprep.subr.mxu0 0.0
    %3518 = vmatpush1.xpose.msra.mxu0 0.0
    %3519 = vmatprep.subr.mxu0 0.0
    %3520 = vmatpush1.xpose.msra.mxu0 0.0
    %3521 = vmatprep.mubr.f32.mxu0 0.0
    %3522 = vmatmul.mubr.f32.gmra.mrb[0].mxu0 %v3453
    %v3523 = vpop.f32.mrb[0].mxu0
    %v3524 = vadd.f32 0.0, %v3523
    %v3525 = vpop.f32.mrb[0].mxu0
    %3526 = vdwg.mxu0
    %3527 = vrot.lane.b32.xlu0 %v2772, 112
    %v3528 = vpop.permute.xlu0 %3527
    %3529 = vrot.lane.b32.xlu0 %v2768, 112
    %v3530 = vpop.permute.xlu0 %3529
    %v3531 = vsel %vm454, %v3528, 0
    %v3533 = vsel %vm454, %v3530, 0
    %3535 = vmatprep.subr.mxu0 0.0
    %3536 = vmatpush1.xpose.msra.mxu0 %v3533
    %3537 = vmatprep.subr.mxu0 0.0
    %3538 = vmatpush1.xpose.msra.mxu0 0.0
    %3539 = vmatprep.subr.mxu0 0.0
    %3540 = vmatpush1.xpose.msra.mxu0 0.0
    %3541 = vmatprep.subr.mxu0 0.0
    %3542 = vmatpush1.xpose.msra.mxu0 0.0
    %3543 = vmatprep.subr.mxu0 0.0
    %3544 = vmatpush1.xpose.msra.mxu0 0.0
    %3545 = vmatprep.subr.mxu0 0.0
    %3546 = vmatpush1.xpose.msra.mxu0 0.0
    %3547 = vmatprep.subr.mxu0 0.0
    %3548 = vmatpush1.xpose.msra.mxu0 0.0
    %3549 = vmatprep.subr.mxu0 0.0
    %3550 = vmatpush1.xpose.msra.mxu0 0.0
    %3551 = vmatprep.subr.mxu0 0.0
    %3552 = vmatpush1.xpose.msra.mxu0 0.0
    %3553 = vmatprep.subr.mxu0 0.0
    %3554 = vmatpush1.xpose.msra.mxu0 0.0
    %3555 = vmatprep.subr.mxu0 0.0
    %3556 = vmatpush1.xpose.msra.mxu0 0.0
    %3557 = vmatprep.subr.mxu0 0.0
    %3558 = vmatpush1.xpose.msra.mxu0 0.0
    %3559 = vmatprep.subr.mxu0 0.0
    %3560 = vmatpush1.xpose.msra.mxu0 0.0
    %3561 = vmatprep.subr.mxu0 0.0
    %3562 = vmatpush1.xpose.msra.mxu0 0.0
    %3563 = vmatprep.subr.mxu0 0.0
    %3564 = vmatpush1.xpose.msra.mxu0 0.0
    %3565 = vmatprep.subr.mxu0 0.0
    %3566 = vmatpush1.xpose.msra.mxu0 0.0
    %3567 = vmatprep.subr.mxu0 0.0
    %3568 = vmatpush1.xpose.msra.mxu0 0.0
    %3569 = vmatprep.subr.mxu0 0.0
    %3570 = vmatpush1.xpose.msra.mxu0 0.0
    %3571 = vmatprep.subr.mxu0 0.0
    %3572 = vmatpush1.xpose.msra.mxu0 0.0
    %3573 = vmatprep.subr.mxu0 0.0
    %3574 = vmatpush1.xpose.msra.mxu0 0.0
    %3575 = vmatprep.subr.mxu0 0.0
    %3576 = vmatpush1.xpose.msra.mxu0 0.0
    %3577 = vmatprep.subr.mxu0 0.0
    %3578 = vmatpush1.xpose.msra.mxu0 0.0
    %3579 = vmatprep.subr.mxu0 0.0
    %3580 = vmatpush1.xpose.msra.mxu0 0.0
    %3581 = vmatprep.subr.mxu0 0.0
    %3582 = vmatpush1.xpose.msra.mxu0 0.0
    %3583 = vmatprep.subr.mxu0 0.0
    %3584 = vmatpush1.xpose.msra.mxu0 0.0
    %3585 = vmatprep.subr.mxu0 0.0
    %3586 = vmatpush1.xpose.msra.mxu0 0.0
    %3587 = vmatprep.subr.mxu0 0.0
    %3588 = vmatpush1.xpose.msra.mxu0 0.0
    %3589 = vmatprep.subr.mxu0 0.0
    %3590 = vmatpush1.xpose.msra.mxu0 0.0
    %3591 = vmatprep.subr.mxu0 0.0
    %3592 = vmatpush1.xpose.msra.mxu0 0.0
    %3593 = vmatprep.subr.mxu0 0.0
    %3594 = vmatpush1.xpose.msra.mxu0 0.0
    %3595 = vmatprep.subr.mxu0 0.0
    %3596 = vmatpush1.xpose.msra.mxu0 0.0
    %3597 = vmatprep.subr.mxu0 0.0
    %3598 = vmatpush1.xpose.msra.mxu0 0.0
    %3599 = vmatprep.mubr.f32.mxu0 0.0
    %3600 = vmatmul.mubr.f32.gmra.mrb[0].mxu0 %v3531
    %v3601 = vpop.f32.mrb[0].mxu0
    %v3602 = vadd.f32 0.0, %v3601
    %v3603 = vpop.f32.mrb[0].mxu0
    %3604 = vdwg.mxu0
    %v3605 = vsel %vm1280, -1e+30, %v3524
    %v3606 = vsel %vm1281, -1e+30, %v3602
    %v3607 = vsel %vm454, %v3605, -inf
    %3608 = vmax.xlane.f32.xlu0 %v3607
    %v3609 = vpop.xlane.xlu0 %3608
    %v3610 = vsel %vm454, %v3606, -inf
    %3611 = vmax.xlane.f32.xlu0 %v3610
    %v3612 = vpop.xlane.xlu0 %3611
    %v3613 = vsub.f32 %v3605, %v3609
    %v3614 = vsub.f32 %v3606, %v3612
    %v3615 = vmul.f32 %v3613, 1.442695
    %v3616 = vpow.pop %v3615
    %v3617 = vmul.f32 %v3614, 1.442695
    %v3618 = vpow.pop %v3617
    %v3619 = vsel %vm454, %v3616, 0.0
    %3620 = vadd.xlane.f32.xlu0 %v3619
    %v3621 = vpop.xlane.xlu0 %3620
    %v3622 = vsel %vm454, %v3618, 0.0
    %3623 = vadd.xlane.f32.xlu0 %v3622
    %v3624 = vpop.xlane.xlu0 %3623
    %v3625 = vrcp.pop %v3621
    %v3626 = vrcp.pop %v3624
    %v3627 = vmul.f32 %v3616, %v3625
    %v3628 = vmul.f32 %v3618, %v3626
    %v3629 = vadd.f32 %v3285, %v3627
    %v3630 = vadd.f32 %v3286, %v3628
    %3631 = vrot.lane.b32.xlu0 %v2763, 80
    %v3632 = vpop.permute.xlu0 %3631
    %v3635 = vsel %vm454, %v3627, 0
    %3637 = vmatprep.subr.mxu0 0.0
    %3638 = vmatpush1.msra.mxu0 %v3632
    %3639 = vmatprep.subr.mxu0 0.0
    %3640 = vmatpush1.msra.mxu0 0.0
    %3641 = vmatprep.subr.mxu0 0.0
    %3642 = vmatpush1.msra.mxu0 0.0
    %3643 = vmatprep.subr.mxu0 0.0
    %3644 = vmatpush1.msra.mxu0 0.0
    %3645 = vmatprep.subr.mxu0 0.0
    %3646 = vmatpush1.msra.mxu0 0.0
    %3647 = vmatprep.subr.mxu0 0.0
    %3648 = vmatpush1.msra.mxu0 0.0
    %3649 = vmatprep.subr.mxu0 0.0
    %3650 = vmatpush1.msra.mxu0 0.0
    %3651 = vmatprep.subr.mxu0 0.0
    %3652 = vmatpush1.msra.mxu0 0.0
    %3653 = vmatprep.subr.mxu0 0.0
    %3654 = vmatpush1.msra.mxu0 0.0
    %3655 = vmatprep.subr.mxu0 0.0
    %3656 = vmatpush1.msra.mxu0 0.0
    %3657 = vmatprep.subr.mxu0 0.0
    %3658 = vmatpush1.msra.mxu0 0.0
    %3659 = vmatprep.subr.mxu0 0.0
    %3660 = vmatpush1.msra.mxu0 0.0
    %3661 = vmatprep.subr.mxu0 0.0
    %3662 = vmatpush1.msra.mxu0 0.0
    %3663 = vmatprep.subr.mxu0 0.0
    %3664 = vmatpush1.msra.mxu0 0.0
    %3665 = vmatprep.subr.mxu0 0.0
    %3666 = vmatpush1.msra.mxu0 0.0
    %3667 = vmatprep.subr.mxu0 0.0
    %3668 = vmatpush1.msra.mxu0 0.0
    %3669 = vmatprep.subr.mxu0 0.0
    %3670 = vmatpush1.msra.mxu0 0.0
    %3671 = vmatprep.subr.mxu0 0.0
    %3672 = vmatpush1.msra.mxu0 0.0
    %3673 = vmatprep.subr.mxu0 0.0
    %3674 = vmatpush1.msra.mxu0 0.0
    %3675 = vmatprep.subr.mxu0 0.0
    %3676 = vmatpush1.msra.mxu0 0.0
    %3677 = vmatprep.subr.mxu0 0.0
    %3678 = vmatpush1.msra.mxu0 0.0
    %3679 = vmatprep.subr.mxu0 0.0
    %3680 = vmatpush1.msra.mxu0 0.0
    %3681 = vmatprep.subr.mxu0 0.0
    %3682 = vmatpush1.msra.mxu0 0.0
    %3683 = vmatprep.subr.mxu0 0.0
    %3684 = vmatpush1.msra.mxu0 0.0
    %3685 = vmatprep.subr.mxu0 0.0
    %3686 = vmatpush1.msra.mxu0 0.0
    %3687 = vmatprep.subr.mxu0 0.0
    %3688 = vmatpush1.msra.mxu0 0.0
    %3689 = vmatprep.subr.mxu0 0.0
    %3690 = vmatpush1.msra.mxu0 0.0
    %3691 = vmatprep.subr.mxu0 0.0
    %3692 = vmatpush1.msra.mxu0 0.0
    %3693 = vmatprep.subr.mxu0 0.0
    %3694 = vmatpush1.msra.mxu0 0.0
    %3695 = vmatprep.subr.mxu0 0.0
    %3696 = vmatpush1.msra.mxu0 0.0
    %3697 = vmatprep.subr.mxu0 0.0
    %3698 = vmatpush1.msra.mxu0 0.0
    %3699 = vmatprep.subr.mxu0 0.0
    %3700 = vmatpush1.msra.mxu0 0.0
    %3701 = vmatprep.mubr.f32.mxu0 0.0
    %3702 = vmatmul.mubr.f32.gmra.mrb[0].mxu0 %v3635
    %v3703 = vpop.f32.mrb[0].mxu0
    %v3704 = vadd.f32 0.0, %v3703
    %v3705 = vpop.f32.mrb[0].mxu0
    %3706 = vdwg.mxu0
    %3707 = vrot.lane.b32.xlu0 %v2768, 80
    %v3708 = vpop.permute.xlu0 %3707
    %v3711 = vsel %vm454, %v3628, 0
    %3713 = vmatprep.subr.mxu0 0.0
    %3714 = vmatpush1.msra.mxu0 %v3708
    %3715 = vmatprep.subr.mxu0 0.0
    %3716 = vmatpush1.msra.mxu0 0.0
    %3717 = vmatprep.subr.mxu0 0.0
    %3718 = vmatpush1.msra.mxu0 0.0
    %3719 = vmatprep.subr.mxu0 0.0
    %3720 = vmatpush1.msra.mxu0 0.0
    %3721 = vmatprep.subr.mxu0 0.0
    %3722 = vmatpush1.msra.mxu0 0.0
    %3723 = vmatprep.subr.mxu0 0.0
    %3724 = vmatpush1.msra.mxu0 0.0
    %3725 = vmatprep.subr.mxu0 0.0
    %3726 = vmatpush1.msra.mxu0 0.0
    %3727 = vmatprep.subr.mxu0 0.0
    %3728 = vmatpush1.msra.mxu0 0.0
    %3729 = vmatprep.subr.mxu0 0.0
    %3730 = vmatpush1.msra.mxu0 0.0
    %3731 = vmatprep.subr.mxu0 0.0
    %3732 = vmatpush1.msra.mxu0 0.0
    %3733 = vmatprep.subr.mxu0 0.0
    %3734 = vmatpush1.msra.mxu0 0.0
    %3735 = vmatprep.subr.mxu0 0.0
    %3736 = vmatpush1.msra.mxu0 0.0
    %3737 = vmatprep.subr.mxu0 0.0
    %3738 = vmatpush1.msra.mxu0 0.0
    %3739 = vmatprep.subr.mxu0 0.0
    %3740 = vmatpush1.msra.mxu0 0.0
    %3741 = vmatprep.subr.mxu0 0.0
    %3742 = vmatpush1.msra.mxu0 0.0
    %3743 = vmatprep.subr.mxu0 0.0
    %3744 = vmatpush1.msra.mxu0 0.0
    %3745 = vmatprep.subr.mxu0 0.0
    %3746 = vmatpush1.msra.mxu0 0.0
    %3747 = vmatprep.subr.mxu0 0.0
    %3748 = vmatpush1.msra.mxu0 0.0
    %3749 = vmatprep.subr.mxu0 0.0
    %3750 = vmatpush1.msra.mxu0 0.0
    %3751 = vmatprep.subr.mxu0 0.0
    %3752 = vmatpush1.msra.mxu0 0.0
    %3753 = vmatprep.subr.mxu0 0.0
    %3754 = vmatpush1.msra.mxu0 0.0
    %3755 = vmatprep.subr.mxu0 0.0
    %3756 = vmatpush1.msra.mxu0 0.0
    %3757 = vmatprep.subr.mxu0 0.0
    %3758 = vmatpush1.msra.mxu0 0.0
    %3759 = vmatprep.subr.mxu0 0.0
    %3760 = vmatpush1.msra.mxu0 0.0
    %3761 = vmatprep.subr.mxu0 0.0
    %3762 = vmatpush1.msra.mxu0 0.0
    %3763 = vmatprep.subr.mxu0 0.0
    %3764 = vmatpush1.msra.mxu0 0.0
    %3765 = vmatprep.subr.mxu0 0.0
    %3766 = vmatpush1.msra.mxu0 0.0
    %3767 = vmatprep.subr.mxu0 0.0
    %3768 = vmatpush1.msra.mxu0 0.0
    %3769 = vmatprep.subr.mxu0 0.0
    %3770 = vmatpush1.msra.mxu0 0.0
    %3771 = vmatprep.subr.mxu0 0.0
    %3772 = vmatpush1.msra.mxu0 0.0
    %3773 = vmatprep.subr.mxu0 0.0
    %3774 = vmatpush1.msra.mxu0 0.0
    %3775 = vmatprep.subr.mxu0 0.0
    %3776 = vmatpush1.msra.mxu0 0.0
    %3777 = vmatprep.mubr.f32.mxu0 0.0
    %3778 = vmatmul.mubr.f32.gmra.mrb[0].mxu0 %v3711
    %v3779 = vpop.f32.mrb[0].mxu0
    %v3780 = vadd.f32 0.0, %v3779
    %v3781 = vpop.f32.mrb[0].mxu0
    %3782 = vdwg.mxu0
    %3785 = vrot.lane.b32.xlu0 %v3704, 16
    %v3786 = vpop.permute.xlu0 %3785
    %3787 = vrot.lane.b32.xlu0 %v3780, 16
    %v3788 = vpop.permute.xlu0 %3787
    %3791 = vst.msk [vmem:[#allocation2] sm:$0xff] %vm2149, %v3786
    %3792 = vst.msk [vmem:[#allocation2 + $0x8] sm:$0xff] %vm2149, %v3788
    %3793 = vrot.lane.b32.xlu0 %v2771, 104
    %v3794 = vpop.permute.xlu0 %3793
    %3795 = vrot.lane.b32.xlu0 %v2763, 104
    %v3796 = vpop.permute.xlu0 %3795
    %v3797 = vsel %vm454, %v3794, 0
    %v3799 = vsel %vm454, %v3796, 0
    %3801 = vmatprep.subr.mxu0 0.0
    %3802 = vmatpush1.xpose.msra.mxu0 %v3799
    %3803 = vmatprep.subr.mxu0 0.0
    %3804 = vmatpush1.xpose.msra.mxu0 0.0
    %3805 = vmatprep.subr.mxu0 0.0
    %3806 = vmatpush1.xpose.msra.mxu0 0.0
    %3807 = vmatprep.subr.mxu0 0.0
    %3808 = vmatpush1.xpose.msra.mxu0 0.0
    %3809 = vmatprep.subr.mxu0 0.0
    %3810 = vmatpush1.xpose.msra.mxu0 0.0
    %3811 = vmatprep.subr.mxu0 0.0
    %3812 = vmatpush1.xpose.msra.mxu0 0.0
    %3813 = vmatprep.subr.mxu0 0.0
    %3814 = vmatpush1.xpose.msra.mxu0 0.0
    %3815 = vmatprep.subr.mxu0 0.0
    %3816 = vmatpush1.xpose.msra.mxu0 0.0
    %3817 = vmatprep.subr.mxu0 0.0
    %3818 = vmatpush1.xpose.msra.mxu0 0.0
    %3819 = vmatprep.subr.mxu0 0.0
    %3820 = vmatpush1.xpose.msra.mxu0 0.0
    %3821 = vmatprep.subr.mxu0 0.0
    %3822 = vmatpush1.xpose.msra.mxu0 0.0
    %3823 = vmatprep.subr.mxu0 0.0
    %3824 = vmatpush1.xpose.msra.mxu0 0.0
    %3825 = vmatprep.subr.mxu0 0.0
    %3826 = vmatpush1.xpose.msra.mxu0 0.0
    %3827 = vmatprep.subr.mxu0 0.0
    %3828 = vmatpush1.xpose.msra.mxu0 0.0
    %3829 = vmatprep.subr.mxu0 0.0
    %3830 = vmatpush1.xpose.msra.mxu0 0.0
    %3831 = vmatprep.subr.mxu0 0.0
    %3832 = vmatpush1.xpose.msra.mxu0 0.0
    %3833 = vmatprep.subr.mxu0 0.0
    %3834 = vmatpush1.xpose.msra.mxu0 0.0
    %3835 = vmatprep.subr.mxu0 0.0
    %3836 = vmatpush1.xpose.msra.mxu0 0.0
    %3837 = vmatprep.subr.mxu0 0.0
    %3838 = vmatpush1.xpose.msra.mxu0 0.0
    %3839 = vmatprep.subr.mxu0 0.0
    %3840 = vmatpush1.xpose.msra.mxu0 0.0
    %3841 = vmatprep.subr.mxu0 0.0
    %3842 = vmatpush1.xpose.msra.mxu0 0.0
    %3843 = vmatprep.subr.mxu0 0.0
    %3844 = vmatpush1.xpose.msra.mxu0 0.0
    %3845 = vmatprep.subr.mxu0 0.0
    %3846 = vmatpush1.xpose.msra.mxu0 0.0
    %3847 = vmatprep.subr.mxu0 0.0
    %3848 = vmatpush1.xpose.msra.mxu0 0.0
    %3849 = vmatprep.subr.mxu0 0.0
    %3850 = vmatpush1.xpose.msra.mxu0 0.0
    %3851 = vmatprep.subr.mxu0 0.0
    %3852 = vmatpush1.xpose.msra.mxu0 0.0
    %3853 = vmatprep.subr.mxu0 0.0
    %3854 = vmatpush1.xpose.msra.mxu0 0.0
    %3855 = vmatprep.subr.mxu0 0.0
    %3856 = vmatpush1.xpose.msra.mxu0 0.0
    %3857 = vmatprep.subr.mxu0 0.0
    %3858 = vmatpush1.xpose.msra.mxu0 0.0
    %3859 = vmatprep.subr.mxu0 0.0
    %3860 = vmatpush1.xpose.msra.mxu0 0.0
    %3861 = vmatprep.subr.mxu0 0.0
    %3862 = vmatpush1.xpose.msra.mxu0 0.0
    %3863 = vmatprep.subr.mxu0 0.0
    %3864 = vmatpush1.xpose.msra.mxu0 0.0
    %3865 = vmatprep.mubr.f32.mxu0 0.0
    %3866 = vmatmul.mubr.f32.gmra.mrb[0].mxu0 %v3797
    %v3867 = vpop.f32.mrb[0].mxu0
    %v3868 = vadd.f32 0.0, %v3867
    %v3869 = vpop.f32.mrb[0].mxu0
    %3870 = vdwg.mxu0
    %3871 = vrot.lane.b32.xlu0 %v2772, 104
    %v3872 = vpop.permute.xlu0 %3871
    %3873 = vrot.lane.b32.xlu0 %v2768, 104
    %v3874 = vpop.permute.xlu0 %3873
    %v3875 = vsel %vm454, %v3872, 0
    %v3877 = vsel %vm454, %v3874, 0
    %3879 = vmatprep.subr.mxu0 0.0
    %3880 = vmatpush1.xpose.msra.mxu0 %v3877
    %3881 = vmatprep.subr.mxu0 0.0
    %3882 = vmatpush1.xpose.msra.mxu0 0.0
    %3883 = vmatprep.subr.mxu0 0.0
    %3884 = vmatpush1.xpose.msra.mxu0 0.0
    %3885 = vmatprep.subr.mxu0 0.0
    %3886 = vmatpush1.xpose.msra.mxu0 0.0
    %3887 = vmatprep.subr.mxu0 0.0
    %3888 = vmatpush1.xpose.msra.mxu0 0.0
    %3889 = vmatprep.subr.mxu0 0.0
    %3890 = vmatpush1.xpose.msra.mxu0 0.0
    %3891 = vmatprep.subr.mxu0 0.0
    %3892 = vmatpush1.xpose.msra.mxu0 0.0
    %3893 = vmatprep.subr.mxu0 0.0
    %3894 = vmatpush1.xpose.msra.mxu0 0.0
    %3895 = vmatprep.subr.mxu0 0.0
    %3896 = vmatpush1.xpose.msra.mxu0 0.0
    %3897 = vmatprep.subr.mxu0 0.0
    %3898 = vmatpush1.xpose.msra.mxu0 0.0
    %3899 = vmatprep.subr.mxu0 0.0
    %3900 = vmatpush1.xpose.msra.mxu0 0.0
    %3901 = vmatprep.subr.mxu0 0.0
    %3902 = vmatpush1.xpose.msra.mxu0 0.0
    %3903 = vmatprep.subr.mxu0 0.0
    %3904 = vmatpush1.xpose.msra.mxu0 0.0
    %3905 = vmatprep.subr.mxu0 0.0
    %3906 = vmatpush1.xpose.msra.mxu0 0.0
    %3907 = vmatprep.subr.mxu0 0.0
    %3908 = vmatpush1.xpose.msra.mxu0 0.0
    %3909 = vmatprep.subr.mxu0 0.0
    %3910 = vmatpush1.xpose.msra.mxu0 0.0
    %3911 = vmatprep.subr.mxu0 0.0
    %3912 = vmatpush1.xpose.msra.mxu0 0.0
    %3913 = vmatprep.subr.mxu0 0.0
    %3914 = vmatpush1.xpose.msra.mxu0 0.0
    %3915 = vmatprep.subr.mxu0 0.0
    %3916 = vmatpush1.xpose.msra.mxu0 0.0
    %3917 = vmatprep.subr.mxu0 0.0
    %3918 = vmatpush1.xpose.msra.mxu0 0.0
    %3919 = vmatprep.subr.mxu0 0.0
    %3920 = vmatpush1.xpose.msra.mxu0 0.0
    %3921 = vmatprep.subr.mxu0 0.0
    %3922 = vmatpush1.xpose.msra.mxu0 0.0
    %3923 = vmatprep.subr.mxu0 0.0
    %3924 = vmatpush1.xpose.msra.mxu0 0.0
    %3925 = vmatprep.subr.mxu0 0.0
    %3926 = vmatpush1.xpose.msra.mxu0 0.0
    %3927 = vmatprep.subr.mxu0 0.0
    %3928 = vmatpush1.xpose.msra.mxu0 0.0
    %3929 = vmatprep.subr.mxu0 0.0
    %3930 = vmatpush1.xpose.msra.mxu0 0.0
    %3931 = vmatprep.subr.mxu0 0.0
    %3932 = vmatpush1.xpose.msra.mxu0 0.0
    %3933 = vmatprep.subr.mxu0 0.0
    %3934 = vmatpush1.xpose.msra.mxu0 0.0
    %3935 = vmatprep.subr.mxu0 0.0
    %3936 = vmatpush1.xpose.msra.mxu0 0.0
    %3937 = vmatprep.subr.mxu0 0.0
    %3938 = vmatpush1.xpose.msra.mxu0 0.0
    %3939 = vmatprep.subr.mxu0 0.0
    %3940 = vmatpush1.xpose.msra.mxu0 0.0
    %3941 = vmatprep.subr.mxu0 0.0
    %3942 = vmatpush1.xpose.msra.mxu0 0.0
    %3943 = vmatprep.mubr.f32.mxu0 0.0
    %3944 = vmatmul.mubr.f32.gmra.mrb[0].mxu0 %v3875
    %v3945 = vpop.f32.mrb[0].mxu0
    %v3946 = vadd.f32 0.0, %v3945
    %v3947 = vpop.f32.mrb[0].mxu0
    %3948 = vdwg.mxu0
    %v3949 = vsel %vm1280, -1e+30, %v3868
    %v3950 = vsel %vm1281, -1e+30, %v3946
    %v3951 = vsel %vm454, %v3949, -inf
    %3952 = vmax.xlane.f32.xlu0 %v3951
    %v3953 = vpop.xlane.xlu0 %3952
    %v3954 = vsel %vm454, %v3950, -inf
    %3955 = vmax.xlane.f32.xlu0 %v3954
    %v3956 = vpop.xlane.xlu0 %3955
    %v3957 = vsub.f32 %v3949, %v3953
    %v3958 = vsub.f32 %v3950, %v3956
    %v3959 = vmul.f32 %v3957, 1.442695
    %v3960 = vpow.pop %v3959
    %v3961 = vmul.f32 %v3958, 1.442695
    %v3962 = vpow.pop %v3961
    %v3963 = vsel %vm454, %v3960, 0.0
    %3964 = vadd.xlane.f32.xlu0 %v3963
    %v3965 = vpop.xlane.xlu0 %3964
    %v3966 = vsel %vm454, %v3962, 0.0
    %3967 = vadd.xlane.f32.xlu0 %v3966
    %v3968 = vpop.xlane.xlu0 %3967
    %v3969 = vrcp.pop %v3965
    %v3970 = vrcp.pop %v3968
    %v3971 = vmul.f32 %v3960, %v3969
    %v3972 = vmul.f32 %v3962, %v3970
    %v3973 = vadd.f32 %v3629, %v3971
    %v3974 = vadd.f32 %v3630, %v3972
    %3975 = vrot.lane.b32.xlu0 %v2763, 72
    %v3976 = vpop.permute.xlu0 %3975
    %v3979 = vsel %vm454, %v3971, 0
    %3981 = vmatprep.subr.mxu0 0.0
    %3982 = vmatpush1.msra.mxu0 %v3976
    %3983 = vmatprep.subr.mxu0 0.0
    %3984 = vmatpush1.msra.mxu0 0.0
    %3985 = vmatprep.subr.mxu0 0.0
    %3986 = vmatpush1.msra.mxu0 0.0
    %3987 = vmatprep.subr.mxu0 0.0
    %3988 = vmatpush1.msra.mxu0 0.0
    %3989 = vmatprep.subr.mxu0 0.0
    %3990 = vmatpush1.msra.mxu0 0.0
    %3991 = vmatprep.subr.mxu0 0.0
    %3992 = vmatpush1.msra.mxu0 0.0
    %3993 = vmatprep.subr.mxu0 0.0
    %3994 = vmatpush1.msra.mxu0 0.0
    %3995 = vmatprep.subr.mxu0 0.0
    %3996 = vmatpush1.msra.mxu0 0.0
    %3997 = vmatprep.subr.mxu0 0.0
    %3998 = vmatpush1.msra.mxu0 0.0
    %3999 = vmatprep.subr.mxu0 0.0
    %4000 = vmatpush1.msra.mxu0 0.0
    %4001 = vmatprep.subr.mxu0 0.0
    %4002 = vmatpush1.msra.mxu0 0.0
    %4003 = vmatprep.subr.mxu0 0.0
    %4004 = vmatpush1.msra.mxu0 0.0
    %4005 = vmatprep.subr.mxu0 0.0
    %4006 = vmatpush1.msra.mxu0 0.0
    %4007 = vmatprep.subr.mxu0 0.0
    %4008 = vmatpush1.msra.mxu0 0.0
    %4009 = vmatprep.subr.mxu0 0.0
    %4010 = vmatpush1.msra.mxu0 0.0
    %4011 = vmatprep.subr.mxu0 0.0
    %4012 = vmatpush1.msra.mxu0 0.0
    %4013 = vmatprep.subr.mxu0 0.0
    %4014 = vmatpush1.msra.mxu0 0.0
    %4015 = vmatprep.subr.mxu0 0.0
    %4016 = vmatpush1.msra.mxu0 0.0
    %4017 = vmatprep.subr.mxu0 0.0
    %4018 = vmatpush1.msra.mxu0 0.0
    %4019 = vmatprep.subr.mxu0 0.0
    %4020 = vmatpush1.msra.mxu0 0.0
    %4021 = vmatprep.subr.mxu0 0.0
    %4022 = vmatpush1.msra.mxu0 0.0
    %4023 = vmatprep.subr.mxu0 0.0
    %4024 = vmatpush1.msra.mxu0 0.0
    %4025 = vmatprep.subr.mxu0 0.0
    %4026 = vmatpush1.msra.mxu0 0.0
    %4027 = vmatprep.subr.mxu0 0.0
    %4028 = vmatpush1.msra.mxu0 0.0
    %4029 = vmatprep.subr.mxu0 0.0
    %4030 = vmatpush1.msra.mxu0 0.0
    %4031 = vmatprep.subr.mxu0 0.0
    %4032 = vmatpush1.msra.mxu0 0.0
    %4033 = vmatprep.subr.mxu0 0.0
    %4034 = vmatpush1.msra.mxu0 0.0
    %4035 = vmatprep.subr.mxu0 0.0
    %4036 = vmatpush1.msra.mxu0 0.0
    %4037 = vmatprep.subr.mxu0 0.0
    %4038 = vmatpush1.msra.mxu0 0.0
    %4039 = vmatprep.subr.mxu0 0.0
    %4040 = vmatpush1.msra.mxu0 0.0
    %4041 = vmatprep.subr.mxu0 0.0
    %4042 = vmatpush1.msra.mxu0 0.0
    %4043 = vmatprep.subr.mxu0 0.0
    %4044 = vmatpush1.msra.mxu0 0.0
    %4045 = vmatprep.mubr.f32.mxu0 0.0
    %4046 = vmatmul.mubr.f32.gmra.mrb[0].mxu0 %v3979
    %v4047 = vpop.f32.mrb[0].mxu0
    %v4048 = vadd.f32 0.0, %v4047
    %v4049 = vpop.f32.mrb[0].mxu0
    %4050 = vdwg.mxu0
    %4051 = vrot.lane.b32.xlu0 %v2768, 72
    %v4052 = vpop.permute.xlu0 %4051
    %v4055 = vsel %vm454, %v3972, 0
    %4057 = vmatprep.subr.mxu0 0.0
    %4058 = vmatpush1.msra.mxu0 %v4052
    %4059 = vmatprep.subr.mxu0 0.0
    %4060 = vmatpush1.msra.mxu0 0.0
    %4061 = vmatprep.subr.mxu0 0.0
    %4062 = vmatpush1.msra.mxu0 0.0
    %4063 = vmatprep.subr.mxu0 0.0
    %4064 = vmatpush1.msra.mxu0 0.0
    %4065 = vmatprep.subr.mxu0 0.0
    %4066 = vmatpush1.msra.mxu0 0.0
    %4067 = vmatprep.subr.mxu0 0.0
    %4068 = vmatpush1.msra.mxu0 0.0
    %4069 = vmatprep.subr.mxu0 0.0
    %4070 = vmatpush1.msra.mxu0 0.0
    %4071 = vmatprep.subr.mxu0 0.0
    %4072 = vmatpush1.msra.mxu0 0.0
    %4073 = vmatprep.subr.mxu0 0.0
    %4074 = vmatpush1.msra.mxu0 0.0
    %4075 = vmatprep.subr.mxu0 0.0
    %4076 = vmatpush1.msra.mxu0 0.0
    %4077 = vmatprep.subr.mxu0 0.0
    %4078 = vmatpush1.msra.mxu0 0.0
    %4079 = vmatprep.subr.mxu0 0.0
    %4080 = vmatpush1.msra.mxu0 0.0
    %4081 = vmatprep.subr.mxu0 0.0
    %4082 = vmatpush1.msra.mxu0 0.0
    %4083 = vmatprep.subr.mxu0 0.0
    %4084 = vmatpush1.msra.mxu0 0.0
    %4085 = vmatprep.subr.mxu0 0.0
    %4086 = vmatpush1.msra.mxu0 0.0
    %4087 = vmatprep.subr.mxu0 0.0
    %4088 = vmatpush1.msra.mxu0 0.0
    %4089 = vmatprep.subr.mxu0 0.0
    %4090 = vmatpush1.msra.mxu0 0.0
    %4091 = vmatprep.subr.mxu0 0.0
    %4092 = vmatpush1.msra.mxu0 0.0
    %4093 = vmatprep.subr.mxu0 0.0
    %4094 = vmatpush1.msra.mxu0 0.0
    %4095 = vmatprep.subr.mxu0 0.0
    %4096 = vmatpush1.msra.mxu0 0.0
    %4097 = vmatprep.subr.mxu0 0.0
    %4098 = vmatpush1.msra.mxu0 0.0
    %4099 = vmatprep.subr.mxu0 0.0
    %4100 = vmatpush1.msra.mxu0 0.0
    %4101 = vmatprep.subr.mxu0 0.0
    %4102 = vmatpush1.msra.mxu0 0.0
    %4103 = vmatprep.subr.mxu0 0.0
    %4104 = vmatpush1.msra.mxu0 0.0
    %4105 = vmatprep.subr.mxu0 0.0
    %4106 = vmatpush1.msra.mxu0 0.0
    %4107 = vmatprep.subr.mxu0 0.0
    %4108 = vmatpush1.msra.mxu0 0.0
    %4109 = vmatprep.subr.mxu0 0.0
    %4110 = vmatpush1.msra.mxu0 0.0
    %4111 = vmatprep.subr.mxu0 0.0
    %4112 = vmatpush1.msra.mxu0 0.0
    %4113 = vmatprep.subr.mxu0 0.0
    %4114 = vmatpush1.msra.mxu0 0.0
    %4115 = vmatprep.subr.mxu0 0.0
    %4116 = vmatpush1.msra.mxu0 0.0
    %4117 = vmatprep.subr.mxu0 0.0
    %4118 = vmatpush1.msra.mxu0 0.0
    %4119 = vmatprep.subr.mxu0 0.0
    %4120 = vmatpush1.msra.mxu0 0.0
    %4121 = vmatprep.mubr.f32.mxu0 0.0
    %4122 = vmatmul.mubr.f32.gmra.mrb[0].mxu0 %v4055
    %v4123 = vpop.f32.mrb[0].mxu0
    %v4124 = vadd.f32 0.0, %v4123
    %v4125 = vpop.f32.mrb[0].mxu0
    %4126 = vdwg.mxu0
    %4129 = vrot.lane.b32.xlu0 %v4048, 24
    %v4130 = vpop.permute.xlu0 %4129
    %4131 = vrot.lane.b32.xlu0 %v4124, 24
    %v4132 = vpop.permute.xlu0 %4131
    %4135 = vst.msk [vmem:[#allocation2] sm:$0xff] %vm2494, %v4130
    %4136 = vst.msk [vmem:[#allocation2 + $0x8] sm:$0xff] %vm2494, %v4132
    %v4137 = vld [vmem:[#allocation2] sm:$0xff]
    %v4138 = vld [vmem:[#allocation2 + $0x8] sm:$0xff]
    %v4140 = vlaneseq
    %v4141 = vshrl.u32 %v4140, 7
    %v4142 = vsub.s32 0, %v4141
    %v4143 = vrot.slane %v2602, %v4142
    %v4146 = vsel %vm345, %v4137, 0
    %v4149 = vsel %vm345, %v4138, 0
    %4151 = vmatprep.subr.mxu0 0.0
    %4152 = vmatpush1.msra.mxu0 %v2598
    %4153 = vmatprep.subr.mxu0 0.0
    %4154 = vmatpush1.msra.mxu0 %v2599
    %4155 = vmatprep.subr.mxu0 0.0
    %4156 = vmatpush1.msra.mxu0 %v2600
    %4157 = vmatprep.subr.mxu0 0.0
    %4158 = vmatpush1.msra.mxu0 %v2601
    %4159 = vmatprep.subr.mxu0 0.0
    %4160 = vmatpush1.msra.mxu0 0.0
    %4161 = vmatprep.subr.mxu0 0.0
    %4162 = vmatpush1.msra.mxu0 0.0
    %4163 = vmatprep.subr.mxu0 0.0
    %4164 = vmatpush1.msra.mxu0 0.0
    %4165 = vmatprep.subr.mxu0 0.0
    %4166 = vmatpush1.msra.mxu0 0.0
    %4167 = vmatprep.subr.mxu0 0.0
    %4168 = vmatpush1.msra.mxu0 0.0
    %4169 = vmatprep.subr.mxu0 0.0
    %4170 = vmatpush1.msra.mxu0 0.0
    %4171 = vmatprep.subr.mxu0 0.0
    %4172 = vmatpush1.msra.mxu0 0.0
    %4173 = vmatprep.subr.mxu0 0.0
    %4174 = vmatpush1.msra.mxu0 0.0
    %4175 = vmatprep.subr.mxu0 0.0
    %4176 = vmatpush1.msra.mxu0 0.0
    %4177 = vmatprep.subr.mxu0 0.0
    %4178 = vmatpush1.msra.mxu0 0.0
    %4179 = vmatprep.subr.mxu0 0.0
    %4180 = vmatpush1.msra.mxu0 0.0
    %4181 = vmatprep.subr.mxu0 0.0
    %4182 = vmatpush1.msra.mxu0 0.0
    %4183 = vmatprep.subr.mxu0 0.0
    %4184 = vmatpush1.msra.mxu0 0.0
    %4185 = vmatprep.subr.mxu0 0.0
    %4186 = vmatpush1.msra.mxu0 0.0
    %4187 = vmatprep.subr.mxu0 0.0
    %4188 = vmatpush1.msra.mxu0 0.0
    %4189 = vmatprep.subr.mxu0 0.0
    %4190 = vmatpush1.msra.mxu0 0.0
    %4191 = vmatprep.subr.mxu0 0.0
    %4192 = vmatpush1.msra.mxu0 0.0
    %4193 = vmatprep.subr.mxu0 0.0
    %4194 = vmatpush1.msra.mxu0 0.0
    %4195 = vmatprep.subr.mxu0 0.0
    %4196 = vmatpush1.msra.mxu0 0.0
    %4197 = vmatprep.subr.mxu0 0.0
    %4198 = vmatpush1.msra.mxu0 0.0
    %4199 = vmatprep.subr.mxu0 0.0
    %4200 = vmatpush1.msra.mxu0 0.0
    %4201 = vmatprep.subr.mxu0 0.0
    %4202 = vmatpush1.msra.mxu0 0.0
    %4203 = vmatprep.subr.mxu0 0.0
    %4204 = vmatpush1.msra.mxu0 0.0
    %4205 = vmatprep.subr.mxu0 0.0
    %4206 = vmatpush1.msra.mxu0 0.0
    %4207 = vmatprep.subr.mxu0 0.0
    %4208 = vmatpush1.msra.mxu0 0.0
    %4209 = vmatprep.subr.mxu0 0.0
    %4210 = vmatpush1.msra.mxu0 0.0
    %4211 = vmatprep.subr.mxu0 0.0
    %4212 = vmatpush1.msra.mxu0 0.0
    %4213 = vmatprep.subr.mxu0 0.0
    %4214 = vmatpush1.msra.mxu0 0.0
    %4215 = vmatprep.mubr.f32.mxu0 0.0
    %4216 = vmatmul.mubr.f32.gmra.mrb[0].mxu0 %v4146
    %v4217 = vpop.f32.mrb[0].mxu0
    %v4218 = vadd.f32 %v4143, %v4217
    %v4219 = vpop.f32.mrb[0].mxu0
    %4220 = vmatprep.mubr.f32.mxu0 0.0
    %4221 = vmatmul.mubr.f32.gmra.mrb[0].mxu0 %v4149
    %v4222 = vpop.f32.mrb[0].mxu0
    %v4223 = vadd.f32 %v4143, %v4222
    %v4224 = vpop.f32.mrb[0].mxu0
    %4225 = vdwg.mxu0
    %v4226 = vmul.f32 %v3973, 0.25
    %v4227 = vmul.f32 %v3974, 0.25
    %4228 = vst.msk [vmem:[#allocation6] sm:$0xff] %vm454, %v2586
    %4229 = vst.msk [vmem:[#allocation6 + $0x8] sm:$0xff] %vm454, %v2587
    %4230 = vst.msk [vmem:[#allocation8] sm:$0xff] %vm454, %v4226
    %4231 = vst.msk [vmem:[#allocation8 + $0x8] sm:$0xff] %vm454, %v4227
    %v4232 = vld [vmem:[%s61] sm:$0xff]
    %v4233 = vld [vmem:[%s61 + $0x8] sm:$0xff]
    %v4234 = vld [vmem:[%s61 + $0x10] sm:$0xff]
    %v4235 = vld [vmem:[%s61 + $0x18] sm:$0xff]
    %v4236 = vld [vmem:[%s63] sm:$0x1]
    %v4237 = vld [vmem:[%s65] sm:$0xff]
    %v4238 = vld [vmem:[%s65 + $0x8] sm:$0xff]
    %v4239 = vld [vmem:[%s65 + $0x10] sm:$0xff]
    %v4240 = vld [vmem:[%s65 + $0x18] sm:$0xff]
    %v4241 = vld [vmem:[%s65 + $0x20] sm:$0xff]
    %v4242 = vld [vmem:[%s65 + $0x28] sm:$0xff]
    %v4243 = vld [vmem:[%s65 + $0x30] sm:$0xff]
    %v4244 = vld [vmem:[%s65 + $0x38] sm:$0xff]
    %v4245 = vld [vmem:[%s65 + $0x40] sm:$0xff]
    %v4246 = vld [vmem:[%s65 + $0x48] sm:$0xff]
    %v4247 = vld [vmem:[%s65 + $0x50] sm:$0xff]
    %v4248 = vld [vmem:[%s65 + $0x58] sm:$0xff]
    %v4249 = vld [vmem:[%s65 + $0x60] sm:$0xff]
    %v4250 = vld [vmem:[%s65 + $0x68] sm:$0xff]
    %v4251 = vld [vmem:[%s65 + $0x70] sm:$0xff]
    %v4252 = vld [vmem:[%s65 + $0x78] sm:$0xff]
    %v4253 = vld [vmem:[%s67] sm:$0x1]
    %v4254 = vld [vmem:[%s69] sm:$0x3]
    %v4255 = vld [vmem:[%s59] sm:$0x3]
    %v4256 = vsel %vm345, %v2578, 0.0
    %4257 = vadd.xlane.f32.xlu0 %v4256
    %v4258 = vpop.xlane.xlu0 %4257
    %v4259 = vsel %vm345, %v2583, 0.0
    %4260 = vadd.xlane.f32.xlu0 %v4259
    %v4261 = vpop.xlane.xlu0 %4260
    %v4262 = vrcp.pop 32.0
    %v4263 = vmul.f32 %v4258, %v4262
    %v4264 = vmul.f32 %v4261, %v4262
    %v4265 = vsub.f32 %v2578, %v4263
    %v4266 = vsub.f32 %v2583, %v4264
    %v4267 = vmul.f32 %v4265, %v4265
    %v4268 = vmul.f32 %v4266, %v4266
    %v4269 = vsel %vm345, %v4267, 0.0
    %4270 = vadd.xlane.f32.xlu0 %v4269
    %v4271 = vpop.xlane.xlu0 %4270
    %v4272 = vsel %vm345, %v4268, 0.0
    %4273 = vadd.xlane.f32.xlu0 %v4272
    %v4274 = vpop.xlane.xlu0 %4273
    %v4275 = vmul.f32 %v4271, %v4262
    %v4276 = vmul.f32 %v4274, %v4262
    %v4277 = vadd.f32 %v4275, 1e-05
    %v4278 = vadd.f32 %v4276, 1e-05
    %v4279 = vrsqrt.pop %v4277
    %v4280 = vrsqrt.pop %v4278
    %v4281 = vmul.f32 %v4265, %v4279
    %v4282 = vmul.f32 %v4266, %v4280
    %v4283 = vlaneseq
    %v4284 = vshrl.u32 %v4283, 7
    %v4285 = vsub.s32 0, %v4284
    %v4286 = vrot.slane %v4255, %v4285
    %v4287 = vmul.f32 %v4281, %v4286
    %v4288 = vmul.f32 %v4282, %v4286
    %v4289 = vlaneseq
    %v4290 = vshrl.u32 %v4289, 7
    %v4291 = vsub.s32 1, %v4290
    %v4292 = vrot.slane %v4255, %v4291
    %v4293 = vadd.f32 %v4287, %v4292
    %v4294 = vadd.f32 %v4288, %v4292
    %v4296 = vlaneseq
    %v4297 = vshrl.u32 %v4296, 7
    %v4298 = vsub.s32 0, %v4297
    %v4299 = vrot.slane %v4236, %v4298
    %v4302 = vsel %vm345, %v4293, 0
    %v4305 = vsel %vm345, %v4294, 0
    %4307 = vmatprep.subr.mxu0 0.0
    %4308 = vmatpush1.msra.mxu0 %v4232
    %4309 = vmatprep.subr.mxu0 0.0
    %4310 = vmatpush1.msra.mxu0 %v4233
    %4311 = vmatprep.subr.mxu0 0.0
    %4312 = vmatpush1.msra.mxu0 %v4234
    %4313 = vmatprep.subr.mxu0 0.0
    %4314 = vmatpush1.msra.mxu0 %v4235
    %4315 = vmatprep.subr.mxu0 0.0
    %4316 = vmatpush1.msra.mxu0 0.0
    %4317 = vmatprep.subr.mxu0 0.0
    %4318 = vmatpush1.msra.mxu0 0.0
    %4319 = vmatprep.subr.mxu0 0.0
    %4320 = vmatpush1.msra.mxu0 0.0
    %4321 = vmatprep.subr.mxu0 0.0
    %4322 = vmatpush1.msra.mxu0 0.0
    %4323 = vmatprep.subr.mxu0 0.0
    %4324 = vmatpush1.msra.mxu0 0.0
    %4325 = vmatprep.subr.mxu0 0.0
    %4326 = vmatpush1.msra.mxu0 0.0
    %4327 = vmatprep.subr.mxu0 0.0
    %4328 = vmatpush1.msra.mxu0 0.0
    %4329 = vmatprep.subr.mxu0 0.0
    %4330 = vmatpush1.msra.mxu0 0.0
    %4331 = vmatprep.subr.mxu0 0.0
    %4332 = vmatpush1.msra.mxu0 0.0
    %4333 = vmatprep.subr.mxu0 0.0
    %4334 = vmatpush1.msra.mxu0 0.0
    %4335 = vmatprep.subr.mxu0 0.0
    %4336 = vmatpush1.msra.mxu0 0.0
    %4337 = vmatprep.subr.mxu0 0.0
    %4338 = vmatpush1.msra.mxu0 0.0
    %4339 = vmatprep.subr.mxu0 0.0
    %4340 = vmatpush1.msra.mxu0 0.0
    %4341 = vmatprep.subr.mxu0 0.0
    %4342 = vmatpush1.msra.mxu0 0.0
    %4343 = vmatprep.subr.mxu0 0.0
    %4344 = vmatpush1.msra.mxu0 0.0
    %4345 = vmatprep.subr.mxu0 0.0
    %4346 = vmatpush1.msra.mxu0 0.0
    %4347 = vmatprep.subr.mxu0 0.0
    %4348 = vmatpush1.msra.mxu0 0.0
    %4349 = vmatprep.subr.mxu0 0.0
    %4350 = vmatpush1.msra.mxu0 0.0
    %4351 = vmatprep.subr.mxu0 0.0
    %4352 = vmatpush1.msra.mxu0 0.0
    %4353 = vmatprep.subr.mxu0 0.0
    %4354 = vmatpush1.msra.mxu0 0.0
    %4355 = vmatprep.subr.mxu0 0.0
    %4356 = vmatpush1.msra.mxu0 0.0
    %4357 = vmatprep.subr.mxu0 0.0
    %4358 = vmatpush1.msra.mxu0 0.0
    %4359 = vmatprep.subr.mxu0 0.0
    %4360 = vmatpush1.msra.mxu0 0.0
    %4361 = vmatprep.subr.mxu0 0.0
    %4362 = vmatpush1.msra.mxu0 0.0
    %4363 = vmatprep.subr.mxu0 0.0
    %4364 = vmatpush1.msra.mxu0 0.0
    %4365 = vmatprep.subr.mxu0 0.0
    %4366 = vmatpush1.msra.mxu0 0.0
    %4367 = vmatprep.subr.mxu0 0.0
    %4368 = vmatpush1.msra.mxu0 0.0
    %4369 = vmatprep.subr.mxu0 0.0
    %4370 = vmatpush1.msra.mxu0 0.0
    %4371 = vmatprep.mubr.f32.mxu0 0.0
    %4372 = vmatmul.mubr.f32.gmra.mrb[0].mxu0 %v4302
    %v4373 = vpop.f32.mrb[0].mxu0
    %v4374 = vadd.f32 %v4299, %v4373
    %v4375 = vpop.f32.mrb[0].mxu0
    %4376 = vmatprep.mubr.f32.mxu0 0.0
    %4377 = vmatmul.mubr.f32.gmra.mrb[0].mxu0 %v4305
    %v4378 = vpop.f32.mrb[0].mxu0
    %v4379 = vadd.f32 %v4299, %v4378
    %v4380 = vpop.f32.mrb[0].mxu0
    %4381 = vdwg.mxu0
    %vm4382 = vcmp.gt.f32.partialorder %v4374, 0.0
    %vm4383 = vcmp.gt.f32.partialorder %v4379, 0.0
    %v4384 = vmul.f32 %v4374, 0.25
    %v4385 = vmul.f32 %v4379, 0.25
    %v4386 = vsel %vm4382, %v4374, %v4384
    %v4387 = vsel %vm4383, %v4379, %v4385
    %v4389 = vlaneseq
    %v4390 = vshrl.u32 %v4389, 7
    %v4391 = vsub.s32 0, %v4390
    %v4392 = vrot.slane %v4253, %v4391
    %4394 = vmatprep.subr.mxu0 0.0
    %4395 = vmatpush1.msra.mxu0 %v4237
    %4396 = vmatprep.subr.mxu0 0.0
    %4397 = vmatpush1.msra.mxu0 %v4238
    %4398 = vmatprep.subr.mxu0 0.0
    %4399 = vmatpush1.msra.mxu0 %v4239
    %4400 = vmatprep.subr.mxu0 0.0
    %4401 = vmatpush1.msra.mxu0 %v4240
    %4402 = vmatprep.subr.mxu0 0.0
    %4403 = vmatpush1.msra.mxu0 %v4241
    %4404 = vmatprep.subr.mxu0 0.0
    %4405 = vmatpush1.msra.mxu0 %v4242
    %4406 = vmatprep.subr.mxu0 0.0
    %4407 = vmatpush1.msra.mxu0 %v4243
    %4408 = vmatprep.subr.mxu0 0.0
    %4409 = vmatpush1.msra.mxu0 %v4244
    %4410 = vmatprep.subr.mxu0 0.0
    %4411 = vmatpush1.msra.mxu0 %v4245
    %4412 = vmatprep.subr.mxu0 0.0
    %4413 = vmatpush1.msra.mxu0 %v4246
    %4414 = vmatprep.subr.mxu0 0.0
    %4415 = vmatpush1.msra.mxu0 %v4247
    %4416 = vmatprep.subr.mxu0 0.0
    %4417 = vmatpush1.msra.mxu0 %v4248
    %4418 = vmatprep.subr.mxu0 0.0
    %4419 = vmatpush1.msra.mxu0 %v4249
    %4420 = vmatprep.subr.mxu0 0.0
    %4421 = vmatpush1.msra.mxu0 %v4250
    %4422 = vmatprep.subr.mxu0 0.0
    %4423 = vmatpush1.msra.mxu0 %v4251
    %4424 = vmatprep.subr.mxu0 0.0
    %4425 = vmatpush1.msra.mxu0 %v4252
    %4426 = vmatprep.subr.mxu0 0.0
    %4427 = vmatpush1.msra.mxu0 0.0
    %4428 = vmatprep.subr.mxu0 0.0
    %4429 = vmatpush1.msra.mxu0 0.0
    %4430 = vmatprep.subr.mxu0 0.0
    %4431 = vmatpush1.msra.mxu0 0.0
    %4432 = vmatprep.subr.mxu0 0.0
    %4433 = vmatpush1.msra.mxu0 0.0
    %4434 = vmatprep.subr.mxu0 0.0
    %4435 = vmatpush1.msra.mxu0 0.0
    %4436 = vmatprep.subr.mxu0 0.0
    %4437 = vmatpush1.msra.mxu0 0.0
    %4438 = vmatprep.subr.mxu0 0.0
    %4439 = vmatpush1.msra.mxu0 0.0
    %4440 = vmatprep.subr.mxu0 0.0
    %4441 = vmatpush1.msra.mxu0 0.0
    %4442 = vmatprep.subr.mxu0 0.0
    %4443 = vmatpush1.msra.mxu0 0.0
    %4444 = vmatprep.subr.mxu0 0.0
    %4445 = vmatpush1.msra.mxu0 0.0
    %4446 = vmatprep.subr.mxu0 0.0
    %4447 = vmatpush1.msra.mxu0 0.0
    %4448 = vmatprep.subr.mxu0 0.0
    %4449 = vmatpush1.msra.mxu0 0.0
    %4450 = vmatprep.subr.mxu0 0.0
    %4451 = vmatpush1.msra.mxu0 0.0
    %4452 = vmatprep.subr.mxu0 0.0
    %4453 = vmatpush1.msra.mxu0 0.0
    %4454 = vmatprep.subr.mxu0 0.0
    %4455 = vmatpush1.msra.mxu0 0.0
    %4456 = vmatprep.subr.mxu0 0.0
    %4457 = vmatpush1.msra.mxu0 0.0
    %4458 = vmatprep.mubr.f32.mxu0 0.0
    %4459 = vmatmul.mubr.f32.gmra.mrb[0].mxu0 %v4386
    %v4460 = vpop.f32.mrb[0].mxu0
    %v4461 = vadd.f32 %v4392, %v4460
    %v4462 = vpop.f32.mrb[0].mxu0
    %4463 = vmatprep.mubr.f32.mxu0 0.0
    %4464 = vmatmul.mubr.f32.gmra.mrb[0].mxu0 %v4387
    %v4465 = vpop.f32.mrb[0].mxu0
    %v4466 = vadd.f32 %v4392, %v4465
    %v4467 = vpop.f32.mrb[0].mxu0
    %4468 = vdwg.mxu0
    %v4469 = vadd.f32 %v4293, %v4461
    %v4470 = vadd.f32 %v4294, %v4466
    %v4471 = vsel %vm345, %v4469, 0.0
    %4472 = vadd.xlane.f32.xlu0 %v4471
    %v4473 = vpop.xlane.xlu0 %4472
    %v4474 = vsel %vm345, %v4470, 0.0
    %4475 = vadd.xlane.f32.xlu0 %v4474
    %v4476 = vpop.xlane.xlu0 %4475
    %v4477 = vmul.f32 %v4473, %v4262
    %v4478 = vmul.f32 %v4476, %v4262
    %v4479 = vsub.f32 %v4469, %v4477
    %v4480 = vsub.f32 %v4470, %v4478
    %v4481 = vmul.f32 %v4479, %v4479
    %v4482 = vmul.f32 %v4480, %v4480
    %v4483 = vsel %vm345, %v4481, 0.0
    %4484 = vadd.xlane.f32.xlu0 %v4483
    %v4485 = vpop.xlane.xlu0 %4484
    %v4486 = vsel %vm345, %v4482, 0.0
    %4487 = vadd.xlane.f32.xlu0 %v4486
    %v4488 = vpop.xlane.xlu0 %4487
    %v4489 = vmul.f32 %v4485, %v4262
    %v4490 = vmul.f32 %v4488, %v4262
    %v4491 = vadd.f32 %v4489, 1e-05
    %v4492 = vadd.f32 %v4490, 1e-05
    %v4493 = vrsqrt.pop %v4491
    %v4494 = vrsqrt.pop %v4492
    %v4495 = vmul.f32 %v4479, %v4493
    %v4496 = vmul.f32 %v4480, %v4494
    %v4497 = vlaneseq
    %v4498 = vshrl.u32 %v4497, 7
    %v4499 = vsub.s32 0, %v4498
    %v4500 = vrot.slane %v4254, %v4499
    %v4501 = vmul.f32 %v4495, %v4500
    %v4502 = vmul.f32 %v4496, %v4500
    %v4503 = vlaneseq
    %v4504 = vshrl.u32 %v4503, 7
    %v4505 = vsub.s32 1, %v4504
    %v4506 = vrot.slane %v4254, %v4505
    %v4507 = vadd.f32 %v4501, %v4506
    %v4508 = vadd.f32 %v4502, %v4506
    %v4509 = vld [vmem:[%s71] sm:$0xff]
    %v4510 = vld [vmem:[%s71 + $0x8] sm:$0xff]
    %v4511 = vld [vmem:[%s71 + $0x10] sm:$0xff]
    %v4512 = vld [vmem:[%s71 + $0x18] sm:$0xff]
    %v4513 = vld [vmem:[%s73] sm:$0x1]
    %v4514 = vld [vmem:[%s75] sm:$0xff]
    %v4515 = vld [vmem:[%s75 + $0x8] sm:$0xff]
    %v4516 = vld [vmem:[%s75 + $0x10] sm:$0xff]
    %v4517 = vld [vmem:[%s75 + $0x18] sm:$0xff]
    %v4518 = vld [vmem:[%s75 + $0x20] sm:$0xff]
    %v4519 = vld [vmem:[%s75 + $0x28] sm:$0xff]
    %v4520 = vld [vmem:[%s75 + $0x30] sm:$0xff]
    %v4521 = vld [vmem:[%s75 + $0x38] sm:$0xff]
    %v4522 = vld [vmem:[%s75 + $0x40] sm:$0xff]
    %v4523 = vld [vmem:[%s75 + $0x48] sm:$0xff]
    %v4524 = vld [vmem:[%s75 + $0x50] sm:$0xff]
    %v4525 = vld [vmem:[%s75 + $0x58] sm:$0xff]
    %v4526 = vld [vmem:[%s75 + $0x60] sm:$0xff]
    %v4527 = vld [vmem:[%s75 + $0x68] sm:$0xff]
    %v4528 = vld [vmem:[%s75 + $0x70] sm:$0xff]
    %v4529 = vld [vmem:[%s75 + $0x78] sm:$0xff]
    %v4530 = vld [vmem:[%s77] sm:$0x1]
    %v4531 = vld [vmem:[%s79] sm:$0x3]
    %v4532 = vsel %vm345, %v4218, 0.0
    %4533 = vadd.xlane.f32.xlu0 %v4532
    %v4534 = vpop.xlane.xlu0 %4533
    %v4535 = vsel %vm345, %v4223, 0.0
    %4536 = vadd.xlane.f32.xlu0 %v4535
    %v4537 = vpop.xlane.xlu0 %4536
    %v4538 = vmul.f32 %v4534, %v4262
    %v4539 = vmul.f32 %v4537, %v4262
    %v4540 = vsub.f32 %v4218, %v4538
    %v4541 = vsub.f32 %v4223, %v4539
    %v4542 = vmul.f32 %v4540, %v4540
    %v4543 = vmul.f32 %v4541, %v4541
    %v4544 = vsel %vm345, %v4542, 0.0
    %4545 = vadd.xlane.f32.xlu0 %v4544
    %v4546 = vpop.xlane.xlu0 %4545
    %v4547 = vsel %vm345, %v4543, 0.0
    %4548 = vadd.xlane.f32.xlu0 %v4547
    %v4549 = vpop.xlane.xlu0 %4548
    %v4550 = vmul.f32 %v4546, %v4262
    %v4551 = vmul.f32 %v4549, %v4262
    %v4552 = vadd.f32 %v4550, 1e-05
    %v4553 = vadd.f32 %v4551, 1e-05
    %v4554 = vrsqrt.pop %v4552
    %v4555 = vrsqrt.pop %v4553
    %v4556 = vmul.f32 %v4540, %v4554
    %v4557 = vmul.f32 %v4541, %v4555
    %v4558 = vmul.f32 %v4556, %v4286
    %v4559 = vmul.f32 %v4557, %v4286
    %v4560 = vadd.f32 %v4558, %v4292
    %v4561 = vadd.f32 %v4559, %v4292
    %v4563 = vlaneseq
    %v4564 = vshrl.u32 %v4563, 7
    %v4565 = vsub.s32 0, %v4564
    %v4566 = vrot.slane %v4513, %v4565
    %v4569 = vsel %vm345, %v4560, 0
    %v4572 = vsel %vm345, %v4561, 0
    %4574 = vmatprep.subr.mxu0 0.0
    %4575 = vmatpush1.msra.mxu0 %v4509
    %4576 = vmatprep.subr.mxu0 0.0
    %4577 = vmatpush1.msra.mxu0 %v4510
    %4578 = vmatprep.subr.mxu0 0.0
    %4579 = vmatpush1.msra.mxu0 %v4511
    %4580 = vmatprep.subr.mxu0 0.0
    %4581 = vmatpush1.msra.mxu0 %v4512
    %4582 = vmatprep.subr.mxu0 0.0
    %4583 = vmatpush1.msra.mxu0 0.0
    %4584 = vmatprep.subr.mxu0 0.0
    %4585 = vmatpush1.msra.mxu0 0.0
    %4586 = vmatprep.subr.mxu0 0.0
    %4587 = vmatpush1.msra.mxu0 0.0
    %4588 = vmatprep.subr.mxu0 0.0
    %4589 = vmatpush1.msra.mxu0 0.0
    %4590 = vmatprep.subr.mxu0 0.0
    %4591 = vmatpush1.msra.mxu0 0.0
    %4592 = vmatprep.subr.mxu0 0.0
    %4593 = vmatpush1.msra.mxu0 0.0
    %4594 = vmatprep.subr.mxu0 0.0
    %4595 = vmatpush1.msra.mxu0 0.0
    %4596 = vmatprep.subr.mxu0 0.0
    %4597 = vmatpush1.msra.mxu0 0.0
    %4598 = vmatprep.subr.mxu0 0.0
    %4599 = vmatpush1.msra.mxu0 0.0
    %4600 = vmatprep.subr.mxu0 0.0
    %4601 = vmatpush1.msra.mxu0 0.0
    %4602 = vmatprep.subr.mxu0 0.0
    %4603 = vmatpush1.msra.mxu0 0.0
    %4604 = vmatprep.subr.mxu0 0.0
    %4605 = vmatpush1.msra.mxu0 0.0
    %4606 = vmatprep.subr.mxu0 0.0
    %4607 = vmatpush1.msra.mxu0 0.0
    %4608 = vmatprep.subr.mxu0 0.0
    %4609 = vmatpush1.msra.mxu0 0.0
    %4610 = vmatprep.subr.mxu0 0.0
    %4611 = vmatpush1.msra.mxu0 0.0
    %4612 = vmatprep.subr.mxu0 0.0
    %4613 = vmatpush1.msra.mxu0 0.0
    %4614 = vmatprep.subr.mxu0 0.0
    %4615 = vmatpush1.msra.mxu0 0.0
    %4616 = vmatprep.subr.mxu0 0.0
    %4617 = vmatpush1.msra.mxu0 0.0
    %4618 = vmatprep.subr.mxu0 0.0
    %4619 = vmatpush1.msra.mxu0 0.0
    %4620 = vmatprep.subr.mxu0 0.0
    %4621 = vmatpush1.msra.mxu0 0.0
    %4622 = vmatprep.subr.mxu0 0.0
    %4623 = vmatpush1.msra.mxu0 0.0
    %4624 = vmatprep.subr.mxu0 0.0
    %4625 = vmatpush1.msra.mxu0 0.0
    %4626 = vmatprep.subr.mxu0 0.0
    %4627 = vmatpush1.msra.mxu0 0.0
    %4628 = vmatprep.subr.mxu0 0.0
    %4629 = vmatpush1.msra.mxu0 0.0
    %4630 = vmatprep.subr.mxu0 0.0
    %4631 = vmatpush1.msra.mxu0 0.0
    %4632 = vmatprep.subr.mxu0 0.0
    %4633 = vmatpush1.msra.mxu0 0.0
    %4634 = vmatprep.subr.mxu0 0.0
    %4635 = vmatpush1.msra.mxu0 0.0
    %4636 = vmatprep.subr.mxu0 0.0
    %4637 = vmatpush1.msra.mxu0 0.0
    %4638 = vmatprep.mubr.f32.mxu0 0.0
    %4639 = vmatmul.mubr.f32.gmra.mrb[0].mxu0 %v4569
    %v4640 = vpop.f32.mrb[0].mxu0
    %v4641 = vadd.f32 %v4566, %v4640
    %v4642 = vpop.f32.mrb[0].mxu0
    %4643 = vmatprep.mubr.f32.mxu0 0.0
    %4644 = vmatmul.mubr.f32.gmra.mrb[0].mxu0 %v4572
    %v4645 = vpop.f32.mrb[0].mxu0
    %v4646 = vadd.f32 %v4566, %v4645
    %v4647 = vpop.f32.mrb[0].mxu0
    %4648 = vdwg.mxu0
    %vm4649 = vcmp.gt.f32.partialorder %v4641, 0.0
    %vm4650 = vcmp.gt.f32.partialorder %v4646, 0.0
    %v4651 = vmul.f32 %v4641, 0.25
    %v4652 = vmul.f32 %v4646, 0.25
    %v4653 = vsel %vm4649, %v4641, %v4651
    %v4654 = vsel %vm4650, %v4646, %v4652
    %v4656 = vlaneseq
    %v4657 = vshrl.u32 %v4656, 7
    %v4658 = vsub.s32 0, %v4657
    %v4659 = vrot.slane %v4530, %v4658
    %4661 = vmatprep.subr.mxu0 0.0
    %4662 = vmatpush1.msra.mxu0 %v4514
    %4663 = vmatprep.subr.mxu0 0.0
    %4664 = vmatpush1.msra.mxu0 %v4515
    %4665 = vmatprep.subr.mxu0 0.0
    %4666 = vmatpush1.msra.mxu0 %v4516
    %4667 = vmatprep.subr.mxu0 0.0
    %4668 = vmatpush1.msra.mxu0 %v4517
    %4669 = vmatprep.subr.mxu0 0.0
    %4670 = vmatpush1.msra.mxu0 %v4518
    %4671 = vmatprep.subr.mxu0 0.0
    %4672 = vmatpush1.msra.mxu0 %v4519
    %4673 = vmatprep.subr.mxu0 0.0
    %4674 = vmatpush1.msra.mxu0 %v4520
    %4675 = vmatprep.subr.mxu0 0.0
    %4676 = vmatpush1.msra.mxu0 %v4521
    %4677 = vmatprep.subr.mxu0 0.0
    %4678 = vmatpush1.msra.mxu0 %v4522
    %4679 = vmatprep.subr.mxu0 0.0
    %4680 = vmatpush1.msra.mxu0 %v4523
    %4681 = vmatprep.subr.mxu0 0.0
    %4682 = vmatpush1.msra.mxu0 %v4524
    %4683 = vmatprep.subr.mxu0 0.0
    %4684 = vmatpush1.msra.mxu0 %v4525
    %4685 = vmatprep.subr.mxu0 0.0
    %4686 = vmatpush1.msra.mxu0 %v4526
    %4687 = vmatprep.subr.mxu0 0.0
    %4688 = vmatpush1.msra.mxu0 %v4527
    %4689 = vmatprep.subr.mxu0 0.0
    %4690 = vmatpush1.msra.mxu0 %v4528
    %4691 = vmatprep.subr.mxu0 0.0
    %4692 = vmatpush1.msra.mxu0 %v4529
    %4693 = vmatprep.subr.mxu0 0.0
    %4694 = vmatpush1.msra.mxu0 0.0
    %4695 = vmatprep.subr.mxu0 0.0
    %4696 = vmatpush1.msra.mxu0 0.0
    %4697 = vmatprep.subr.mxu0 0.0
    %4698 = vmatpush1.msra.mxu0 0.0
    %4699 = vmatprep.subr.mxu0 0.0
    %4700 = vmatpush1.msra.mxu0 0.0
    %4701 = vmatprep.subr.mxu0 0.0
    %4702 = vmatpush1.msra.mxu0 0.0
    %4703 = vmatprep.subr.mxu0 0.0
    %4704 = vmatpush1.msra.mxu0 0.0
    %4705 = vmatprep.subr.mxu0 0.0
    %4706 = vmatpush1.msra.mxu0 0.0
    %4707 = vmatprep.subr.mxu0 0.0
    %4708 = vmatpush1.msra.mxu0 0.0
    %4709 = vmatprep.subr.mxu0 0.0
    %4710 = vmatpush1.msra.mxu0 0.0
    %4711 = vmatprep.subr.mxu0 0.0
    %4712 = vmatpush1.msra.mxu0 0.0
    %4713 = vmatprep.subr.mxu0 0.0
    %4714 = vmatpush1.msra.mxu0 0.0
    %4715 = vmatprep.subr.mxu0 0.0
    %4716 = vmatpush1.msra.mxu0 0.0
    %4717 = vmatprep.subr.mxu0 0.0
    %4718 = vmatpush1.msra.mxu0 0.0
    %4719 = vmatprep.subr.mxu0 0.0
    %4720 = vmatpush1.msra.mxu0 0.0
    %4721 = vmatprep.subr.mxu0 0.0
    %4722 = vmatpush1.msra.mxu0 0.0
    %4723 = vmatprep.subr.mxu0 0.0
    %4724 = vmatpush1.msra.mxu0 0.0
    %4725 = vmatprep.mubr.f32.mxu0 0.0
    %4726 = vmatmul.mubr.f32.gmra.mrb[0].mxu0 %v4653
    %v4727 = vpop.f32.mrb[0].mxu0
    %v4728 = vadd.f32 %v4659, %v4727
    %v4729 = vpop.f32.mrb[0].mxu0
    %4730 = vmatprep.mubr.f32.mxu0 0.0
    %4731 = vmatmul.mubr.f32.gmra.mrb[0].mxu0 %v4654
    %v4732 = vpop.f32.mrb[0].mxu0
    %v4733 = vadd.f32 %v4659, %v4732
    %v4734 = vpop.f32.mrb[0].mxu0
    %4735 = vdwg.mxu0
    %v4736 = vadd.f32 %v4560, %v4728
    %v4737 = vadd.f32 %v4561, %v4733
    %v4738 = vsel %vm345, %v4736, 0.0
    %4739 = vadd.xlane.f32.xlu0 %v4738
    %v4740 = vpop.xlane.xlu0 %4739
    %v4741 = vsel %vm345, %v4737, 0.0
    %4742 = vadd.xlane.f32.xlu0 %v4741
    %v4743 = vpop.xlane.xlu0 %4742
    %v4744 = vmul.f32 %v4740, %v4262
    %v4745 = vmul.f32 %v4743, %v4262
    %v4746 = vsub.f32 %v4736, %v4744
    %v4747 = vsub.f32 %v4737, %v4745
    %v4748 = vmul.f32 %v4746, %v4746
    %v4749 = vmul.f32 %v4747, %v4747
    %v4750 = vsel %vm345, %v4748, 0.0
    %4751 = vadd.xlane.f32.xlu0 %v4750
    %v4752 = vpop.xlane.xlu0 %4751
    %v4753 = vsel %vm345, %v4749, 0.0
    %4754 = vadd.xlane.f32.xlu0 %v4753
    %v4755 = vpop.xlane.xlu0 %4754
    %v4756 = vmul.f32 %v4752, %v4262
    %v4757 = vmul.f32 %v4755, %v4262
    %v4758 = vadd.f32 %v4756, 1e-05
    %v4759 = vadd.f32 %v4757, 1e-05
    %v4760 = vrsqrt.pop %v4758
    %v4761 = vrsqrt.pop %v4759
    %v4762 = vmul.f32 %v4746, %v4760
    %v4763 = vmul.f32 %v4747, %v4761
    %v4764 = vlaneseq
    %v4765 = vshrl.u32 %v4764, 7
    %v4766 = vsub.s32 0, %v4765
    %v4767 = vrot.slane %v4531, %v4766
    %v4768 = vmul.f32 %v4762, %v4767
    %v4769 = vmul.f32 %v4763, %v4767
    %v4770 = vlaneseq
    %v4771 = vshrl.u32 %v4770, 7
    %v4772 = vsub.s32 1, %v4771
    %v4773 = vrot.slane %v4531, %v4772
    %v4774 = vadd.f32 %v4768, %v4773
    %v4775 = vadd.f32 %v4769, %v4773
    %v4776 = vadd.f32 %v4507, %v4774
    %v4777 = vadd.f32 %v4508, %v4775
    %v4778 = vsel %vm345, %v4776, 0.0
    %4779 = vadd.xlane.f32.xlu0 %v4778
    %v4780 = vpop.xlane.xlu0 %4779
    %v4781 = vsel %vm345, %v4777, 0.0
    %4782 = vadd.xlane.f32.xlu0 %v4781
    %v4783 = vpop.xlane.xlu0 %4782
    %v4784 = vmul.f32 %v4780, %v4262
    %v4785 = vmul.f32 %v4783, %v4262
    %v4786 = vsub.f32 %v4776, %v4784
    %v4787 = vsub.f32 %v4777, %v4785
    %v4788 = vmul.f32 %v4786, %v4786
    %v4789 = vmul.f32 %v4787, %v4787
    %v4790 = vsel %vm345, %v4788, 0.0
    %4791 = vadd.xlane.f32.xlu0 %v4790
    %v4792 = vpop.xlane.xlu0 %4791
    %v4793 = vsel %vm345, %v4789, 0.0
    %4794 = vadd.xlane.f32.xlu0 %v4793
    %v4795 = vpop.xlane.xlu0 %4794
    %v4796 = vmul.f32 %v4792, %v4262
    %v4797 = vmul.f32 %v4795, %v4262
    %v4798 = vadd.f32 %v4796, 1e-05
    %v4799 = vadd.f32 %v4797, 1e-05
    %v4800 = vrsqrt.pop %v4798
    %v4801 = vrsqrt.pop %v4799
    %v4802 = vmul.f32 %v4786, %v4800
    %v4803 = vmul.f32 %v4787, %v4801
    %v4804 = vmul.f32 %v4802, %v4286
    %v4805 = vmul.f32 %v4803, %v4286
    %v4806 = vadd.f32 %v4804, %v4292
    %v4807 = vadd.f32 %v4805, %v4292
    %v4811 = vunpack.c.l.s4 1983009808
    %v4812 = vunpack.c.0.s8 %v4811
    %v4813 = vlaneseq
    %v4814 = vshrl.u32 %v4813, 7
    %v4815 = vsub.s32 %v4812, %v4814
    %v4816 = vrot.slane %v4806, %v4815
    %v4818 = vunpack.c.l.s4 1983009808
    %v4819 = vunpack.c.0.s8 %v4818
    %v4820 = vlaneseq
    %v4821 = vshrl.u32 %v4820, 7
    %v4822 = vsub.s32 %v4819, %v4821
    %v4823 = vrot.slane %v4807, %v4822
    %vm4824 = vcmask 1044484
    %v4825 = vsel %vm4824, %v4816, %v4816
    %vm4826 = vcmask 1046534
    %v4827 = vsel %vm4826, %v4816, %v4825
    %v4828 = vrot.slane %v4823, 7
    %v4829 = vsel %vm371, %v4828, %v4827
    %vm4830 = vcmask 1043459
    %v4831 = vsel %vm4830, %v4828, %v4829
    %vm4832 = vcmask 1045509
    %v4833 = vsel %vm4832, %v4828, %v4831
    %vm4834 = vcmask 1047559
    %v4835 = vsel %vm4834, %v4828, %v4833
    %vm4837 = vcmask 254976
    %4838 = vst.msk [vmem:[#allocation3] sm:$0x3] %vm4837, %v4835
    %v4839 = vrot.slane %v4816, 1
    %v4840 = vsel %vm4824, %v4839, %v4839
    %v4841 = vsel %vm4826, %v4839, %v4840
    %v4842 = vsel %vm371, %v4823, %v4841
    %v4843 = vsel %vm4830, %v4823, %v4842
    %v4844 = vsel %vm4832, %v4823, %v4843
    %v4845 = vsel %vm4834, %v4823, %v4844
    %4846 = vrot.lane.b32.xlu0 %v4845, 32
    %v4847 = vpop.permute.xlu0 %4846
    %vm4849 = vcmask 517376
    %4850 = vst.msk [vmem:[#allocation3] sm:$0x3] %vm4849, %v4847
    %v4851 = vcombine.high %v4816, %v4816
    %v4852 = vcombine.high %v4823, %v4823
    %v4853 = vsel %vm4824, %v4851, %v4851
    %v4854 = vsel %vm4826, %v4851, %v4853
    %v4855 = vrot.slane %v4852, 7
    %v4856 = vsel %vm371, %v4855, %v4854
    %v4857 = vsel %vm4830, %v4855, %v4856
    %v4858 = vsel %vm4832, %v4855, %v4857
    %v4859 = vsel %vm4834, %v4855, %v4858
    %4860 = vrot.lane.b32.xlu0 %v4859, 64
    %v4861 = vpop.permute.xlu0 %4860
    %vm4863 = vcmask 779776
    %4864 = vst.msk [vmem:[#allocation3] sm:$0x3] %vm4863, %v4861
    %v4865 = vrot.slane %v4851, 1
    %v4866 = vsel %vm4824, %v4865, %v4865
    %v4867 = vsel %vm4826, %v4865, %v4866
    %v4868 = vsel %vm371, %v4852, %v4867
    %v4869 = vsel %vm4830, %v4852, %v4868
    %v4870 = vsel %vm4832, %v4852, %v4869
    %v4871 = vsel %vm4834, %v4852, %v4870
    %4872 = vrot.lane.b32.xlu0 %v4871, 96
    %v4873 = vpop.permute.xlu0 %4872
    %vm4875 = vcmask 1042176
    %4876 = vst.msk [vmem:[#allocation3] sm:$0x3] %vm4875, %v4873
    %v4877 = vcombine.high %v4806, %v4806
    %v4879 = vunpack.c.l.s4 1983009808
    %v4880 = vunpack.c.0.s8 %v4879
    %v4881 = vlaneseq
    %v4882 = vshrl.u32 %v4881, 7
    %v4883 = vsub.s32 %v4880, %v4882
    %v4884 = vrot.slane %v4877, %v4883
    %v4885 = vcombine.high %v4807, %v4807
    %v4887 = vunpack.c.l.s4 1983009808
    %v4888 = vunpack.c.0.s8 %v4887
    %v4889 = vlaneseq
    %v4890 = vshrl.u32 %v4889, 7
    %v4891 = vsub.s32 %v4888, %v4890
    %v4892 = vrot.slane %v4885, %v4891
    %v4893 = vsel %vm4824, %v4884, %v4884
    %v4894 = vsel %vm4826, %v4884, %v4893
    %v4895 = vrot.slane %v4892, 7
    %v4896 = vsel %vm371, %v4895, %v4894
    %v4897 = vsel %vm4830, %v4895, %v4896
    %v4898 = vsel %vm4832, %v4895, %v4897
    %v4899 = vsel %vm4834, %v4895, %v4898
    %4901 = vst.msk [vmem:[#allocation3 + $0x2] sm:$0x3] %vm4837, %v4899
    %v4902 = vrot.slane %v4884, 1
    %v4903 = vsel %vm4824, %v4902, %v4902
    %v4904 = vsel %vm4826, %v4902, %v4903
    %v4905 = vsel %vm371, %v4892, %v4904
    %v4906 = vsel %vm4830, %v4892, %v4905
    %v4907 = vsel %vm4832, %v4892, %v4906
    %v4908 = vsel %vm4834, %v4892, %v4907
    %4909 = vrot.lane.b32.xlu0 %v4908, 32
    %v4910 = vpop.permute.xlu0 %4909
    %4912 = vst.msk [vmem:[#allocation3 + $0x2] sm:$0x3] %vm4849, %v4910
    %v4913 = vcombine.high %v4884, %v4884
    %v4914 = vcombine.high %v4892, %v4892
    %v4915 = vsel %vm4824, %v4913, %v4913
    %v4916 = vsel %vm4826, %v4913, %v4915
    %v4917 = vrot.slane %v4914, 7
    %v4918 = vsel %vm371, %v4917, %v4916
    %v4919 = vsel %vm4830, %v4917, %v4918
    %v4920 = vsel %vm4832, %v4917, %v4919
    %v4921 = vsel %vm4834, %v4917, %v4920
    %4922 = vrot.lane.b32.xlu0 %v4921, 64
    %v4923 = vpop.permute.xlu0 %4922
    %4925 = vst.msk [vmem:[#allocation3 + $0x2] sm:$0x3] %vm4863, %v4923
    %v4926 = vrot.slane %v4913, 1
    %v4927 = vsel %vm4824, %v4926, %v4926
    %v4928 = vsel %vm4826, %v4926, %v4927
    %v4929 = vsel %vm371, %v4914, %v4928
    %v4930 = vsel %vm4830, %v4914, %v4929
    %v4931 = vsel %vm4832, %v4914, %v4930
    %v4932 = vsel %vm4834, %v4914, %v4931
    %4933 = vrot.lane.b32.xlu0 %v4932, 96
    %v4934 = vpop.permute.xlu0 %4933
    %4936 = vst.msk [vmem:[#allocation3 + $0x2] sm:$0x3] %vm4875, %v4934
    %v4937 = vld [vmem:[#allocation3] sm:$0xf]
    %v4938 = vld [vmem:[%s81] sm:$0xff]
    %v4939 = vld [vmem:[%s81 + $0x8] sm:$0xff]
    %v4940 = vld [vmem:[%s81 + $0x10] sm:$0xff]
    %v4941 = vld [vmem:[%s81 + $0x18] sm:$0xff]
    %v4942 = vld [vmem:[%s81 + $0x20] sm:$0xff]
    %v4943 = vld [vmem:[%s81 + $0x28] sm:$0xff]
    %v4944 = vld [vmem:[%s81 + $0x30] sm:$0xff]
    %v4945 = vld [vmem:[%s81 + $0x38] sm:$0xff]
    %v4946 = vld [vmem:[%s81 + $0x40] sm:$0xff]
    %v4947 = vld [vmem:[%s81 + $0x48] sm:$0xff]
    %v4948 = vld [vmem:[%s81 + $0x50] sm:$0xff]
    %v4949 = vld [vmem:[%s81 + $0x58] sm:$0xff]
    %v4950 = vld [vmem:[%s81 + $0x60] sm:$0xff]
    %v4951 = vld [vmem:[%s81 + $0x68] sm:$0xff]
    %v4952 = vld [vmem:[%s81 + $0x70] sm:$0xff]
    %v4953 = vld [vmem:[%s81 + $0x78] sm:$0xff]
    %v4954 = vld [vmem:[%s81 + $0x80] sm:$0xff]
    %v4955 = vld [vmem:[%s81 + $0x88] sm:$0xff]
    %v4956 = vld [vmem:[%s81 + $0x90] sm:$0xff]
    %v4957 = vld [vmem:[%s81 + $0x98] sm:$0xff]
    %v4958 = vld [vmem:[%s81 + $0xa0] sm:$0xff]
    %v4959 = vld [vmem:[%s81 + $0xa8] sm:$0xff]
    %v4960 = vld [vmem:[%s81 + $0xb0] sm:$0xff]
    %v4961 = vld [vmem:[%s81 + $0xb8] sm:$0xff]
    %v4962 = vld [vmem:[%s81 + $0xc0] sm:$0xff]
    %v4963 = vld [vmem:[%s81 + $0xc8] sm:$0xff]
    %v4964 = vld [vmem:[%s81 + $0xd0] sm:$0xff]
    %v4965 = vld [vmem:[%s81 + $0xd8] sm:$0xff]
    %v4966 = vld [vmem:[%s81 + $0xe0] sm:$0xff]
    %v4967 = vld [vmem:[%s81 + $0xe8] sm:$0xff]
    %v4968 = vld [vmem:[%s81 + $0xf0] sm:$0xff]
    %v4969 = vld [vmem:[%s81 + $0xf8] sm:$0xff]
    %v4970 = vld [vmem:[%s83] sm:$0x1]
    %v4972 = vlaneseq
    %v4973 = vshrl.u32 %v4972, 7
    %v4974 = vsub.s32 0, %v4973
    %v4975 = vrot.slane %v4970, %v4974
    %v4979 = vunpack.c.l.s4 1983009808
    %v4980 = vunpack.c.0.s8 %v4979
    %v4981 = vlaneseq
    %v4982 = vshrl.u32 %v4981, 7
    %v4983 = vsub.s32 %v4980, %v4982
    %v4984 = vrot.slane %v4937, %v4983
    %v4985 = vcombine.high %v4984, %v4984
    %4988 = vmatprep.subr.mxu0 0.0
    %4989 = vmatpush1.msra.mxu0 %v4938
    %4990 = vmatprep.subr.mxu0 0.0
    %4991 = vmatpush1.msra.mxu0 %v4939
    %4992 = vmatprep.subr.mxu0 0.0
    %4993 = vmatpush1.msra.mxu0 %v4940
    %4994 = vmatprep.subr.mxu0 0.0
    %4995 = vmatpush1.msra.mxu0 %v4941
    %4996 = vmatprep.subr.mxu0 0.0
    %4997 = vmatpush1.msra.mxu0 %v4942
    %4998 = vmatprep.subr.mxu0 0.0
    %4999 = vmatpush1.msra.mxu0 %v4943
    %5000 = vmatprep.subr.mxu0 0.0
    %5001 = vmatpush1.msra.mxu0 %v4944
    %5002 = vmatprep.subr.mxu0 0.0
    %5003 = vmatpush1.msra.mxu0 %v4945
    %5004 = vmatprep.subr.mxu0 0.0
    %5005 = vmatpush1.msra.mxu0 %v4946
    %5006 = vmatprep.subr.mxu0 0.0
    %5007 = vmatpush1.msra.mxu0 %v4947
    %5008 = vmatprep.subr.mxu0 0.0
    %5009 = vmatpush1.msra.mxu0 %v4948
    %5010 = vmatprep.subr.mxu0 0.0
    %5011 = vmatpush1.msra.mxu0 %v4949
    %5012 = vmatprep.subr.mxu0 0.0
    %5013 = vmatpush1.msra.mxu0 %v4950
    %5014 = vmatprep.subr.mxu0 0.0
    %5015 = vmatpush1.msra.mxu0 %v4951
    %5016 = vmatprep.subr.mxu0 0.0
    %5017 = vmatpush1.msra.mxu0 %v4952
    %5018 = vmatprep.subr.mxu0 0.0
    %5019 = vmatpush1.msra.mxu0 %v4953
    %5020 = vmatprep.subr.mxu0 0.0
    %5021 = vmatpush1.msra.mxu0 %v4954
    %5022 = vmatprep.subr.mxu0 0.0
    %5023 = vmatpush1.msra.mxu0 %v4955
    %5024 = vmatprep.subr.mxu0 0.0
    %5025 = vmatpush1.msra.mxu0 %v4956
    %5026 = vmatprep.subr.mxu0 0.0
    %5027 = vmatpush1.msra.mxu0 %v4957
    %5028 = vmatprep.subr.mxu0 0.0
    %5029 = vmatpush1.msra.mxu0 %v4958
    %5030 = vmatprep.subr.mxu0 0.0
    %5031 = vmatpush1.msra.mxu0 %v4959
    %5032 = vmatprep.subr.mxu0 0.0
    %5033 = vmatpush1.msra.mxu0 %v4960
    %5034 = vmatprep.subr.mxu0 0.0
    %5035 = vmatpush1.msra.mxu0 %v4961
    %5036 = vmatprep.subr.mxu0 0.0
    %5037 = vmatpush1.msra.mxu0 %v4962
    %5038 = vmatprep.subr.mxu0 0.0
    %5039 = vmatpush1.msra.mxu0 %v4963
    %5040 = vmatprep.subr.mxu0 0.0
    %5041 = vmatpush1.msra.mxu0 %v4964
    %5042 = vmatprep.subr.mxu0 0.0
    %5043 = vmatpush1.msra.mxu0 %v4965
    %5044 = vmatprep.subr.mxu0 0.0
    %5045 = vmatpush1.msra.mxu0 %v4966
    %5046 = vmatprep.subr.mxu0 0.0
    %5047 = vmatpush1.msra.mxu0 %v4967
    %5048 = vmatprep.subr.mxu0 0.0
    %5049 = vmatpush1.msra.mxu0 %v4968
    %5050 = vmatprep.subr.mxu0 0.0
    %5051 = vmatpush1.msra.mxu0 %v4969
    %5052 = vmatprep.mubr.f32.mxu0 %v4985
    %5053 = vmatmul.mubr.f32.gmra.mrb[0].mxu0 %v4984
    %v5054 = vpop.f32.mrb[0].mxu0
    %v5055 = vadd.f32 %v4975, %v5054
    %v5056 = vpop.f32.mrb[0].mxu0
    %5057 = vdwg.mxu0
    %v5058 = vld [vmem:[%s85] sm:$0xf]
    %v5059 = vlaneseq
    %v5060 = vshrl.u32 %v5059, 7
    %v5061 = vsub.s32 2, %v5060
    %v5062 = vrot.slane %v5058, %v5061
    %v5063 = vsub.f32 %v5055, %v5062
    %v5064 = vadd.f32 %v5058, 1e-05
    %v5065 = vrsqrt.pop %v5064
    %v5066 = vlaneseq
    %v5067 = vshrl.u32 %v5066, 7
    %v5068 = vsub.s32 3, %v5067
    %v5069 = vrot.slane %v5065, %v5068
    %v5070 = vmul.f32 %v5063, %v5069
    %v5071 = vlaneseq
    %v5072 = vshrl.u32 %v5071, 7
    %v5073 = vsub.s32 0, %v5072
    %v5074 = vrot.slane %v5058, %v5073
    %v5075 = vmul.f32 %v5070, %v5074
    %v5076 = vlaneseq
    %v5077 = vshrl.u32 %v5076, 7
    %v5078 = vsub.s32 1, %v5077
    %v5079 = vrot.slane %v5058, %v5078
    %v5080 = vadd.f32 %v5075, %v5079
    %vm5081 = vcmp.gt.f32.partialorder %v5080, 0.0
    %v5082 = vmul.f32 %v5080, 0.25
    %v5083 = vsel %vm5081, %v5080, %v5082
    %v5084 = vld [vmem:[%s87] sm:$0xff]
    %v5085 = vld [vmem:[%s87 + $0x8] sm:$0xff]
    %v5086 = vld [vmem:[%s87 + $0x10] sm:$0xff]
    %v5087 = vld [vmem:[%s87 + $0x18] sm:$0xff]
    %v5088 = vld [vmem:[%s87 + $0x20] sm:$0xff]
    %v5089 = vld [vmem:[%s87 + $0x28] sm:$0xff]
    %v5090 = vld [vmem:[%s87 + $0x30] sm:$0xff]
    %v5091 = vld [vmem:[%s87 + $0x38] sm:$0xff]
    %v5092 = vld [vmem:[%s89] sm:$0x1]
    %v5094 = vlaneseq
    %v5095 = vshrl.u32 %v5094, 7
    %v5096 = vsub.s32 0, %v5095
    %v5097 = vrot.slane %v5092, %v5096
    %vm5099 = vcmask 523264
    %v5101 = vsel %vm5099, %v5083, 0
    %5103 = vmatprep.subr.mxu0 0.0
    %5104 = vmatpush1.msra.mxu0 %v5084
    %5105 = vmatprep.subr.mxu0 0.0
    %5106 = vmatpush1.msra.mxu0 %v5085
    %5107 = vmatprep.subr.mxu0 0.0
    %5108 = vmatpush1.msra.mxu0 %v5086
    %5109 = vmatprep.subr.mxu0 0.0
    %5110 = vmatpush1.msra.mxu0 %v5087
    %5111 = vmatprep.subr.mxu0 0.0
    %5112 = vmatpush1.msra.mxu0 %v5088
    %5113 = vmatprep.subr.mxu0 0.0
    %5114 = vmatpush1.msra.mxu0 %v5089
    %5115 = vmatprep.subr.mxu0 0.0
    %5116 = vmatpush1.msra.mxu0 %v5090
    %5117 = vmatprep.subr.mxu0 0.0
    %5118 = vmatpush1.msra.mxu0 %v5091
    %5119 = vmatprep.subr.mxu0 0.0
    %5120 = vmatpush1.msra.mxu0 0.0
    %5121 = vmatprep.subr.mxu0 0.0
    %5122 = vmatpush1.msra.mxu0 0.0
    %5123 = vmatprep.subr.mxu0 0.0
    %5124 = vmatpush1.msra.mxu0 0.0
    %5125 = vmatprep.subr.mxu0 0.0
    %5126 = vmatpush1.msra.mxu0 0.0
    %5127 = vmatprep.subr.mxu0 0.0
    %5128 = vmatpush1.msra.mxu0 0.0
    %5129 = vmatprep.subr.mxu0 0.0
    %5130 = vmatpush1.msra.mxu0 0.0
    %5131 = vmatprep.subr.mxu0 0.0
    %5132 = vmatpush1.msra.mxu0 0.0
    %5133 = vmatprep.subr.mxu0 0.0
    %5134 = vmatpush1.msra.mxu0 0.0
    %5135 = vmatprep.subr.mxu0 0.0
    %5136 = vmatpush1.msra.mxu0 0.0
    %5137 = vmatprep.subr.mxu0 0.0
    %5138 = vmatpush1.msra.mxu0 0.0
    %5139 = vmatprep.subr.mxu0 0.0
    %5140 = vmatpush1.msra.mxu0 0.0
    %5141 = vmatprep.subr.mxu0 0.0
    %5142 = vmatpush1.msra.mxu0 0.0
    %5143 = vmatprep.subr.mxu0 0.0
    %5144 = vmatpush1.msra.mxu0 0.0
    %5145 = vmatprep.subr.mxu0 0.0
    %5146 = vmatpush1.msra.mxu0 0.0
    %5147 = vmatprep.subr.mxu0 0.0
    %5148 = vmatpush1.msra.mxu0 0.0
    %5149 = vmatprep.subr.mxu0 0.0
    %5150 = vmatpush1.msra.mxu0 0.0
    %5151 = vmatprep.subr.mxu0 0.0
    %5152 = vmatpush1.msra.mxu0 0.0
    %5153 = vmatprep.subr.mxu0 0.0
    %5154 = vmatpush1.msra.mxu0 0.0
    %5155 = vmatprep.subr.mxu0 0.0
    %5156 = vmatpush1.msra.mxu0 0.0
    %5157 = vmatprep.subr.mxu0 0.0
    %5158 = vmatpush1.msra.mxu0 0.0
    %5159 = vmatprep.subr.mxu0 0.0
    %5160 = vmatpush1.msra.mxu0 0.0
    %5161 = vmatprep.subr.mxu0 0.0
    %5162 = vmatpush1.msra.mxu0 0.0
    %5163 = vmatprep.subr.mxu0 0.0
    %5164 = vmatpush1.msra.mxu0 0.0
    %5165 = vmatprep.subr.mxu0 0.0
    %5166 = vmatpush1.msra.mxu0 0.0
    %5167 = vmatprep.mubr.f32.mxu0 0.0
    %5168 = vmatmul.mubr.f32.gmra.mrb[0].mxu0 %v5101
    %v5169 = vpop.f32.mrb[0].mxu0
    %v5170 = vadd.f32 %v5097, %v5169
    %v5171 = vpop.f32.mrb[0].mxu0
    %5172 = vdwg.mxu0
    %v5173 = vld [vmem:[%s91] sm:$0xf]
    %v5174 = vlaneseq
    %v5175 = vshrl.u32 %v5174, 7
    %v5176 = vsub.s32 2, %v5175
    %v5177 = vrot.slane %v5173, %v5176
    %v5178 = vsub.f32 %v5170, %v5177
    %v5179 = vadd.f32 %v5173, 1e-05
    %v5180 = vrsqrt.pop %v5179
    %v5181 = vlaneseq
    %v5182 = vshrl.u32 %v5181, 7
    %v5183 = vsub.s32 3, %v5182
    %v5184 = vrot.slane %v5180, %v5183
    %v5185 = vmul.f32 %v5178, %v5184
    %v5186 = vlaneseq
    %v5187 = vshrl.u32 %v5186, 7
    %v5188 = vsub.s32 0, %v5187
    %v5189 = vrot.slane %v5173, %v5188
    %v5190 = vmul.f32 %v5185, %v5189
    %v5191 = vlaneseq
    %v5192 = vshrl.u32 %v5191, 7
    %v5193 = vsub.s32 1, %v5192
    %v5194 = vrot.slane %v5173, %v5193
    %v5195 = vadd.f32 %v5190, %v5194
    %vm5196 = vcmp.gt.f32.partialorder %v5195, 0.0
    %v5197 = vmul.f32 %v5195, 0.25
    %v5198 = vsel %vm5196, %v5195, %v5197
    %v5199 = vld [vmem:[%s93] sm:$0xff]
    %v5200 = vld [vmem:[%s93 + $0x8] sm:$0xff]
    %v5201 = vld [vmem:[%s95] sm:$0x1]
    %v5203 = vlaneseq
    %v5204 = vshrl.u32 %v5203, 7
    %v5205 = vsub.s32 0, %v5204
    %v5206 = vrot.slane %v5201, %v5205
    %vm5208 = vcmask 130048
    %v5210 = vsel %vm5208, %v5198, 0
    %5212 = vmatprep.subr.mxu0 0.0
    %5213 = vmatpush1.msra.mxu0 %v5199
    %5214 = vmatprep.subr.mxu0 0.0
    %5215 = vmatpush1.msra.mxu0 %v5200
    %5216 = vmatprep.subr.mxu0 0.0
    %5217 = vmatpush1.msra.mxu0 0.0
    %5218 = vmatprep.subr.mxu0 0.0
    %5219 = vmatpush1.msra.mxu0 0.0
    %5220 = vmatprep.subr.mxu0 0.0
    %5221 = vmatpush1.msra.mxu0 0.0
    %5222 = vmatprep.subr.mxu0 0.0
    %5223 = vmatpush1.msra.mxu0 0.0
    %5224 = vmatprep.subr.mxu0 0.0
    %5225 = vmatpush1.msra.mxu0 0.0
    %5226 = vmatprep.subr.mxu0 0.0
    %5227 = vmatpush1.msra.mxu0 0.0
    %5228 = vmatprep.subr.mxu0 0.0
    %5229 = vmatpush1.msra.mxu0 0.0
    %5230 = vmatprep.subr.mxu0 0.0
    %5231 = vmatpush1.msra.mxu0 0.0
    %5232 = vmatprep.subr.mxu0 0.0
    %5233 = vmatpush1.msra.mxu0 0.0
    %5234 = vmatprep.subr.mxu0 0.0
    %5235 = vmatpush1.msra.mxu0 0.0
    %5236 = vmatprep.subr.mxu0 0.0
    %5237 = vmatpush1.msra.mxu0 0.0
    %5238 = vmatprep.subr.mxu0 0.0
    %5239 = vmatpush1.msra.mxu0 0.0
    %5240 = vmatprep.subr.mxu0 0.0
    %5241 = vmatpush1.msra.mxu0 0.0
    %5242 = vmatprep.subr.mxu0 0.0
    %5243 = vmatpush1.msra.mxu0 0.0
    %5244 = vmatprep.subr.mxu0 0.0
    %5245 = vmatpush1.msra.mxu0 0.0
    %5246 = vmatprep.subr.mxu0 0.0
    %5247 = vmatpush1.msra.mxu0 0.0
    %5248 = vmatprep.subr.mxu0 0.0
    %5249 = vmatpush1.msra.mxu0 0.0
    %5250 = vmatprep.subr.mxu0 0.0
    %5251 = vmatpush1.msra.mxu0 0.0
    %5252 = vmatprep.subr.mxu0 0.0
    %5253 = vmatpush1.msra.mxu0 0.0
    %5254 = vmatprep.subr.mxu0 0.0
    %5255 = vmatpush1.msra.mxu0 0.0
    %5256 = vmatprep.subr.mxu0 0.0
    %5257 = vmatpush1.msra.mxu0 0.0
    %5258 = vmatprep.subr.mxu0 0.0
    %5259 = vmatpush1.msra.mxu0 0.0
    %5260 = vmatprep.subr.mxu0 0.0
    %5261 = vmatpush1.msra.mxu0 0.0
    %5262 = vmatprep.subr.mxu0 0.0
    %5263 = vmatpush1.msra.mxu0 0.0
    %5264 = vmatprep.subr.mxu0 0.0
    %5265 = vmatpush1.msra.mxu0 0.0
    %5266 = vmatprep.subr.mxu0 0.0
    %5267 = vmatpush1.msra.mxu0 0.0
    %5268 = vmatprep.subr.mxu0 0.0
    %5269 = vmatpush1.msra.mxu0 0.0
    %5270 = vmatprep.subr.mxu0 0.0
    %5271 = vmatpush1.msra.mxu0 0.0
    %5272 = vmatprep.subr.mxu0 0.0
    %5273 = vmatpush1.msra.mxu0 0.0
    %5274 = vmatprep.subr.mxu0 0.0
    %5275 = vmatpush1.msra.mxu0 0.0
    %5276 = vmatprep.mubr.f32.mxu0 0.0
    %5277 = vmatmul.mubr.f32.gmra.mrb[0].mxu0 %v5210
    %v5278 = vpop.f32.mrb[0].mxu0
    %v5279 = vadd.f32 %v5206, %v5278
    %v5280 = vpop.f32.mrb[0].mxu0
    %5281 = vdwg.mxu0
    %vm5282 = vcmask 9216
    %5283 = vst.msk [vmem:[#allocation4] sm:$0x3] %vm5282, %v5279
    // Predicated region
    $region194: #{conv_hier_attention3.1} parent=1 // pred_check
      _
    $region195: #{conv_hier_attention3.1} parent=1 // pred_check_branch
      %5285 = sbr.rel (0) target = $region197
    $region196: #{conv_hier_attention3.1} parent=1 // pred_region
      %s5287 = ssub.s32 32, 32
      %5288 = vsyncadd [#allocation5], %s5287
      %s5290 = sshll.u32 [#allocation4], 4
      %s5291 = int_to_ptr.vmem [resolvable:$true] %s5290
      %5293 = dma.vmem_to_hbm [thread:$0]  %s5291, 32, %s97, [#allocation5]
    $region197: #{conv_hier_attention3.1} parent=1 // pred_fallthru
      _
    // Predicated region
    $region198: #{conv_hier_attention3.1} parent=1 // pred_check
      _
    $region199: #{conv_hier_attention3.1} parent=1 // pred_check_branch
      %5295 = sbr.rel (0) target = $region201
    $region200: #{conv_hier_attention3.1} parent=1 // pred_region
      %s5297 = ssub.s32 256, 256
      %5298 = vsyncadd [#allocation7], %s5297
      %s5299 = sshll.u32 [#allocation6], 4
      %s5300 = int_to_ptr.vmem [resolvable:$true] %s5299
      %5305 = dma.vmem_to_hbm [thread:$0]  %s5300, 256, %s99, [#allocation7], 128, 128, 8
    $region201: #{conv_hier_attention3.1} parent=1 // pred_fallthru
      _
    // Predicated region
    $region202: #{conv_hier_attention3.1} parent=1 // pred_check
      _
    $region203: #{conv_hier_attention3.1} parent=1 // pred_check_branch
      %5307 = sbr.rel (0) target = $region205
    $region204: #{conv_hier_attention3.1} parent=1 // pred_region
      %s5309 = ssub.s32 256, 256
      %5310 = vsyncadd [#allocation7], %s5309
      %s5311 = sshll.u32 [#allocation8], 4
      %s5312 = int_to_ptr.vmem [resolvable:$true] %s5311
      %5317 = dma.vmem_to_hbm [thread:$0]  %s5312, 256, %s101, [#allocation7], 128, 128, 8
    $region205: #{conv_hier_attention3.1} parent=1 // pred_fallthru
      _
    // Predicated region
    $region206: #{conv_hier_attention3.1} parent=1 // pred_check
      _
    $region207: #{conv_hier_attention3.1} parent=1 // pred_check_branch
      %5319 = sbr.rel (0) target = $region209
    $region208: #{conv_hier_attention3.1} parent=1 // pred_region
      %5320 = dma.done [#allocation5], 32
    $region209: #{conv_hier_attention3.1} parent=1 // pred_fallthru
      _
    // Predicated region
    $region210: #{conv_hier_attention3.1} parent=1 // pred_check
      _
    $region211: #{conv_hier_attention3.1} parent=1 // pred_check_branch
      %5322 = sbr.rel (0) target = $region213
    $region212: #{conv_hier_attention3.1} parent=1 // pred_region
      %5323 = dma.done [#allocation7], 256
    $region213: #{conv_hier_attention3.1} parent=1 // pred_fallthru
      _
    // Predicated region
    $region214: #{conv_hier_attention3.1} parent=1 // pred_check
      _
    $region215: #{conv_hier_attention3.1} parent=1 // pred_check_branch
      %5325 = sbr.rel (0) target = $region217
    $region216: #{conv_hier_attention3.1} parent=1 // pred_region
      %5326 = dma.done [#allocation7], 256
    $region217: #{conv_hier_attention3.1} parent=1 // pred_fallthru
      _
    %5327 = vsyncpa [#allocation5], 1
    %5328 = vsyncpa [#allocation7], 1

</llo_original>
